<compile_context>
chip_gen: v5e
topology: v5e:2x2
jax: 0.10.0
libtpu: 0.0.40
codegen_flags: <defaults>
</compile_context>

<pallas_src>
import functools

import jax
import jax.numpy as jnp
from jax import lax
from jax.experimental import pallas as pl
from jax.experimental.pallas import tpu as pltpu


_LN_EPS = 1e-5
_VMEM_LIMIT = 32 * 1024 * 1024   # safe on v5e/v6e (128 MiB) and v7x (64 MiB physical)


def _fold3x3(w):
    """(…, 3, 3, Cin, Cout) -> (…, 9*Cin, Cout). Row order matches the in-kernel
    im2col tap order (dy-major, then dx, then ci)."""
    *lead, kh, kw, ci, co = w.shape
    return w.reshape(*lead, kh * kw * ci, co)


# ---------------------------------------------------------------------------
# In-kernel helpers
# ---------------------------------------------------------------------------

def _im2col_matmul(fp_ref, w9, H, W, C):
    """3x3 stride-1 conv over the zero-padded VMEM scratch `fp_ref` ((H+2, W+2, C),
    bf16), K-folded into ONE MXU matmul with K = 9*C. Returns (H*W, Cout) f32."""
    fp = fp_ref[...]
    cols = [fp[dy:dy + H, dx:dx + W, :] for dy in range(3) for dx in range(3)]
    patches = jnp.concatenate(cols, axis=-1).reshape(H * W, 9 * C)
    return jnp.dot(patches, w9, preferred_element_type=jnp.float32)


def _layernorm(x, gamma, beta):
    mu = jnp.mean(x, axis=-1, keepdims=True)
    var = jnp.mean((x - mu) ** 2, axis=-1, keepdims=True)
    return (x - mu) * lax.rsqrt(var + _LN_EPS) * gamma + beta


# ---------------------------------------------------------------------------
# Kernels
# ---------------------------------------------------------------------------

def _patch_embed_kernel(xp_ref, w_ref, b_ref, g_ref, bt_ref, hx_ref, t_ref, *, C):
    """xian (4x4/4 conv) + PatchEmbed (4x4/4 conv) as one patch matmul (their
    weights concatenated along Cout), PatchEmbed LayerNorm fused as epilogue."""
    y = jnp.dot(xp_ref[...], w_ref[...],
                preferred_element_type=jnp.float32) + b_ref[...]
    hx_ref[...] = y[:, :C].astype(hx_ref.dtype)                  # xian tokens
    t_ref[...] = _layernorm(y[:, C:], g_ref[...], bt_ref[...]).astype(t_ref.dtype)


def _content_extractor_kernel(x_ref, hw_ref, hb_ref, w1_ref, b1_ref, w2_ref, b2_ref,
                              o_ref, fp_ref, acc_ref, hbuf_ref, *, H, W, C, nb):
    """Fully fused ContentExtractor: head conv + LeakyReLU(0.1) + nb ResBlocks +
    both residual adds. Feature map + all weights stay VMEM-resident."""
    # Zero the padded scratch once; every conv only rewrites the interior.
    fp_ref[...] = jnp.zeros_like(fp_ref)

    def set_interior(v2d):                                       # v2d: (H*W, C) f32
        fp_ref[1:H + 1, 1:W + 1, :] = v2d.reshape(H, W, C).astype(fp_ref.dtype)

    # head: conv3x3 + LeakyReLU(0.1)
    fp_ref[1:H + 1, 1:W + 1, :] = x_ref[...].astype(fp_ref.dtype)
    h = _im2col_matmul(fp_ref, hw_ref[...], H, W, C) + hb_ref[...]
    h = jnp.where(h >= 0.0, h, 0.1 * h)
    hbuf_ref[...] = h
    acc_ref[...] = h

    # body: nb ResBlocks; weights indexed dynamically from the stacked arrays.
    def block(blk, carry):
        cur = acc_ref[...]
        set_interior(cur)
        r = _im2col_matmul(fp_ref, w1_ref[blk], H, W, C) + b1_ref[blk]
        r = jnp.maximum(r, 0.0)                                  # ReLU
        set_interior(r)
        r = _im2col_matmul(fp_ref, w2_ref[blk], H, W, C) + b2_ref[blk]
        acc_ref[...] = cur + r                                   # ResBlock residual
        return carry

    lax.fori_loop(0, nb, block, 0)

    # ContentExtractor residual: body(h) + h
    o_ref[...] = (acc_ref[...] + hbuf_ref[...]).reshape(H, W, C).astype(o_ref.dtype)


def _concat_conv_kernel(*refs, H, W, C, with_norm):
    """conv3x3(cat((a, b), channel)) done as split-K (no concat materialized).
    When `with_norm`, also emits LayerNorm of the flattened output (= self.norm)."""
    if with_norm:
        (a_ref, b_ref, wa_ref, wb_ref, bias_ref, g_ref, bt_ref,
         xc_ref, t_ref, fp_ref) = refs
    else:
        a_ref, b_ref, wa_ref, wb_ref, bias_ref, xc_ref, fp_ref = refs

    fp_ref[...] = jnp.zeros_like(fp_ref)
    fp_ref[1:H + 1, 1:W + 1, :] = a_ref[...].astype(fp_ref.dtype)
    acc = _im2col_matmul(fp_ref, wa_ref[...], H, W, C)
    fp_ref[1:H + 1, 1:W + 1, :] = b_ref[...].astype(fp_ref.dtype)
    acc = acc + _im2col_matmul(fp_ref, wb_ref[...], H, W, C) + bias_ref[...]

    xc_ref[...] = acc.reshape(H, W, C).astype(xc_ref.dtype)
    if with_norm:
        t_ref[...] = _layernorm(acc, g_ref[...], bt_ref[...]).astype(t_ref.dtype)


# ---------------------------------------------------------------------------
# pallas_call wrappers (one grid step per batch element)
# ---------------------------------------------------------------------------

def fused_patch_embed(x_nhwc, wx, bx, wp, bp, gamma, beta):
    """Patchify once; run xian + PatchEmbed as one matmul (N = 2C) with the
    PatchEmbed LayerNorm fused. Returns (xian tokens, normed patch-embed tokens),
    both (B, Np, C) f32, Np in (h, w) row-major order."""
    B, H, W, Cin = x_nhwc.shape
    C = wx.shape[-1]
    H4, W4 = H // 4, W // 4
    Np = H4 * W4
    K = 16 * Cin
    xp = (x_nhwc.reshape(B, H4, 4, W4, 4, Cin)
                .transpose(0, 1, 3, 2, 4, 5)
                .reshape(B, Np, K)).astype(jnp.bfloat16)
    w = jnp.concatenate([wx.reshape(K, C), wp.reshape(K, C)],
                        axis=-1).astype(jnp.bfloat16)            # (K, 2C)
    b = jnp.concatenate([bx, bp]).reshape(1, 2 * C)

    return pl.pallas_call(
        functools.partial(_patch_embed_kernel, C=C),
        out_shape=(jax.ShapeDtypeStruct((B, Np, C), jnp.float32),
                   jax.ShapeDtypeStruct((B, Np, C), jnp.float32)),
        grid=(B,),
        in_specs=[
            pl.BlockSpec((None, Np, K), lambda n: (n, 0, 0)),
            pl.BlockSpec((K, 2 * C), lambda n: (0, 0)),
            pl.BlockSpec((1, 2 * C), lambda n: (0, 0)),
            pl.BlockSpec((1, C), lambda n: (0, 0)),
            pl.BlockSpec((1, C), lambda n: (0, 0)),
        ],
        out_specs=(pl.BlockSpec((None, Np, C), lambda n: (n, 0, 0)),
                   pl.BlockSpec((None, Np, C), lambda n: (n, 0, 0))),
        compiler_params=pltpu.CompilerParams(
            dimension_semantics=("parallel",), vmem_limit_bytes=_VMEM_LIMIT),
    )(xp, w, b, gamma.reshape(1, C), beta.reshape(1, C))


def content_extractor_fused(x, p):
    """x: (B, H, W, C) f32. One pallas_call for the whole ContentExtractor."""
    B, H, W, C = x.shape
    nb = p["w1"].shape[0]
    hw9 = _fold3x3(p["head_w"]).astype(jnp.bfloat16)             # (9C, C)
    bw1 = _fold3x3(p["w1"]).astype(jnp.bfloat16)                 # (nb, 9C, C)
    bw2 = _fold3x3(p["w2"]).astype(jnp.bfloat16)
    hb = p["head_b"].reshape(1, C)
    bb1 = p["b1"].reshape(nb, 1, C)
    bb2 = p["b2"].reshape(nb, 1, C)

    return pl.pallas_call(
        functools.partial(_content_extractor_kernel, H=H, W=W, C=C, nb=nb),
        out_shape=jax.ShapeDtypeStruct((B, H, W, C), jnp.float32),
        grid=(B,),
        in_specs=[
            pl.BlockSpec((None, H, W, C), lambda n: (n, 0, 0, 0)),
            pl.BlockSpec((9 * C, C), lambda n: (0, 0)),
            pl.BlockSpec((1, C), lambda n: (0, 0)),
            pl.BlockSpec((nb, 9 * C, C), lambda n: (0, 0, 0)),
            pl.BlockSpec((nb, 1, C), lambda n: (0, 0, 0)),
            pl.BlockSpec((nb, 9 * C, C), lambda n: (0, 0, 0)),
            pl.BlockSpec((nb, 1, C), lambda n: (0, 0, 0)),
        ],
        out_specs=pl.BlockSpec((None, H, W, C), lambda n: (n, 0, 0, 0)),
        scratch_shapes=[
            pltpu.VMEM((H + 2, W + 2, C), jnp.bfloat16),   # padded feature (halo in VMEM)
            pltpu.VMEM((H * W, C), jnp.float32),           # running feature map
            pltpu.VMEM((H * W, C), jnp.float32),           # head output (final residual)
        ],
        compiler_params=pltpu.CompilerParams(
            dimension_semantics=("parallel",), vmem_limit_bytes=_VMEM_LIMIT),
    )(x, hw9, hb, bw1, bb1, bw2, bb2)


def concat_conv(a, b, w, bias, norm_scale=None, norm_bias=None):
    """conv3x3 over cat((a, b), channel) without materializing the concat.
    a, b: (B, H, W, C) f32; w: (3, 3, 2C, C) HWIO.  Optionally also returns
    LayerNorm of the flattened output tokens (fuses `self.norm`)."""
    B, H, W, C = a.shape
    wa = _fold3x3(w[:, :, :C, :]).astype(jnp.bfloat16)           # applies to `a`
    wb = _fold3x3(w[:, :, C:, :]).astype(jnp.bfloat16)           # applies to `b`
    bias2 = bias.reshape(1, C)
    with_norm = norm_scale is not None

    in_specs = [
        pl.BlockSpec((None, H, W, C), lambda n: (n, 0, 0, 0)),
        pl.BlockSpec((None, H, W, C), lambda n: (n, 0, 0, 0)),
        pl.BlockSpec((9 * C, C), lambda n: (0, 0)),
        pl.BlockSpec((9 * C, C), lambda n: (0, 0)),
        pl.BlockSpec((1, C), lambda n: (0, 0)),
    ]
    inputs = [a, b, wa, wb, bias2]
    if with_norm:
        in_specs += [pl.BlockSpec((1, C), lambda n: (0, 0)),
                     pl.BlockSpec((1, C), lambda n: (0, 0))]
        inputs += [norm_scale.reshape(1, C), norm_bias.reshape(1, C)]
        out_shape = (jax.ShapeDtypeStruct((B, H, W, C), jnp.float32),
                     jax.ShapeDtypeStruct((B, H * W, C), jnp.float32))
        out_specs = (pl.BlockSpec((None, H, W, C), lambda n: (n, 0, 0, 0)),
                     pl.BlockSpec((None, H * W, C), lambda n: (n, 0, 0)))
    else:
        out_shape = jax.ShapeDtypeStruct((B, H, W, C), jnp.float32)
        out_specs = pl.BlockSpec((None, H, W, C), lambda n: (n, 0, 0, 0))

    return pl.pallas_call(
        functools.partial(_concat_conv_kernel, H=H, W=W, C=C, with_norm=with_norm),
        out_shape=out_shape,
        grid=(B,),
        in_specs=in_specs,
        out_specs=out_specs,
        scratch_shapes=[pltpu.VMEM((H + 2, W + 2, C), jnp.bfloat16)],
        compiler_params=pltpu.CompilerParams(
            dimension_semantics=("parallel",), vmem_limit_bytes=_VMEM_LIMIT),
    )(*inputs)


# ---------------------------------------------------------------------------
# Model forward
# ---------------------------------------------------------------------------

def last_model_forward(params, x_nchw):
    """Forward of last_model. Input/output are NCHW (PyTorch convention)."""
    x = jnp.transpose(x_nchw, (0, 2, 3, 1)).astype(jnp.float32)  # -> NHWC
    B, H, W, _ = x.shape
    C = params["xian_w"].shape[-1]
    H4, W4 = H // 4, W // 4

    # h = self.xian(x) ; x = self.patch_embed(x)  (fused into one kernel)
    h_tok, t = fused_patch_embed(x, params["xian_w"], params["xian_b"],
                                 params["pe_w"], params["pe_b"],
                                 params["pe_ng"], params["pe_nb"])

    # h = self.content_extractor(h)
    h = content_extractor_fused(h_tok.reshape(B, H4, W4, C), params["ce1"])

    # x = self.st1(x)   TODO(synk): Swin stage source unavailable -> identity stub
    xs = t.reshape(B, H4, W4, C)

    # x = self.concat1(cat(x, h));  self.norm(flatten(x)) fused as 2nd output
    xc, t2 = concat_conv(xs, h, params["cat1_w"], params["cat1_b"],
                         norm_scale=params["norm_g"], norm_bias=params["norm_b"])

    # h = self.content_extractor2(x)
    h2 = content_extractor_fused(xc, params["ce2"])

    # x = self.st2(norm(flatten(x)))   TODO(synk): identity stub
    xs2 = t2.reshape(B, H4, W4, C)

    # x = self.concat2(cat(x, h))
    out = concat_conv(xs2, h2, params["cat2_w"], params["cat2_b"])
    return jnp.transpose(out, (0, 3, 1, 2))                      # -> NCHW


# ---------------------------------------------------------------------------
# Deterministic parameter init (shapes from the module __init__; HWIO layout —
# a real PyTorch-weight import would need an OIHW -> HWIO transpose)
# ---------------------------------------------------------------------------

def init_params(key, C=32, in_chans=3, n_blocks=15):
    keys = iter(jax.random.split(key, 32))

    def w(shape, scale=0.05):
        return scale * jax.random.normal(next(keys), shape, jnp.float32)

    def zeros(shape):
        return jnp.zeros(shape, jnp.float32)

    def ce():
        return {
            "head_w": w((3, 3, C, C)), "head_b": zeros((C,)),
            "w1": w((n_blocks, 3, 3, C, C)), "b1": zeros((n_blocks, C)),
            "w2": w((n_blocks, 3, 3, C, C)), "b2": zeros((n_blocks, C)),
        }

    return {
        "xian_w": w((4, 4, in_chans, C)), "xian_b": zeros((C,)),
        "pe_w": w((4, 4, in_chans, C)), "pe_b": zeros((C,)),
        "pe_ng": jnp.ones((C,), jnp.float32), "pe_nb": zeros((C,)),
        "norm_g": jnp.ones((C,), jnp.float32), "norm_b": zeros((C,)),
        "cat1_w": w((3, 3, 2 * C, C)), "cat1_b": zeros((C,)),
        "cat2_w": w((3, 3, 2 * C, C)), "cat2_b": zeros((C,)),
        "ce1": ce(),
        "ce2": ce(),
    }


if __name__ == "__main__":
    key = jax.random.PRNGKey(0)
    pkey, xkey = jax.random.split(key)

    C = 32            # embed_dim (small stand-in for 64)
    img = 32          # small stand-in for img_size=480 (divisible by patch_size=4)
    params = init_params(pkey, C=C, in_chans=3, n_blocks=15)

    x = jax.random.normal(xkey, (2, 3, img, img), jnp.float32)   # NCHW input

    fwd = jax.jit(last_model_forward)
    out = fwd(params, x)
    out = jax.block_until_ready(out)

    assert out.shape == (2, C, img // 4, img // 4), out.shape
    assert bool(jnp.all(jnp.isfinite(out)))
    print("KERNEL_OK")
</pallas_src>

<mosaic_0001>
module attributes {stable_mosaic.version = 11 : i64} {
  func.func @_patch_embed_kernel(%arg0: i32, %arg1: memref<1x64x48xbf16, #tpu.memory_space<vmem>>, %arg2: memref<48x64xbf16, #tpu.memory_space<vmem>>, %arg3: memref<1x64xf32, #tpu.memory_space<vmem>>, %arg4: memref<1x32xf32, #tpu.memory_space<vmem>>, %arg5: memref<1x32xf32, #tpu.memory_space<vmem>>, %arg6: memref<1x64x32xf32, #tpu.memory_space<vmem>>, %arg7: memref<1x64x32xf32, #tpu.memory_space<vmem>>) attributes {dimension_semantics = [#tpu.dimension_semantics<parallel>], iteration_bounds = array<i64: 2>, scalar_prefetch = 0 : i64, scratch_operands = 0 : i64, tpu.core_type = #tpu.core_type<tc>, window_params = [{transform_indices = @transform_0, window_bounds = array<i64: 1, 64, 48>}, {pipeline_mode = #tpu.pipeline_mode<synchronous>, transform_indices = @transform_1, window_bounds = array<i64: 48, 64>}, {pipeline_mode = #tpu.pipeline_mode<synchronous>, transform_indices = @transform_2, window_bounds = array<i64: 1, 64>}, {pipeline_mode = #tpu.pipeline_mode<synchronous>, transform_indices = @transform_3, window_bounds = array<i64: 1, 32>}, {pipeline_mode = #tpu.pipeline_mode<synchronous>, transform_indices = @transform_4, window_bounds = array<i64: 1, 32>}, {transform_indices = @transform_5, window_bounds = array<i64: 1, 64, 32>}, {transform_indices = @transform_6, window_bounds = array<i64: 1, 64, 32>}]} {
    %c0 = arith.constant 0 : index
    %c0_0 = arith.constant 0 : index
    %c0_1 = arith.constant 0 : index
    %0 = vector.load %arg1[%c0, %c0_0, %c0_1] : memref<1x64x48xbf16, #tpu.memory_space<vmem>>, vector<1x64x48xbf16>
    %1 = vector.shape_cast %0 : vector<1x64x48xbf16> to vector<64x48xbf16>
    %c0_2 = arith.constant 0 : index
    %c0_3 = arith.constant 0 : index
    %2 = vector.load %arg2[%c0_2, %c0_3] : memref<48x64xbf16, #tpu.memory_space<vmem>>, vector<48x64xbf16>
    %cst = arith.constant dense<0.000000e+00> : vector<64x64xf32>
    %3 = tpu.matmul %1, %2, %cst {dimension_numbers = #tpu.dot_dimension_numbers<[1], [0], [0], [1], [0, 0, 1, 1], [], []>} : vector<64x48xbf16>, vector<48x64xbf16>, vector<64x64xf32> -> vector<64x64xf32>
    %c0_4 = arith.constant 0 : index
    %c0_5 = arith.constant 0 : index
    %4 = vector.load %arg3[%c0_4, %c0_5] : memref<1x64xf32, #tpu.memory_space<vmem>>, vector<1x64xf32>
    %5 = vector.broadcast %4 : vector<1x64xf32> to vector<64x64xf32>
    %6 = arith.addf %3, %5 : vector<64x64xf32>
    %7 = vector.extract_strided_slice %6 {offsets = [0, 0], sizes = [64, 32], strides = [1, 1]} : vector<64x64xf32> to vector<64x32xf32>
    %c0_6 = arith.constant 0 : index
    %c0_7 = arith.constant 0 : index
    %c0_8 = arith.constant 0 : index
    %8 = vector.load %arg6[%c0_6, %c0_7, %c0_8] : memref<1x64x32xf32, #tpu.memory_space<vmem>>, vector<1x64x32xf32>
    %9 = vector.shape_cast %8 : vector<1x64x32xf32> to vector<64x32xf32>
    %10 = vector.shape_cast %7 : vector<64x32xf32> to vector<1x64x32xf32>
    tpu.vector_store %arg6[%c0_6, %c0_7, %c0_8], %10 {strides = array<i32>} : memref<1x64x32xf32, #tpu.memory_space<vmem>>, vector<1x64x32xf32>,
    %11 = vector.extract_strided_slice %6 {offsets = [0, 32], sizes = [64, 32], strides = [1, 1]} : vector<64x64xf32> to vector<64x32xf32>
    %c0_9 = arith.constant 0 : index
    %c0_10 = arith.constant 0 : index
    %12 = vector.load %arg4[%c0_9, %c0_10] : memref<1x32xf32, #tpu.memory_space<vmem>>, vector<1x32xf32>
    %c0_11 = arith.constant 0 : index
    %c0_12 = arith.constant 0 : index
    %13 = vector.load %arg5[%c0_11, %c0_12] : memref<1x32xf32, #tpu.memory_space<vmem>>, vector<1x32xf32>
    %cst_13 = arith.constant dense<0.000000e+00> : vector<64xf32>
    %14 = vector.multi_reduction <add>, %11, %cst_13 [1] : vector<64x32xf32> to vector<64xf32>
    %15 = vector.shape_cast %14 : vector<64xf32> to vector<64x1xf32>
    %cst_14 = arith.constant 3.200000e+01 : f32
    %16 = vector.broadcast %cst_14 : f32 to vector<64x1xf32>
    %17 = arith.divf %15, %16 : vector<64x1xf32>
    %18 = vector.broadcast %17 : vector<64x1xf32> to vector<64x32xf32>
    %19 = arith.subf %11, %18 : vector<64x32xf32>
    %20 = arith.mulf %19, %19 : vector<64x32xf32>
    %cst_15 = arith.constant dense<0.000000e+00> : vector<64xf32>
    %21 = vector.multi_reduction <add>, %20, %cst_15 [1] : vector<64x32xf32> to vector<64xf32>
    %22 = vector.shape_cast %21 : vector<64xf32> to vector<64x1xf32>
    %cst_16 = arith.constant 3.200000e+01 : f32
    %23 = vector.broadcast %cst_16 : f32 to vector<64x1xf32>
    %24 = arith.divf %22, %23 : vector<64x1xf32>
    %25 = vector.broadcast %17 : vector<64x1xf32> to vector<64x32xf32>
    %26 = arith.subf %11, %25 : vector<64x32xf32>
    %cst_17 = arith.constant 9.99999974E-6 : f32
    %27 = vector.broadcast %cst_17 : f32 to vector<64x1xf32>
    %28 = arith.addf %24, %27 : vector<64x1xf32>
    %29 = math.rsqrt %28 : vector<64x1xf32>
    %30 = vector.broadcast %29 : vector<64x1xf32> to vector<64x32xf32>
    %31 = arith.mulf %26, %30 : vector<64x32xf32>
    %32 = vector.broadcast %12 : vector<1x32xf32> to vector<64x32xf32>
    %33 = arith.mulf %31, %32 : vector<64x32xf32>
    %34 = vector.broadcast %13 : vector<1x32xf32> to vector<64x32xf32>
    %35 = arith.addf %33, %34 : vector<64x32xf32>
    %c0_18 = arith.constant 0 : index
    %c0_19 = arith.constant 0 : index
    %c0_20 = arith.constant 0 : index
    %36 = vector.load %arg7[%c0_18, %c0_19, %c0_20] : memref<1x64x32xf32, #tpu.memory_space<vmem>>, vector<1x64x32xf32>
    %37 = vector.shape_cast %36 : vector<1x64x32xf32> to vector<64x32xf32>
    %38 = vector.shape_cast %35 : vector<64x32xf32> to vector<1x64x32xf32>
    tpu.vector_store %arg7[%c0_18, %c0_19, %c0_20], %38 {strides = array<i32>} : memref<1x64x32xf32, #tpu.memory_space<vmem>>, vector<1x64x32xf32>,
    return
  }
  func.func @transform_0(%arg0: i32) -> (i32, i32, i32) {
    %c0_i32 = arith.constant 0 : i32
    %c0_i32_0 = arith.constant 0 : i32
    %c0_i32_1 = arith.constant 0 : i32
    return %arg0, %c0_i32, %c0_i32_0 : i32, i32, i32
  }
  func.func @transform_1(%arg0: i32) -> (i32, i32) {
    %c0_i32 = arith.constant 0 : i32
    %c0_i32_0 = arith.constant 0 : i32
    %c0_i32_1 = arith.constant 0 : i32
    return %c0_i32, %c0_i32_0 : i32, i32
  }
  func.func @transform_2(%arg0: i32) -> (i32, i32) {
    %c0_i32 = arith.constant 0 : i32
    %c0_i32_0 = arith.constant 0 : i32
    %c0_i32_1 = arith.constant 0 : i32
    return %c0_i32, %c0_i32_0 : i32, i32
  }
  func.func @transform_3(%arg0: i32) -> (i32, i32) {
    %c0_i32 = arith.constant 0 : i32
    %c0_i32_0 = arith.constant 0 : i32
    %c0_i32_1 = arith.constant 0 : i32
    return %c0_i32, %c0_i32_0 : i32, i32
  }
  func.func @transform_4(%arg0: i32) -> (i32, i32) {
    %c0_i32 = arith.constant 0 : i32
    %c0_i32_0 = arith.constant 0 : i32
    %c0_i32_1 = arith.constant 0 : i32
    return %c0_i32, %c0_i32_0 : i32, i32
  }
  func.func @transform_5(%arg0: i32) -> (i32, i32, i32) {
    %c0_i32 = arith.constant 0 : i32
    %c0_i32_0 = arith.constant 0 : i32
    %c0_i32_1 = arith.constant 0 : i32
    return %arg0, %c0_i32, %c0_i32_0 : i32, i32, i32
  }
  func.func @transform_6(%arg0: i32) -> (i32, i32, i32) {
    %c0_i32 = arith.constant 0 : i32
    %c0_i32_0 = arith.constant 0 : i32
    %c0_i32_1 = arith.constant 0 : i32
    return %arg0, %c0_i32, %c0_i32_0 : i32, i32, i32
  }
}

module attributes {stable_mosaic.version = 11 : i64} {
  func.func @_content_extractor_kernel(%arg0: i32, %arg1: memref<1x8x8x32xf32, #tpu.memory_space<vmem>>, %arg2: memref<288x32xbf16, #tpu.memory_space<vmem>>, %arg3: memref<1x32xf32, #tpu.memory_space<vmem>>, %arg4: memref<15x288x32xbf16, #tpu.memory_space<vmem>>, %arg5: memref<15x1x32xf32, #tpu.memory_space<vmem>>, %arg6: memref<15x288x32xbf16, #tpu.memory_space<vmem>>, %arg7: memref<15x1x32xf32, #tpu.memory_space<vmem>>, %arg8: memref<1x8x8x32xf32, #tpu.memory_space<vmem>>, %arg9: memref<10x10x32xbf16, #tpu.memory_space<vmem>>, %arg10: memref<64x32xf32, #tpu.memory_space<vmem>>, %arg11: memref<64x32xf32, #tpu.memory_space<vmem>>) attributes {dimension_semantics = [#tpu.dimension_semantics<parallel>], iteration_bounds = array<i64: 2>, scalar_prefetch = 0 : i64, scratch_operands = 3 : i64, tpu.core_type = #tpu.core_type<tc>, window_params = [{transform_indices = @transform_0, window_bounds = array<i64: 1, 8, 8, 32>}, {pipeline_mode = #tpu.pipeline_mode<synchronous>, transform_indices = @transform_1, window_bounds = array<i64: 288, 32>}, {pipeline_mode = #tpu.pipeline_mode<synchronous>, transform_indices = @transform_2, window_bounds = array<i64: 1, 32>}, {pipeline_mode = #tpu.pipeline_mode<synchronous>, transform_indices = @transform_3, window_bounds = array<i64: 15, 288, 32>}, {pipeline_mode = #tpu.pipeline_mode<synchronous>, transform_indices = @transform_4, window_bounds = array<i64: 15, 1, 32>}, {pipeline_mode = #tpu.pipeline_mode<synchronous>, transform_indices = @transform_5, window_bounds = array<i64: 15, 288, 32>}, {pipeline_mode = #tpu.pipeline_mode<synchronous>, transform_indices = @transform_6, window_bounds = array<i64: 15, 1, 32>}, {transform_indices = @transform_7, window_bounds = array<i64: 1, 8, 8, 32>}]} {
    %cst = arith.constant 0.000000e+00 : bf16
    %0 = vector.broadcast %cst : bf16 to vector<10x10x32xbf16>
    %c0 = arith.constant 0 : index
    %c0_0 = arith.constant 0 : index
    %c0_1 = arith.constant 0 : index
    %1 = vector.load %arg9[%c0, %c0_0, %c0_1] : memref<10x10x32xbf16, #tpu.memory_space<vmem>>, vector<10x10x32xbf16>
    tpu.vector_store %arg9[%c0, %c0_0, %c0_1], %0 {strides = array<i32>} : memref<10x10x32xbf16, #tpu.memory_space<vmem>>, vector<10x10x32xbf16>,
    %c0_2 = arith.constant 0 : index
    %c0_3 = arith.constant 0 : index
    %c0_4 = arith.constant 0 : index
    %c0_5 = arith.constant 0 : index
    %2 = vector.load %arg1[%c0_2, %c0_3, %c0_4, %c0_5] : memref<1x8x8x32xf32, #tpu.memory_space<vmem>>, vector<1x8x8x32xf32>
    %3 = vector.shape_cast %2 : vector<1x8x8x32xf32> to vector<8x8x32xf32>
    %4 = arith.truncf %3 : vector<8x8x32xf32> to vector<8x8x32xbf16>
    %c1 = arith.constant 1 : index
    %c1_6 = arith.constant 1 : index
    %c0_7 = arith.constant 0 : index
    %5 = vector.load %arg9[%c1, %c1_6, %c0_7] : memref<10x10x32xbf16, #tpu.memory_space<vmem>>, vector<8x8x32xbf16>
    tpu.vector_store %arg9[%c1, %c1_6, %c0_7], %4 {strides = array<i32>} : memref<10x10x32xbf16, #tpu.memory_space<vmem>>, vector<8x8x32xbf16>,
    %c0_8 = arith.constant 0 : index
    %c0_9 = arith.constant 0 : index
    %6 = vector.load %arg2[%c0_8, %c0_9] : memref<288x32xbf16, #tpu.memory_space<vmem>>, vector<288x32xbf16>
    %c0_10 = arith.constant 0 : index
    %c0_11 = arith.constant 0 : index
    %c0_12 = arith.constant 0 : index
    %7 = vector.load %arg9[%c0_10, %c0_11, %c0_12] : memref<10x10x32xbf16, #tpu.memory_space<vmem>>, vector<10x10x32xbf16>
    %8 = vector.extract_strided_slice %7 {offsets = [0, 0, 0], sizes = [8, 8, 32], strides = [1, 1, 1]} : vector<10x10x32xbf16> to vector<8x8x32xbf16>
    %9 = vector.extract_strided_slice %7 {offsets = [0, 1, 0], sizes = [8, 8, 32], strides = [1, 1, 1]} : vector<10x10x32xbf16> to vector<8x8x32xbf16>
    %10 = vector.extract_strided_slice %7 {offsets = [0, 2, 0], sizes = [8, 8, 32], strides = [1, 1, 1]} : vector<10x10x32xbf16> to vector<8x8x32xbf16>
    %11 = vector.extract_strided_slice %7 {offsets = [1, 0, 0], sizes = [8, 8, 32], strides = [1, 1, 1]} : vector<10x10x32xbf16> to vector<8x8x32xbf16>
    %12 = vector.extract_strided_slice %7 {offsets = [1, 1, 0], sizes = [8, 8, 32], strides = [1, 1, 1]} : vector<10x10x32xbf16> to vector<8x8x32xbf16>
    %13 = vector.extract_strided_slice %7 {offsets = [1, 2, 0], sizes = [8, 8, 32], strides = [1, 1, 1]} : vector<10x10x32xbf16> to vector<8x8x32xbf16>
    %14 = vector.extract_strided_slice %7 {offsets = [2, 0, 0], sizes = [8, 8, 32], strides = [1, 1, 1]} : vector<10x10x32xbf16> to vector<8x8x32xbf16>
    %15 = vector.extract_strided_slice %7 {offsets = [2, 1, 0], sizes = [8, 8, 32], strides = [1, 1, 1]} : vector<10x10x32xbf16> to vector<8x8x32xbf16>
    %16 = vector.extract_strided_slice %7 {offsets = [2, 2, 0], sizes = [8, 8, 32], strides = [1, 1, 1]} : vector<10x10x32xbf16> to vector<8x8x32xbf16>
    %17 = tpu.concatenate %8, %9, %10, %11, %12, %13, %14, %15, %16 in 2 : vector<8x8x32xbf16>, vector<8x8x32xbf16>, vector<8x8x32xbf16>, vector<8x8x32xbf16>, vector<8x8x32xbf16>, vector<8x8x32xbf16>, vector<8x8x32xbf16>, vector<8x8x32xbf16>, vector<8x8x32xbf16> -> vector<8x8x288xbf16>
    %18 = vector.shape_cast %17 : vector<8x8x288xbf16> to vector<64x288xbf16>
    %cst_13 = arith.constant dense<0.000000e+00> : vector<64x32xf32>
    %19 = tpu.matmul %18, %6, %cst_13 {dimension_numbers = #tpu.dot_dimension_numbers<[1], [0], [0], [1], [0, 0, 1, 1], [], []>} : vector<64x288xbf16>, vector<288x32xbf16>, vector<64x32xf32> -> vector<64x32xf32>
    %c0_14 = arith.constant 0 : index
    %c0_15 = arith.constant 0 : index
    %20 = vector.load %arg3[%c0_14, %c0_15] : memref<1x32xf32, #tpu.memory_space<vmem>>, vector<1x32xf32>
    %21 = vector.broadcast %20 : vector<1x32xf32> to vector<64x32xf32>
    %22 = arith.addf %19, %21 : vector<64x32xf32>
    %cst_16 = arith.constant 0.000000e+00 : f32
    %23 = vector.broadcast %cst_16 : f32 to vector<64x32xf32>
    %24 = arith.cmpf oge, %22, %23 : vector<64x32xf32>
    %cst_17 = arith.constant 1.000000e-01 : f32
    %25 = vector.broadcast %cst_17 : f32 to vector<64x32xf32>
    %26 = arith.mulf %25, %22 : vector<64x32xf32>
    %27 = arith.select %24, %22, %26 : vector<64x32xi1>, vector<64x32xf32>
    %c0_18 = arith.constant 0 : index
    %c0_19 = arith.constant 0 : index
    %28 = vector.load %arg11[%c0_18, %c0_19] : memref<64x32xf32, #tpu.memory_space<vmem>>, vector<64x32xf32>
    tpu.vector_store %arg11[%c0_18, %c0_19], %27 {strides = array<i32>} : memref<64x32xf32, #tpu.memory_space<vmem>>, vector<64x32xf32>,
    %c0_20 = arith.constant 0 : index
    %c0_21 = arith.constant 0 : index
    %29 = vector.load %arg10[%c0_20, %c0_21] : memref<64x32xf32, #tpu.memory_space<vmem>>, vector<64x32xf32>
    tpu.vector_store %arg10[%c0_20, %c0_21], %27 {strides = array<i32>} : memref<64x32xf32, #tpu.memory_space<vmem>>, vector<64x32xf32>,
    %c0_i32 = arith.constant 0 : i32
    %c15_i32 = arith.constant 15 : i32
    %30 = arith.addi %c0_i32, %c15_i32 : i32
    %c1_i32 = arith.constant 1 : i32
    scf.for %arg12 = %c0_i32 to %30 step %c1_i32  : i32 {
      %c0_31 = arith.constant 0 : index
      %c0_32 = arith.constant 0 : index
      %38 = vector.load %arg10[%c0_31, %c0_32] : memref<64x32xf32, #tpu.memory_space<vmem>>, vector<64x32xf32>
      %39 = vector.shape_cast %38 : vector<64x32xf32> to vector<8x8x32xf32>
      %40 = arith.truncf %39 : vector<8x8x32xf32> to vector<8x8x32xbf16>
      %c1_33 = arith.constant 1 : index
      %c1_34 = arith.constant 1 : index
      %c0_35 = arith.constant 0 : index
      %41 = vector.load %arg9[%c1_33, %c1_34, %c0_35] : memref<10x10x32xbf16, #tpu.memory_space<vmem>>, vector<8x8x32xbf16>
      tpu.vector_store %arg9[%c1_33, %c1_34, %c0_35], %40 {strides = array<i32>} : memref<10x10x32xbf16, #tpu.memory_space<vmem>>, vector<8x8x32xbf16>,
      %42 = arith.index_cast %arg12 : i32 to index
      %c0_36 = arith.constant 0 : index
      %c0_37 = arith.constant 0 : index
      %43 = vector.load %arg4[%42, %c0_36, %c0_37] : memref<15x288x32xbf16, #tpu.memory_space<vmem>>, vector<1x288x32xbf16>
      %44 = vector.shape_cast %43 : vector<1x288x32xbf16> to vector<288x32xbf16>
      %c0_38 = arith.constant 0 : index
      %c0_39 = arith.constant 0 : index
      %c0_40 = arith.constant 0 : index
      %45 = vector.load %arg9[%c0_38, %c0_39, %c0_40] : memref<10x10x32xbf16, #tpu.memory_space<vmem>>, vector<10x10x32xbf16>
      %46 = vector.extract_strided_slice %45 {offsets = [0, 0, 0], sizes = [8, 8, 32], strides = [1, 1, 1]} : vector<10x10x32xbf16> to vector<8x8x32xbf16>
      %47 = vector.extract_strided_slice %45 {offsets = [0, 1, 0], sizes = [8, 8, 32], strides = [1, 1, 1]} : vector<10x10x32xbf16> to vector<8x8x32xbf16>
      %48 = vector.extract_strided_slice %45 {offsets = [0, 2, 0], sizes = [8, 8, 32], strides = [1, 1, 1]} : vector<10x10x32xbf16> to vector<8x8x32xbf16>
      %49 = vector.extract_strided_slice %45 {offsets = [1, 0, 0], sizes = [8, 8, 32], strides = [1, 1, 1]} : vector<10x10x32xbf16> to vector<8x8x32xbf16>
      %50 = vector.extract_strided_slice %45 {offsets = [1, 1, 0], sizes = [8, 8, 32], strides = [1, 1, 1]} : vector<10x10x32xbf16> to vector<8x8x32xbf16>
      %51 = vector.extract_strided_slice %45 {offsets = [1, 2, 0], sizes = [8, 8, 32], strides = [1, 1, 1]} : vector<10x10x32xbf16> to vector<8x8x32xbf16>
      %52 = vector.extract_strided_slice %45 {offsets = [2, 0, 0], sizes = [8, 8, 32], strides = [1, 1, 1]} : vector<10x10x32xbf16> to vector<8x8x32xbf16>
      %53 = vector.extract_strided_slice %45 {offsets = [2, 1, 0], sizes = [8, 8, 32], strides = [1, 1, 1]} : vector<10x10x32xbf16> to vector<8x8x32xbf16>
      %54 = vector.extract_strided_slice %45 {offsets = [2, 2, 0], sizes = [8, 8, 32], strides = [1, 1, 1]} : vector<10x10x32xbf16> to vector<8x8x32xbf16>
      %55 = tpu.concatenate %46, %47, %48, %49, %50, %51, %52, %53, %54 in 2 : vector<8x8x32xbf16>, vector<8x8x32xbf16>, vector<8x8x32xbf16>, vector<8x8x32xbf16>, vector<8x8x32xbf16>, vector<8x8x32xbf16>, vector<8x8x32xbf16>, vector<8x8x32xbf16>, vector<8x8x32xbf16> -> vector<8x8x288xbf16>
      %56 = vector.shape_cast %55 : vector<8x8x288xbf16> to vector<64x288xbf16>
      %cst_41 = arith.constant dense<0.000000e+00> : vector<64x32xf32>
      %57 = tpu.matmul %56, %44, %cst_41 {dimension_numbers = #tpu.dot_dimension_numbers<[1], [0], [0], [1], [0, 0, 1, 1], [], []>} : vector<64x288xbf16>, vector<288x32xbf16>, vector<64x32xf32> -> vector<64x32xf32>
      %58 = arith.index_cast %arg12 : i32 to index
      %c0_42 = arith.constant 0 : index
      %c0_43 = arith.constant 0 : index
      %59 = vector.load %arg5[%58, %c0_42, %c0_43] : memref<15x1x32xf32, #tpu.memory_space<vmem>>, vector<1x1x32xf32>
      %60 = vector.shape_cast %59 : vector<1x1x32xf32> to vector<1x32xf32>
      %61 = vector.broadcast %60 : vector<1x32xf32> to vector<64x32xf32>
      %62 = arith.addf %57, %61 : vector<64x32xf32>
      %cst_44 = arith.constant 0.000000e+00 : f32
      %63 = vector.broadcast %cst_44 : f32 to vector<64x32xf32>
      %64 = arith.maximumf %62, %63 : vector<64x32xf32>
      %65 = vector.shape_cast %64 : vector<64x32xf32> to vector<8x8x32xf32>
      %66 = arith.truncf %65 : vector<8x8x32xf32> to vector<8x8x32xbf16>
      %c1_45 = arith.constant 1 : index
      %c1_46 = arith.constant 1 : index
      %c0_47 = arith.constant 0 : index
      %67 = vector.load %arg9[%c1_45, %c1_46, %c0_47] : memref<10x10x32xbf16, #tpu.memory_space<vmem>>, vector<8x8x32xbf16>
      tpu.vector_store %arg9[%c1_45, %c1_46, %c0_47], %66 {strides = array<i32>} : memref<10x10x32xbf16, #tpu.memory_space<vmem>>, vector<8x8x32xbf16>,
      %68 = arith.index_cast %arg12 : i32 to index
      %c0_48 = arith.constant 0 : index
      %c0_49 = arith.constant 0 : index
      %69 = vector.load %arg6[%68, %c0_48, %c0_49] : memref<15x288x32xbf16, #tpu.memory_space<vmem>>, vector<1x288x32xbf16>
      %70 = vector.shape_cast %69 : vector<1x288x32xbf16> to vector<288x32xbf16>
      %c0_50 = arith.constant 0 : index
      %c0_51 = arith.constant 0 : index
      %c0_52 = arith.constant 0 : index
      %71 = vector.load %arg9[%c0_50, %c0_51, %c0_52] : memref<10x10x32xbf16, #tpu.memory_space<vmem>>, vector<10x10x32xbf16>
      %72 = vector.extract_strided_slice %71 {offsets = [0, 0, 0], sizes = [8, 8, 32], strides = [1, 1, 1]} : vector<10x10x32xbf16> to vector<8x8x32xbf16>
      %73 = vector.extract_strided_slice %71 {offsets = [0, 1, 0], sizes = [8, 8, 32], strides = [1, 1, 1]} : vector<10x10x32xbf16> to vector<8x8x32xbf16>
      %74 = vector.extract_strided_slice %71 {offsets = [0, 2, 0], sizes = [8, 8, 32], strides = [1, 1, 1]} : vector<10x10x32xbf16> to vector<8x8x32xbf16>
      %75 = vector.extract_strided_slice %71 {offsets = [1, 0, 0], sizes = [8, 8, 32], strides = [1, 1, 1]} : vector<10x10x32xbf16> to vector<8x8x32xbf16>
      %76 = vector.extract_strided_slice %71 {offsets = [1, 1, 0], sizes = [8, 8, 32], strides = [1, 1, 1]} : vector<10x10x32xbf16> to vector<8x8x32xbf16>
      %77 = vector.extract_strided_slice %71 {offsets = [1, 2, 0], sizes = [8, 8, 32], strides = [1, 1, 1]} : vector<10x10x32xbf16> to vector<8x8x32xbf16>
      %78 = vector.extract_strided_slice %71 {offsets = [2, 0, 0], sizes = [8, 8, 32], strides = [1, 1, 1]} : vector<10x10x32xbf16> to vector<8x8x32xbf16>
      %79 = vector.extract_strided_slice %71 {offsets = [2, 1, 0], sizes = [8, 8, 32], strides = [1, 1, 1]} : vector<10x10x32xbf16> to vector<8x8x32xbf16>
      %80 = vector.extract_strided_slice %71 {offsets = [2, 2, 0], sizes = [8, 8, 32], strides = [1, 1, 1]} : vector<10x10x32xbf16> to vector<8x8x32xbf16>
      %81 = tpu.concatenate %72, %73, %74, %75, %76, %77, %78, %79, %80 in 2 : vector<8x8x32xbf16>, vector<8x8x32xbf16>, vector<8x8x32xbf16>, vector<8x8x32xbf16>, vector<8x8x32xbf16>, vector<8x8x32xbf16>, vector<8x8x32xbf16>, vector<8x8x32xbf16>, vector<8x8x32xbf16> -> vector<8x8x288xbf16>
      %82 = vector.shape_cast %81 : vector<8x8x288xbf16> to vector<64x288xbf16>
      %cst_53 = arith.constant dense<0.000000e+00> : vector<64x32xf32>
      %83 = tpu.matmul %82, %70, %cst_53 {dimension_numbers = #tpu.dot_dimension_numbers<[1], [0], [0], [1], [0, 0, 1, 1], [], []>} : vector<64x288xbf16>, vector<288x32xbf16>, vector<64x32xf32> -> vector<64x32xf32>
      %84 = arith.index_cast %arg12 : i32 to index
      %c0_54 = arith.constant 0 : index
      %c0_55 = arith.constant 0 : index
      %85 = vector.load %arg7[%84, %c0_54, %c0_55] : memref<15x1x32xf32, #tpu.memory_space<vmem>>, vector<1x1x32xf32>
      %86 = vector.shape_cast %85 : vector<1x1x32xf32> to vector<1x32xf32>
      %87 = vector.broadcast %86 : vector<1x32xf32> to vector<64x32xf32>
      %88 = arith.addf %83, %87 : vector<64x32xf32>
      %89 = arith.addf %38, %88 : vector<64x32xf32>
      %c0_56 = arith.constant 0 : index
      %c0_57 = arith.constant 0 : index
      %90 = vector.load %arg10[%c0_56, %c0_57] : memref<64x32xf32, #tpu.memory_space<vmem>>, vector<64x32xf32>
      tpu.vector_store %arg10[%c0_56, %c0_57], %89 {strides = array<i32>} : memref<64x32xf32, #tpu.memory_space<vmem>>, vector<64x32xf32>,
    }
    %c15_i32_22 = arith.constant 15 : i32
    %c0_23 = arith.constant 0 : index
    %c0_24 = arith.constant 0 : index
    %31 = vector.load %arg10[%c0_23, %c0_24] : memref<64x32xf32, #tpu.memory_space<vmem>>, vector<64x32xf32>
    %c0_25 = arith.constant 0 : index
    %c0_26 = arith.constant 0 : index
    %32 = vector.load %arg11[%c0_25, %c0_26] : memref<64x32xf32, #tpu.memory_space<vmem>>, vector<64x32xf32>
    %33 = arith.addf %31, %32 : vector<64x32xf32>
    %34 = vector.shape_cast %33 : vector<64x32xf32> to vector<8x8x32xf32>
    %c0_27 = arith.constant 0 : index
    %c0_28 = arith.constant 0 : index
    %c0_29 = arith.constant 0 : index
    %c0_30 = arith.constant 0 : index
    %35 = vector.load %arg8[%c0_27, %c0_28, %c0_29, %c0_30] : memref<1x8x8x32xf32, #tpu.memory_space<vmem>>, vector<1x8x8x32xf32>
    %36 = vector.shape_cast %35 : vector<1x8x8x32xf32> to vector<8x8x32xf32>
    %37 = vector.shape_cast %34 : vector<8x8x32xf32> to vector<1x8x8x32xf32>
    tpu.vector_store %arg8[%c0_27, %c0_28, %c0_29, %c0_30], %37 {strides = array<i32>} : memref<1x8x8x32xf32, #tpu.memory_space<vmem>>, vector<1x8x8x32xf32>,
    return
  }
  func.func @transform_0(%arg0: i32) -> (i32, i32, i32, i32) {
    %c0_i32 = arith.constant 0 : i32
    %c0_i32_0 = arith.constant 0 : i32
    %c0_i32_1 = arith.constant 0 : i32
    %c0_i32_2 = arith.constant 0 : i32
    return %arg0, %c0_i32, %c0_i32_0, %c0_i32_1 : i32, i32, i32, i32
  }
  func.func @transform_1(%arg0: i32) -> (i32, i32) {
    %c0_i32 = arith.constant 0 : i32
    %c0_i32_0 = arith.constant 0 : i32
    %c0_i32_1 = arith.constant 0 : i32
    return %c0_i32, %c0_i32_0 : i32, i32
  }
  func.func @transform_2(%arg0: i32) -> (i32, i32) {
    %c0_i32 = arith.constant 0 : i32
    %c0_i32_0 = arith.constant 0 : i32
    %c0_i32_1 = arith.constant 0 : i32
    return %c0_i32, %c0_i32_0 : i32, i32
  }
  func.func @transform_3(%arg0: i32) -> (i32, i32, i32) {
    %c0_i32 = arith.constant 0 : i32
    %c0_i32_0 = arith.constant 0 : i32
    %c0_i32_1 = arith.constant 0 : i32
    %c0_i32_2 = arith.constant 0 : i32
    return %c0_i32, %c0_i32_0, %c0_i32_1 : i32, i32, i32
  }
  func.func @transform_4(%arg0: i32) -> (i32, i32, i32) {
    %c0_i32 = arith.constant 0 : i32
    %c0_i32_0 = arith.constant 0 : i32
    %c0_i32_1 = arith.constant 0 : i32
    %c0_i32_2 = arith.constant 0 : i32
    return %c0_i32, %c0_i32_0, %c0_i32_1 : i32, i32, i32
  }
  func.func @transform_5(%arg0: i32) -> (i32, i32, i32) {
    %c0_i32 = arith.constant 0 : i32
    %c0_i32_0 = arith.constant 0 : i32
    %c0_i32_1 = arith.constant 0 : i32
    %c0_i32_2 = arith.constant 0 : i32
    return %c0_i32, %c0_i32_0, %c0_i32_1 : i32, i32, i32
  }
  func.func @transform_6(%arg0: i32) -> (i32, i32, i32) {
    %c0_i32 = arith.constant 0 : i32
    %c0_i32_0 = arith.constant 0 : i32
    %c0_i32_1 = arith.constant 0 : i32
    %c0_i32_2 = arith.constant 0 : i32
    return %c0_i32, %c0_i32_0, %c0_i32_1 : i32, i32, i32
  }
  func.func @transform_7(%arg0: i32) -> (i32, i32, i32, i32) {
    %c0_i32 = arith.constant 0 : i32
    %c0_i32_0 = arith.constant 0 : i32
    %c0_i32_1 = arith.constant 0 : i32
    %c0_i32_2 = arith.constant 0 : i32
    return %arg0, %c0_i32, %c0_i32_0, %c0_i32_1 : i32, i32, i32, i32
  }
}

module attributes {stable_mosaic.version = 11 : i64} {
  func.func @_concat_conv_kernel(%arg0: i32, %arg1: memref<1x8x8x32xf32, #tpu.memory_space<vmem>>, %arg2: memref<1x8x8x32xf32, #tpu.memory_space<vmem>>, %arg3: memref<288x32xbf16, #tpu.memory_space<vmem>>, %arg4: memref<288x32xbf16, #tpu.memory_space<vmem>>, %arg5: memref<1x32xf32, #tpu.memory_space<vmem>>, %arg6: memref<1x32xf32, #tpu.memory_space<vmem>>, %arg7: memref<1x32xf32, #tpu.memory_space<vmem>>, %arg8: memref<1x8x8x32xf32, #tpu.memory_space<vmem>>, %arg9: memref<1x64x32xf32, #tpu.memory_space<vmem>>, %arg10: memref<10x10x32xbf16, #tpu.memory_space<vmem>>) attributes {dimension_semantics = [#tpu.dimension_semantics<parallel>], iteration_bounds = array<i64: 2>, scalar_prefetch = 0 : i64, scratch_operands = 1 : i64, tpu.core_type = #tpu.core_type<tc>, window_params = [{transform_indices = @transform_0, window_bounds = array<i64: 1, 8, 8, 32>}, {transform_indices = @transform_1, window_bounds = array<i64: 1, 8, 8, 32>}, {pipeline_mode = #tpu.pipeline_mode<synchronous>, transform_indices = @transform_2, window_bounds = array<i64: 288, 32>}, {pipeline_mode = #tpu.pipeline_mode<synchronous>, transform_indices = @transform_3, window_bounds = array<i64: 288, 32>}, {pipeline_mode = #tpu.pipeline_mode<synchronous>, transform_indices = @transform_4, window_bounds = array<i64: 1, 32>}, {pipeline_mode = #tpu.pipeline_mode<synchronous>, transform_indices = @transform_5, window_bounds = array<i64: 1, 32>}, {pipeline_mode = #tpu.pipeline_mode<synchronous>, transform_indices = @transform_6, window_bounds = array<i64: 1, 32>}, {transform_indices = @transform_7, window_bounds = array<i64: 1, 8, 8, 32>}, {transform_indices = @transform_8, window_bounds = array<i64: 1, 64, 32>}]} {
    %cst = arith.constant 0.000000e+00 : bf16
    %0 = vector.broadcast %cst : bf16 to vector<10x10x32xbf16>
    %c0 = arith.constant 0 : index
    %c0_0 = arith.constant 0 : index
    %c0_1 = arith.constant 0 : index
    %1 = vector.load %arg10[%c0, %c0_0, %c0_1] : memref<10x10x32xbf16, #tpu.memory_space<vmem>>, vector<10x10x32xbf16>
    tpu.vector_store %arg10[%c0, %c0_0, %c0_1], %0 {strides = array<i32>} : memref<10x10x32xbf16, #tpu.memory_space<vmem>>, vector<10x10x32xbf16>,
    %c0_2 = arith.constant 0 : index
    %c0_3 = arith.constant 0 : index
    %c0_4 = arith.constant 0 : index
    %c0_5 = arith.constant 0 : index
    %2 = vector.load %arg1[%c0_2, %c0_3, %c0_4, %c0_5] : memref<1x8x8x32xf32, #tpu.memory_space<vmem>>, vector<1x8x8x32xf32>
    %3 = vector.shape_cast %2 : vector<1x8x8x32xf32> to vector<8x8x32xf32>
    %4 = arith.truncf %3 : vector<8x8x32xf32> to vector<8x8x32xbf16>
    %c1 = arith.constant 1 : index
    %c1_6 = arith.constant 1 : index
    %c0_7 = arith.constant 0 : index
    %5 = vector.load %arg10[%c1, %c1_6, %c0_7] : memref<10x10x32xbf16, #tpu.memory_space<vmem>>, vector<8x8x32xbf16>
    tpu.vector_store %arg10[%c1, %c1_6, %c0_7], %4 {strides = array<i32>} : memref<10x10x32xbf16, #tpu.memory_space<vmem>>, vector<8x8x32xbf16>,
    %c0_8 = arith.constant 0 : index
    %c0_9 = arith.constant 0 : index
    %6 = vector.load %arg3[%c0_8, %c0_9] : memref<288x32xbf16, #tpu.memory_space<vmem>>, vector<288x32xbf16>
    %c0_10 = arith.constant 0 : index
    %c0_11 = arith.constant 0 : index
    %c0_12 = arith.constant 0 : index
    %7 = vector.load %arg10[%c0_10, %c0_11, %c0_12] : memref<10x10x32xbf16, #tpu.memory_space<vmem>>, vector<10x10x32xbf16>
    %8 = vector.extract_strided_slice %7 {offsets = [0, 0, 0], sizes = [8, 8, 32], strides = [1, 1, 1]} : vector<10x10x32xbf16> to vector<8x8x32xbf16>
    %9 = vector.extract_strided_slice %7 {offsets = [0, 1, 0], sizes = [8, 8, 32], strides = [1, 1, 1]} : vector<10x10x32xbf16> to vector<8x8x32xbf16>
    %10 = vector.extract_strided_slice %7 {offsets = [0, 2, 0], sizes = [8, 8, 32], strides = [1, 1, 1]} : vector<10x10x32xbf16> to vector<8x8x32xbf16>
    %11 = vector.extract_strided_slice %7 {offsets = [1, 0, 0], sizes = [8, 8, 32], strides = [1, 1, 1]} : vector<10x10x32xbf16> to vector<8x8x32xbf16>
    %12 = vector.extract_strided_slice %7 {offsets = [1, 1, 0], sizes = [8, 8, 32], strides = [1, 1, 1]} : vector<10x10x32xbf16> to vector<8x8x32xbf16>
    %13 = vector.extract_strided_slice %7 {offsets = [1, 2, 0], sizes = [8, 8, 32], strides = [1, 1, 1]} : vector<10x10x32xbf16> to vector<8x8x32xbf16>
    %14 = vector.extract_strided_slice %7 {offsets = [2, 0, 0], sizes = [8, 8, 32], strides = [1, 1, 1]} : vector<10x10x32xbf16> to vector<8x8x32xbf16>
    %15 = vector.extract_strided_slice %7 {offsets = [2, 1, 0], sizes = [8, 8, 32], strides = [1, 1, 1]} : vector<10x10x32xbf16> to vector<8x8x32xbf16>
    %16 = vector.extract_strided_slice %7 {offsets = [2, 2, 0], sizes = [8, 8, 32], strides = [1, 1, 1]} : vector<10x10x32xbf16> to vector<8x8x32xbf16>
    %17 = tpu.concatenate %8, %9, %10, %11, %12, %13, %14, %15, %16 in 2 : vector<8x8x32xbf16>, vector<8x8x32xbf16>, vector<8x8x32xbf16>, vector<8x8x32xbf16>, vector<8x8x32xbf16>, vector<8x8x32xbf16>, vector<8x8x32xbf16>, vector<8x8x32xbf16>, vector<8x8x32xbf16> -> vector<8x8x288xbf16>
    %18 = vector.shape_cast %17 : vector<8x8x288xbf16> to vector<64x288xbf16>
    %cst_13 = arith.constant dense<0.000000e+00> : vector<64x32xf32>
    %19 = tpu.matmul %18, %6, %cst_13 {dimension_numbers = #tpu.dot_dimension_numbers<[1], [0], [0], [1], [0, 0, 1, 1], [], []>} : vector<64x288xbf16>, vector<288x32xbf16>, vector<64x32xf32> -> vector<64x32xf32>
    %c0_14 = arith.constant 0 : index
    %c0_15 = arith.constant 0 : index
    %c0_16 = arith.constant 0 : index
    %c0_17 = arith.constant 0 : index
    %20 = vector.load %arg2[%c0_14, %c0_15, %c0_16, %c0_17] : memref<1x8x8x32xf32, #tpu.memory_space<vmem>>, vector<1x8x8x32xf32>
    %21 = vector.shape_cast %20 : vector<1x8x8x32xf32> to vector<8x8x32xf32>
    %22 = arith.truncf %21 : vector<8x8x32xf32> to vector<8x8x32xbf16>
    %c1_18 = arith.constant 1 : index
    %c1_19 = arith.constant 1 : index
    %c0_20 = arith.constant 0 : index
    %23 = vector.load %arg10[%c1_18, %c1_19, %c0_20] : memref<10x10x32xbf16, #tpu.memory_space<vmem>>, vector<8x8x32xbf16>
    tpu.vector_store %arg10[%c1_18, %c1_19, %c0_20], %22 {strides = array<i32>} : memref<10x10x32xbf16, #tpu.memory_space<vmem>>, vector<8x8x32xbf16>,
    %c0_21 = arith.constant 0 : index
    %c0_22 = arith.constant 0 : index
    %24 = vector.load %arg4[%c0_21, %c0_22] : memref<288x32xbf16, #tpu.memory_space<vmem>>, vector<288x32xbf16>
    %c0_23 = arith.constant 0 : index
    %c0_24 = arith.constant 0 : index
    %c0_25 = arith.constant 0 : index
    %25 = vector.load %arg10[%c0_23, %c0_24, %c0_25] : memref<10x10x32xbf16, #tpu.memory_space<vmem>>, vector<10x10x32xbf16>
    %26 = vector.extract_strided_slice %25 {offsets = [0, 0, 0], sizes = [8, 8, 32], strides = [1, 1, 1]} : vector<10x10x32xbf16> to vector<8x8x32xbf16>
    %27 = vector.extract_strided_slice %25 {offsets = [0, 1, 0], sizes = [8, 8, 32], strides = [1, 1, 1]} : vector<10x10x32xbf16> to vector<8x8x32xbf16>
    %28 = vector.extract_strided_slice %25 {offsets = [0, 2, 0], sizes = [8, 8, 32], strides = [1, 1, 1]} : vector<10x10x32xbf16> to vector<8x8x32xbf16>
    %29 = vector.extract_strided_slice %25 {offsets = [1, 0, 0], sizes = [8, 8, 32], strides = [1, 1, 1]} : vector<10x10x32xbf16> to vector<8x8x32xbf16>
    %30 = vector.extract_strided_slice %25 {offsets = [1, 1, 0], sizes = [8, 8, 32], strides = [1, 1, 1]} : vector<10x10x32xbf16> to vector<8x8x32xbf16>
    %31 = vector.extract_strided_slice %25 {offsets = [1, 2, 0], sizes = [8, 8, 32], strides = [1, 1, 1]} : vector<10x10x32xbf16> to vector<8x8x32xbf16>
    %32 = vector.extract_strided_slice %25 {offsets = [2, 0, 0], sizes = [8, 8, 32], strides = [1, 1, 1]} : vector<10x10x32xbf16> to vector<8x8x32xbf16>
    %33 = vector.extract_strided_slice %25 {offsets = [2, 1, 0], sizes = [8, 8, 32], strides = [1, 1, 1]} : vector<10x10x32xbf16> to vector<8x8x32xbf16>
    %34 = vector.extract_strided_slice %25 {offsets = [2, 2, 0], sizes = [8, 8, 32], strides = [1, 1, 1]} : vector<10x10x32xbf16> to vector<8x8x32xbf16>
    %35 = tpu.concatenate %26, %27, %28, %29, %30, %31, %32, %33, %34 in 2 : vector<8x8x32xbf16>, vector<8x8x32xbf16>, vector<8x8x32xbf16>, vector<8x8x32xbf16>, vector<8x8x32xbf16>, vector<8x8x32xbf16>, vector<8x8x32xbf16>, vector<8x8x32xbf16>, vector<8x8x32xbf16> -> vector<8x8x288xbf16>
    %36 = vector.shape_cast %35 : vector<8x8x288xbf16> to vector<64x288xbf16>
    %cst_26 = arith.constant dense<0.000000e+00> : vector<64x32xf32>
    %37 = tpu.matmul %36, %24, %cst_26 {dimension_numbers = #tpu.dot_dimension_numbers<[1], [0], [0], [1], [0, 0, 1, 1], [], []>} : vector<64x288xbf16>, vector<288x32xbf16>, vector<64x32xf32> -> vector<64x32xf32>
    %38 = arith.addf %19, %37 : vector<64x32xf32>
    %c0_27 = arith.constant 0 : index
    %c0_28 = arith.constant 0 : index
    %39 = vector.load %arg5[%c0_27, %c0_28] : memref<1x32xf32, #tpu.memory_space<vmem>>, vector<1x32xf32>
    %40 = vector.broadcast %39 : vector<1x32xf32> to vector<64x32xf32>
    %41 = arith.addf %38, %40 : vector<64x32xf32>
    %42 = vector.shape_cast %41 : vector<64x32xf32> to vector<8x8x32xf32>
    %c0_29 = arith.constant 0 : index
    %c0_30 = arith.constant 0 : index
    %c0_31 = arith.constant 0 : index
    %c0_32 = arith.constant 0 : index
    %43 = vector.load %arg8[%c0_29, %c0_30, %c0_31, %c0_32] : memref<1x8x8x32xf32, #tpu.memory_space<vmem>>, vector<1x8x8x32xf32>
    %44 = vector.shape_cast %43 : vector<1x8x8x32xf32> to vector<8x8x32xf32>
    %45 = vector.shape_cast %42 : vector<8x8x32xf32> to vector<1x8x8x32xf32>
    tpu.vector_store %arg8[%c0_29, %c0_30, %c0_31, %c0_32], %45 {strides = array<i32>} : memref<1x8x8x32xf32, #tpu.memory_space<vmem>>, vector<1x8x8x32xf32>,
    %c0_33 = arith.constant 0 : index
    %c0_34 = arith.constant 0 : index
    %46 = vector.load %arg6[%c0_33, %c0_34] : memref<1x32xf32, #tpu.memory_space<vmem>>, vector<1x32xf32>
    %c0_35 = arith.constant 0 : index
    %c0_36 = arith.constant 0 : index
    %47 = vector.load %arg7[%c0_35, %c0_36] : memref<1x32xf32, #tpu.memory_space<vmem>>, vector<1x32xf32>
    %cst_37 = arith.constant dense<0.000000e+00> : vector<64xf32>
    %48 = vector.multi_reduction <add>, %41, %cst_37 [1] : vector<64x32xf32> to vector<64xf32>
    %49 = vector.shape_cast %48 : vector<64xf32> to vector<64x1xf32>
    %cst_38 = arith.constant 3.200000e+01 : f32
    %50 = vector.broadcast %cst_38 : f32 to vector<64x1xf32>
    %51 = arith.divf %49, %50 : vector<64x1xf32>
    %52 = vector.broadcast %51 : vector<64x1xf32> to vector<64x32xf32>
    %53 = arith.subf %41, %52 : vector<64x32xf32>
    %54 = arith.mulf %53, %53 : vector<64x32xf32>
    %cst_39 = arith.constant dense<0.000000e+00> : vector<64xf32>
    %55 = vector.multi_reduction <add>, %54, %cst_39 [1] : vector<64x32xf32> to vector<64xf32>
    %56 = vector.shape_cast %55 : vector<64xf32> to vector<64x1xf32>
    %cst_40 = arith.constant 3.200000e+01 : f32
    %57 = vector.broadcast %cst_40 : f32 to vector<64x1xf32>
    %58 = arith.divf %56, %57 : vector<64x1xf32>
    %59 = vector.broadcast %51 : vector<64x1xf32> to vector<64x32xf32>
    %60 = arith.subf %41, %59 : vector<64x32xf32>
    %cst_41 = arith.constant 9.99999974E-6 : f32
    %61 = vector.broadcast %cst_41 : f32 to vector<64x1xf32>
    %62 = arith.addf %58, %61 : vector<64x1xf32>
    %63 = math.rsqrt %62 : vector<64x1xf32>
    %64 = vector.broadcast %63 : vector<64x1xf32> to vector<64x32xf32>
    %65 = arith.mulf %60, %64 : vector<64x32xf32>
    %66 = vector.broadcast %46 : vector<1x32xf32> to vector<64x32xf32>
    %67 = arith.mulf %65, %66 : vector<64x32xf32>
    %68 = vector.broadcast %47 : vector<1x32xf32> to vector<64x32xf32>
    %69 = arith.addf %67, %68 : vector<64x32xf32>
    %c0_42 = arith.constant 0 : index
    %c0_43 = arith.constant 0 : index
    %c0_44 = arith.constant 0 : index
    %70 = vector.load %arg9[%c0_42, %c0_43, %c0_44] : memref<1x64x32xf32, #tpu.memory_space<vmem>>, vector<1x64x32xf32>
    %71 = vector.shape_cast %70 : vector<1x64x32xf32> to vector<64x32xf32>
    %72 = vector.shape_cast %69 : vector<64x32xf32> to vector<1x64x32xf32>
    tpu.vector_store %arg9[%c0_42, %c0_43, %c0_44], %72 {strides = array<i32>} : memref<1x64x32xf32, #tpu.memory_space<vmem>>, vector<1x64x32xf32>,
    return
  }
  func.func @transform_0(%arg0: i32) -> (i32, i32, i32, i32) {
    %c0_i32 = arith.constant 0 : i32
    %c0_i32_0 = arith.constant 0 : i32
    %c0_i32_1 = arith.constant 0 : i32
    %c0_i32_2 = arith.constant 0 : i32
    return %arg0, %c0_i32, %c0_i32_0, %c0_i32_1 : i32, i32, i32, i32
  }
  func.func @transform_1(%arg0: i32) -> (i32, i32, i32, i32) {
    %c0_i32 = arith.constant 0 : i32
    %c0_i32_0 = arith.constant 0 : i32
    %c0_i32_1 = arith.constant 0 : i32
    %c0_i32_2 = arith.constant 0 : i32
    return %arg0, %c0_i32, %c0_i32_0, %c0_i32_1 : i32, i32, i32, i32
  }
  func.func @transform_2(%arg0: i32) -> (i32, i32) {
    %c0_i32 = arith.constant 0 : i32
    %c0_i32_0 = arith.constant 0 : i32
    %c0_i32_1 = arith.constant 0 : i32
    return %c0_i32, %c0_i32_0 : i32, i32
  }
  func.func @transform_3(%arg0: i32) -> (i32, i32) {
    %c0_i32 = arith.constant 0 : i32
    %c0_i32_0 = arith.constant 0 : i32
    %c0_i32_1 = arith.constant 0 : i32
    return %c0_i32, %c0_i32_0 : i32, i32
  }
  func.func @transform_4(%arg0: i32) -> (i32, i32) {
    %c0_i32 = arith.constant 0 : i32
    %c0_i32_0 = arith.constant 0 : i32
    %c0_i32_1 = arith.constant 0 : i32
    return %c0_i32, %c0_i32_0 : i32, i32
  }
  func.func @transform_5(%arg0: i32) -> (i32, i32) {
    %c0_i32 = arith.constant 0 : i32
    %c0_i32_0 = arith.constant 0 : i32
    %c0_i32_1 = arith.constant 0 : i32
    return %c0_i32, %c0_i32_0 : i32, i32
  }
  func.func @transform_6(%arg0: i32) -> (i32, i32) {
    %c0_i32 = arith.constant 0 : i32
    %c0_i32_0 = arith.constant 0 : i32
    %c0_i32_1 = arith.constant 0 : i32
    return %c0_i32, %c0_i32_0 : i32, i32
  }
  func.func @transform_7(%arg0: i32) -> (i32, i32, i32, i32) {
    %c0_i32 = arith.constant 0 : i32
    %c0_i32_0 = arith.constant 0 : i32
    %c0_i32_1 = arith.constant 0 : i32
    %c0_i32_2 = arith.constant 0 : i32
    return %arg0, %c0_i32, %c0_i32_0, %c0_i32_1 : i32, i32, i32, i32
  }
  func.func @transform_8(%arg0: i32) -> (i32, i32, i32) {
    %c0_i32 = arith.constant 0 : i32
    %c0_i32_0 = arith.constant 0 : i32
    %c0_i32_1 = arith.constant 0 : i32
    return %arg0, %c0_i32, %c0_i32_0 : i32, i32, i32
  }
}

module attributes {stable_mosaic.version = 11 : i64} {
  func.func @_concat_conv_kernel(%arg0: i32, %arg1: memref<1x8x8x32xf32, #tpu.memory_space<vmem>>, %arg2: memref<1x8x8x32xf32, #tpu.memory_space<vmem>>, %arg3: memref<288x32xbf16, #tpu.memory_space<vmem>>, %arg4: memref<288x32xbf16, #tpu.memory_space<vmem>>, %arg5: memref<1x32xf32, #tpu.memory_space<vmem>>, %arg6: memref<1x8x8x32xf32, #tpu.memory_space<vmem>>, %arg7: memref<10x10x32xbf16, #tpu.memory_space<vmem>>) attributes {dimension_semantics = [#tpu.dimension_semantics<parallel>], iteration_bounds = array<i64: 2>, scalar_prefetch = 0 : i64, scratch_operands = 1 : i64, tpu.core_type = #tpu.core_type<tc>, window_params = [{transform_indices = @transform_0, window_bounds = array<i64: 1, 8, 8, 32>}, {transform_indices = @transform_1, window_bounds = array<i64: 1, 8, 8, 32>}, {pipeline_mode = #tpu.pipeline_mode<synchronous>, transform_indices = @transform_2, window_bounds = array<i64: 288, 32>}, {pipeline_mode = #tpu.pipeline_mode<synchronous>, transform_indices = @transform_3, window_bounds = array<i64: 288, 32>}, {pipeline_mode = #tpu.pipeline_mode<synchronous>, transform_indices = @transform_4, window_bounds = array<i64: 1, 32>}, {transform_indices = @transform_5, window_bounds = array<i64: 1, 8, 8, 32>}]} {
    %cst = arith.constant 0.000000e+00 : bf16
    %0 = vector.broadcast %cst : bf16 to vector<10x10x32xbf16>
    %c0 = arith.constant 0 : index
    %c0_0 = arith.constant 0 : index
    %c0_1 = arith.constant 0 : index
    %1 = vector.load %arg7[%c0, %c0_0, %c0_1] : memref<10x10x32xbf16, #tpu.memory_space<vmem>>, vector<10x10x32xbf16>
    tpu.vector_store %arg7[%c0, %c0_0, %c0_1], %0 {strides = array<i32>} : memref<10x10x32xbf16, #tpu.memory_space<vmem>>, vector<10x10x32xbf16>,
    %c0_2 = arith.constant 0 : index
    %c0_3 = arith.constant 0 : index
    %c0_4 = arith.constant 0 : index
    %c0_5 = arith.constant 0 : index
    %2 = vector.load %arg1[%c0_2, %c0_3, %c0_4, %c0_5] : memref<1x8x8x32xf32, #tpu.memory_space<vmem>>, vector<1x8x8x32xf32>
    %3 = vector.shape_cast %2 : vector<1x8x8x32xf32> to vector<8x8x32xf32>
    %4 = arith.truncf %3 : vector<8x8x32xf32> to vector<8x8x32xbf16>
    %c1 = arith.constant 1 : index
    %c1_6 = arith.constant 1 : index
    %c0_7 = arith.constant 0 : index
    %5 = vector.load %arg7[%c1, %c1_6, %c0_7] : memref<10x10x32xbf16, #tpu.memory_space<vmem>>, vector<8x8x32xbf16>
    tpu.vector_store %arg7[%c1, %c1_6, %c0_7], %4 {strides = array<i32>} : memref<10x10x32xbf16, #tpu.memory_space<vmem>>, vector<8x8x32xbf16>,
    %c0_8 = arith.constant 0 : index
    %c0_9 = arith.constant 0 : index
    %6 = vector.load %arg3[%c0_8, %c0_9] : memref<288x32xbf16, #tpu.memory_space<vmem>>, vector<288x32xbf16>
    %c0_10 = arith.constant 0 : index
    %c0_11 = arith.constant 0 : index
    %c0_12 = arith.constant 0 : index
    %7 = vector.load %arg7[%c0_10, %c0_11, %c0_12] : memref<10x10x32xbf16, #tpu.memory_space<vmem>>, vector<10x10x32xbf16>
    %8 = vector.extract_strided_slice %7 {offsets = [0, 0, 0], sizes = [8, 8, 32], strides = [1, 1, 1]} : vector<10x10x32xbf16> to vector<8x8x32xbf16>
    %9 = vector.extract_strided_slice %7 {offsets = [0, 1, 0], sizes = [8, 8, 32], strides = [1, 1, 1]} : vector<10x10x32xbf16> to vector<8x8x32xbf16>
    %10 = vector.extract_strided_slice %7 {offsets = [0, 2, 0], sizes = [8, 8, 32], strides = [1, 1, 1]} : vector<10x10x32xbf16> to vector<8x8x32xbf16>
    %11 = vector.extract_strided_slice %7 {offsets = [1, 0, 0], sizes = [8, 8, 32], strides = [1, 1, 1]} : vector<10x10x32xbf16> to vector<8x8x32xbf16>
    %12 = vector.extract_strided_slice %7 {offsets = [1, 1, 0], sizes = [8, 8, 32], strides = [1, 1, 1]} : vector<10x10x32xbf16> to vector<8x8x32xbf16>
    %13 = vector.extract_strided_slice %7 {offsets = [1, 2, 0], sizes = [8, 8, 32], strides = [1, 1, 1]} : vector<10x10x32xbf16> to vector<8x8x32xbf16>
    %14 = vector.extract_strided_slice %7 {offsets = [2, 0, 0], sizes = [8, 8, 32], strides = [1, 1, 1]} : vector<10x10x32xbf16> to vector<8x8x32xbf16>
    %15 = vector.extract_strided_slice %7 {offsets = [2, 1, 0], sizes = [8, 8, 32], strides = [1, 1, 1]} : vector<10x10x32xbf16> to vector<8x8x32xbf16>
    %16 = vector.extract_strided_slice %7 {offsets = [2, 2, 0], sizes = [8, 8, 32], strides = [1, 1, 1]} : vector<10x10x32xbf16> to vector<8x8x32xbf16>
    %17 = tpu.concatenate %8, %9, %10, %11, %12, %13, %14, %15, %16 in 2 : vector<8x8x32xbf16>, vector<8x8x32xbf16>, vector<8x8x32xbf16>, vector<8x8x32xbf16>, vector<8x8x32xbf16>, vector<8x8x32xbf16>, vector<8x8x32xbf16>, vector<8x8x32xbf16>, vector<8x8x32xbf16> -> vector<8x8x288xbf16>
    %18 = vector.shape_cast %17 : vector<8x8x288xbf16> to vector<64x288xbf16>
    %cst_13 = arith.constant dense<0.000000e+00> : vector<64x32xf32>
    %19 = tpu.matmul %18, %6, %cst_13 {dimension_numbers = #tpu.dot_dimension_numbers<[1], [0], [0], [1], [0, 0, 1, 1], [], []>} : vector<64x288xbf16>, vector<288x32xbf16>, vector<64x32xf32> -> vector<64x32xf32>
    %c0_14 = arith.constant 0 : index
    %c0_15 = arith.constant 0 : index
    %c0_16 = arith.constant 0 : index
    %c0_17 = arith.constant 0 : index
    %20 = vector.load %arg2[%c0_14, %c0_15, %c0_16, %c0_17] : memref<1x8x8x32xf32, #tpu.memory_space<vmem>>, vector<1x8x8x32xf32>
    %21 = vector.shape_cast %20 : vector<1x8x8x32xf32> to vector<8x8x32xf32>
    %22 = arith.truncf %21 : vector<8x8x32xf32> to vector<8x8x32xbf16>
    %c1_18 = arith.constant 1 : index
    %c1_19 = arith.constant 1 : index
    %c0_20 = arith.constant 0 : index
    %23 = vector.load %arg7[%c1_18, %c1_19, %c0_20] : memref<10x10x32xbf16, #tpu.memory_space<vmem>>, vector<8x8x32xbf16>
    tpu.vector_store %arg7[%c1_18, %c1_19, %c0_20], %22 {strides = array<i32>} : memref<10x10x32xbf16, #tpu.memory_space<vmem>>, vector<8x8x32xbf16>,
    %c0_21 = arith.constant 0 : index
    %c0_22 = arith.constant 0 : index
    %24 = vector.load %arg4[%c0_21, %c0_22] : memref<288x32xbf16, #tpu.memory_space<vmem>>, vector<288x32xbf16>
    %c0_23 = arith.constant 0 : index
    %c0_24 = arith.constant 0 : index
    %c0_25 = arith.constant 0 : index
    %25 = vector.load %arg7[%c0_23, %c0_24, %c0_25] : memref<10x10x32xbf16, #tpu.memory_space<vmem>>, vector<10x10x32xbf16>
    %26 = vector.extract_strided_slice %25 {offsets = [0, 0, 0], sizes = [8, 8, 32], strides = [1, 1, 1]} : vector<10x10x32xbf16> to vector<8x8x32xbf16>
    %27 = vector.extract_strided_slice %25 {offsets = [0, 1, 0], sizes = [8, 8, 32], strides = [1, 1, 1]} : vector<10x10x32xbf16> to vector<8x8x32xbf16>
    %28 = vector.extract_strided_slice %25 {offsets = [0, 2, 0], sizes = [8, 8, 32], strides = [1, 1, 1]} : vector<10x10x32xbf16> to vector<8x8x32xbf16>
    %29 = vector.extract_strided_slice %25 {offsets = [1, 0, 0], sizes = [8, 8, 32], strides = [1, 1, 1]} : vector<10x10x32xbf16> to vector<8x8x32xbf16>
    %30 = vector.extract_strided_slice %25 {offsets = [1, 1, 0], sizes = [8, 8, 32], strides = [1, 1, 1]} : vector<10x10x32xbf16> to vector<8x8x32xbf16>
    %31 = vector.extract_strided_slice %25 {offsets = [1, 2, 0], sizes = [8, 8, 32], strides = [1, 1, 1]} : vector<10x10x32xbf16> to vector<8x8x32xbf16>
    %32 = vector.extract_strided_slice %25 {offsets = [2, 0, 0], sizes = [8, 8, 32], strides = [1, 1, 1]} : vector<10x10x32xbf16> to vector<8x8x32xbf16>
    %33 = vector.extract_strided_slice %25 {offsets = [2, 1, 0], sizes = [8, 8, 32], strides = [1, 1, 1]} : vector<10x10x32xbf16> to vector<8x8x32xbf16>
    %34 = vector.extract_strided_slice %25 {offsets = [2, 2, 0], sizes = [8, 8, 32], strides = [1, 1, 1]} : vector<10x10x32xbf16> to vector<8x8x32xbf16>
    %35 = tpu.concatenate %26, %27, %28, %29, %30, %31, %32, %33, %34 in 2 : vector<8x8x32xbf16>, vector<8x8x32xbf16>, vector<8x8x32xbf16>, vector<8x8x32xbf16>, vector<8x8x32xbf16>, vector<8x8x32xbf16>, vector<8x8x32xbf16>, vector<8x8x32xbf16>, vector<8x8x32xbf16> -> vector<8x8x288xbf16>
    %36 = vector.shape_cast %35 : vector<8x8x288xbf16> to vector<64x288xbf16>
    %cst_26 = arith.constant dense<0.000000e+00> : vector<64x32xf32>
    %37 = tpu.matmul %36, %24, %cst_26 {dimension_numbers = #tpu.dot_dimension_numbers<[1], [0], [0], [1], [0, 0, 1, 1], [], []>} : vector<64x288xbf16>, vector<288x32xbf16>, vector<64x32xf32> -> vector<64x32xf32>
    %38 = arith.addf %19, %37 : vector<64x32xf32>
    %c0_27 = arith.constant 0 : index
    %c0_28 = arith.constant 0 : index
    %39 = vector.load %arg5[%c0_27, %c0_28] : memref<1x32xf32, #tpu.memory_space<vmem>>, vector<1x32xf32>
    %40 = vector.broadcast %39 : vector<1x32xf32> to vector<64x32xf32>
    %41 = arith.addf %38, %40 : vector<64x32xf32>
    %42 = vector.shape_cast %41 : vector<64x32xf32> to vector<8x8x32xf32>
    %c0_29 = arith.constant 0 : index
    %c0_30 = arith.constant 0 : index
    %c0_31 = arith.constant 0 : index
    %c0_32 = arith.constant 0 : index
    %43 = vector.load %arg6[%c0_29, %c0_30, %c0_31, %c0_32] : memref<1x8x8x32xf32, #tpu.memory_space<vmem>>, vector<1x8x8x32xf32>
    %44 = vector.shape_cast %43 : vector<1x8x8x32xf32> to vector<8x8x32xf32>
    %45 = vector.shape_cast %42 : vector<8x8x32xf32> to vector<1x8x8x32xf32>
    tpu.vector_store %arg6[%c0_29, %c0_30, %c0_31, %c0_32], %45 {strides = array<i32>} : memref<1x8x8x32xf32, #tpu.memory_space<vmem>>, vector<1x8x8x32xf32>,
    return
  }
  func.func @transform_0(%arg0: i32) -> (i32, i32, i32, i32) {
    %c0_i32 = arith.constant 0 : i32
    %c0_i32_0 = arith.constant 0 : i32
    %c0_i32_1 = arith.constant 0 : i32
    %c0_i32_2 = arith.constant 0 : i32
    return %arg0, %c0_i32, %c0_i32_0, %c0_i32_1 : i32, i32, i32, i32
  }
  func.func @transform_1(%arg0: i32) -> (i32, i32, i32, i32) {
    %c0_i32 = arith.constant 0 : i32
    %c0_i32_0 = arith.constant 0 : i32
    %c0_i32_1 = arith.constant 0 : i32
    %c0_i32_2 = arith.constant 0 : i32
    return %arg0, %c0_i32, %c0_i32_0, %c0_i32_1 : i32, i32, i32, i32
  }
  func.func @transform_2(%arg0: i32) -> (i32, i32) {
    %c0_i32 = arith.constant 0 : i32
    %c0_i32_0 = arith.constant 0 : i32
    %c0_i32_1 = arith.constant 0 : i32
    return %c0_i32, %c0_i32_0 : i32, i32
  }
  func.func @transform_3(%arg0: i32) -> (i32, i32) {
    %c0_i32 = arith.constant 0 : i32
    %c0_i32_0 = arith.constant 0 : i32
    %c0_i32_1 = arith.constant 0 : i32
    return %c0_i32, %c0_i32_0 : i32, i32
  }
  func.func @transform_4(%arg0: i32) -> (i32, i32) {
    %c0_i32 = arith.constant 0 : i32
    %c0_i32_0 = arith.constant 0 : i32
    %c0_i32_1 = arith.constant 0 : i32
    return %c0_i32, %c0_i32_0 : i32, i32
  }
  func.func @transform_5(%arg0: i32) -> (i32, i32, i32, i32) {
    %c0_i32 = arith.constant 0 : i32
    %c0_i32_0 = arith.constant 0 : i32
    %c0_i32_1 = arith.constant 0 : i32
    %c0_i32_2 = arith.constant 0 : i32
    return %arg0, %c0_i32, %c0_i32_0, %c0_i32_1 : i32, i32, i32, i32
  }
}

</mosaic_0001>

<llo_original>
// kernel: last_model_forward.5
$region0: #{last_model_forward.5}
  #allocation0 [shape = 'u32[]', space=smem, size = 0x4, offset = 0x4, fixed_abs, tag = 'smem constant byte address 0x4 - core index']
  #allocation1 [shape = 'u32[72,128]{1,0:T(1,128)}', space=vmem, size = 0x9000, scoped, tag = 'internal scratch']
  %s0 = inlined_call_operand.vmem [shape: bf16[2,64,48], index: 0, kind: input, shape index: {}]
  %s1 = inlined_call_operand.vmem [shape: bf16[48,64], index: 1, kind: input, shape index: {}]
  %s2 = inlined_call_operand.vmem [shape: f32[1,64], index: 2, kind: input, shape index: {}]
  %s3 = inlined_call_operand.hbm [shape: f32[1,32], index: 3, kind: input, shape index: {}]
  %s4 = inlined_call_operand.hbm [shape: f32[1,32], index: 4, kind: input, shape index: {}]
  %s5 = inlined_call_operand.vmem [shape: f32[2,64,32], index: 5, kind: output, shape index: {0}]
  %s6 = inlined_call_operand.vmem [shape: f32[2,64,32], index: 6, kind: output, shape index: {1}]
  %7 = xla_tuple %s5, %s6
  %s8 = sld [smem:[#allocation0]]
  $region69: #{last_model_forward.5} parent=0
    _
  %s10 = ssub.s32 1, %s8
  %s11 = scalar_select 0, %s10, %s8
  $region1: #{last_model_forward.5} parent=0
    #allocation2 [shape = 'u8[512]{0}', space=vmem, size = 0x400, scoped, tag = 'input window, operand 3, single buffered']
    #allocation3 [shape = 's32[2]{0}', space=sflag, size = 0x8, scoped, tag = 'scoped memory for last_model_forward.5']
    #allocation4 [shape = 'u8[512]{0}', space=vmem, size = 0x400, scoped, tag = 'input window, operand 4, single buffered']
    #allocation5 [shape = 's32[1]{0}', space=sflag, size = 0x4, scoped, tag = 'scoped memory for last_model_forward.5']
    %12 = vsyncpa [#allocation3], 0
    %13 = vsyncpa [#allocation5], 0
    loop: start=0, step=1, limit=4
    $region2: #{last_model_forward.5} parent=1 // loop_pre_header
      _
    $region3: #{last_model_forward.5} parent=1 // loop_header
      %s15 = sphi 0, %s19
      %p16 = scmp.ge.s32.totalorder %s15, 4
      %s25 = sphi 0, %s27
      %s28 = sphi 0, %s25
      %s29 = sphi 0, %s28
      %s45 = sphi 0, %s29
      %s49 = sphi 0, %s49
      %s51 = sphi 0, %s49
      %s52 = sphi 0, %s51
      %s66 = sphi 0, %s52
      %s70 = sphi 0, %s70
      %s72 = sphi 0, %s70
      %s73 = sphi 0, %s72
      %s87 = sphi 0, %s73
      %s91 = sphi 0, %s91
      %s93 = sphi 0, %s91
      %s94 = sphi 0, %s93
      %s108 = sphi 0, %s94
      %s112 = sphi 0, %s112
      %s114 = sphi 0, %s112
      %s115 = sphi 0, %s114
      %s129 = sphi 0, %s115
      %s135 = sphi 0, %s137
      %s138 = sphi 0, %s135
      %s139 = sphi 0, %s138
      %s155 = sphi 0, %s139
      %s161 = sphi 0, %s163
      %s164 = sphi 0, %s161
      %s165 = sphi 0, %s164
      %s181 = sphi 0, %s165
    $region4: #{last_model_forward.5} parent=1 // loop_header_branch
      %18 = sbr.rel (%p16) target = $region8
    $region5: #{last_model_forward.5} parent=1 // loop_body
      %s20 = ssub.s32 %s15, 1
      %s21 = ssub.s32 %s15, 2
      %s22 = sadd.s32 %s15, 1
      %s23 = ssub.s32 %s15, %s22
      %p24 = scmp.eq.s32.totalorder %s23, 0
      %s26 = sadd.s32 %s25, 1
      %s27 = scalar_select %p24, %s25, %s26
      %p30 = pneg %p24
      %p31 = scmp.eq.s32.totalorder %s15, 1
      %p32 = por %p30, %p31
      %p33 = scmp.ne.s32.totalorder %s25, %s28
      %p34 = scmp.eq.s32.totalorder %s15, 0
      %p35 = por %p33, %p34
      %p36 = scmp.ne.s32.totalorder %s25, %s28
      %p37 = scmp.eq.s32.totalorder %s20, 1
      %p38 = por %p36, %p37
      %p39 = scmp.ne.s32.totalorder %s28, %s29
      %p40 = scmp.eq.s32.totalorder %s20, 0
      %p41 = por %p39, %p40
      %p42 = scmp.ne.s32.totalorder %s28, %s29
      %p43 = scmp.eq.s32.totalorder %s21, 1
      %p44 = por %p42, %p43
      %p46 = scmp.ne.s32.totalorder %s29, %s45
      %p47 = scmp.eq.s32.totalorder %s21, 0
      %p48 = por %p46, %p47
      %s50 = sadd.s32 %s49, 1
      %p53 = scmp.eq.s32.totalorder %s15, 1
      %p54 = scmp.ne.s32.totalorder %s49, %s51
      %p55 = scmp.eq.s32.totalorder %s15, 0
      %p56 = por %p54, %p55
      %p57 = scmp.ne.s32.totalorder %s49, %s51
      %p58 = scmp.eq.s32.totalorder %s20, 1
      %p59 = por %p57, %p58
      %p60 = scmp.ne.s32.totalorder %s51, %s52
      %p61 = scmp.eq.s32.totalorder %s20, 0
      %p62 = por %p60, %p61
      %p63 = scmp.ne.s32.totalorder %s51, %s52
      %p64 = scmp.eq.s32.totalorder %s21, 1
      %p65 = por %p63, %p64
      %p67 = scmp.ne.s32.totalorder %s52, %s66
      %p68 = scmp.eq.s32.totalorder %s21, 0
      %p69 = por %p67, %p68
      %s71 = sadd.s32 %s70, 1
      %p74 = scmp.eq.s32.totalorder %s15, 1
      %p75 = scmp.ne.s32.totalorder %s70, %s72
      %p76 = scmp.eq.s32.totalorder %s15, 0
      %p77 = por %p75, %p76
      %p78 = scmp.ne.s32.totalorder %s70, %s72
      %p79 = scmp.eq.s32.totalorder %s20, 1
      %p80 = por %p78, %p79
      %p81 = scmp.ne.s32.totalorder %s72, %s73
      %p82 = scmp.eq.s32.totalorder %s20, 0
      %p83 = por %p81, %p82
      %p84 = scmp.ne.s32.totalorder %s72, %s73
      %p85 = scmp.eq.s32.totalorder %s21, 1
      %p86 = por %p84, %p85
      %p88 = scmp.ne.s32.totalorder %s73, %s87
      %p89 = scmp.eq.s32.totalorder %s21, 0
      %p90 = por %p88, %p89
      %s92 = sadd.s32 %s91, 1
      %p95 = scmp.eq.s32.totalorder %s15, 1
      %p96 = scmp.ne.s32.totalorder %s91, %s93
      %p97 = scmp.eq.s32.totalorder %s15, 0
      %p98 = por %p96, %p97
      %p99 = scmp.ne.s32.totalorder %s91, %s93
      %p100 = scmp.eq.s32.totalorder %s20, 1
      %p101 = por %p99, %p100
      %p102 = scmp.ne.s32.totalorder %s93, %s94
      %p103 = scmp.eq.s32.totalorder %s20, 0
      %p104 = por %p102, %p103
      %p105 = scmp.ne.s32.totalorder %s93, %s94
      %p106 = scmp.eq.s32.totalorder %s21, 1
      %p107 = por %p105, %p106
      %p109 = scmp.ne.s32.totalorder %s94, %s108
      %p110 = scmp.eq.s32.totalorder %s21, 0
      %p111 = por %p109, %p110
      %s113 = sadd.s32 %s112, 1
      %p116 = scmp.eq.s32.totalorder %s15, 1
      %p117 = scmp.ne.s32.totalorder %s112, %s114
      %p118 = scmp.eq.s32.totalorder %s15, 0
      %p119 = por %p117, %p118
      %p120 = scmp.ne.s32.totalorder %s112, %s114
      %p121 = scmp.eq.s32.totalorder %s20, 1
      %p122 = por %p120, %p121
      %p123 = scmp.ne.s32.totalorder %s114, %s115
      %p124 = scmp.eq.s32.totalorder %s20, 0
      %p125 = por %p123, %p124
      %p126 = scmp.ne.s32.totalorder %s114, %s115
      %p127 = scmp.eq.s32.totalorder %s21, 1
      %p128 = por %p126, %p127
      %p130 = scmp.ne.s32.totalorder %s115, %s129
      %p131 = scmp.eq.s32.totalorder %s21, 0
      %p132 = por %p130, %p131
      %s133 = ssub.s32 %s15, %s22
      %p134 = scmp.eq.s32.totalorder %s133, 0
      %s136 = sadd.s32 %s135, 1
      %s137 = scalar_select %p134, %s135, %s136
      %p140 = pneg %p134
      %p141 = scmp.eq.s32.totalorder %s15, 1
      %p142 = por %p140, %p141
      %p143 = scmp.ne.s32.totalorder %s135, %s138
      %p144 = scmp.eq.s32.totalorder %s15, 0
      %p145 = por %p143, %p144
      %p146 = scmp.ne.s32.totalorder %s135, %s138
      %p147 = scmp.eq.s32.totalorder %s20, 1
      %p148 = por %p146, %p147
      %p149 = scmp.ne.s32.totalorder %s138, %s139
      %p150 = scmp.eq.s32.totalorder %s20, 0
      %p151 = por %p149, %p150
      %p152 = scmp.ne.s32.totalorder %s138, %s139
      %p153 = scmp.eq.s32.totalorder %s21, 1
      %p154 = por %p152, %p153
      %p156 = scmp.ne.s32.totalorder %s139, %s155
      %p157 = scmp.eq.s32.totalorder %s21, 0
      %p158 = por %p156, %p157
      %s159 = ssub.s32 %s15, %s22
      %p160 = scmp.eq.s32.totalorder %s159, 0
      %s162 = sadd.s32 %s161, 1
      %s163 = scalar_select %p160, %s161, %s162
      %p166 = pneg %p160
      %p167 = scmp.eq.s32.totalorder %s15, 1
      %p168 = por %p166, %p167
      %p169 = scmp.ne.s32.totalorder %s161, %s164
      %p170 = scmp.eq.s32.totalorder %s15, 0
      %p171 = por %p169, %p170
      %p172 = scmp.ne.s32.totalorder %s161, %s164
      %p173 = scmp.eq.s32.totalorder %s20, 1
      %p174 = por %p172, %p173
      %p175 = scmp.ne.s32.totalorder %s164, %s165
      %p176 = scmp.eq.s32.totalorder %s20, 0
      %p177 = por %p175, %p176
      %p178 = scmp.ne.s32.totalorder %s164, %s165
      %p179 = scmp.eq.s32.totalorder %s21, 1
      %p180 = por %p178, %p179
      %p182 = scmp.ne.s32.totalorder %s165, %s181
      %p183 = scmp.eq.s32.totalorder %s21, 0
      %p184 = por %p182, %p183
      %p185 = scmp.le.s32.totalorder 1, %s15
      %p186 = scmp.lt.s32.totalorder %s15, 3
      %p187 = pnand %p185, %p186
      %p188 = pneg %p187
      // Predicated region
      $region9: #{last_model_forward.5} parent=5 // pred_check
        _
      $region10: #{last_model_forward.5} parent=5 // pred_check_branch
        %190 = sbr.rel (%p187) target = $region12
      $region11: #{last_model_forward.5} parent=5 // pred_region
        %s191 = ssub.s32 %s15, 1
        // Predicated region
        $region13: #{last_model_forward.5} parent=11 // pred_check
          %p192 = pneg %p62
        $region14: #{last_model_forward.5} parent=11 // pred_check_branch
          %194 = sbr.rel (%p192) target = $region16
        $region15: #{last_model_forward.5} parent=11 // pred_region
          _
        $region16: #{last_model_forward.5} parent=11 // pred_fallthru
          _
        // Predicated region
        $region17: #{last_model_forward.5} parent=11 // pred_check
          %p195 = pneg %p83
        $region18: #{last_model_forward.5} parent=11 // pred_check_branch
          %197 = sbr.rel (%p195) target = $region20
        $region19: #{last_model_forward.5} parent=11 // pred_region
          _
        $region20: #{last_model_forward.5} parent=11 // pred_fallthru
          _
        // Predicated region
        $region21: #{last_model_forward.5} parent=11 // pred_check
          %p198 = pneg %p104
        $region22: #{last_model_forward.5} parent=11 // pred_check_branch
          %200 = sbr.rel (%p198) target = $region24
        $region23: #{last_model_forward.5} parent=11 // pred_region
          %202 = vsyncadd [#allocation3], 0
          %s204 = sshll.u32 %s3, 4
          %s205 = int_to_ptr.hbm [resolvable:$true] %s204
          %s206 = sshll.u32 [#allocation2], 4
          %s207 = int_to_ptr.vmem [resolvable:$true] %s206
          %209 = dma.hbm_to_vmem [thread:$0]  %s205, 16, %s207, [#allocation3]
        $region24: #{last_model_forward.5} parent=11 // pred_fallthru
          _
        // Predicated region
        $region25: #{last_model_forward.5} parent=11 // pred_check
          %p210 = pneg %p125
        $region26: #{last_model_forward.5} parent=11 // pred_check_branch
          %212 = sbr.rel (%p210) target = $region28
        $region27: #{last_model_forward.5} parent=11 // pred_region
          %214 = vsyncadd [#allocation5], 0
          %s216 = sshll.u32 %s4, 4
          %s217 = int_to_ptr.hbm [resolvable:$true] %s216
          %s218 = sshll.u32 [#allocation4], 4
          %s219 = int_to_ptr.vmem [resolvable:$true] %s218
          %221 = dma.hbm_to_vmem [thread:$0]  %s217, 16, %s219, [#allocation5]
        $region28: #{last_model_forward.5} parent=11 // pred_fallthru
          _
      $region12: #{last_model_forward.5} parent=5 // pred_fallthru
        _
      %p222 = scmp.lt.s32.totalorder %s15, 2
      // Predicated region
      $region29: #{last_model_forward.5} parent=5 // pred_check
        %p223 = pneg %p222
      $region30: #{last_model_forward.5} parent=5 // pred_check_branch
        %225 = sbr.rel (%p223) target = $region32
      $region31: #{last_model_forward.5} parent=5 // pred_region
        // Predicated region
        $region33: #{last_model_forward.5} parent=31 // pred_check
          %p226 = pneg %p35
        $region34: #{last_model_forward.5} parent=31 // pred_check_branch
          %228 = sbr.rel (%p226) target = $region36
        $region35: #{last_model_forward.5} parent=31 // pred_region
          %p229 = scmp.lt.s32.totalorder %s15, 1
          %s230 = scalar_select %p229, %s15, 1
          %s231 = smul.addr %s230, 8
          %s232 = smul.addr %s231, 4
          %s233 = scalar_lea.vmem %s0, %s232
        $region36: #{last_model_forward.5} parent=31 // pred_fallthru
          _
      $region32: #{last_model_forward.5} parent=5 // pred_fallthru
        _
      %p234 = scmp.le.s32.totalorder 1, %s15
      %p235 = scmp.lt.s32.totalorder %s15, 3
      %p236 = pnand %p234, %p235
      %p237 = pneg %p236
      // Predicated region
      $region37: #{last_model_forward.5} parent=5 // pred_check
        _
      $region38: #{last_model_forward.5} parent=5 // pred_check_branch
        %239 = sbr.rel (%p236) target = $region40
      $region39: #{last_model_forward.5} parent=5 // pred_region
        %s240 = ssub.s32 %s15, 1
        // Predicated region
        $region41: #{last_model_forward.5} parent=39 // pred_check
          %p241 = pneg %p104
        $region42: #{last_model_forward.5} parent=39 // pred_check_branch
          %243 = sbr.rel (%p241) target = $region44
        $region43: #{last_model_forward.5} parent=39 // pred_region
          %245 = dma.done [#allocation3], 16
        $region44: #{last_model_forward.5} parent=39 // pred_fallthru
          _
        // Predicated region
        $region45: #{last_model_forward.5} parent=39 // pred_check
          %p246 = pneg %p125
        $region46: #{last_model_forward.5} parent=39 // pred_check_branch
          %248 = sbr.rel (%p246) target = $region48
        $region47: #{last_model_forward.5} parent=39 // pred_region
          %250 = dma.done [#allocation5], 16
        $region48: #{last_model_forward.5} parent=39 // pred_fallthru
          _
        %p251 = scmp.lt.s32.totalorder %s20, 1
        %s252 = scalar_select %p251, %s20, 1
        %s253 = smul.addr %s252, 8
        %s254 = smul.addr %s253, 4
        %s255 = scalar_lea.vmem %s0, %s254
        %p256 = pneg %p41
        %p257 = pneg %p38
        %p258 = pneg %p62
        %p259 = pneg %p59
        %p260 = pneg %p83
        %p261 = pneg %p80
        %p262 = pneg %p104
        %p263 = pneg %p101
        %p264 = pneg %p125
        %p265 = pneg %p122
        %p266 = pneg %p151
        %p267 = pneg %p148
        %p268 = scmp.lt.s32.totalorder %s20, 1
        %s269 = scalar_select %p268, %s20, 1
        %s270 = smul.addr %s269, 8
        %s271 = smul.addr %s270, 8
        %s272 = scalar_lea.vmem %s5, %s271
        %p273 = pneg %p177
        %p274 = pneg %p174
        %p275 = scmp.lt.s32.totalorder %s20, 1
        %s276 = scalar_select %p275, %s20, 1
        %s277 = smul.addr %s276, 8
        %s278 = smul.addr %s277, 8
        %s279 = scalar_lea.vmem %s6, %s278
        %p280 = scmp.lt.s32.totalorder %s20, 1
        %s281 = scalar_select %p280, %s20, 1
        %s282 = smul.addr %s281, 8
        %s283 = smul.addr %s282, 4
        %s284 = scalar_lea.vmem %s0, %s283
        %p285 = scmp.lt.s32.totalorder %s20, 1
        %s286 = scalar_select %p285, %s20, 1
        %s287 = smul.addr %s286, 8
        %s288 = smul.addr %s287, 8
        %s289 = scalar_lea.vmem %s5, %s288
        %p290 = scmp.lt.s32.totalorder %s20, 1
        %s291 = scalar_select %p290, %s20, 1
        %s292 = smul.addr %s291, 8
        %s293 = smul.addr %s292, 8
        %s294 = scalar_lea.vmem %s6, %s293
        %v296 = vld [vmem:[%s284] sm:$0xf]
        %v297 = vld [vmem:[%s284 + $0x4] sm:$0xf]
        %v298 = vld [vmem:[%s284 + $0x8] sm:$0xf]
        %v299 = vld [vmem:[%s284 + $0xc] sm:$0xf]
        %v300 = vld [vmem:[%s284 + $0x10] sm:$0xf]
        %v301 = vld [vmem:[%s284 + $0x14] sm:$0xf]
        %v302 = vld [vmem:[%s284 + $0x18] sm:$0xf]
        %v303 = vld [vmem:[%s284 + $0x1c] sm:$0xf]
        %v304 = vld [vmem:[%s1] sm:$0xf]
        %v305 = vld [vmem:[%s1 + $0x4] sm:$0xf]
        %v306 = vld [vmem:[%s1 + $0x8] sm:$0xf]
        %v307 = vld [vmem:[%s1 + $0xc] sm:$0xf]
        %v308 = vld [vmem:[%s1 + $0x10] sm:$0xf]
        %v309 = vld [vmem:[%s1 + $0x14] sm:$0xf]
        %v310 = vld [vmem:[%s2] sm:$0x1]
        %v312 = vperm.slane %v310, 0
        %v322 = vunpack.c.l.b16 %v296
        %v323 = vunpack.c.l.b16 %v297
        %v324 = vunpack.c.l.b16 %v298
        %v325 = vunpack.c.l.b16 %v299
        %v326 = vunpack.c.l.b16 %v300
        %v327 = vunpack.c.l.b16 %v301
        %v328 = vunpack.c.l.b16 %v302
        %v329 = vunpack.c.l.b16 %v303
        %v330 = vpack.c.b16 %v323, %v322
        %v331 = vpack.c.b16 %v325, %v324
        %v332 = vpack.c.b16 %v327, %v326
        %v333 = vpack.c.b16 %v329, %v328
        %v340 = vunpack.c.l.b16 %v304
        %v341 = vunpack.c.l.b16 %v305
        %v342 = vunpack.c.l.b16 %v306
        %v343 = vunpack.c.l.b16 %v307
        %v344 = vunpack.c.l.b16 %v308
        %v345 = vunpack.c.l.b16 %v309
        %v346 = vpack.c.b16 %v341, %v340
        %v347 = vpack.c.b16 %v343, %v342
        %v348 = vpack.c.b16 %v345, %v344
        %vm352 = vcmask 392192
        %v354 = vsel %vm352, %v330, 0
        %v357 = vsel %vm352, %v331, 0
        %v360 = vsel %vm352, %v332, 0
        %v363 = vsel %vm352, %v333, 0
        %365 = vmatpush.bf16.msra.mxu0 0
        %366 = vmatpush.bf16.msra.mxu0 0
        %367 = vmatpush.bf16.msra.mxu0 0
        %368 = vmatpush.bf16.msra.mxu0 0
        %369 = vmatpush.bf16.msra.mxu0 0
        %370 = vmatpush.bf16.msra.mxu0 %v348
        %371 = vmatpush.bf16.msra.mxu0 %v347
        %372 = vmatpush.bf16.msra.mxu0 %v346
        %373 = vmatmul.bf16.gmra.mxu0 %v354
        %v374 = vpop.f32.mrf.mxu0
        %v375 = vadd.f32 %v312, %v374
        %v376 = vpop.f32.mrf.mxu0
        %v377 = vadd.f32 %v312, %v376
        %378 = vmatmul.bf16.gmra.mxu0 %v357
        %v379 = vpop.f32.mrf.mxu0
        %v380 = vadd.f32 %v312, %v379
        %v381 = vpop.f32.mrf.mxu0
        %v382 = vadd.f32 %v312, %v381
        %383 = vmatmul.bf16.gmra.mxu0 %v360
        %v384 = vpop.f32.mrf.mxu0
        %v385 = vadd.f32 %v312, %v384
        %v386 = vpop.f32.mrf.mxu0
        %v387 = vadd.f32 %v312, %v386
        %388 = vmatmul.bf16.gmra.mxu0 %v363
        %v389 = vpop.f32.mrf.mxu0
        %v390 = vadd.f32 %v312, %v389
        %v391 = vpop.f32.mrf.mxu0
        %v392 = vadd.f32 %v312, %v391
        %393 = vdwg.mxu0
        %vm394 = vcmask 261120
        %395 = vst.msk [vmem:[%s289] sm:$0xff] %vm394, %v375
        %396 = vst.msk [vmem:[%s289 + $0x8] sm:$0xff] %vm394, %v377
        %397 = vst.msk [vmem:[%s289 + $0x10] sm:$0xff] %vm394, %v380
        %398 = vst.msk [vmem:[%s289 + $0x18] sm:$0xff] %vm394, %v382
        %399 = vst.msk [vmem:[%s289 + $0x20] sm:$0xff] %vm394, %v385
        %400 = vst.msk [vmem:[%s289 + $0x28] sm:$0xff] %vm394, %v387
        %401 = vst.msk [vmem:[%s289 + $0x30] sm:$0xff] %vm394, %v390
        %402 = vst.msk [vmem:[%s289 + $0x38] sm:$0xff] %vm394, %v392
        %v403 = vld [vmem:[#allocation2] sm:$0x1]
        %v404 = vld [vmem:[#allocation4] sm:$0x1]
        %413 = vrot.lane.b32.xlu0 %v375, 96
        %v414 = vpop.permute.xlu0 %413
        %415 = vrot.lane.b32.xlu0 %v377, 96
        %v416 = vpop.permute.xlu0 %415
        %417 = vrot.lane.b32.xlu0 %v380, 96
        %v418 = vpop.permute.xlu0 %417
        %419 = vrot.lane.b32.xlu0 %v382, 96
        %v420 = vpop.permute.xlu0 %419
        %421 = vrot.lane.b32.xlu0 %v385, 96
        %v422 = vpop.permute.xlu0 %421
        %423 = vrot.lane.b32.xlu0 %v387, 96
        %v424 = vpop.permute.xlu0 %423
        %425 = vrot.lane.b32.xlu0 %v390, 96
        %v426 = vpop.permute.xlu0 %425
        %427 = vrot.lane.b32.xlu0 %v392, 96
        %v428 = vpop.permute.xlu0 %427
        %v437 = vsel %vm394, %v414, 0.0
        %438 = vadd.xlane.f32.xlu0 %v437
        %v439 = vpop.xlane.xlu0 %438
        %v440 = vsel %vm394, %v416, 0.0
        %441 = vadd.xlane.f32.xlu0 %v440
        %v442 = vpop.xlane.xlu0 %441
        %v443 = vsel %vm394, %v418, 0.0
        %444 = vadd.xlane.f32.xlu0 %v443
        %v445 = vpop.xlane.xlu0 %444
        %v446 = vsel %vm394, %v420, 0.0
        %447 = vadd.xlane.f32.xlu0 %v446
        %v448 = vpop.xlane.xlu0 %447
        %v449 = vsel %vm394, %v422, 0.0
        %450 = vadd.xlane.f32.xlu0 %v449
        %v451 = vpop.xlane.xlu0 %450
        %v452 = vsel %vm394, %v424, 0.0
        %453 = vadd.xlane.f32.xlu0 %v452
        %v454 = vpop.xlane.xlu0 %453
        %v455 = vsel %vm394, %v426, 0.0
        %456 = vadd.xlane.f32.xlu0 %v455
        %v457 = vpop.xlane.xlu0 %456
        %v458 = vsel %vm394, %v428, 0.0
        %459 = vadd.xlane.f32.xlu0 %v458
        %v460 = vpop.xlane.xlu0 %459
        %v461 = vrcp.pop 32.0
        %v462 = vmul.f32 32.0, %v461
        %v463 = vsub.f32 1.0, %v462
        %v464 = vmul.f32 %v461, %v463
        %v465 = vadd.f32 %v461, %v464
        %vm466 = vweird.f32 %v461
        %v467 = vsel %vm466, %v461, %v465
        %v468 = vmul.f32 %v439, %v467
        %v469 = vmul.f32 %v442, %v467
        %v470 = vmul.f32 %v445, %v467
        %v471 = vmul.f32 %v448, %v467
        %v472 = vmul.f32 %v451, %v467
        %v473 = vmul.f32 %v454, %v467
        %v474 = vmul.f32 %v457, %v467
        %v475 = vmul.f32 %v460, %v467
        %v476 = vsub.f32 %v375, %v468
        %v477 = vsub.f32 %v377, %v469
        %v478 = vsub.f32 %v380, %v470
        %v479 = vsub.f32 %v382, %v471
        %v480 = vsub.f32 %v385, %v472
        %v481 = vsub.f32 %v387, %v473
        %v482 = vsub.f32 %v390, %v474
        %v483 = vsub.f32 %v392, %v475
        %v484 = vmul.f32 %v476, %v476
        %v485 = vmul.f32 %v477, %v477
        %v486 = vmul.f32 %v478, %v478
        %v487 = vmul.f32 %v479, %v479
        %v488 = vmul.f32 %v480, %v480
        %v489 = vmul.f32 %v481, %v481
        %v490 = vmul.f32 %v482, %v482
        %v491 = vmul.f32 %v483, %v483
        %500 = vrot.lane.b32.xlu0 %v484, 96
        %v501 = vpop.permute.xlu0 %500
        %502 = vrot.lane.b32.xlu0 %v485, 96
        %v503 = vpop.permute.xlu0 %502
        %504 = vrot.lane.b32.xlu0 %v486, 96
        %v505 = vpop.permute.xlu0 %504
        %506 = vrot.lane.b32.xlu0 %v487, 96
        %v507 = vpop.permute.xlu0 %506
        %508 = vrot.lane.b32.xlu0 %v488, 96
        %v509 = vpop.permute.xlu0 %508
        %510 = vrot.lane.b32.xlu0 %v489, 96
        %v511 = vpop.permute.xlu0 %510
        %512 = vrot.lane.b32.xlu0 %v490, 96
        %v513 = vpop.permute.xlu0 %512
        %514 = vrot.lane.b32.xlu0 %v491, 96
        %v515 = vpop.permute.xlu0 %514
        %v524 = vsel %vm394, %v501, 0.0
        %525 = vadd.xlane.f32.xlu0 %v524
        %v526 = vpop.xlane.xlu0 %525
        %v527 = vsel %vm394, %v503, 0.0
        %528 = vadd.xlane.f32.xlu0 %v527
        %v529 = vpop.xlane.xlu0 %528
        %v530 = vsel %vm394, %v505, 0.0
        %531 = vadd.xlane.f32.xlu0 %v530
        %v532 = vpop.xlane.xlu0 %531
        %v533 = vsel %vm394, %v507, 0.0
        %534 = vadd.xlane.f32.xlu0 %v533
        %v535 = vpop.xlane.xlu0 %534
        %v536 = vsel %vm394, %v509, 0.0
        %537 = vadd.xlane.f32.xlu0 %v536
        %v538 = vpop.xlane.xlu0 %537
        %v539 = vsel %vm394, %v511, 0.0
        %540 = vadd.xlane.f32.xlu0 %v539
        %v541 = vpop.xlane.xlu0 %540
        %v542 = vsel %vm394, %v513, 0.0
        %543 = vadd.xlane.f32.xlu0 %v542
        %v544 = vpop.xlane.xlu0 %543
        %v545 = vsel %vm394, %v515, 0.0
        %546 = vadd.xlane.f32.xlu0 %v545
        %v547 = vpop.xlane.xlu0 %546
        %v548 = vmul.f32 %v526, %v467
        %v549 = vmul.f32 %v529, %v467
        %v550 = vmul.f32 %v532, %v467
        %v551 = vmul.f32 %v535, %v467
        %v552 = vmul.f32 %v538, %v467
        %v553 = vmul.f32 %v541, %v467
        %v554 = vmul.f32 %v544, %v467
        %v555 = vmul.f32 %v547, %v467
        %v556 = vadd.f32 %v548, 1e-05
        %v557 = vadd.f32 %v549, 1e-05
        %v558 = vadd.f32 %v550, 1e-05
        %v559 = vadd.f32 %v551, 1e-05
        %v560 = vadd.f32 %v552, 1e-05
        %v561 = vadd.f32 %v553, 1e-05
        %v562 = vadd.f32 %v554, 1e-05
        %v563 = vadd.f32 %v555, 1e-05
        %v564 = vrsqrt.pop %v556
        %v565 = vmul.f32 %v564, %v556
        %v566 = vmul.f32 %v565, %v564
        %v567 = vmul.f32 0.5, %v566
        %v568 = vsub.f32 1.5, %v567
        %v569 = vmul.f32 %v564, %v568
        %vm570 = vweird.f32 %v556
        %vm571 = vweird.f32 %v564
        %vm572 = vmor %vm570, %vm571
        %v573 = vsel %vm572, %v564, %v569
        %v574 = vrsqrt.pop %v557
        %v575 = vmul.f32 %v574, %v557
        %v576 = vmul.f32 %v575, %v574
        %v577 = vmul.f32 0.5, %v576
        %v578 = vsub.f32 1.5, %v577
        %v579 = vmul.f32 %v574, %v578
        %vm580 = vweird.f32 %v557
        %vm581 = vweird.f32 %v574
        %vm582 = vmor %vm580, %vm581
        %v583 = vsel %vm582, %v574, %v579
        %v584 = vrsqrt.pop %v558
        %v585 = vmul.f32 %v584, %v558
        %v586 = vmul.f32 %v585, %v584
        %v587 = vmul.f32 0.5, %v586
        %v588 = vsub.f32 1.5, %v587
        %v589 = vmul.f32 %v584, %v588
        %vm590 = vweird.f32 %v558
        %vm591 = vweird.f32 %v584
        %vm592 = vmor %vm590, %vm591
        %v593 = vsel %vm592, %v584, %v589
        %v594 = vrsqrt.pop %v559
        %v595 = vmul.f32 %v594, %v559
        %v596 = vmul.f32 %v595, %v594
        %v597 = vmul.f32 0.5, %v596
        %v598 = vsub.f32 1.5, %v597
        %v599 = vmul.f32 %v594, %v598
        %vm600 = vweird.f32 %v559
        %vm601 = vweird.f32 %v594
        %vm602 = vmor %vm600, %vm601
        %v603 = vsel %vm602, %v594, %v599
        %v604 = vrsqrt.pop %v560
        %v605 = vmul.f32 %v604, %v560
        %v606 = vmul.f32 %v605, %v604
        %v607 = vmul.f32 0.5, %v606
        %v608 = vsub.f32 1.5, %v607
        %v609 = vmul.f32 %v604, %v608
        %vm610 = vweird.f32 %v560
        %vm611 = vweird.f32 %v604
        %vm612 = vmor %vm610, %vm611
        %v613 = vsel %vm612, %v604, %v609
        %v614 = vrsqrt.pop %v561
        %v615 = vmul.f32 %v614, %v561
        %v616 = vmul.f32 %v615, %v614
        %v617 = vmul.f32 0.5, %v616
        %v618 = vsub.f32 1.5, %v617
        %v619 = vmul.f32 %v614, %v618
        %vm620 = vweird.f32 %v561
        %vm621 = vweird.f32 %v614
        %vm622 = vmor %vm620, %vm621
        %v623 = vsel %vm622, %v614, %v619
        %v624 = vrsqrt.pop %v562
        %v625 = vmul.f32 %v624, %v562
        %v626 = vmul.f32 %v625, %v624
        %v627 = vmul.f32 0.5, %v626
        %v628 = vsub.f32 1.5, %v627
        %v629 = vmul.f32 %v624, %v628
        %vm630 = vweird.f32 %v562
        %vm631 = vweird.f32 %v624
        %vm632 = vmor %vm630, %vm631
        %v633 = vsel %vm632, %v624, %v629
        %v634 = vrsqrt.pop %v563
        %v635 = vmul.f32 %v634, %v563
        %v636 = vmul.f32 %v635, %v634
        %v637 = vmul.f32 0.5, %v636
        %v638 = vsub.f32 1.5, %v637
        %v639 = vmul.f32 %v634, %v638
        %vm640 = vweird.f32 %v563
        %vm641 = vweird.f32 %v634
        %vm642 = vmor %vm640, %vm641
        %v643 = vsel %vm642, %v634, %v639
        %v644 = vmul.f32 %v476, %v573
        %v645 = vmul.f32 %v477, %v583
        %v646 = vmul.f32 %v478, %v593
        %v647 = vmul.f32 %v479, %v603
        %v648 = vmul.f32 %v480, %v613
        %v649 = vmul.f32 %v481, %v623
        %v650 = vmul.f32 %v482, %v633
        %v651 = vmul.f32 %v483, %v643
        %v653 = vperm.slane %v403, 0
        %654 = vrot.lane.b32.xlu0 %v653, 32
        %v655 = vpop.permute.xlu0 %654
        %v657 = vmul.f32 %v644, %v655
        %v658 = vmul.f32 %v645, %v655
        %v659 = vmul.f32 %v646, %v655
        %v660 = vmul.f32 %v647, %v655
        %v661 = vmul.f32 %v648, %v655
        %v662 = vmul.f32 %v649, %v655
        %v663 = vmul.f32 %v650, %v655
        %v664 = vmul.f32 %v651, %v655
        %v666 = vperm.slane %v404, 0
        %667 = vrot.lane.b32.xlu0 %v666, 32
        %v668 = vpop.permute.xlu0 %667
        %v670 = vadd.f32 %v657, %v668
        %v671 = vadd.f32 %v658, %v668
        %v672 = vadd.f32 %v659, %v668
        %v673 = vadd.f32 %v660, %v668
        %v674 = vadd.f32 %v661, %v668
        %v675 = vadd.f32 %v662, %v668
        %v676 = vadd.f32 %v663, %v668
        %v677 = vadd.f32 %v664, %v668
        %686 = vrot.lane.b32.xlu0 %v670, 96
        %v687 = vpop.permute.xlu0 %686
        %688 = vrot.lane.b32.xlu0 %v671, 96
        %v689 = vpop.permute.xlu0 %688
        %690 = vrot.lane.b32.xlu0 %v672, 96
        %v691 = vpop.permute.xlu0 %690
        %692 = vrot.lane.b32.xlu0 %v673, 96
        %v693 = vpop.permute.xlu0 %692
        %694 = vrot.lane.b32.xlu0 %v674, 96
        %v695 = vpop.permute.xlu0 %694
        %696 = vrot.lane.b32.xlu0 %v675, 96
        %v697 = vpop.permute.xlu0 %696
        %698 = vrot.lane.b32.xlu0 %v676, 96
        %v699 = vpop.permute.xlu0 %698
        %700 = vrot.lane.b32.xlu0 %v677, 96
        %v701 = vpop.permute.xlu0 %700
        %710 = vst.msk [vmem:[%s294] sm:$0xff] %vm394, %v687
        %711 = vst.msk [vmem:[%s294 + $0x8] sm:$0xff] %vm394, %v689
        %712 = vst.msk [vmem:[%s294 + $0x10] sm:$0xff] %vm394, %v691
        %713 = vst.msk [vmem:[%s294 + $0x18] sm:$0xff] %vm394, %v693
        %714 = vst.msk [vmem:[%s294 + $0x20] sm:$0xff] %vm394, %v695
        %715 = vst.msk [vmem:[%s294 + $0x28] sm:$0xff] %vm394, %v697
        %716 = vst.msk [vmem:[%s294 + $0x30] sm:$0xff] %vm394, %v699
        %717 = vst.msk [vmem:[%s294 + $0x38] sm:$0xff] %vm394, %v701
        %p718 = scmp.lt.s32.totalorder %s20, 1
        %s719 = scalar_select %p718, %s20, 1
        %s720 = smul.addr %s719, 8
        %s721 = smul.addr %s720, 8
        %s722 = scalar_lea.vmem %s5, %s721
        %p723 = scmp.lt.s32.totalorder %s20, 1
        %s724 = scalar_select %p723, %s20, 1
        %s725 = smul.addr %s724, 8
        %s726 = smul.addr %s725, 8
        %s727 = scalar_lea.vmem %s6, %s726
        // Predicated region
        $region49: #{last_model_forward.5} parent=39 // pred_check
          %p728 = pneg %p148
        $region50: #{last_model_forward.5} parent=39 // pred_check_branch
          %730 = sbr.rel (%p728) target = $region52
        $region51: #{last_model_forward.5} parent=39 // pred_region
          _
        $region52: #{last_model_forward.5} parent=39 // pred_fallthru
          _
        // Predicated region
        $region53: #{last_model_forward.5} parent=39 // pred_check
          %p731 = pneg %p174
        $region54: #{last_model_forward.5} parent=39 // pred_check_branch
          %733 = sbr.rel (%p731) target = $region56
        $region55: #{last_model_forward.5} parent=39 // pred_region
          _
        $region56: #{last_model_forward.5} parent=39 // pred_fallthru
          _
      $region40: #{last_model_forward.5} parent=5 // pred_fallthru
        _
      %p734 = scmp.le.s32.totalorder 2, %s15
      // Predicated region
      $region57: #{last_model_forward.5} parent=5 // pred_check
        %p735 = pneg %p734
      $region58: #{last_model_forward.5} parent=5 // pred_check_branch
        %737 = sbr.rel (%p735) target = $region60
      $region59: #{last_model_forward.5} parent=5 // pred_region
        %s738 = ssub.s32 %s15, 2
        // Predicated region
        $region61: #{last_model_forward.5} parent=59 // pred_check
          %p739 = pneg %p154
        $region62: #{last_model_forward.5} parent=59 // pred_check_branch
          %741 = sbr.rel (%p739) target = $region64
        $region63: #{last_model_forward.5} parent=59 // pred_region
          %p742 = scmp.lt.s32.totalorder %s21, 1
          %s743 = scalar_select %p742, %s21, 1
          %s744 = smul.addr %s743, 8
          %s745 = smul.addr %s744, 8
          %s746 = scalar_lea.vmem %s5, %s745
        $region64: #{last_model_forward.5} parent=59 // pred_fallthru
          _
        // Predicated region
        $region65: #{last_model_forward.5} parent=59 // pred_check
          %p747 = pneg %p180
        $region66: #{last_model_forward.5} parent=59 // pred_check_branch
          %749 = sbr.rel (%p747) target = $region68
        $region67: #{last_model_forward.5} parent=59 // pred_region
          %p750 = scmp.lt.s32.totalorder %s21, 1
          %s751 = scalar_select %p750, %s21, 1
          %s752 = smul.addr %s751, 8
          %s753 = smul.addr %s752, 8
          %s754 = scalar_lea.vmem %s6, %s753
        $region68: #{last_model_forward.5} parent=59 // pred_fallthru
          _
      $region60: #{last_model_forward.5} parent=5 // pred_fallthru
        _
    $region6: #{last_model_forward.5} parent=1 // loop_footer
      %s19 = sadd.s32 1, %s15
    $region7: #{last_model_forward.5} parent=1 // loop_footer_branch
      %14 = sbr.rel target = $region3
    $region8: #{last_model_forward.5} parent=1 // loop_exit
      _
    %755 = vsyncpa [#allocation3], 1
    %s756 = scalar_lea.sflag [#allocation3], 1
    %757 = vsyncpa %s756, 1
    %758 = vsyncpa [#allocation5], 1

// kernel: last_model_forward.6
$region0: #{last_model_forward.6}
  #allocation0 [shape = 'u32[]', space=smem, size = 0x4, offset = 0x4, fixed_abs, tag = 'smem constant byte address 0x4 - core index']
  #allocation1 [shape = 'u32[72,128]{1,0:T(1,128)}', space=vmem, size = 0x9000, scoped, tag = 'internal scratch']
  #allocation2 [shape = 'bf16[10,10,32]{2,1,0:T(8,128)(2,1)}', space=vmem, size = 0xa000, scoped, tag = 'scratch operand']
  #allocation3 [shape = 'f32[64,32]{1,0:T(8,128)}', space=vmem, size = 0x8000, scoped, tag = 'scratch operand']
  #allocation4 [shape = 'f32[64,32]{1,0:T(8,128)}', space=vmem, size = 0x8000, scoped, tag = 'scratch operand']
  %s0 = inlined_call_operand.vmem [shape: f32[2,8,8,32], index: 0, kind: input, shape index: {}]
  %s1 = inlined_call_operand.vmem [shape: bf16[288,32], index: 1, kind: input, shape index: {}]
  %s2 = inlined_call_operand.vmem [shape: f32[1,32], index: 2, kind: input, shape index: {}]
  %s3 = inlined_call_operand.vmem [shape: bf16[15,288,32], index: 3, kind: input, shape index: {}]
  %s4 = inlined_call_operand.vmem [shape: f32[15,1,32], index: 4, kind: input, shape index: {}]
  %s5 = inlined_call_operand.vmem [shape: bf16[15,288,32], index: 5, kind: input, shape index: {}]
  %s6 = inlined_call_operand.vmem [shape: f32[15,1,32], index: 6, kind: input, shape index: {}]
  %s7 = inlined_call_operand.vmem [shape: f32[2,8,8,32], index: 7, kind: output, shape index: {}]
  %s8 = sld [smem:[#allocation0]]
  $region68: #{last_model_forward.6} parent=0
    _
  %s10 = ssub.s32 1, %s8
  %s11 = scalar_select 0, %s10, %s8
  loop: start=0, step=1, limit=4
  $region2: #{last_model_forward.6} parent=0 // loop_pre_header
    _
  $region3: #{last_model_forward.6} parent=0 // loop_header
    %s13 = sphi 0, %s17
    %p14 = scmp.ge.s32.totalorder %s13, 4
    %s23 = sphi 0, %s25
    %s26 = sphi 0, %s23
    %s27 = sphi 0, %s26
    %s43 = sphi 0, %s27
    %s47 = sphi 0, %s47
    %s49 = sphi 0, %s47
    %s50 = sphi 0, %s49
    %s64 = sphi 0, %s50
    %s68 = sphi 0, %s68
    %s70 = sphi 0, %s68
    %s71 = sphi 0, %s70
    %s85 = sphi 0, %s71
    %s89 = sphi 0, %s89
    %s91 = sphi 0, %s89
    %s92 = sphi 0, %s91
    %s106 = sphi 0, %s92
    %s110 = sphi 0, %s110
    %s112 = sphi 0, %s110
    %s113 = sphi 0, %s112
    %s127 = sphi 0, %s113
    %s131 = sphi 0, %s131
    %s133 = sphi 0, %s131
    %s134 = sphi 0, %s133
    %s148 = sphi 0, %s134
    %s152 = sphi 0, %s152
    %s154 = sphi 0, %s152
    %s155 = sphi 0, %s154
    %s169 = sphi 0, %s155
    %s175 = sphi 0, %s177
    %s178 = sphi 0, %s175
    %s179 = sphi 0, %s178
    %s195 = sphi 0, %s179
  $region4: #{last_model_forward.6} parent=0 // loop_header_branch
    %16 = sbr.rel (%p14) target = $region8
  $region5: #{last_model_forward.6} parent=0 // loop_body
    %s18 = ssub.s32 %s13, 1
    %s19 = ssub.s32 %s13, 2
    %s20 = sadd.s32 %s13, 1
    %s21 = ssub.s32 %s13, %s20
    %p22 = scmp.eq.s32.totalorder %s21, 0
    %s24 = sadd.s32 %s23, 1
    %s25 = scalar_select %p22, %s23, %s24
    %p28 = pneg %p22
    %p29 = scmp.eq.s32.totalorder %s13, 1
    %p30 = por %p28, %p29
    %p31 = scmp.ne.s32.totalorder %s23, %s26
    %p32 = scmp.eq.s32.totalorder %s13, 0
    %p33 = por %p31, %p32
    %p34 = scmp.ne.s32.totalorder %s23, %s26
    %p35 = scmp.eq.s32.totalorder %s18, 1
    %p36 = por %p34, %p35
    %p37 = scmp.ne.s32.totalorder %s26, %s27
    %p38 = scmp.eq.s32.totalorder %s18, 0
    %p39 = por %p37, %p38
    %p40 = scmp.ne.s32.totalorder %s26, %s27
    %p41 = scmp.eq.s32.totalorder %s19, 1
    %p42 = por %p40, %p41
    %p44 = scmp.ne.s32.totalorder %s27, %s43
    %p45 = scmp.eq.s32.totalorder %s19, 0
    %p46 = por %p44, %p45
    %s48 = sadd.s32 %s47, 1
    %p51 = scmp.eq.s32.totalorder %s13, 1
    %p52 = scmp.ne.s32.totalorder %s47, %s49
    %p53 = scmp.eq.s32.totalorder %s13, 0
    %p54 = por %p52, %p53
    %p55 = scmp.ne.s32.totalorder %s47, %s49
    %p56 = scmp.eq.s32.totalorder %s18, 1
    %p57 = por %p55, %p56
    %p58 = scmp.ne.s32.totalorder %s49, %s50
    %p59 = scmp.eq.s32.totalorder %s18, 0
    %p60 = por %p58, %p59
    %p61 = scmp.ne.s32.totalorder %s49, %s50
    %p62 = scmp.eq.s32.totalorder %s19, 1
    %p63 = por %p61, %p62
    %p65 = scmp.ne.s32.totalorder %s50, %s64
    %p66 = scmp.eq.s32.totalorder %s19, 0
    %p67 = por %p65, %p66
    %s69 = sadd.s32 %s68, 1
    %p72 = scmp.eq.s32.totalorder %s13, 1
    %p73 = scmp.ne.s32.totalorder %s68, %s70
    %p74 = scmp.eq.s32.totalorder %s13, 0
    %p75 = por %p73, %p74
    %p76 = scmp.ne.s32.totalorder %s68, %s70
    %p77 = scmp.eq.s32.totalorder %s18, 1
    %p78 = por %p76, %p77
    %p79 = scmp.ne.s32.totalorder %s70, %s71
    %p80 = scmp.eq.s32.totalorder %s18, 0
    %p81 = por %p79, %p80
    %p82 = scmp.ne.s32.totalorder %s70, %s71
    %p83 = scmp.eq.s32.totalorder %s19, 1
    %p84 = por %p82, %p83
    %p86 = scmp.ne.s32.totalorder %s71, %s85
    %p87 = scmp.eq.s32.totalorder %s19, 0
    %p88 = por %p86, %p87
    %s90 = sadd.s32 %s89, 1
    %p93 = scmp.eq.s32.totalorder %s13, 1
    %p94 = scmp.ne.s32.totalorder %s89, %s91
    %p95 = scmp.eq.s32.totalorder %s13, 0
    %p96 = por %p94, %p95
    %p97 = scmp.ne.s32.totalorder %s89, %s91
    %p98 = scmp.eq.s32.totalorder %s18, 1
    %p99 = por %p97, %p98
    %p100 = scmp.ne.s32.totalorder %s91, %s92
    %p101 = scmp.eq.s32.totalorder %s18, 0
    %p102 = por %p100, %p101
    %p103 = scmp.ne.s32.totalorder %s91, %s92
    %p104 = scmp.eq.s32.totalorder %s19, 1
    %p105 = por %p103, %p104
    %p107 = scmp.ne.s32.totalorder %s92, %s106
    %p108 = scmp.eq.s32.totalorder %s19, 0
    %p109 = por %p107, %p108
    %s111 = sadd.s32 %s110, 1
    %p114 = scmp.eq.s32.totalorder %s13, 1
    %p115 = scmp.ne.s32.totalorder %s110, %s112
    %p116 = scmp.eq.s32.totalorder %s13, 0
    %p117 = por %p115, %p116
    %p118 = scmp.ne.s32.totalorder %s110, %s112
    %p119 = scmp.eq.s32.totalorder %s18, 1
    %p120 = por %p118, %p119
    %p121 = scmp.ne.s32.totalorder %s112, %s113
    %p122 = scmp.eq.s32.totalorder %s18, 0
    %p123 = por %p121, %p122
    %p124 = scmp.ne.s32.totalorder %s112, %s113
    %p125 = scmp.eq.s32.totalorder %s19, 1
    %p126 = por %p124, %p125
    %p128 = scmp.ne.s32.totalorder %s113, %s127
    %p129 = scmp.eq.s32.totalorder %s19, 0
    %p130 = por %p128, %p129
    %s132 = sadd.s32 %s131, 1
    %p135 = scmp.eq.s32.totalorder %s13, 1
    %p136 = scmp.ne.s32.totalorder %s131, %s133
    %p137 = scmp.eq.s32.totalorder %s13, 0
    %p138 = por %p136, %p137
    %p139 = scmp.ne.s32.totalorder %s131, %s133
    %p140 = scmp.eq.s32.totalorder %s18, 1
    %p141 = por %p139, %p140
    %p142 = scmp.ne.s32.totalorder %s133, %s134
    %p143 = scmp.eq.s32.totalorder %s18, 0
    %p144 = por %p142, %p143
    %p145 = scmp.ne.s32.totalorder %s133, %s134
    %p146 = scmp.eq.s32.totalorder %s19, 1
    %p147 = por %p145, %p146
    %p149 = scmp.ne.s32.totalorder %s134, %s148
    %p150 = scmp.eq.s32.totalorder %s19, 0
    %p151 = por %p149, %p150
    %s153 = sadd.s32 %s152, 1
    %p156 = scmp.eq.s32.totalorder %s13, 1
    %p157 = scmp.ne.s32.totalorder %s152, %s154
    %p158 = scmp.eq.s32.totalorder %s13, 0
    %p159 = por %p157, %p158
    %p160 = scmp.ne.s32.totalorder %s152, %s154
    %p161 = scmp.eq.s32.totalorder %s18, 1
    %p162 = por %p160, %p161
    %p163 = scmp.ne.s32.totalorder %s154, %s155
    %p164 = scmp.eq.s32.totalorder %s18, 0
    %p165 = por %p163, %p164
    %p166 = scmp.ne.s32.totalorder %s154, %s155
    %p167 = scmp.eq.s32.totalorder %s19, 1
    %p168 = por %p166, %p167
    %p170 = scmp.ne.s32.totalorder %s155, %s169
    %p171 = scmp.eq.s32.totalorder %s19, 0
    %p172 = por %p170, %p171
    %s173 = ssub.s32 %s13, %s20
    %p174 = scmp.eq.s32.totalorder %s173, 0
    %s176 = sadd.s32 %s175, 1
    %s177 = scalar_select %p174, %s175, %s176
    %p180 = pneg %p174
    %p181 = scmp.eq.s32.totalorder %s13, 1
    %p182 = por %p180, %p181
    %p183 = scmp.ne.s32.totalorder %s175, %s178
    %p184 = scmp.eq.s32.totalorder %s13, 0
    %p185 = por %p183, %p184
    %p186 = scmp.ne.s32.totalorder %s175, %s178
    %p187 = scmp.eq.s32.totalorder %s18, 1
    %p188 = por %p186, %p187
    %p189 = scmp.ne.s32.totalorder %s178, %s179
    %p190 = scmp.eq.s32.totalorder %s18, 0
    %p191 = por %p189, %p190
    %p192 = scmp.ne.s32.totalorder %s178, %s179
    %p193 = scmp.eq.s32.totalorder %s19, 1
    %p194 = por %p192, %p193
    %p196 = scmp.ne.s32.totalorder %s179, %s195
    %p197 = scmp.eq.s32.totalorder %s19, 0
    %p198 = por %p196, %p197
    %p199 = scmp.le.s32.totalorder 1, %s13
    %p200 = scmp.lt.s32.totalorder %s13, 3
    %p201 = pnand %p199, %p200
    %p202 = pneg %p201
    // Predicated region
    $region9: #{last_model_forward.6} parent=5 // pred_check
      _
    $region10: #{last_model_forward.6} parent=5 // pred_check_branch
      %204 = sbr.rel (%p201) target = $region12
    $region11: #{last_model_forward.6} parent=5 // pred_region
      %s205 = ssub.s32 %s13, 1
      // Predicated region
      $region13: #{last_model_forward.6} parent=11 // pred_check
        %p206 = pneg %p60
      $region14: #{last_model_forward.6} parent=11 // pred_check_branch
        %208 = sbr.rel (%p206) target = $region16
      $region15: #{last_model_forward.6} parent=11 // pred_region
        _
      $region16: #{last_model_forward.6} parent=11 // pred_fallthru
        _
      // Predicated region
      $region17: #{last_model_forward.6} parent=11 // pred_check
        %p209 = pneg %p81
      $region18: #{last_model_forward.6} parent=11 // pred_check_branch
        %211 = sbr.rel (%p209) target = $region20
      $region19: #{last_model_forward.6} parent=11 // pred_region
        _
      $region20: #{last_model_forward.6} parent=11 // pred_fallthru
        _
      // Predicated region
      $region21: #{last_model_forward.6} parent=11 // pred_check
        %p212 = pneg %p102
      $region22: #{last_model_forward.6} parent=11 // pred_check_branch
        %214 = sbr.rel (%p212) target = $region24
      $region23: #{last_model_forward.6} parent=11 // pred_region
        _
      $region24: #{last_model_forward.6} parent=11 // pred_fallthru
        _
      // Predicated region
      $region25: #{last_model_forward.6} parent=11 // pred_check
        %p215 = pneg %p123
      $region26: #{last_model_forward.6} parent=11 // pred_check_branch
        %217 = sbr.rel (%p215) target = $region28
      $region27: #{last_model_forward.6} parent=11 // pred_region
        _
      $region28: #{last_model_forward.6} parent=11 // pred_fallthru
        _
      // Predicated region
      $region29: #{last_model_forward.6} parent=11 // pred_check
        %p218 = pneg %p144
      $region30: #{last_model_forward.6} parent=11 // pred_check_branch
        %220 = sbr.rel (%p218) target = $region32
      $region31: #{last_model_forward.6} parent=11 // pred_region
        _
      $region32: #{last_model_forward.6} parent=11 // pred_fallthru
        _
      // Predicated region
      $region33: #{last_model_forward.6} parent=11 // pred_check
        %p221 = pneg %p165
      $region34: #{last_model_forward.6} parent=11 // pred_check_branch
        %223 = sbr.rel (%p221) target = $region36
      $region35: #{last_model_forward.6} parent=11 // pred_region
        _
      $region36: #{last_model_forward.6} parent=11 // pred_fallthru
        _
    $region12: #{last_model_forward.6} parent=5 // pred_fallthru
      _
    %p224 = scmp.lt.s32.totalorder %s13, 2
    // Predicated region
    $region37: #{last_model_forward.6} parent=5 // pred_check
      %p225 = pneg %p224
    $region38: #{last_model_forward.6} parent=5 // pred_check_branch
      %227 = sbr.rel (%p225) target = $region40
    $region39: #{last_model_forward.6} parent=5 // pred_region
      // Predicated region
      $region41: #{last_model_forward.6} parent=39 // pred_check
        %p228 = pneg %p33
      $region42: #{last_model_forward.6} parent=39 // pred_check_branch
        %230 = sbr.rel (%p228) target = $region44
      $region43: #{last_model_forward.6} parent=39 // pred_region
        %p231 = scmp.lt.s32.totalorder %s13, 1
        %s232 = scalar_select %p231, %s13, 1
        %s233 = smul.addr %s232, 8
        %s234 = smul.addr %s233, 8
        %s235 = scalar_lea.vmem %s0, %s234
      $region44: #{last_model_forward.6} parent=39 // pred_fallthru
        _
    $region40: #{last_model_forward.6} parent=5 // pred_fallthru
      _
    %p236 = scmp.le.s32.totalorder 1, %s13
    %p237 = scmp.lt.s32.totalorder %s13, 3
    %p238 = pnand %p236, %p237
    %p239 = pneg %p238
    // Predicated region
    $region45: #{last_model_forward.6} parent=5 // pred_check
      _
    $region46: #{last_model_forward.6} parent=5 // pred_check_branch
      %241 = sbr.rel (%p238) target = $region48
    $region47: #{last_model_forward.6} parent=5 // pred_region
      %s242 = ssub.s32 %s13, 1
      %p243 = scmp.lt.s32.totalorder %s18, 1
      %s244 = scalar_select %p243, %s18, 1
      %s245 = smul.addr %s244, 8
      %s246 = smul.addr %s245, 8
      %s247 = scalar_lea.vmem %s0, %s246
      %p248 = pneg %p39
      %p249 = pneg %p36
      %p250 = pneg %p60
      %p251 = pneg %p57
      %p252 = pneg %p81
      %p253 = pneg %p78
      %p254 = pneg %p102
      %p255 = pneg %p99
      %p256 = pneg %p123
      %p257 = pneg %p120
      %p258 = pneg %p144
      %p259 = pneg %p141
      %p260 = pneg %p165
      %p261 = pneg %p162
      %p262 = pneg %p191
      %p263 = pneg %p188
      %p264 = scmp.lt.s32.totalorder %s18, 1
      %s265 = scalar_select %p264, %s18, 1
      %s266 = smul.addr %s265, 8
      %s267 = smul.addr %s266, 8
      %s268 = scalar_lea.vmem %s7, %s267
      %p269 = scmp.lt.s32.totalorder %s18, 1
      %s270 = scalar_select %p269, %s18, 1
      %s271 = smul.addr %s270, 8
      %s272 = smul.addr %s271, 8
      %s273 = scalar_lea.vmem %s0, %s272
      %p274 = scmp.lt.s32.totalorder %s18, 1
      %s275 = scalar_select %p274, %s18, 1
      %s276 = smul.addr %s275, 8
      %s277 = smul.addr %s276, 8
      %s278 = scalar_lea.vmem %s7, %s277
      %vm280 = vcmask 257024
      %281 = vst.msk [vmem:[#allocation2] sm:$0xf] %vm280, 0
      %vm282 = vcmask 253952
      %283 = vst.msk [vmem:[#allocation2 + $0x4] sm:$0x1] %vm282, 0
      %284 = vst.msk [vmem:[#allocation2 + $0x8] sm:$0xf] %vm280, 0
      %285 = vst.msk [vmem:[#allocation2 + $0xc] sm:$0x1] %vm282, 0
      %286 = vst.msk [vmem:[#allocation2 + $0x10] sm:$0xf] %vm280, 0
      %287 = vst.msk [vmem:[#allocation2 + $0x14] sm:$0x1] %vm282, 0
      %288 = vst.msk [vmem:[#allocation2 + $0x18] sm:$0xf] %vm280, 0
      %289 = vst.msk [vmem:[#allocation2 + $0x1c] sm:$0x1] %vm282, 0
      %290 = vst.msk [vmem:[#allocation2 + $0x20] sm:$0xf] %vm280, 0
      %291 = vst.msk [vmem:[#allocation2 + $0x24] sm:$0x1] %vm282, 0
      %292 = vst.msk [vmem:[#allocation2 + $0x28] sm:$0xf] %vm280, 0
      %293 = vst.msk [vmem:[#allocation2 + $0x2c] sm:$0x1] %vm282, 0
      %294 = vst.msk [vmem:[#allocation2 + $0x30] sm:$0xf] %vm280, 0
      %295 = vst.msk [vmem:[#allocation2 + $0x34] sm:$0x1] %vm282, 0
      %296 = vst.msk [vmem:[#allocation2 + $0x38] sm:$0xf] %vm280, 0
      %297 = vst.msk [vmem:[#allocation2 + $0x3c] sm:$0x1] %vm282, 0
      %298 = vst.msk [vmem:[#allocation2 + $0x40] sm:$0xf] %vm280, 0
      %299 = vst.msk [vmem:[#allocation2 + $0x44] sm:$0x1] %vm282, 0
      %300 = vst.msk [vmem:[#allocation2 + $0x48] sm:$0xf] %vm280, 0
      %301 = vst.msk [vmem:[#allocation2 + $0x4c] sm:$0x1] %vm282, 0
      %v302 = vld [vmem:[%s273] sm:$0xff]
      %v303 = vld [vmem:[%s273 + $0x8] sm:$0xff]
      %v304 = vld [vmem:[%s273 + $0x10] sm:$0xff]
      %v305 = vld [vmem:[%s273 + $0x18] sm:$0xff]
      %v306 = vld [vmem:[%s273 + $0x20] sm:$0xff]
      %v307 = vld [vmem:[%s273 + $0x28] sm:$0xff]
      %v308 = vld [vmem:[%s273 + $0x30] sm:$0xff]
      %v309 = vld [vmem:[%s273 + $0x38] sm:$0xff]
      %v310 = vpack.c.bf16 %v302, %v302
      %v311 = vpack.c.bf16 %v303, %v303
      %v312 = vpack.c.bf16 %v304, %v304
      %v313 = vpack.c.bf16 %v305, %v305
      %v314 = vpack.c.bf16 %v306, %v306
      %v315 = vpack.c.bf16 %v307, %v307
      %v316 = vpack.c.bf16 %v308, %v308
      %v317 = vpack.c.bf16 %v309, %v309
      %v319 = vshrl.u32 %v310, 16
      %v321 = vrot.slane %v319, 7
      %v322 = vshll.u32 %v310, 16
      %v324 = vor.u32 %v321, %v322
      %v325 = vrot.slane %v321, 4
      %v327 = vshrl.u32 %v311, 16
      %v329 = vrot.slane %v327, 7
      %v330 = vshll.u32 %v311, 16
      %v332 = vor.u32 %v329, %v330
      %v333 = vrot.slane %v329, 4
      %v335 = vshrl.u32 %v312, 16
      %v337 = vrot.slane %v335, 7
      %v338 = vshll.u32 %v312, 16
      %v340 = vor.u32 %v337, %v338
      %v341 = vrot.slane %v337, 4
      %v343 = vshrl.u32 %v313, 16
      %v345 = vrot.slane %v343, 7
      %v346 = vshll.u32 %v313, 16
      %v348 = vor.u32 %v345, %v346
      %v349 = vrot.slane %v345, 4
      %v351 = vshrl.u32 %v314, 16
      %v353 = vrot.slane %v351, 7
      %v354 = vshll.u32 %v314, 16
      %v356 = vor.u32 %v353, %v354
      %v357 = vrot.slane %v353, 4
      %v359 = vshrl.u32 %v315, 16
      %v361 = vrot.slane %v359, 7
      %v362 = vshll.u32 %v315, 16
      %v364 = vor.u32 %v361, %v362
      %v365 = vrot.slane %v361, 4
      %v367 = vshrl.u32 %v316, 16
      %v369 = vrot.slane %v367, 7
      %v370 = vshll.u32 %v316, 16
      %v372 = vor.u32 %v369, %v370
      %v373 = vrot.slane %v369, 4
      %v375 = vshrl.u32 %v317, 16
      %v377 = vrot.slane %v375, 7
      %v378 = vshll.u32 %v317, 16
      %v380 = vor.u32 %v377, %v378
      %v381 = vrot.slane %v377, 4
      %s398 = scalar_lea.vmem [#allocation2], 8
      %vm399 = vcmask 257024
      %vm400 = vsmask.f32 7938
      %vm401 = vmand %vm399, %vm400
      %v402 = vld [vmem:[%s398] sm:$0xf]
      %v403 = vsel %vm401, %v324, %v402
      %404 = vst [vmem:[%s398] sm:$0xf] %v403
      %vm405 = vcmask 253952
      %vm406 = vsmask.f32 256
      %vm407 = vmand %vm405, %vm406
      %v408 = vld [vmem:[%s398 + $0x4] sm:$0x1]
      %v409 = vsel %vm407, %v325, %v408
      %410 = vst [vmem:[%s398 + $0x4] sm:$0x1] %v409
      %v411 = vld [vmem:[%s398 + $0x8] sm:$0xf]
      %v412 = vsel %vm401, %v332, %v411
      %413 = vst [vmem:[%s398 + $0x8] sm:$0xf] %v412
      %v414 = vld [vmem:[%s398 + $0xc] sm:$0x1]
      %v415 = vsel %vm407, %v333, %v414
      %416 = vst [vmem:[%s398 + $0xc] sm:$0x1] %v415
      %v417 = vld [vmem:[%s398 + $0x10] sm:$0xf]
      %v418 = vsel %vm401, %v340, %v417
      %419 = vst [vmem:[%s398 + $0x10] sm:$0xf] %v418
      %v420 = vld [vmem:[%s398 + $0x14] sm:$0x1]
      %v421 = vsel %vm407, %v341, %v420
      %422 = vst [vmem:[%s398 + $0x14] sm:$0x1] %v421
      %v423 = vld [vmem:[%s398 + $0x18] sm:$0xf]
      %v424 = vsel %vm401, %v348, %v423
      %425 = vst [vmem:[%s398 + $0x18] sm:$0xf] %v424
      %v426 = vld [vmem:[%s398 + $0x1c] sm:$0x1]
      %v427 = vsel %vm407, %v349, %v426
      %428 = vst [vmem:[%s398 + $0x1c] sm:$0x1] %v427
      %v429 = vld [vmem:[%s398 + $0x20] sm:$0xf]
      %v430 = vsel %vm401, %v356, %v429
      %431 = vst [vmem:[%s398 + $0x20] sm:$0xf] %v430
      %v432 = vld [vmem:[%s398 + $0x24] sm:$0x1]
      %v433 = vsel %vm407, %v357, %v432
      %434 = vst [vmem:[%s398 + $0x24] sm:$0x1] %v433
      %v435 = vld [vmem:[%s398 + $0x28] sm:$0xf]
      %v436 = vsel %vm401, %v364, %v435
      %437 = vst [vmem:[%s398 + $0x28] sm:$0xf] %v436
      %v438 = vld [vmem:[%s398 + $0x2c] sm:$0x1]
      %v439 = vsel %vm407, %v365, %v438
      %440 = vst [vmem:[%s398 + $0x2c] sm:$0x1] %v439
      %v441 = vld [vmem:[%s398 + $0x30] sm:$0xf]
      %v442 = vsel %vm401, %v372, %v441
      %443 = vst [vmem:[%s398 + $0x30] sm:$0xf] %v442
      %v444 = vld [vmem:[%s398 + $0x34] sm:$0x1]
      %v445 = vsel %vm407, %v373, %v444
      %446 = vst [vmem:[%s398 + $0x34] sm:$0x1] %v445
      %v447 = vld [vmem:[%s398 + $0x38] sm:$0xf]
      %v448 = vsel %vm401, %v380, %v447
      %449 = vst [vmem:[%s398 + $0x38] sm:$0xf] %v448
      %v450 = vld [vmem:[%s398 + $0x3c] sm:$0x1]
      %v451 = vsel %vm407, %v381, %v450
      %452 = vst [vmem:[%s398 + $0x3c] sm:$0x1] %v451
      %v453 = vld [vmem:[%s1] sm:$0xf]
      %v454 = vld [vmem:[%s1 + $0x4] sm:$0xf]
      %v455 = vld [vmem:[%s1 + $0x8] sm:$0xf]
      %v456 = vld [vmem:[%s1 + $0xc] sm:$0xf]
      %v457 = vld [vmem:[%s1 + $0x10] sm:$0xf]
      %v458 = vld [vmem:[%s1 + $0x14] sm:$0xf]
      %v459 = vld [vmem:[%s1 + $0x18] sm:$0xf]
      %v460 = vld [vmem:[%s1 + $0x1c] sm:$0xf]
      %v461 = vld [vmem:[%s1 + $0x20] sm:$0xf]
      %v462 = vld [vmem:[%s1 + $0x24] sm:$0xf]
      %v463 = vld [vmem:[%s1 + $0x28] sm:$0xf]
      %v464 = vld [vmem:[%s1 + $0x2c] sm:$0xf]
      %v465 = vld [vmem:[%s1 + $0x30] sm:$0xf]
      %v466 = vld [vmem:[%s1 + $0x34] sm:$0xf]
      %v467 = vld [vmem:[%s1 + $0x38] sm:$0xf]
      %v468 = vld [vmem:[%s1 + $0x3c] sm:$0xf]
      %v469 = vld [vmem:[%s1 + $0x40] sm:$0xf]
      %v470 = vld [vmem:[%s1 + $0x44] sm:$0xf]
      %v471 = vld [vmem:[%s1 + $0x48] sm:$0xf]
      %v472 = vld [vmem:[%s1 + $0x4c] sm:$0xf]
      %v473 = vld [vmem:[%s1 + $0x50] sm:$0xf]
      %v474 = vld [vmem:[%s1 + $0x54] sm:$0xf]
      %v475 = vld [vmem:[%s1 + $0x58] sm:$0xf]
      %v476 = vld [vmem:[%s1 + $0x5c] sm:$0xf]
      %v477 = vld [vmem:[%s1 + $0x60] sm:$0xf]
      %v478 = vld [vmem:[%s1 + $0x64] sm:$0xf]
      %v479 = vld [vmem:[%s1 + $0x68] sm:$0xf]
      %v480 = vld [vmem:[%s1 + $0x6c] sm:$0xf]
      %v481 = vld [vmem:[%s1 + $0x70] sm:$0xf]
      %v482 = vld [vmem:[%s1 + $0x74] sm:$0xf]
      %v483 = vld [vmem:[%s1 + $0x78] sm:$0xf]
      %v484 = vld [vmem:[%s1 + $0x7c] sm:$0xf]
      %v485 = vld [vmem:[%s1 + $0x80] sm:$0xf]
      %v486 = vld [vmem:[%s1 + $0x84] sm:$0xf]
      %v487 = vld [vmem:[%s1 + $0x88] sm:$0xf]
      %v488 = vld [vmem:[%s1 + $0x8c] sm:$0xf]
      %v489 = vld [vmem:[#allocation2] sm:$0xf]
      %v490 = vld [vmem:[#allocation2 + $0x4] sm:$0x1]
      %v491 = vld [vmem:[#allocation2 + $0x8] sm:$0xf]
      %v492 = vld [vmem:[#allocation2 + $0xc] sm:$0x1]
      %v493 = vld [vmem:[#allocation2 + $0x10] sm:$0xf]
      %v494 = vld [vmem:[#allocation2 + $0x14] sm:$0x1]
      %v495 = vld [vmem:[#allocation2 + $0x18] sm:$0xf]
      %v496 = vld [vmem:[#allocation2 + $0x1c] sm:$0x1]
      %v497 = vld [vmem:[#allocation2 + $0x20] sm:$0xf]
      %v498 = vld [vmem:[#allocation2 + $0x24] sm:$0x1]
      %v499 = vld [vmem:[#allocation2 + $0x28] sm:$0xf]
      %v500 = vld [vmem:[#allocation2 + $0x2c] sm:$0x1]
      %v501 = vld [vmem:[#allocation2 + $0x30] sm:$0xf]
      %v502 = vld [vmem:[#allocation2 + $0x34] sm:$0x1]
      %v503 = vld [vmem:[#allocation2 + $0x38] sm:$0xf]
      %v504 = vld [vmem:[#allocation2 + $0x3c] sm:$0x1]
      %v505 = vld [vmem:[#allocation2 + $0x40] sm:$0xf]
      %v506 = vld [vmem:[#allocation2 + $0x44] sm:$0x1]
      %v507 = vld [vmem:[#allocation2 + $0x48] sm:$0xf]
      %v508 = vld [vmem:[#allocation2 + $0x4c] sm:$0x1]
      %v525 = vunpack.c.l.b16 %v489
      %v526 = vunpack.c.l.b16 %v490
      %v527 = vunpack.c.l.b16 %v491
      %v528 = vunpack.c.l.b16 %v492
      %v529 = vunpack.c.l.b16 %v493
      %v530 = vunpack.c.l.b16 %v494
      %v531 = vunpack.c.l.b16 %v495
      %v532 = vunpack.c.l.b16 %v496
      %v533 = vunpack.c.l.b16 %v497
      %v534 = vunpack.c.l.b16 %v498
      %v535 = vunpack.c.l.b16 %v499
      %v536 = vunpack.c.l.b16 %v500
      %v537 = vunpack.c.l.b16 %v501
      %v538 = vunpack.c.l.b16 %v502
      %v539 = vunpack.c.l.b16 %v503
      %v540 = vunpack.c.l.b16 %v504
      %v541 = vpack.c.b16 %v526, %v525
      %v542 = vpack.c.b16 %v528, %v527
      %v543 = vpack.c.b16 %v530, %v529
      %v544 = vpack.c.b16 %v532, %v531
      %v545 = vpack.c.b16 %v534, %v533
      %v546 = vpack.c.b16 %v536, %v535
      %v547 = vpack.c.b16 %v538, %v537
      %v548 = vpack.c.b16 %v540, %v539
      %v550 = vshrl.u32 %v541, 16
      %v552 = vshll.u32 %v541, 16
      %v554 = vrot.slane %v552, 1
      %v555 = vor.u32 %v550, %v554
      %v557 = vshrl.u32 %v542, 16
      %v559 = vshll.u32 %v542, 16
      %v561 = vrot.slane %v559, 1
      %v562 = vor.u32 %v557, %v561
      %v564 = vshrl.u32 %v543, 16
      %v566 = vshll.u32 %v543, 16
      %v568 = vrot.slane %v566, 1
      %v569 = vor.u32 %v564, %v568
      %v571 = vshrl.u32 %v544, 16
      %v573 = vshll.u32 %v544, 16
      %v575 = vrot.slane %v573, 1
      %v576 = vor.u32 %v571, %v575
      %v578 = vshrl.u32 %v545, 16
      %v580 = vshll.u32 %v545, 16
      %v582 = vrot.slane %v580, 1
      %v583 = vor.u32 %v578, %v582
      %v585 = vshrl.u32 %v546, 16
      %v587 = vshll.u32 %v546, 16
      %v589 = vrot.slane %v587, 1
      %v590 = vor.u32 %v585, %v589
      %v592 = vshrl.u32 %v547, 16
      %v594 = vshll.u32 %v547, 16
      %v596 = vrot.slane %v594, 1
      %v597 = vor.u32 %v592, %v596
      %v599 = vshrl.u32 %v548, 16
      %v601 = vshll.u32 %v548, 16
      %v603 = vrot.slane %v601, 1
      %v604 = vor.u32 %v599, %v603
      %605 = vrot.lane.b32.xlu0 %v555, 32
      %v606 = vpop.permute.xlu0 %605
      %607 = vrot.lane.b32.xlu0 %v562, 32
      %v608 = vpop.permute.xlu0 %607
      %609 = vrot.lane.b32.xlu0 %v569, 32
      %v610 = vpop.permute.xlu0 %609
      %611 = vrot.lane.b32.xlu0 %v576, 32
      %v612 = vpop.permute.xlu0 %611
      %613 = vrot.lane.b32.xlu0 %v583, 32
      %v614 = vpop.permute.xlu0 %613
      %615 = vrot.lane.b32.xlu0 %v590, 32
      %v616 = vpop.permute.xlu0 %615
      %617 = vrot.lane.b32.xlu0 %v597, 32
      %v618 = vpop.permute.xlu0 %617
      %619 = vrot.lane.b32.xlu0 %v604, 32
      %v620 = vpop.permute.xlu0 %619
      %v621 = vrot.slane %v541, 1
      %v622 = vrot.slane %v542, 1
      %v623 = vrot.slane %v543, 1
      %v624 = vrot.slane %v544, 1
      %v625 = vrot.slane %v545, 1
      %v626 = vrot.slane %v546, 1
      %v627 = vrot.slane %v547, 1
      %v628 = vrot.slane %v548, 1
      %629 = vrot.lane.b32.xlu0 %v621, 64
      %v630 = vpop.permute.xlu0 %629
      %631 = vrot.lane.b32.xlu0 %v622, 64
      %v632 = vpop.permute.xlu0 %631
      %633 = vrot.lane.b32.xlu0 %v623, 64
      %v634 = vpop.permute.xlu0 %633
      %635 = vrot.lane.b32.xlu0 %v624, 64
      %v636 = vpop.permute.xlu0 %635
      %637 = vrot.lane.b32.xlu0 %v625, 64
      %v638 = vpop.permute.xlu0 %637
      %639 = vrot.lane.b32.xlu0 %v626, 64
      %v640 = vpop.permute.xlu0 %639
      %641 = vrot.lane.b32.xlu0 %v627, 64
      %v642 = vpop.permute.xlu0 %641
      %643 = vrot.lane.b32.xlu0 %v628, 64
      %v644 = vpop.permute.xlu0 %643
      %v646 = vunpack.c.l.b16 %v505
      %v647 = vpack.c.b16 %v527, %v527
      %v648 = vpack.c.b16 %v529, %v529
      %v649 = vpack.c.b16 %v531, %v531
      %v650 = vpack.c.b16 %v533, %v533
      %v651 = vpack.c.b16 %v535, %v535
      %v652 = vpack.c.b16 %v537, %v537
      %v653 = vpack.c.b16 %v539, %v539
      %v654 = vpack.c.b16 %v646, %v646
      %655 = vrot.lane.b32.xlu0 %v647, 96
      %v656 = vpop.permute.xlu0 %655
      %657 = vrot.lane.b32.xlu0 %v648, 96
      %v658 = vpop.permute.xlu0 %657
      %659 = vrot.lane.b32.xlu0 %v649, 96
      %v660 = vpop.permute.xlu0 %659
      %661 = vrot.lane.b32.xlu0 %v650, 96
      %v662 = vpop.permute.xlu0 %661
      %663 = vrot.lane.b32.xlu0 %v651, 96
      %v664 = vpop.permute.xlu0 %663
      %665 = vrot.lane.b32.xlu0 %v652, 96
      %v666 = vpop.permute.xlu0 %665
      %667 = vrot.lane.b32.xlu0 %v653, 96
      %v668 = vpop.permute.xlu0 %667
      %669 = vrot.lane.b32.xlu0 %v654, 96
      %v670 = vpop.permute.xlu0 %669
      %v672 = vunpack.c.l.b16 %v506
      %v673 = vpack.c.b16 %v672, %v646
      %v675 = vshrl.u32 %v673, 16
      %v677 = vshll.u32 %v673, 16
      %v679 = vrot.slane %v677, 1
      %v680 = vor.u32 %v675, %v679
      %v681 = vrot.slane %v673, 1
      %682 = vrot.lane.b32.xlu0 %v622, 32
      %v683 = vpop.permute.xlu0 %682
      %684 = vrot.lane.b32.xlu0 %v623, 32
      %v685 = vpop.permute.xlu0 %684
      %686 = vrot.lane.b32.xlu0 %v624, 32
      %v687 = vpop.permute.xlu0 %686
      %688 = vrot.lane.b32.xlu0 %v625, 32
      %v689 = vpop.permute.xlu0 %688
      %690 = vrot.lane.b32.xlu0 %v626, 32
      %v691 = vpop.permute.xlu0 %690
      %692 = vrot.lane.b32.xlu0 %v627, 32
      %v693 = vpop.permute.xlu0 %692
      %694 = vrot.lane.b32.xlu0 %v628, 32
      %v695 = vpop.permute.xlu0 %694
      %696 = vrot.lane.b32.xlu0 %v681, 32
      %v697 = vpop.permute.xlu0 %696
      %v699 = vunpack.c.l.b16 %v507
      %v700 = vpack.c.b16 %v699, %v699
      %701 = vrot.lane.b32.xlu0 %v648, 64
      %v702 = vpop.permute.xlu0 %701
      %703 = vrot.lane.b32.xlu0 %v649, 64
      %v704 = vpop.permute.xlu0 %703
      %705 = vrot.lane.b32.xlu0 %v650, 64
      %v706 = vpop.permute.xlu0 %705
      %707 = vrot.lane.b32.xlu0 %v651, 64
      %v708 = vpop.permute.xlu0 %707
      %709 = vrot.lane.b32.xlu0 %v652, 64
      %v710 = vpop.permute.xlu0 %709
      %711 = vrot.lane.b32.xlu0 %v653, 64
      %v712 = vpop.permute.xlu0 %711
      %713 = vrot.lane.b32.xlu0 %v654, 64
      %v714 = vpop.permute.xlu0 %713
      %715 = vrot.lane.b32.xlu0 %v700, 64
      %v716 = vpop.permute.xlu0 %715
      %v718 = vunpack.c.l.b16 %v508
      %v719 = vpack.c.b16 %v718, %v699
      %v721 = vshrl.u32 %v719, 16
      %v723 = vshll.u32 %v719, 16
      %v725 = vrot.slane %v723, 1
      %v726 = vor.u32 %v721, %v725
      %727 = vrot.lane.b32.xlu0 %v569, 96
      %v728 = vpop.permute.xlu0 %727
      %729 = vrot.lane.b32.xlu0 %v576, 96
      %v730 = vpop.permute.xlu0 %729
      %731 = vrot.lane.b32.xlu0 %v583, 96
      %v732 = vpop.permute.xlu0 %731
      %733 = vrot.lane.b32.xlu0 %v590, 96
      %v734 = vpop.permute.xlu0 %733
      %735 = vrot.lane.b32.xlu0 %v597, 96
      %v736 = vpop.permute.xlu0 %735
      %737 = vrot.lane.b32.xlu0 %v604, 96
      %v738 = vpop.permute.xlu0 %737
      %739 = vrot.lane.b32.xlu0 %v680, 96
      %v740 = vpop.permute.xlu0 %739
      %741 = vrot.lane.b32.xlu0 %v726, 96
      %v742 = vpop.permute.xlu0 %741
      %v743 = vrot.slane %v719, 1
      %vm744 = vcmask 261120
      %v747 = vsel %vm744, %v489, %v606
      %v750 = vsel %vm744, %v491, %v608
      %v753 = vsel %vm744, %v493, %v610
      %v756 = vsel %vm744, %v495, %v612
      %v759 = vsel %vm744, %v497, %v614
      %v762 = vsel %vm744, %v499, %v616
      %v765 = vsel %vm744, %v501, %v618
      %v768 = vsel %vm744, %v503, %v620
      %vm769 = vcmask 523264
      %v771 = vsel %vm769, %v747, %v630
      %v773 = vsel %vm769, %v750, %v632
      %v775 = vsel %vm769, %v753, %v634
      %v777 = vsel %vm769, %v756, %v636
      %v779 = vsel %vm769, %v759, %v638
      %v781 = vsel %vm769, %v762, %v640
      %v783 = vsel %vm769, %v765, %v642
      %v785 = vsel %vm769, %v768, %v644
      %vm786 = vcmask 785408
      %v788 = vsel %vm786, %v771, %v656
      %v790 = vsel %vm786, %v773, %v658
      %v792 = vsel %vm786, %v775, %v660
      %v794 = vsel %vm786, %v777, %v662
      %v796 = vsel %vm786, %v779, %v664
      %v798 = vsel %vm786, %v781, %v666
      %v800 = vsel %vm786, %v783, %v668
      %v802 = vsel %vm786, %v785, %v670
      %v805 = vsel %vm744, %v562, %v683
      %v808 = vsel %vm744, %v569, %v685
      %v811 = vsel %vm744, %v576, %v687
      %v814 = vsel %vm744, %v583, %v689
      %v817 = vsel %vm744, %v590, %v691
      %v820 = vsel %vm744, %v597, %v693
      %v823 = vsel %vm744, %v604, %v695
      %v826 = vsel %vm744, %v680, %v697
      %v828 = vsel %vm769, %v805, %v702
      %v830 = vsel %vm769, %v808, %v704
      %v832 = vsel %vm769, %v811, %v706
      %v834 = vsel %vm769, %v814, %v708
      %v836 = vsel %vm769, %v817, %v710
      %v838 = vsel %vm769, %v820, %v712
      %v840 = vsel %vm769, %v823, %v714
      %v842 = vsel %vm769, %v826, %v716
      %v844 = vsel %vm786, %v828, %v728
      %v846 = vsel %vm786, %v830, %v730
      %v848 = vsel %vm786, %v832, %v732
      %v850 = vsel %vm786, %v834, %v734
      %v852 = vsel %vm786, %v836, %v736
      %v854 = vsel %vm786, %v838, %v738
      %v856 = vsel %vm786, %v840, %v740
      %v858 = vsel %vm786, %v842, %v742
      %v875 = vunpack.c.l.b16 %v788
      %v876 = vunpack.c.l.b16 %v844
      %v877 = vunpack.c.l.b16 %v623
      %v878 = vunpack.c.l.b16 %v790
      %v879 = vunpack.c.l.b16 %v846
      %v880 = vunpack.c.l.b16 %v624
      %v881 = vunpack.c.l.b16 %v792
      %v882 = vunpack.c.l.b16 %v848
      %v883 = vunpack.c.l.b16 %v625
      %v884 = vunpack.c.l.b16 %v794
      %v885 = vunpack.c.l.b16 %v850
      %v886 = vunpack.c.l.b16 %v626
      %v887 = vunpack.c.l.b16 %v796
      %v888 = vunpack.c.l.b16 %v852
      %v889 = vunpack.c.l.b16 %v627
      %v890 = vunpack.c.l.b16 %v798
      %v891 = vunpack.c.l.b16 %v854
      %v892 = vunpack.c.l.b16 %v628
      %v893 = vunpack.c.l.b16 %v800
      %v894 = vunpack.c.l.b16 %v856
      %v895 = vunpack.c.l.b16 %v681
      %v896 = vunpack.c.l.b16 %v802
      %v897 = vunpack.c.l.b16 %v858
      %v898 = vunpack.c.l.b16 %v743
      %v899 = vld [vmem:[%s2] sm:$0x1]
      %v901 = vperm.slane %v899, 0
      %v903 = vpack.c.b16 %v878, %v875
      %v904 = vpack.c.b16 %v879, %v876
      %v905 = vpack.c.b16 %v880, %v877
      %v906 = vpack.c.b16 %v884, %v881
      %v907 = vpack.c.b16 %v885, %v882
      %v908 = vpack.c.b16 %v886, %v883
      %v909 = vpack.c.b16 %v890, %v887
      %v910 = vpack.c.b16 %v891, %v888
      %v911 = vpack.c.b16 %v892, %v889
      %v912 = vpack.c.b16 %v896, %v893
      %v913 = vpack.c.b16 %v897, %v894
      %v914 = vpack.c.b16 %v898, %v895
      %v959 = vunpack.c.l.b16 %v453
      %v960 = vunpack.c.l.b16 %v454
      %v961 = vunpack.c.l.b16 %v455
      %v962 = vunpack.c.l.b16 %v456
      %v963 = vunpack.c.l.b16 %v457
      %v964 = vunpack.c.l.b16 %v458
      %v965 = vunpack.c.l.b16 %v459
      %v966 = vunpack.c.l.b16 %v460
      %v967 = vunpack.c.l.b16 %v461
      %v968 = vunpack.c.l.b16 %v462
      %v969 = vunpack.c.l.b16 %v463
      %v970 = vunpack.c.l.b16 %v464
      %v971 = vunpack.c.l.b16 %v465
      %v972 = vunpack.c.l.b16 %v466
      %v973 = vunpack.c.l.b16 %v467
      %v974 = vunpack.c.l.b16 %v468
      %v975 = vunpack.c.l.b16 %v469
      %v976 = vunpack.c.l.b16 %v470
      %v977 = vunpack.c.l.b16 %v471
      %v978 = vunpack.c.l.b16 %v472
      %v979 = vunpack.c.l.b16 %v473
      %v980 = vunpack.c.l.b16 %v474
      %v981 = vunpack.c.l.b16 %v475
      %v982 = vunpack.c.l.b16 %v476
      %v983 = vunpack.c.l.b16 %v477
      %v984 = vunpack.c.l.b16 %v478
      %v985 = vunpack.c.l.b16 %v479
      %v986 = vunpack.c.l.b16 %v480
      %v987 = vunpack.c.l.b16 %v481
      %v988 = vunpack.c.l.b16 %v482
      %v989 = vunpack.c.l.b16 %v483
      %v990 = vunpack.c.l.b16 %v484
      %v991 = vunpack.c.l.b16 %v485
      %v992 = vunpack.c.l.b16 %v486
      %v993 = vunpack.c.l.b16 %v487
      %v994 = vunpack.c.l.b16 %v488
      %v995 = vpack.c.b16 %v960, %v959
      %v996 = vpack.c.b16 %v962, %v961
      %v997 = vpack.c.b16 %v964, %v963
      %v998 = vpack.c.b16 %v966, %v965
      %v999 = vpack.c.b16 %v968, %v967
      %v1000 = vpack.c.b16 %v970, %v969
      %v1001 = vpack.c.b16 %v972, %v971
      %v1002 = vpack.c.b16 %v974, %v973
      %v1003 = vpack.c.b16 %v976, %v975
      %v1004 = vpack.c.b16 %v978, %v977
      %v1005 = vpack.c.b16 %v980, %v979
      %v1006 = vpack.c.b16 %v982, %v981
      %v1007 = vpack.c.b16 %v984, %v983
      %v1008 = vpack.c.b16 %v986, %v985
      %v1009 = vpack.c.b16 %v988, %v987
      %v1010 = vpack.c.b16 %v990, %v989
      %v1011 = vpack.c.b16 %v992, %v991
      %v1012 = vpack.c.b16 %v994, %v993
      %v1032 = vsel %vm744, %v905, 0
      %v1035 = vsel %vm744, %v908, 0
      %v1038 = vsel %vm744, %v911, 0
      %v1041 = vsel %vm744, %v914, 0
      %1043 = vmatpush.bf16.msra.mxu0 %v1002
      %1044 = vmatpush.bf16.msra.mxu0 %v1001
      %1045 = vmatpush.bf16.msra.mxu0 %v1000
      %1046 = vmatpush.bf16.msra.mxu0 %v999
      %1047 = vmatpush.bf16.msra.mxu0 %v998
      %1048 = vmatpush.bf16.msra.mxu0 %v997
      %1049 = vmatpush.bf16.msra.mxu0 %v996
      %1050 = vmatpush.bf16.msra.mxu0 %v995
      %1051 = vmatmul.bf16.gmra.mxu0 %v903
      %v1052 = vpop.f32.mrf.mxu0
      %v1053 = vadd.f32 %v901, %v1052
      %v1054 = vpop.f32.mrf.mxu0
      %v1055 = vadd.f32 %v901, %v1054
      %1056 = vmatmul.bf16.gmra.mxu0 %v906
      %v1057 = vpop.f32.mrf.mxu0
      %v1058 = vadd.f32 %v901, %v1057
      %v1059 = vpop.f32.mrf.mxu0
      %v1060 = vadd.f32 %v901, %v1059
      %1061 = vmatmul.bf16.gmra.mxu0 %v909
      %v1062 = vpop.f32.mrf.mxu0
      %v1063 = vadd.f32 %v901, %v1062
      %v1064 = vpop.f32.mrf.mxu0
      %v1065 = vadd.f32 %v901, %v1064
      %1066 = vmatmul.bf16.gmra.mxu0 %v912
      %v1067 = vpop.f32.mrf.mxu0
      %v1068 = vadd.f32 %v901, %v1067
      %v1069 = vpop.f32.mrf.mxu0
      %v1070 = vadd.f32 %v901, %v1069
      %1071 = vdwg.mxu0
      %1072 = vmatpush.bf16.msra.mxu0 %v1010
      %1073 = vmatpush.bf16.msra.mxu0 %v1009
      %1074 = vmatpush.bf16.msra.mxu0 %v1008
      %1075 = vmatpush.bf16.msra.mxu0 %v1007
      %1076 = vmatpush.bf16.msra.mxu0 %v1006
      %1077 = vmatpush.bf16.msra.mxu0 %v1005
      %1078 = vmatpush.bf16.msra.mxu0 %v1004
      %1079 = vmatpush.bf16.msra.mxu0 %v1003
      %1080 = vmatmul.bf16.gmra.mxu0 %v904
      %v1081 = vpop.f32.mrf.mxu0
      %v1082 = vadd.f32 %v1053, %v1081
      %v1083 = vpop.f32.mrf.mxu0
      %v1084 = vadd.f32 %v1055, %v1083
      %1085 = vmatmul.bf16.gmra.mxu0 %v907
      %v1086 = vpop.f32.mrf.mxu0
      %v1087 = vadd.f32 %v1058, %v1086
      %v1088 = vpop.f32.mrf.mxu0
      %v1089 = vadd.f32 %v1060, %v1088
      %1090 = vmatmul.bf16.gmra.mxu0 %v910
      %v1091 = vpop.f32.mrf.mxu0
      %v1092 = vadd.f32 %v1063, %v1091
      %v1093 = vpop.f32.mrf.mxu0
      %v1094 = vadd.f32 %v1065, %v1093
      %1095 = vmatmul.bf16.gmra.mxu0 %v913
      %v1096 = vpop.f32.mrf.mxu0
      %v1097 = vadd.f32 %v1068, %v1096
      %v1098 = vpop.f32.mrf.mxu0
      %v1099 = vadd.f32 %v1070, %v1098
      %1100 = vdwg.mxu0
      %1101 = vmatpush.bf16.msra.mxu0 0
      %1102 = vmatpush.bf16.msra.mxu0 0
      %1103 = vmatpush.bf16.msra.mxu0 0
      %1104 = vmatpush.bf16.msra.mxu0 0
      %1105 = vmatpush.bf16.msra.mxu0 0
      %1106 = vmatpush.bf16.msra.mxu0 0
      %1107 = vmatpush.bf16.msra.mxu0 %v1012
      %1108 = vmatpush.bf16.msra.mxu0 %v1011
      %1109 = vmatmul.bf16.gmra.mxu0 %v1032
      %v1110 = vpop.f32.mrf.mxu0
      %v1111 = vadd.f32 %v1082, %v1110
      %v1112 = vpop.f32.mrf.mxu0
      %v1113 = vadd.f32 %v1084, %v1112
      %1114 = vmatmul.bf16.gmra.mxu0 %v1035
      %v1115 = vpop.f32.mrf.mxu0
      %v1116 = vadd.f32 %v1087, %v1115
      %v1117 = vpop.f32.mrf.mxu0
      %v1118 = vadd.f32 %v1089, %v1117
      %1119 = vmatmul.bf16.gmra.mxu0 %v1038
      %v1120 = vpop.f32.mrf.mxu0
      %v1121 = vadd.f32 %v1092, %v1120
      %v1122 = vpop.f32.mrf.mxu0
      %v1123 = vadd.f32 %v1094, %v1122
      %1124 = vmatmul.bf16.gmra.mxu0 %v1041
      %v1125 = vpop.f32.mrf.mxu0
      %v1126 = vadd.f32 %v1097, %v1125
      %v1127 = vpop.f32.mrf.mxu0
      %v1128 = vadd.f32 %v1099, %v1127
      %1129 = vdwg.mxu0
      %vm1130 = vcmp.ge.f32.partialorder %v1111, 0.0
      %vm1131 = vcmp.ge.f32.partialorder %v1113, 0.0
      %vm1132 = vcmp.ge.f32.partialorder %v1116, 0.0
      %vm1133 = vcmp.ge.f32.partialorder %v1118, 0.0
      %vm1134 = vcmp.ge.f32.partialorder %v1121, 0.0
      %vm1135 = vcmp.ge.f32.partialorder %v1123, 0.0
      %vm1136 = vcmp.ge.f32.partialorder %v1126, 0.0
      %vm1137 = vcmp.ge.f32.partialorder %v1128, 0.0
      %v1138 = vmul.f32 %v1111, 0.1
      %v1139 = vmul.f32 %v1113, 0.1
      %v1140 = vmul.f32 %v1116, 0.1
      %v1141 = vmul.f32 %v1118, 0.1
      %v1142 = vmul.f32 %v1121, 0.1
      %v1143 = vmul.f32 %v1123, 0.1
      %v1144 = vmul.f32 %v1126, 0.1
      %v1145 = vmul.f32 %v1128, 0.1
      %v1146 = vsel %vm1130, %v1111, %v1138
      %v1147 = vsel %vm1131, %v1113, %v1139
      %v1148 = vsel %vm1132, %v1116, %v1140
      %v1149 = vsel %vm1133, %v1118, %v1141
      %v1150 = vsel %vm1134, %v1121, %v1142
      %v1151 = vsel %vm1135, %v1123, %v1143
      %v1152 = vsel %vm1136, %v1126, %v1144
      %v1153 = vsel %vm1137, %v1128, %v1145
      %1154 = vst.msk [vmem:[#allocation4] sm:$0xff] %vm744, %v1146
      %1155 = vst.msk [vmem:[#allocation4 + $0x8] sm:$0xff] %vm744, %v1147
      %1156 = vst.msk [vmem:[#allocation4 + $0x10] sm:$0xff] %vm744, %v1148
      %1157 = vst.msk [vmem:[#allocation4 + $0x18] sm:$0xff] %vm744, %v1149
      %1158 = vst.msk [vmem:[#allocation4 + $0x20] sm:$0xff] %vm744, %v1150
      %1159 = vst.msk [vmem:[#allocation4 + $0x28] sm:$0xff] %vm744, %v1151
      %1160 = vst.msk [vmem:[#allocation4 + $0x30] sm:$0xff] %vm744, %v1152
      %1161 = vst.msk [vmem:[#allocation4 + $0x38] sm:$0xff] %vm744, %v1153
      %1162 = vst.msk [vmem:[#allocation3] sm:$0xff] %vm744, %v1146
      %1163 = vst.msk [vmem:[#allocation3 + $0x8] sm:$0xff] %vm744, %v1147
      %1164 = vst.msk [vmem:[#allocation3 + $0x10] sm:$0xff] %vm744, %v1148
      %1165 = vst.msk [vmem:[#allocation3 + $0x18] sm:$0xff] %vm744, %v1149
      %1166 = vst.msk [vmem:[#allocation3 + $0x20] sm:$0xff] %vm744, %v1150
      %1167 = vst.msk [vmem:[#allocation3 + $0x28] sm:$0xff] %vm744, %v1151
      %1168 = vst.msk [vmem:[#allocation3 + $0x30] sm:$0xff] %vm744, %v1152
      %1169 = vst.msk [vmem:[#allocation3 + $0x38] sm:$0xff] %vm744, %v1153
      loop: start=0, step=1, limit=15
      $region49: #{last_model_forward.6} parent=47 // loop_pre_header
        _
      $region50: #{last_model_forward.6} parent=47 // loop_header
        %s1171 = sphi 0, %s1175
        %p1172 = scmp.ge.s32.totalorder %s1171, 15
      $region51: #{last_model_forward.6} parent=47 // loop_header_branch
        %1174 = sbr.rel (%p1172) target = $region55
      $region52: #{last_model_forward.6} parent=47 // loop_body
        %v1176 = vld [vmem:[#allocation3] sm:$0xff]
        %v1177 = vld [vmem:[#allocation3 + $0x8] sm:$0xff]
        %v1178 = vld [vmem:[#allocation3 + $0x10] sm:$0xff]
        %v1179 = vld [vmem:[#allocation3 + $0x18] sm:$0xff]
        %v1180 = vld [vmem:[#allocation3 + $0x20] sm:$0xff]
        %v1181 = vld [vmem:[#allocation3 + $0x28] sm:$0xff]
        %v1182 = vld [vmem:[#allocation3 + $0x30] sm:$0xff]
        %v1183 = vld [vmem:[#allocation3 + $0x38] sm:$0xff]
        %v1184 = vpack.c.bf16 %v1176, %v1176
        %v1185 = vpack.c.bf16 %v1177, %v1177
        %v1186 = vpack.c.bf16 %v1178, %v1178
        %v1187 = vpack.c.bf16 %v1179, %v1179
        %v1188 = vpack.c.bf16 %v1180, %v1180
        %v1189 = vpack.c.bf16 %v1181, %v1181
        %v1190 = vpack.c.bf16 %v1182, %v1182
        %v1191 = vpack.c.bf16 %v1183, %v1183
        %v1193 = vshrl.u32 %v1184, 16
        %v1195 = vrot.slane %v1193, 7
        %v1196 = vshll.u32 %v1184, 16
        %v1198 = vor.u32 %v1195, %v1196
        %v1199 = vrot.slane %v1195, 4
        %v1201 = vshrl.u32 %v1185, 16
        %v1203 = vrot.slane %v1201, 7
        %v1204 = vshll.u32 %v1185, 16
        %v1206 = vor.u32 %v1203, %v1204
        %v1207 = vrot.slane %v1203, 4
        %v1209 = vshrl.u32 %v1186, 16
        %v1211 = vrot.slane %v1209, 7
        %v1212 = vshll.u32 %v1186, 16
        %v1214 = vor.u32 %v1211, %v1212
        %v1215 = vrot.slane %v1211, 4
        %v1217 = vshrl.u32 %v1187, 16
        %v1219 = vrot.slane %v1217, 7
        %v1220 = vshll.u32 %v1187, 16
        %v1222 = vor.u32 %v1219, %v1220
        %v1223 = vrot.slane %v1219, 4
        %v1225 = vshrl.u32 %v1188, 16
        %v1227 = vrot.slane %v1225, 7
        %v1228 = vshll.u32 %v1188, 16
        %v1230 = vor.u32 %v1227, %v1228
        %v1231 = vrot.slane %v1227, 4
        %v1233 = vshrl.u32 %v1189, 16
        %v1235 = vrot.slane %v1233, 7
        %v1236 = vshll.u32 %v1189, 16
        %v1238 = vor.u32 %v1235, %v1236
        %v1239 = vrot.slane %v1235, 4
        %v1241 = vshrl.u32 %v1190, 16
        %v1243 = vrot.slane %v1241, 7
        %v1244 = vshll.u32 %v1190, 16
        %v1246 = vor.u32 %v1243, %v1244
        %v1247 = vrot.slane %v1243, 4
        %v1249 = vshrl.u32 %v1191, 16
        %v1251 = vrot.slane %v1249, 7
        %v1252 = vshll.u32 %v1191, 16
        %v1254 = vor.u32 %v1251, %v1252
        %v1255 = vrot.slane %v1251, 4
        %v1272 = vld [vmem:[%s398] sm:$0xf]
        %v1273 = vsel %vm401, %v1198, %v1272
        %1274 = vst [vmem:[%s398] sm:$0xf] %v1273
        %v1275 = vld [vmem:[%s398 + $0x4] sm:$0x1]
        %v1276 = vsel %vm407, %v1199, %v1275
        %1277 = vst [vmem:[%s398 + $0x4] sm:$0x1] %v1276
        %v1278 = vld [vmem:[%s398 + $0x8] sm:$0xf]
        %v1279 = vsel %vm401, %v1206, %v1278
        %1280 = vst [vmem:[%s398 + $0x8] sm:$0xf] %v1279
        %v1281 = vld [vmem:[%s398 + $0xc] sm:$0x1]
        %v1282 = vsel %vm407, %v1207, %v1281
        %1283 = vst [vmem:[%s398 + $0xc] sm:$0x1] %v1282
        %v1284 = vld [vmem:[%s398 + $0x10] sm:$0xf]
        %v1285 = vsel %vm401, %v1214, %v1284
        %1286 = vst [vmem:[%s398 + $0x10] sm:$0xf] %v1285
        %v1287 = vld [vmem:[%s398 + $0x14] sm:$0x1]
        %v1288 = vsel %vm407, %v1215, %v1287
        %1289 = vst [vmem:[%s398 + $0x14] sm:$0x1] %v1288
        %v1290 = vld [vmem:[%s398 + $0x18] sm:$0xf]
        %v1291 = vsel %vm401, %v1222, %v1290
        %1292 = vst [vmem:[%s398 + $0x18] sm:$0xf] %v1291
        %v1293 = vld [vmem:[%s398 + $0x1c] sm:$0x1]
        %v1294 = vsel %vm407, %v1223, %v1293
        %1295 = vst [vmem:[%s398 + $0x1c] sm:$0x1] %v1294
        %v1296 = vld [vmem:[%s398 + $0x20] sm:$0xf]
        %v1297 = vsel %vm401, %v1230, %v1296
        %1298 = vst [vmem:[%s398 + $0x20] sm:$0xf] %v1297
        %v1299 = vld [vmem:[%s398 + $0x24] sm:$0x1]
        %v1300 = vsel %vm407, %v1231, %v1299
        %1301 = vst [vmem:[%s398 + $0x24] sm:$0x1] %v1300
        %v1302 = vld [vmem:[%s398 + $0x28] sm:$0xf]
        %v1303 = vsel %vm401, %v1238, %v1302
        %1304 = vst [vmem:[%s398 + $0x28] sm:$0xf] %v1303
        %v1305 = vld [vmem:[%s398 + $0x2c] sm:$0x1]
        %v1306 = vsel %vm407, %v1239, %v1305
        %1307 = vst [vmem:[%s398 + $0x2c] sm:$0x1] %v1306
        %v1308 = vld [vmem:[%s398 + $0x30] sm:$0xf]
        %v1309 = vsel %vm401, %v1246, %v1308
        %1310 = vst [vmem:[%s398 + $0x30] sm:$0xf] %v1309
        %v1311 = vld [vmem:[%s398 + $0x34] sm:$0x1]
        %v1312 = vsel %vm407, %v1247, %v1311
        %1313 = vst [vmem:[%s398 + $0x34] sm:$0x1] %v1312
        %v1314 = vld [vmem:[%s398 + $0x38] sm:$0xf]
        %v1315 = vsel %vm401, %v1254, %v1314
        %1316 = vst [vmem:[%s398 + $0x38] sm:$0xf] %v1315
        %v1317 = vld [vmem:[%s398 + $0x3c] sm:$0x1]
        %v1318 = vsel %vm407, %v1255, %v1317
        %1319 = vst [vmem:[%s398 + $0x3c] sm:$0x1] %v1318
        %s1320 = smul.u32 %s1171, 36
        %s1321 = smul.addr %s1320, 4
        %s1322 = scalar_lea.vmem %s3, %s1321
        %v1323 = vld [vmem:[%s1322] sm:$0xf]
        %v1324 = vld [vmem:[%s1322 + $0x4] sm:$0xf]
        %v1325 = vld [vmem:[%s1322 + $0x8] sm:$0xf]
        %v1326 = vld [vmem:[%s1322 + $0xc] sm:$0xf]
        %v1327 = vld [vmem:[%s1322 + $0x10] sm:$0xf]
        %v1328 = vld [vmem:[%s1322 + $0x14] sm:$0xf]
        %v1329 = vld [vmem:[%s1322 + $0x18] sm:$0xf]
        %v1330 = vld [vmem:[%s1322 + $0x1c] sm:$0xf]
        %v1331 = vld [vmem:[%s1322 + $0x20] sm:$0xf]
        %v1332 = vld [vmem:[%s1322 + $0x24] sm:$0xf]
        %v1333 = vld [vmem:[%s1322 + $0x28] sm:$0xf]
        %v1334 = vld [vmem:[%s1322 + $0x2c] sm:$0xf]
        %v1335 = vld [vmem:[%s1322 + $0x30] sm:$0xf]
        %v1336 = vld [vmem:[%s1322 + $0x34] sm:$0xf]
        %v1337 = vld [vmem:[%s1322 + $0x38] sm:$0xf]
        %v1338 = vld [vmem:[%s1322 + $0x3c] sm:$0xf]
        %v1339 = vld [vmem:[%s1322 + $0x40] sm:$0xf]
        %v1340 = vld [vmem:[%s1322 + $0x44] sm:$0xf]
        %v1341 = vld [vmem:[%s1322 + $0x48] sm:$0xf]
        %v1342 = vld [vmem:[%s1322 + $0x4c] sm:$0xf]
        %v1343 = vld [vmem:[%s1322 + $0x50] sm:$0xf]
        %v1344 = vld [vmem:[%s1322 + $0x54] sm:$0xf]
        %v1345 = vld [vmem:[%s1322 + $0x58] sm:$0xf]
        %v1346 = vld [vmem:[%s1322 + $0x5c] sm:$0xf]
        %v1347 = vld [vmem:[%s1322 + $0x60] sm:$0xf]
        %v1348 = vld [vmem:[%s1322 + $0x64] sm:$0xf]
        %v1349 = vld [vmem:[%s1322 + $0x68] sm:$0xf]
        %v1350 = vld [vmem:[%s1322 + $0x6c] sm:$0xf]
        %v1351 = vld [vmem:[%s1322 + $0x70] sm:$0xf]
        %v1352 = vld [vmem:[%s1322 + $0x74] sm:$0xf]
        %v1353 = vld [vmem:[%s1322 + $0x78] sm:$0xf]
        %v1354 = vld [vmem:[%s1322 + $0x7c] sm:$0xf]
        %v1355 = vld [vmem:[%s1322 + $0x80] sm:$0xf]
        %v1356 = vld [vmem:[%s1322 + $0x84] sm:$0xf]
        %v1357 = vld [vmem:[%s1322 + $0x88] sm:$0xf]
        %v1358 = vld [vmem:[%s1322 + $0x8c] sm:$0xf]
        %v1359 = vld [vmem:[#allocation2] sm:$0xf]
        %v1360 = vld [vmem:[#allocation2 + $0x4] sm:$0x1]
        %v1361 = vld [vmem:[#allocation2 + $0x8] sm:$0xf]
        %v1362 = vld [vmem:[#allocation2 + $0xc] sm:$0x1]
        %v1363 = vld [vmem:[#allocation2 + $0x10] sm:$0xf]
        %v1364 = vld [vmem:[#allocation2 + $0x14] sm:$0x1]
        %v1365 = vld [vmem:[#allocation2 + $0x18] sm:$0xf]
        %v1366 = vld [vmem:[#allocation2 + $0x1c] sm:$0x1]
        %v1367 = vld [vmem:[#allocation2 + $0x20] sm:$0xf]
        %v1368 = vld [vmem:[#allocation2 + $0x24] sm:$0x1]
        %v1369 = vld [vmem:[#allocation2 + $0x28] sm:$0xf]
        %v1370 = vld [vmem:[#allocation2 + $0x2c] sm:$0x1]
        %v1371 = vld [vmem:[#allocation2 + $0x30] sm:$0xf]
        %v1372 = vld [vmem:[#allocation2 + $0x34] sm:$0x1]
        %v1373 = vld [vmem:[#allocation2 + $0x38] sm:$0xf]
        %v1374 = vld [vmem:[#allocation2 + $0x3c] sm:$0x1]
        %v1375 = vld [vmem:[#allocation2 + $0x40] sm:$0xf]
        %v1376 = vld [vmem:[#allocation2 + $0x44] sm:$0x1]
        %v1377 = vld [vmem:[#allocation2 + $0x48] sm:$0xf]
        %v1378 = vld [vmem:[#allocation2 + $0x4c] sm:$0x1]
        %v1395 = vunpack.c.l.b16 %v1359
        %v1396 = vunpack.c.l.b16 %v1360
        %v1397 = vunpack.c.l.b16 %v1361
        %v1398 = vunpack.c.l.b16 %v1362
        %v1399 = vunpack.c.l.b16 %v1363
        %v1400 = vunpack.c.l.b16 %v1364
        %v1401 = vunpack.c.l.b16 %v1365
        %v1402 = vunpack.c.l.b16 %v1366
        %v1403 = vunpack.c.l.b16 %v1367
        %v1404 = vunpack.c.l.b16 %v1368
        %v1405 = vunpack.c.l.b16 %v1369
        %v1406 = vunpack.c.l.b16 %v1370
        %v1407 = vunpack.c.l.b16 %v1371
        %v1408 = vunpack.c.l.b16 %v1372
        %v1409 = vunpack.c.l.b16 %v1373
        %v1410 = vunpack.c.l.b16 %v1374
        %v1411 = vpack.c.b16 %v1396, %v1395
        %v1412 = vpack.c.b16 %v1398, %v1397
        %v1413 = vpack.c.b16 %v1400, %v1399
        %v1414 = vpack.c.b16 %v1402, %v1401
        %v1415 = vpack.c.b16 %v1404, %v1403
        %v1416 = vpack.c.b16 %v1406, %v1405
        %v1417 = vpack.c.b16 %v1408, %v1407
        %v1418 = vpack.c.b16 %v1410, %v1409
        %v1420 = vshrl.u32 %v1411, 16
        %v1422 = vshll.u32 %v1411, 16
        %v1424 = vrot.slane %v1422, 1
        %v1425 = vor.u32 %v1420, %v1424
        %v1427 = vshrl.u32 %v1412, 16
        %v1429 = vshll.u32 %v1412, 16
        %v1431 = vrot.slane %v1429, 1
        %v1432 = vor.u32 %v1427, %v1431
        %v1434 = vshrl.u32 %v1413, 16
        %v1436 = vshll.u32 %v1413, 16
        %v1438 = vrot.slane %v1436, 1
        %v1439 = vor.u32 %v1434, %v1438
        %v1441 = vshrl.u32 %v1414, 16
        %v1443 = vshll.u32 %v1414, 16
        %v1445 = vrot.slane %v1443, 1
        %v1446 = vor.u32 %v1441, %v1445
        %v1448 = vshrl.u32 %v1415, 16
        %v1450 = vshll.u32 %v1415, 16
        %v1452 = vrot.slane %v1450, 1
        %v1453 = vor.u32 %v1448, %v1452
        %v1455 = vshrl.u32 %v1416, 16
        %v1457 = vshll.u32 %v1416, 16
        %v1459 = vrot.slane %v1457, 1
        %v1460 = vor.u32 %v1455, %v1459
        %v1462 = vshrl.u32 %v1417, 16
        %v1464 = vshll.u32 %v1417, 16
        %v1466 = vrot.slane %v1464, 1
        %v1467 = vor.u32 %v1462, %v1466
        %v1469 = vshrl.u32 %v1418, 16
        %v1471 = vshll.u32 %v1418, 16
        %v1473 = vrot.slane %v1471, 1
        %v1474 = vor.u32 %v1469, %v1473
        %1475 = vrot.lane.b32.xlu0 %v1425, 32
        %v1476 = vpop.permute.xlu0 %1475
        %1477 = vrot.lane.b32.xlu0 %v1432, 32
        %v1478 = vpop.permute.xlu0 %1477
        %1479 = vrot.lane.b32.xlu0 %v1439, 32
        %v1480 = vpop.permute.xlu0 %1479
        %1481 = vrot.lane.b32.xlu0 %v1446, 32
        %v1482 = vpop.permute.xlu0 %1481
        %1483 = vrot.lane.b32.xlu0 %v1453, 32
        %v1484 = vpop.permute.xlu0 %1483
        %1485 = vrot.lane.b32.xlu0 %v1460, 32
        %v1486 = vpop.permute.xlu0 %1485
        %1487 = vrot.lane.b32.xlu0 %v1467, 32
        %v1488 = vpop.permute.xlu0 %1487
        %1489 = vrot.lane.b32.xlu0 %v1474, 32
        %v1490 = vpop.permute.xlu0 %1489
        %v1491 = vrot.slane %v1411, 1
        %v1492 = vrot.slane %v1412, 1
        %v1493 = vrot.slane %v1413, 1
        %v1494 = vrot.slane %v1414, 1
        %v1495 = vrot.slane %v1415, 1
        %v1496 = vrot.slane %v1416, 1
        %v1497 = vrot.slane %v1417, 1
        %v1498 = vrot.slane %v1418, 1
        %1499 = vrot.lane.b32.xlu0 %v1491, 64
        %v1500 = vpop.permute.xlu0 %1499
        %1501 = vrot.lane.b32.xlu0 %v1492, 64
        %v1502 = vpop.permute.xlu0 %1501
        %1503 = vrot.lane.b32.xlu0 %v1493, 64
        %v1504 = vpop.permute.xlu0 %1503
        %1505 = vrot.lane.b32.xlu0 %v1494, 64
        %v1506 = vpop.permute.xlu0 %1505
        %1507 = vrot.lane.b32.xlu0 %v1495, 64
        %v1508 = vpop.permute.xlu0 %1507
        %1509 = vrot.lane.b32.xlu0 %v1496, 64
        %v1510 = vpop.permute.xlu0 %1509
        %1511 = vrot.lane.b32.xlu0 %v1497, 64
        %v1512 = vpop.permute.xlu0 %1511
        %1513 = vrot.lane.b32.xlu0 %v1498, 64
        %v1514 = vpop.permute.xlu0 %1513
        %v1516 = vunpack.c.l.b16 %v1375
        %v1517 = vpack.c.b16 %v1397, %v1397
        %v1518 = vpack.c.b16 %v1399, %v1399
        %v1519 = vpack.c.b16 %v1401, %v1401
        %v1520 = vpack.c.b16 %v1403, %v1403
        %v1521 = vpack.c.b16 %v1405, %v1405
        %v1522 = vpack.c.b16 %v1407, %v1407
        %v1523 = vpack.c.b16 %v1409, %v1409
        %v1524 = vpack.c.b16 %v1516, %v1516
        %1525 = vrot.lane.b32.xlu0 %v1517, 96
        %v1526 = vpop.permute.xlu0 %1525
        %1527 = vrot.lane.b32.xlu0 %v1518, 96
        %v1528 = vpop.permute.xlu0 %1527
        %1529 = vrot.lane.b32.xlu0 %v1519, 96
        %v1530 = vpop.permute.xlu0 %1529
        %1531 = vrot.lane.b32.xlu0 %v1520, 96
        %v1532 = vpop.permute.xlu0 %1531
        %1533 = vrot.lane.b32.xlu0 %v1521, 96
        %v1534 = vpop.permute.xlu0 %1533
        %1535 = vrot.lane.b32.xlu0 %v1522, 96
        %v1536 = vpop.permute.xlu0 %1535
        %1537 = vrot.lane.b32.xlu0 %v1523, 96
        %v1538 = vpop.permute.xlu0 %1537
        %1539 = vrot.lane.b32.xlu0 %v1524, 96
        %v1540 = vpop.permute.xlu0 %1539
        %v1542 = vunpack.c.l.b16 %v1376
        %v1543 = vpack.c.b16 %v1542, %v1516
        %v1545 = vshrl.u32 %v1543, 16
        %v1547 = vshll.u32 %v1543, 16
        %v1549 = vrot.slane %v1547, 1
        %v1550 = vor.u32 %v1545, %v1549
        %v1551 = vrot.slane %v1543, 1
        %1552 = vrot.lane.b32.xlu0 %v1492, 32
        %v1553 = vpop.permute.xlu0 %1552
        %1554 = vrot.lane.b32.xlu0 %v1493, 32
        %v1555 = vpop.permute.xlu0 %1554
        %1556 = vrot.lane.b32.xlu0 %v1494, 32
        %v1557 = vpop.permute.xlu0 %1556
        %1558 = vrot.lane.b32.xlu0 %v1495, 32
        %v1559 = vpop.permute.xlu0 %1558
        %1560 = vrot.lane.b32.xlu0 %v1496, 32
        %v1561 = vpop.permute.xlu0 %1560
        %1562 = vrot.lane.b32.xlu0 %v1497, 32
        %v1563 = vpop.permute.xlu0 %1562
        %1564 = vrot.lane.b32.xlu0 %v1498, 32
        %v1565 = vpop.permute.xlu0 %1564
        %1566 = vrot.lane.b32.xlu0 %v1551, 32
        %v1567 = vpop.permute.xlu0 %1566
        %v1569 = vunpack.c.l.b16 %v1377
        %v1570 = vpack.c.b16 %v1569, %v1569
        %1571 = vrot.lane.b32.xlu0 %v1518, 64
        %v1572 = vpop.permute.xlu0 %1571
        %1573 = vrot.lane.b32.xlu0 %v1519, 64
        %v1574 = vpop.permute.xlu0 %1573
        %1575 = vrot.lane.b32.xlu0 %v1520, 64
        %v1576 = vpop.permute.xlu0 %1575
        %1577 = vrot.lane.b32.xlu0 %v1521, 64
        %v1578 = vpop.permute.xlu0 %1577
        %1579 = vrot.lane.b32.xlu0 %v1522, 64
        %v1580 = vpop.permute.xlu0 %1579
        %1581 = vrot.lane.b32.xlu0 %v1523, 64
        %v1582 = vpop.permute.xlu0 %1581
        %1583 = vrot.lane.b32.xlu0 %v1524, 64
        %v1584 = vpop.permute.xlu0 %1583
        %1585 = vrot.lane.b32.xlu0 %v1570, 64
        %v1586 = vpop.permute.xlu0 %1585
        %v1588 = vunpack.c.l.b16 %v1378
        %v1589 = vpack.c.b16 %v1588, %v1569
        %v1591 = vshrl.u32 %v1589, 16
        %v1593 = vshll.u32 %v1589, 16
        %v1595 = vrot.slane %v1593, 1
        %v1596 = vor.u32 %v1591, %v1595
        %1597 = vrot.lane.b32.xlu0 %v1439, 96
        %v1598 = vpop.permute.xlu0 %1597
        %1599 = vrot.lane.b32.xlu0 %v1446, 96
        %v1600 = vpop.permute.xlu0 %1599
        %1601 = vrot.lane.b32.xlu0 %v1453, 96
        %v1602 = vpop.permute.xlu0 %1601
        %1603 = vrot.lane.b32.xlu0 %v1460, 96
        %v1604 = vpop.permute.xlu0 %1603
        %1605 = vrot.lane.b32.xlu0 %v1467, 96
        %v1606 = vpop.permute.xlu0 %1605
        %1607 = vrot.lane.b32.xlu0 %v1474, 96
        %v1608 = vpop.permute.xlu0 %1607
        %1609 = vrot.lane.b32.xlu0 %v1550, 96
        %v1610 = vpop.permute.xlu0 %1609
        %1611 = vrot.lane.b32.xlu0 %v1596, 96
        %v1612 = vpop.permute.xlu0 %1611
        %v1613 = vrot.slane %v1589, 1
        %v1616 = vsel %vm744, %v1359, %v1476
        %v1619 = vsel %vm744, %v1361, %v1478
        %v1622 = vsel %vm744, %v1363, %v1480
        %v1625 = vsel %vm744, %v1365, %v1482
        %v1628 = vsel %vm744, %v1367, %v1484
        %v1631 = vsel %vm744, %v1369, %v1486
        %v1634 = vsel %vm744, %v1371, %v1488
        %v1637 = vsel %vm744, %v1373, %v1490
        %v1639 = vsel %vm769, %v1616, %v1500
        %v1641 = vsel %vm769, %v1619, %v1502
        %v1643 = vsel %vm769, %v1622, %v1504
        %v1645 = vsel %vm769, %v1625, %v1506
        %v1647 = vsel %vm769, %v1628, %v1508
        %v1649 = vsel %vm769, %v1631, %v1510
        %v1651 = vsel %vm769, %v1634, %v1512
        %v1653 = vsel %vm769, %v1637, %v1514
        %v1655 = vsel %vm786, %v1639, %v1526
        %v1657 = vsel %vm786, %v1641, %v1528
        %v1659 = vsel %vm786, %v1643, %v1530
        %v1661 = vsel %vm786, %v1645, %v1532
        %v1663 = vsel %vm786, %v1647, %v1534
        %v1665 = vsel %vm786, %v1649, %v1536
        %v1667 = vsel %vm786, %v1651, %v1538
        %v1669 = vsel %vm786, %v1653, %v1540
        %v1672 = vsel %vm744, %v1432, %v1553
        %v1675 = vsel %vm744, %v1439, %v1555
        %v1678 = vsel %vm744, %v1446, %v1557
        %v1681 = vsel %vm744, %v1453, %v1559
        %v1684 = vsel %vm744, %v1460, %v1561
        %v1687 = vsel %vm744, %v1467, %v1563
        %v1690 = vsel %vm744, %v1474, %v1565
        %v1693 = vsel %vm744, %v1550, %v1567
        %v1695 = vsel %vm769, %v1672, %v1572
        %v1697 = vsel %vm769, %v1675, %v1574
        %v1699 = vsel %vm769, %v1678, %v1576
        %v1701 = vsel %vm769, %v1681, %v1578
        %v1703 = vsel %vm769, %v1684, %v1580
        %v1705 = vsel %vm769, %v1687, %v1582
        %v1707 = vsel %vm769, %v1690, %v1584
        %v1709 = vsel %vm769, %v1693, %v1586
        %v1711 = vsel %vm786, %v1695, %v1598
        %v1713 = vsel %vm786, %v1697, %v1600
        %v1715 = vsel %vm786, %v1699, %v1602
        %v1717 = vsel %vm786, %v1701, %v1604
        %v1719 = vsel %vm786, %v1703, %v1606
        %v1721 = vsel %vm786, %v1705, %v1608
        %v1723 = vsel %vm786, %v1707, %v1610
        %v1725 = vsel %vm786, %v1709, %v1612
        %v1742 = vunpack.c.l.b16 %v1655
        %v1743 = vunpack.c.l.b16 %v1711
        %v1744 = vunpack.c.l.b16 %v1493
        %v1745 = vunpack.c.l.b16 %v1657
        %v1746 = vunpack.c.l.b16 %v1713
        %v1747 = vunpack.c.l.b16 %v1494
        %v1748 = vunpack.c.l.b16 %v1659
        %v1749 = vunpack.c.l.b16 %v1715
        %v1750 = vunpack.c.l.b16 %v1495
        %v1751 = vunpack.c.l.b16 %v1661
        %v1752 = vunpack.c.l.b16 %v1717
        %v1753 = vunpack.c.l.b16 %v1496
        %v1754 = vunpack.c.l.b16 %v1663
        %v1755 = vunpack.c.l.b16 %v1719
        %v1756 = vunpack.c.l.b16 %v1497
        %v1757 = vunpack.c.l.b16 %v1665
        %v1758 = vunpack.c.l.b16 %v1721
        %v1759 = vunpack.c.l.b16 %v1498
        %v1760 = vunpack.c.l.b16 %v1667
        %v1761 = vunpack.c.l.b16 %v1723
        %v1762 = vunpack.c.l.b16 %v1551
        %v1763 = vunpack.c.l.b16 %v1669
        %v1764 = vunpack.c.l.b16 %v1725
        %v1765 = vunpack.c.l.b16 %v1613
        %s1766 = scalar_lea.vmem %s4, %s1171
        %v1767 = vld [vmem:[%s1766] sm:$0x1]
        %v1769 = vperm.slane %v1767, 0
        %v1771 = vpack.c.b16 %v1745, %v1742
        %v1772 = vpack.c.b16 %v1746, %v1743
        %v1773 = vpack.c.b16 %v1747, %v1744
        %v1774 = vpack.c.b16 %v1751, %v1748
        %v1775 = vpack.c.b16 %v1752, %v1749
        %v1776 = vpack.c.b16 %v1753, %v1750
        %v1777 = vpack.c.b16 %v1757, %v1754
        %v1778 = vpack.c.b16 %v1758, %v1755
        %v1779 = vpack.c.b16 %v1759, %v1756
        %v1780 = vpack.c.b16 %v1763, %v1760
        %v1781 = vpack.c.b16 %v1764, %v1761
        %v1782 = vpack.c.b16 %v1765, %v1762
        %v1827 = vunpack.c.l.b16 %v1323
        %v1828 = vunpack.c.l.b16 %v1324
        %v1829 = vunpack.c.l.b16 %v1325
        %v1830 = vunpack.c.l.b16 %v1326
        %v1831 = vunpack.c.l.b16 %v1327
        %v1832 = vunpack.c.l.b16 %v1328
        %v1833 = vunpack.c.l.b16 %v1329
        %v1834 = vunpack.c.l.b16 %v1330
        %v1835 = vunpack.c.l.b16 %v1331
        %v1836 = vunpack.c.l.b16 %v1332
        %v1837 = vunpack.c.l.b16 %v1333
        %v1838 = vunpack.c.l.b16 %v1334
        %v1839 = vunpack.c.l.b16 %v1335
        %v1840 = vunpack.c.l.b16 %v1336
        %v1841 = vunpack.c.l.b16 %v1337
        %v1842 = vunpack.c.l.b16 %v1338
        %v1843 = vunpack.c.l.b16 %v1339
        %v1844 = vunpack.c.l.b16 %v1340
        %v1845 = vunpack.c.l.b16 %v1341
        %v1846 = vunpack.c.l.b16 %v1342
        %v1847 = vunpack.c.l.b16 %v1343
        %v1848 = vunpack.c.l.b16 %v1344
        %v1849 = vunpack.c.l.b16 %v1345
        %v1850 = vunpack.c.l.b16 %v1346
        %v1851 = vunpack.c.l.b16 %v1347
        %v1852 = vunpack.c.l.b16 %v1348
        %v1853 = vunpack.c.l.b16 %v1349
        %v1854 = vunpack.c.l.b16 %v1350
        %v1855 = vunpack.c.l.b16 %v1351
        %v1856 = vunpack.c.l.b16 %v1352
        %v1857 = vunpack.c.l.b16 %v1353
        %v1858 = vunpack.c.l.b16 %v1354
        %v1859 = vunpack.c.l.b16 %v1355
        %v1860 = vunpack.c.l.b16 %v1356
        %v1861 = vunpack.c.l.b16 %v1357
        %v1862 = vunpack.c.l.b16 %v1358
        %v1863 = vpack.c.b16 %v1828, %v1827
        %v1864 = vpack.c.b16 %v1830, %v1829
        %v1865 = vpack.c.b16 %v1832, %v1831
        %v1866 = vpack.c.b16 %v1834, %v1833
        %v1867 = vpack.c.b16 %v1836, %v1835
        %v1868 = vpack.c.b16 %v1838, %v1837
        %v1869 = vpack.c.b16 %v1840, %v1839
        %v1870 = vpack.c.b16 %v1842, %v1841
        %v1871 = vpack.c.b16 %v1844, %v1843
        %v1872 = vpack.c.b16 %v1846, %v1845
        %v1873 = vpack.c.b16 %v1848, %v1847
        %v1874 = vpack.c.b16 %v1850, %v1849
        %v1875 = vpack.c.b16 %v1852, %v1851
        %v1876 = vpack.c.b16 %v1854, %v1853
        %v1877 = vpack.c.b16 %v1856, %v1855
        %v1878 = vpack.c.b16 %v1858, %v1857
        %v1879 = vpack.c.b16 %v1860, %v1859
        %v1880 = vpack.c.b16 %v1862, %v1861
        %v1900 = vsel %vm744, %v1773, 0
        %v1903 = vsel %vm744, %v1776, 0
        %v1906 = vsel %vm744, %v1779, 0
        %v1909 = vsel %vm744, %v1782, 0
        %1911 = vmatpush.bf16.msra.mxu0 %v1870
        %1912 = vmatpush.bf16.msra.mxu0 %v1869
        %1913 = vmatpush.bf16.msra.mxu0 %v1868
        %1914 = vmatpush.bf16.msra.mxu0 %v1867
        %1915 = vmatpush.bf16.msra.mxu0 %v1866
        %1916 = vmatpush.bf16.msra.mxu0 %v1865
        %1917 = vmatpush.bf16.msra.mxu0 %v1864
        %1918 = vmatpush.bf16.msra.mxu0 %v1863
        %1919 = vmatmul.bf16.gmra.mxu0 %v1771
        %v1920 = vpop.f32.mrf.mxu0
        %v1921 = vadd.f32 %v1769, %v1920
        %v1922 = vpop.f32.mrf.mxu0
        %v1923 = vadd.f32 %v1769, %v1922
        %1924 = vmatmul.bf16.gmra.mxu0 %v1774
        %v1925 = vpop.f32.mrf.mxu0
        %v1926 = vadd.f32 %v1769, %v1925
        %v1927 = vpop.f32.mrf.mxu0
        %v1928 = vadd.f32 %v1769, %v1927
        %1929 = vmatmul.bf16.gmra.mxu0 %v1777
        %v1930 = vpop.f32.mrf.mxu0
        %v1931 = vadd.f32 %v1769, %v1930
        %v1932 = vpop.f32.mrf.mxu0
        %v1933 = vadd.f32 %v1769, %v1932
        %1934 = vmatmul.bf16.gmra.mxu0 %v1780
        %v1935 = vpop.f32.mrf.mxu0
        %v1936 = vadd.f32 %v1769, %v1935
        %v1937 = vpop.f32.mrf.mxu0
        %v1938 = vadd.f32 %v1769, %v1937
        %1939 = vdwg.mxu0
        %1940 = vmatpush.bf16.msra.mxu0 %v1878
        %1941 = vmatpush.bf16.msra.mxu0 %v1877
        %1942 = vmatpush.bf16.msra.mxu0 %v1876
        %1943 = vmatpush.bf16.msra.mxu0 %v1875
        %1944 = vmatpush.bf16.msra.mxu0 %v1874
        %1945 = vmatpush.bf16.msra.mxu0 %v1873
        %1946 = vmatpush.bf16.msra.mxu0 %v1872
        %1947 = vmatpush.bf16.msra.mxu0 %v1871
        %1948 = vmatmul.bf16.gmra.mxu0 %v1772
        %v1949 = vpop.f32.mrf.mxu0
        %v1950 = vadd.f32 %v1921, %v1949
        %v1951 = vpop.f32.mrf.mxu0
        %v1952 = vadd.f32 %v1923, %v1951
        %1953 = vmatmul.bf16.gmra.mxu0 %v1775
        %v1954 = vpop.f32.mrf.mxu0
        %v1955 = vadd.f32 %v1926, %v1954
        %v1956 = vpop.f32.mrf.mxu0
        %v1957 = vadd.f32 %v1928, %v1956
        %1958 = vmatmul.bf16.gmra.mxu0 %v1778
        %v1959 = vpop.f32.mrf.mxu0
        %v1960 = vadd.f32 %v1931, %v1959
        %v1961 = vpop.f32.mrf.mxu0
        %v1962 = vadd.f32 %v1933, %v1961
        %1963 = vmatmul.bf16.gmra.mxu0 %v1781
        %v1964 = vpop.f32.mrf.mxu0
        %v1965 = vadd.f32 %v1936, %v1964
        %v1966 = vpop.f32.mrf.mxu0
        %v1967 = vadd.f32 %v1938, %v1966
        %1968 = vdwg.mxu0
        %1969 = vmatpush.bf16.msra.mxu0 0
        %1970 = vmatpush.bf16.msra.mxu0 0
        %1971 = vmatpush.bf16.msra.mxu0 0
        %1972 = vmatpush.bf16.msra.mxu0 0
        %1973 = vmatpush.bf16.msra.mxu0 0
        %1974 = vmatpush.bf16.msra.mxu0 0
        %1975 = vmatpush.bf16.msra.mxu0 %v1880
        %1976 = vmatpush.bf16.msra.mxu0 %v1879
        %1977 = vmatmul.bf16.gmra.mxu0 %v1900
        %v1978 = vpop.f32.mrf.mxu0
        %v1979 = vadd.f32 %v1950, %v1978
        %v1980 = vpop.f32.mrf.mxu0
        %v1981 = vadd.f32 %v1952, %v1980
        %1982 = vmatmul.bf16.gmra.mxu0 %v1903
        %v1983 = vpop.f32.mrf.mxu0
        %v1984 = vadd.f32 %v1955, %v1983
        %v1985 = vpop.f32.mrf.mxu0
        %v1986 = vadd.f32 %v1957, %v1985
        %1987 = vmatmul.bf16.gmra.mxu0 %v1906
        %v1988 = vpop.f32.mrf.mxu0
        %v1989 = vadd.f32 %v1960, %v1988
        %v1990 = vpop.f32.mrf.mxu0
        %v1991 = vadd.f32 %v1962, %v1990
        %1992 = vmatmul.bf16.gmra.mxu0 %v1909
        %v1993 = vpop.f32.mrf.mxu0
        %v1994 = vadd.f32 %v1965, %v1993
        %v1995 = vpop.f32.mrf.mxu0
        %v1996 = vadd.f32 %v1967, %v1995
        %1997 = vdwg.mxu0
        %v1998 = vmax.f32 %v1979, 0.0
        %v1999 = vmax.f32 %v1981, 0.0
        %v2000 = vmax.f32 %v1984, 0.0
        %v2001 = vmax.f32 %v1986, 0.0
        %v2002 = vmax.f32 %v1989, 0.0
        %v2003 = vmax.f32 %v1991, 0.0
        %v2004 = vmax.f32 %v1994, 0.0
        %v2005 = vmax.f32 %v1996, 0.0
        %v2006 = vpack.c.bf16 %v1998, %v1998
        %v2007 = vpack.c.bf16 %v1999, %v1999
        %v2008 = vpack.c.bf16 %v2000, %v2000
        %v2009 = vpack.c.bf16 %v2001, %v2001
        %v2010 = vpack.c.bf16 %v2002, %v2002
        %v2011 = vpack.c.bf16 %v2003, %v2003
        %v2012 = vpack.c.bf16 %v2004, %v2004
        %v2013 = vpack.c.bf16 %v2005, %v2005
        %v2015 = vshrl.u32 %v2006, 16
        %v2017 = vrot.slane %v2015, 7
        %v2018 = vshll.u32 %v2006, 16
        %v2020 = vor.u32 %v2017, %v2018
        %v2021 = vrot.slane %v2017, 4
        %v2023 = vshrl.u32 %v2007, 16
        %v2025 = vrot.slane %v2023, 7
        %v2026 = vshll.u32 %v2007, 16
        %v2028 = vor.u32 %v2025, %v2026
        %v2029 = vrot.slane %v2025, 4
        %v2031 = vshrl.u32 %v2008, 16
        %v2033 = vrot.slane %v2031, 7
        %v2034 = vshll.u32 %v2008, 16
        %v2036 = vor.u32 %v2033, %v2034
        %v2037 = vrot.slane %v2033, 4
        %v2039 = vshrl.u32 %v2009, 16
        %v2041 = vrot.slane %v2039, 7
        %v2042 = vshll.u32 %v2009, 16
        %v2044 = vor.u32 %v2041, %v2042
        %v2045 = vrot.slane %v2041, 4
        %v2047 = vshrl.u32 %v2010, 16
        %v2049 = vrot.slane %v2047, 7
        %v2050 = vshll.u32 %v2010, 16
        %v2052 = vor.u32 %v2049, %v2050
        %v2053 = vrot.slane %v2049, 4
        %v2055 = vshrl.u32 %v2011, 16
        %v2057 = vrot.slane %v2055, 7
        %v2058 = vshll.u32 %v2011, 16
        %v2060 = vor.u32 %v2057, %v2058
        %v2061 = vrot.slane %v2057, 4
        %v2063 = vshrl.u32 %v2012, 16
        %v2065 = vrot.slane %v2063, 7
        %v2066 = vshll.u32 %v2012, 16
        %v2068 = vor.u32 %v2065, %v2066
        %v2069 = vrot.slane %v2065, 4
        %v2071 = vshrl.u32 %v2013, 16
        %v2073 = vrot.slane %v2071, 7
        %v2074 = vshll.u32 %v2013, 16
        %v2076 = vor.u32 %v2073, %v2074
        %v2077 = vrot.slane %v2073, 4
        %v2094 = vld [vmem:[%s398] sm:$0xf]
        %v2095 = vsel %vm401, %v2020, %v2094
        %2096 = vst [vmem:[%s398] sm:$0xf] %v2095
        %v2097 = vld [vmem:[%s398 + $0x4] sm:$0x1]
        %v2098 = vsel %vm407, %v2021, %v2097
        %2099 = vst [vmem:[%s398 + $0x4] sm:$0x1] %v2098
        %v2100 = vld [vmem:[%s398 + $0x8] sm:$0xf]
        %v2101 = vsel %vm401, %v2028, %v2100
        %2102 = vst [vmem:[%s398 + $0x8] sm:$0xf] %v2101
        %v2103 = vld [vmem:[%s398 + $0xc] sm:$0x1]
        %v2104 = vsel %vm407, %v2029, %v2103
        %2105 = vst [vmem:[%s398 + $0xc] sm:$0x1] %v2104
        %v2106 = vld [vmem:[%s398 + $0x10] sm:$0xf]
        %v2107 = vsel %vm401, %v2036, %v2106
        %2108 = vst [vmem:[%s398 + $0x10] sm:$0xf] %v2107
        %v2109 = vld [vmem:[%s398 + $0x14] sm:$0x1]
        %v2110 = vsel %vm407, %v2037, %v2109
        %2111 = vst [vmem:[%s398 + $0x14] sm:$0x1] %v2110
        %v2112 = vld [vmem:[%s398 + $0x18] sm:$0xf]
        %v2113 = vsel %vm401, %v2044, %v2112
        %2114 = vst [vmem:[%s398 + $0x18] sm:$0xf] %v2113
        %v2115 = vld [vmem:[%s398 + $0x1c] sm:$0x1]
        %v2116 = vsel %vm407, %v2045, %v2115
        %2117 = vst [vmem:[%s398 + $0x1c] sm:$0x1] %v2116
        %v2118 = vld [vmem:[%s398 + $0x20] sm:$0xf]
        %v2119 = vsel %vm401, %v2052, %v2118
        %2120 = vst [vmem:[%s398 + $0x20] sm:$0xf] %v2119
        %v2121 = vld [vmem:[%s398 + $0x24] sm:$0x1]
        %v2122 = vsel %vm407, %v2053, %v2121
        %2123 = vst [vmem:[%s398 + $0x24] sm:$0x1] %v2122
        %v2124 = vld [vmem:[%s398 + $0x28] sm:$0xf]
        %v2125 = vsel %vm401, %v2060, %v2124
        %2126 = vst [vmem:[%s398 + $0x28] sm:$0xf] %v2125
        %v2127 = vld [vmem:[%s398 + $0x2c] sm:$0x1]
        %v2128 = vsel %vm407, %v2061, %v2127
        %2129 = vst [vmem:[%s398 + $0x2c] sm:$0x1] %v2128
        %v2130 = vld [vmem:[%s398 + $0x30] sm:$0xf]
        %v2131 = vsel %vm401, %v2068, %v2130
        %2132 = vst [vmem:[%s398 + $0x30] sm:$0xf] %v2131
        %v2133 = vld [vmem:[%s398 + $0x34] sm:$0x1]
        %v2134 = vsel %vm407, %v2069, %v2133
        %2135 = vst [vmem:[%s398 + $0x34] sm:$0x1] %v2134
        %v2136 = vld [vmem:[%s398 + $0x38] sm:$0xf]
        %v2137 = vsel %vm401, %v2076, %v2136
        %2138 = vst [vmem:[%s398 + $0x38] sm:$0xf] %v2137
        %v2139 = vld [vmem:[%s398 + $0x3c] sm:$0x1]
        %v2140 = vsel %vm407, %v2077, %v2139
        %2141 = vst [vmem:[%s398 + $0x3c] sm:$0x1] %v2140
        %s2142 = smul.addr %s1320, 4
        %s2143 = scalar_lea.vmem %s5, %s2142
        %v2144 = vld [vmem:[%s2143] sm:$0xf]
        %v2145 = vld [vmem:[%s2143 + $0x4] sm:$0xf]
        %v2146 = vld [vmem:[%s2143 + $0x8] sm:$0xf]
        %v2147 = vld [vmem:[%s2143 + $0xc] sm:$0xf]
        %v2148 = vld [vmem:[%s2143 + $0x10] sm:$0xf]
        %v2149 = vld [vmem:[%s2143 + $0x14] sm:$0xf]
        %v2150 = vld [vmem:[%s2143 + $0x18] sm:$0xf]
        %v2151 = vld [vmem:[%s2143 + $0x1c] sm:$0xf]
        %v2152 = vld [vmem:[%s2143 + $0x20] sm:$0xf]
        %v2153 = vld [vmem:[%s2143 + $0x24] sm:$0xf]
        %v2154 = vld [vmem:[%s2143 + $0x28] sm:$0xf]
        %v2155 = vld [vmem:[%s2143 + $0x2c] sm:$0xf]
        %v2156 = vld [vmem:[%s2143 + $0x30] sm:$0xf]
        %v2157 = vld [vmem:[%s2143 + $0x34] sm:$0xf]
        %v2158 = vld [vmem:[%s2143 + $0x38] sm:$0xf]
        %v2159 = vld [vmem:[%s2143 + $0x3c] sm:$0xf]
        %v2160 = vld [vmem:[%s2143 + $0x40] sm:$0xf]
        %v2161 = vld [vmem:[%s2143 + $0x44] sm:$0xf]
        %v2162 = vld [vmem:[%s2143 + $0x48] sm:$0xf]
        %v2163 = vld [vmem:[%s2143 + $0x4c] sm:$0xf]
        %v2164 = vld [vmem:[%s2143 + $0x50] sm:$0xf]
        %v2165 = vld [vmem:[%s2143 + $0x54] sm:$0xf]
        %v2166 = vld [vmem:[%s2143 + $0x58] sm:$0xf]
        %v2167 = vld [vmem:[%s2143 + $0x5c] sm:$0xf]
        %v2168 = vld [vmem:[%s2143 + $0x60] sm:$0xf]
        %v2169 = vld [vmem:[%s2143 + $0x64] sm:$0xf]
        %v2170 = vld [vmem:[%s2143 + $0x68] sm:$0xf]
        %v2171 = vld [vmem:[%s2143 + $0x6c] sm:$0xf]
        %v2172 = vld [vmem:[%s2143 + $0x70] sm:$0xf]
        %v2173 = vld [vmem:[%s2143 + $0x74] sm:$0xf]
        %v2174 = vld [vmem:[%s2143 + $0x78] sm:$0xf]
        %v2175 = vld [vmem:[%s2143 + $0x7c] sm:$0xf]
        %v2176 = vld [vmem:[%s2143 + $0x80] sm:$0xf]
        %v2177 = vld [vmem:[%s2143 + $0x84] sm:$0xf]
        %v2178 = vld [vmem:[%s2143 + $0x88] sm:$0xf]
        %v2179 = vld [vmem:[%s2143 + $0x8c] sm:$0xf]
        %v2180 = vld [vmem:[#allocation2] sm:$0xf]
        %v2181 = vld [vmem:[#allocation2 + $0x4] sm:$0x1]
        %v2182 = vld [vmem:[#allocation2 + $0x8] sm:$0xf]
        %v2183 = vld [vmem:[#allocation2 + $0xc] sm:$0x1]
        %v2184 = vld [vmem:[#allocation2 + $0x10] sm:$0xf]
        %v2185 = vld [vmem:[#allocation2 + $0x14] sm:$0x1]
        %v2186 = vld [vmem:[#allocation2 + $0x18] sm:$0xf]
        %v2187 = vld [vmem:[#allocation2 + $0x1c] sm:$0x1]
        %v2188 = vld [vmem:[#allocation2 + $0x20] sm:$0xf]
        %v2189 = vld [vmem:[#allocation2 + $0x24] sm:$0x1]
        %v2190 = vld [vmem:[#allocation2 + $0x28] sm:$0xf]
        %v2191 = vld [vmem:[#allocation2 + $0x2c] sm:$0x1]
        %v2192 = vld [vmem:[#allocation2 + $0x30] sm:$0xf]
        %v2193 = vld [vmem:[#allocation2 + $0x34] sm:$0x1]
        %v2194 = vld [vmem:[#allocation2 + $0x38] sm:$0xf]
        %v2195 = vld [vmem:[#allocation2 + $0x3c] sm:$0x1]
        %v2196 = vld [vmem:[#allocation2 + $0x40] sm:$0xf]
        %v2197 = vld [vmem:[#allocation2 + $0x44] sm:$0x1]
        %v2198 = vld [vmem:[#allocation2 + $0x48] sm:$0xf]
        %v2199 = vld [vmem:[#allocation2 + $0x4c] sm:$0x1]
        %v2216 = vunpack.c.l.b16 %v2180
        %v2217 = vunpack.c.l.b16 %v2181
        %v2218 = vunpack.c.l.b16 %v2182
        %v2219 = vunpack.c.l.b16 %v2183
        %v2220 = vunpack.c.l.b16 %v2184
        %v2221 = vunpack.c.l.b16 %v2185
        %v2222 = vunpack.c.l.b16 %v2186
        %v2223 = vunpack.c.l.b16 %v2187
        %v2224 = vunpack.c.l.b16 %v2188
        %v2225 = vunpack.c.l.b16 %v2189
        %v2226 = vunpack.c.l.b16 %v2190
        %v2227 = vunpack.c.l.b16 %v2191
        %v2228 = vunpack.c.l.b16 %v2192
        %v2229 = vunpack.c.l.b16 %v2193
        %v2230 = vunpack.c.l.b16 %v2194
        %v2231 = vunpack.c.l.b16 %v2195
        %v2232 = vpack.c.b16 %v2217, %v2216
        %v2233 = vpack.c.b16 %v2219, %v2218
        %v2234 = vpack.c.b16 %v2221, %v2220
        %v2235 = vpack.c.b16 %v2223, %v2222
        %v2236 = vpack.c.b16 %v2225, %v2224
        %v2237 = vpack.c.b16 %v2227, %v2226
        %v2238 = vpack.c.b16 %v2229, %v2228
        %v2239 = vpack.c.b16 %v2231, %v2230
        %v2241 = vshrl.u32 %v2232, 16
        %v2243 = vshll.u32 %v2232, 16
        %v2245 = vrot.slane %v2243, 1
        %v2246 = vor.u32 %v2241, %v2245
        %v2248 = vshrl.u32 %v2233, 16
        %v2250 = vshll.u32 %v2233, 16
        %v2252 = vrot.slane %v2250, 1
        %v2253 = vor.u32 %v2248, %v2252
        %v2255 = vshrl.u32 %v2234, 16
        %v2257 = vshll.u32 %v2234, 16
        %v2259 = vrot.slane %v2257, 1
        %v2260 = vor.u32 %v2255, %v2259
        %v2262 = vshrl.u32 %v2235, 16
        %v2264 = vshll.u32 %v2235, 16
        %v2266 = vrot.slane %v2264, 1
        %v2267 = vor.u32 %v2262, %v2266
        %v2269 = vshrl.u32 %v2236, 16
        %v2271 = vshll.u32 %v2236, 16
        %v2273 = vrot.slane %v2271, 1
        %v2274 = vor.u32 %v2269, %v2273
        %v2276 = vshrl.u32 %v2237, 16
        %v2278 = vshll.u32 %v2237, 16
        %v2280 = vrot.slane %v2278, 1
        %v2281 = vor.u32 %v2276, %v2280
        %v2283 = vshrl.u32 %v2238, 16
        %v2285 = vshll.u32 %v2238, 16
        %v2287 = vrot.slane %v2285, 1
        %v2288 = vor.u32 %v2283, %v2287
        %v2290 = vshrl.u32 %v2239, 16
        %v2292 = vshll.u32 %v2239, 16
        %v2294 = vrot.slane %v2292, 1
        %v2295 = vor.u32 %v2290, %v2294
        %2296 = vrot.lane.b32.xlu0 %v2246, 32
        %v2297 = vpop.permute.xlu0 %2296
        %2298 = vrot.lane.b32.xlu0 %v2253, 32
        %v2299 = vpop.permute.xlu0 %2298
        %2300 = vrot.lane.b32.xlu0 %v2260, 32
        %v2301 = vpop.permute.xlu0 %2300
        %2302 = vrot.lane.b32.xlu0 %v2267, 32
        %v2303 = vpop.permute.xlu0 %2302
        %2304 = vrot.lane.b32.xlu0 %v2274, 32
        %v2305 = vpop.permute.xlu0 %2304
        %2306 = vrot.lane.b32.xlu0 %v2281, 32
        %v2307 = vpop.permute.xlu0 %2306
        %2308 = vrot.lane.b32.xlu0 %v2288, 32
        %v2309 = vpop.permute.xlu0 %2308
        %2310 = vrot.lane.b32.xlu0 %v2295, 32
        %v2311 = vpop.permute.xlu0 %2310
        %v2312 = vrot.slane %v2232, 1
        %v2313 = vrot.slane %v2233, 1
        %v2314 = vrot.slane %v2234, 1
        %v2315 = vrot.slane %v2235, 1
        %v2316 = vrot.slane %v2236, 1
        %v2317 = vrot.slane %v2237, 1
        %v2318 = vrot.slane %v2238, 1
        %v2319 = vrot.slane %v2239, 1
        %2320 = vrot.lane.b32.xlu0 %v2312, 64
        %v2321 = vpop.permute.xlu0 %2320
        %2322 = vrot.lane.b32.xlu0 %v2313, 64
        %v2323 = vpop.permute.xlu0 %2322
        %2324 = vrot.lane.b32.xlu0 %v2314, 64
        %v2325 = vpop.permute.xlu0 %2324
        %2326 = vrot.lane.b32.xlu0 %v2315, 64
        %v2327 = vpop.permute.xlu0 %2326
        %2328 = vrot.lane.b32.xlu0 %v2316, 64
        %v2329 = vpop.permute.xlu0 %2328
        %2330 = vrot.lane.b32.xlu0 %v2317, 64
        %v2331 = vpop.permute.xlu0 %2330
        %2332 = vrot.lane.b32.xlu0 %v2318, 64
        %v2333 = vpop.permute.xlu0 %2332
        %2334 = vrot.lane.b32.xlu0 %v2319, 64
        %v2335 = vpop.permute.xlu0 %2334
        %v2337 = vunpack.c.l.b16 %v2196
        %v2338 = vpack.c.b16 %v2218, %v2218
        %v2339 = vpack.c.b16 %v2220, %v2220
        %v2340 = vpack.c.b16 %v2222, %v2222
        %v2341 = vpack.c.b16 %v2224, %v2224
        %v2342 = vpack.c.b16 %v2226, %v2226
        %v2343 = vpack.c.b16 %v2228, %v2228
        %v2344 = vpack.c.b16 %v2230, %v2230
        %v2345 = vpack.c.b16 %v2337, %v2337
        %2346 = vrot.lane.b32.xlu0 %v2338, 96
        %v2347 = vpop.permute.xlu0 %2346
        %2348 = vrot.lane.b32.xlu0 %v2339, 96
        %v2349 = vpop.permute.xlu0 %2348
        %2350 = vrot.lane.b32.xlu0 %v2340, 96
        %v2351 = vpop.permute.xlu0 %2350
        %2352 = vrot.lane.b32.xlu0 %v2341, 96
        %v2353 = vpop.permute.xlu0 %2352
        %2354 = vrot.lane.b32.xlu0 %v2342, 96
        %v2355 = vpop.permute.xlu0 %2354
        %2356 = vrot.lane.b32.xlu0 %v2343, 96
        %v2357 = vpop.permute.xlu0 %2356
        %2358 = vrot.lane.b32.xlu0 %v2344, 96
        %v2359 = vpop.permute.xlu0 %2358
        %2360 = vrot.lane.b32.xlu0 %v2345, 96
        %v2361 = vpop.permute.xlu0 %2360
        %v2363 = vunpack.c.l.b16 %v2197
        %v2364 = vpack.c.b16 %v2363, %v2337
        %v2366 = vshrl.u32 %v2364, 16
        %v2368 = vshll.u32 %v2364, 16
        %v2370 = vrot.slane %v2368, 1
        %v2371 = vor.u32 %v2366, %v2370
        %v2372 = vrot.slane %v2364, 1
        %2373 = vrot.lane.b32.xlu0 %v2313, 32
        %v2374 = vpop.permute.xlu0 %2373
        %2375 = vrot.lane.b32.xlu0 %v2314, 32
        %v2376 = vpop.permute.xlu0 %2375
        %2377 = vrot.lane.b32.xlu0 %v2315, 32
        %v2378 = vpop.permute.xlu0 %2377
        %2379 = vrot.lane.b32.xlu0 %v2316, 32
        %v2380 = vpop.permute.xlu0 %2379
        %2381 = vrot.lane.b32.xlu0 %v2317, 32
        %v2382 = vpop.permute.xlu0 %2381
        %2383 = vrot.lane.b32.xlu0 %v2318, 32
        %v2384 = vpop.permute.xlu0 %2383
        %2385 = vrot.lane.b32.xlu0 %v2319, 32
        %v2386 = vpop.permute.xlu0 %2385
        %2387 = vrot.lane.b32.xlu0 %v2372, 32
        %v2388 = vpop.permute.xlu0 %2387
        %v2390 = vunpack.c.l.b16 %v2198
        %v2391 = vpack.c.b16 %v2390, %v2390
        %2392 = vrot.lane.b32.xlu0 %v2339, 64
        %v2393 = vpop.permute.xlu0 %2392
        %2394 = vrot.lane.b32.xlu0 %v2340, 64
        %v2395 = vpop.permute.xlu0 %2394
        %2396 = vrot.lane.b32.xlu0 %v2341, 64
        %v2397 = vpop.permute.xlu0 %2396
        %2398 = vrot.lane.b32.xlu0 %v2342, 64
        %v2399 = vpop.permute.xlu0 %2398
        %2400 = vrot.lane.b32.xlu0 %v2343, 64
        %v2401 = vpop.permute.xlu0 %2400
        %2402 = vrot.lane.b32.xlu0 %v2344, 64
        %v2403 = vpop.permute.xlu0 %2402
        %2404 = vrot.lane.b32.xlu0 %v2345, 64
        %v2405 = vpop.permute.xlu0 %2404
        %2406 = vrot.lane.b32.xlu0 %v2391, 64
        %v2407 = vpop.permute.xlu0 %2406
        %v2409 = vunpack.c.l.b16 %v2199
        %v2410 = vpack.c.b16 %v2409, %v2390
        %v2412 = vshrl.u32 %v2410, 16
        %v2414 = vshll.u32 %v2410, 16
        %v2416 = vrot.slane %v2414, 1
        %v2417 = vor.u32 %v2412, %v2416
        %2418 = vrot.lane.b32.xlu0 %v2260, 96
        %v2419 = vpop.permute.xlu0 %2418
        %2420 = vrot.lane.b32.xlu0 %v2267, 96
        %v2421 = vpop.permute.xlu0 %2420
        %2422 = vrot.lane.b32.xlu0 %v2274, 96
        %v2423 = vpop.permute.xlu0 %2422
        %2424 = vrot.lane.b32.xlu0 %v2281, 96
        %v2425 = vpop.permute.xlu0 %2424
        %2426 = vrot.lane.b32.xlu0 %v2288, 96
        %v2427 = vpop.permute.xlu0 %2426
        %2428 = vrot.lane.b32.xlu0 %v2295, 96
        %v2429 = vpop.permute.xlu0 %2428
        %2430 = vrot.lane.b32.xlu0 %v2371, 96
        %v2431 = vpop.permute.xlu0 %2430
        %2432 = vrot.lane.b32.xlu0 %v2417, 96
        %v2433 = vpop.permute.xlu0 %2432
        %v2434 = vrot.slane %v2410, 1
        %v2437 = vsel %vm744, %v2180, %v2297
        %v2440 = vsel %vm744, %v2182, %v2299
        %v2443 = vsel %vm744, %v2184, %v2301
        %v2446 = vsel %vm744, %v2186, %v2303
        %v2449 = vsel %vm744, %v2188, %v2305
        %v2452 = vsel %vm744, %v2190, %v2307
        %v2455 = vsel %vm744, %v2192, %v2309
        %v2458 = vsel %vm744, %v2194, %v2311
        %v2460 = vsel %vm769, %v2437, %v2321
        %v2462 = vsel %vm769, %v2440, %v2323
        %v2464 = vsel %vm769, %v2443, %v2325
        %v2466 = vsel %vm769, %v2446, %v2327
        %v2468 = vsel %vm769, %v2449, %v2329
        %v2470 = vsel %vm769, %v2452, %v2331
        %v2472 = vsel %vm769, %v2455, %v2333
        %v2474 = vsel %vm769, %v2458, %v2335
        %v2476 = vsel %vm786, %v2460, %v2347
        %v2478 = vsel %vm786, %v2462, %v2349
        %v2480 = vsel %vm786, %v2464, %v2351
        %v2482 = vsel %vm786, %v2466, %v2353
        %v2484 = vsel %vm786, %v2468, %v2355
        %v2486 = vsel %vm786, %v2470, %v2357
        %v2488 = vsel %vm786, %v2472, %v2359
        %v2490 = vsel %vm786, %v2474, %v2361
        %v2493 = vsel %vm744, %v2253, %v2374
        %v2496 = vsel %vm744, %v2260, %v2376
        %v2499 = vsel %vm744, %v2267, %v2378
        %v2502 = vsel %vm744, %v2274, %v2380
        %v2505 = vsel %vm744, %v2281, %v2382
        %v2508 = vsel %vm744, %v2288, %v2384
        %v2511 = vsel %vm744, %v2295, %v2386
        %v2514 = vsel %vm744, %v2371, %v2388
        %v2516 = vsel %vm769, %v2493, %v2393
        %v2518 = vsel %vm769, %v2496, %v2395
        %v2520 = vsel %vm769, %v2499, %v2397
        %v2522 = vsel %vm769, %v2502, %v2399
        %v2524 = vsel %vm769, %v2505, %v2401
        %v2526 = vsel %vm769, %v2508, %v2403
        %v2528 = vsel %vm769, %v2511, %v2405
        %v2530 = vsel %vm769, %v2514, %v2407
        %v2532 = vsel %vm786, %v2516, %v2419
        %v2534 = vsel %vm786, %v2518, %v2421
        %v2536 = vsel %vm786, %v2520, %v2423
        %v2538 = vsel %vm786, %v2522, %v2425
        %v2540 = vsel %vm786, %v2524, %v2427
        %v2542 = vsel %vm786, %v2526, %v2429
        %v2544 = vsel %vm786, %v2528, %v2431
        %v2546 = vsel %vm786, %v2530, %v2433
        %v2563 = vunpack.c.l.b16 %v2476
        %v2564 = vunpack.c.l.b16 %v2532
        %v2565 = vunpack.c.l.b16 %v2314
        %v2566 = vunpack.c.l.b16 %v2478
        %v2567 = vunpack.c.l.b16 %v2534
        %v2568 = vunpack.c.l.b16 %v2315
        %v2569 = vunpack.c.l.b16 %v2480
        %v2570 = vunpack.c.l.b16 %v2536
        %v2571 = vunpack.c.l.b16 %v2316
        %v2572 = vunpack.c.l.b16 %v2482
        %v2573 = vunpack.c.l.b16 %v2538
        %v2574 = vunpack.c.l.b16 %v2317
        %v2575 = vunpack.c.l.b16 %v2484
        %v2576 = vunpack.c.l.b16 %v2540
        %v2577 = vunpack.c.l.b16 %v2318
        %v2578 = vunpack.c.l.b16 %v2486
        %v2579 = vunpack.c.l.b16 %v2542
        %v2580 = vunpack.c.l.b16 %v2319
        %v2581 = vunpack.c.l.b16 %v2488
        %v2582 = vunpack.c.l.b16 %v2544
        %v2583 = vunpack.c.l.b16 %v2372
        %v2584 = vunpack.c.l.b16 %v2490
        %v2585 = vunpack.c.l.b16 %v2546
        %v2586 = vunpack.c.l.b16 %v2434
        %s2587 = scalar_lea.vmem %s6, %s1171
        %v2588 = vld [vmem:[%s2587] sm:$0x1]
        %v2590 = vperm.slane %v2588, 0
        %v2592 = vpack.c.b16 %v2566, %v2563
        %v2593 = vpack.c.b16 %v2567, %v2564
        %v2594 = vpack.c.b16 %v2568, %v2565
        %v2595 = vpack.c.b16 %v2572, %v2569
        %v2596 = vpack.c.b16 %v2573, %v2570
        %v2597 = vpack.c.b16 %v2574, %v2571
        %v2598 = vpack.c.b16 %v2578, %v2575
        %v2599 = vpack.c.b16 %v2579, %v2576
        %v2600 = vpack.c.b16 %v2580, %v2577
        %v2601 = vpack.c.b16 %v2584, %v2581
        %v2602 = vpack.c.b16 %v2585, %v2582
        %v2603 = vpack.c.b16 %v2586, %v2583
        %v2648 = vunpack.c.l.b16 %v2144
        %v2649 = vunpack.c.l.b16 %v2145
        %v2650 = vunpack.c.l.b16 %v2146
        %v2651 = vunpack.c.l.b16 %v2147
        %v2652 = vunpack.c.l.b16 %v2148
        %v2653 = vunpack.c.l.b16 %v2149
        %v2654 = vunpack.c.l.b16 %v2150
        %v2655 = vunpack.c.l.b16 %v2151
        %v2656 = vunpack.c.l.b16 %v2152
        %v2657 = vunpack.c.l.b16 %v2153
        %v2658 = vunpack.c.l.b16 %v2154
        %v2659 = vunpack.c.l.b16 %v2155
        %v2660 = vunpack.c.l.b16 %v2156
        %v2661 = vunpack.c.l.b16 %v2157
        %v2662 = vunpack.c.l.b16 %v2158
        %v2663 = vunpack.c.l.b16 %v2159
        %v2664 = vunpack.c.l.b16 %v2160
        %v2665 = vunpack.c.l.b16 %v2161
        %v2666 = vunpack.c.l.b16 %v2162
        %v2667 = vunpack.c.l.b16 %v2163
        %v2668 = vunpack.c.l.b16 %v2164
        %v2669 = vunpack.c.l.b16 %v2165
        %v2670 = vunpack.c.l.b16 %v2166
        %v2671 = vunpack.c.l.b16 %v2167
        %v2672 = vunpack.c.l.b16 %v2168
        %v2673 = vunpack.c.l.b16 %v2169
        %v2674 = vunpack.c.l.b16 %v2170
        %v2675 = vunpack.c.l.b16 %v2171
        %v2676 = vunpack.c.l.b16 %v2172
        %v2677 = vunpack.c.l.b16 %v2173
        %v2678 = vunpack.c.l.b16 %v2174
        %v2679 = vunpack.c.l.b16 %v2175
        %v2680 = vunpack.c.l.b16 %v2176
        %v2681 = vunpack.c.l.b16 %v2177
        %v2682 = vunpack.c.l.b16 %v2178
        %v2683 = vunpack.c.l.b16 %v2179
        %v2684 = vpack.c.b16 %v2649, %v2648
        %v2685 = vpack.c.b16 %v2651, %v2650
        %v2686 = vpack.c.b16 %v2653, %v2652
        %v2687 = vpack.c.b16 %v2655, %v2654
        %v2688 = vpack.c.b16 %v2657, %v2656
        %v2689 = vpack.c.b16 %v2659, %v2658
        %v2690 = vpack.c.b16 %v2661, %v2660
        %v2691 = vpack.c.b16 %v2663, %v2662
        %v2692 = vpack.c.b16 %v2665, %v2664
        %v2693 = vpack.c.b16 %v2667, %v2666
        %v2694 = vpack.c.b16 %v2669, %v2668
        %v2695 = vpack.c.b16 %v2671, %v2670
        %v2696 = vpack.c.b16 %v2673, %v2672
        %v2697 = vpack.c.b16 %v2675, %v2674
        %v2698 = vpack.c.b16 %v2677, %v2676
        %v2699 = vpack.c.b16 %v2679, %v2678
        %v2700 = vpack.c.b16 %v2681, %v2680
        %v2701 = vpack.c.b16 %v2683, %v2682
        %v2721 = vsel %vm744, %v2594, 0
        %v2724 = vsel %vm744, %v2597, 0
        %v2727 = vsel %vm744, %v2600, 0
        %v2730 = vsel %vm744, %v2603, 0
        %2732 = vmatpush.bf16.msra.mxu0 %v2691
        %2733 = vmatpush.bf16.msra.mxu0 %v2690
        %2734 = vmatpush.bf16.msra.mxu0 %v2689
        %2735 = vmatpush.bf16.msra.mxu0 %v2688
        %2736 = vmatpush.bf16.msra.mxu0 %v2687
        %2737 = vmatpush.bf16.msra.mxu0 %v2686
        %2738 = vmatpush.bf16.msra.mxu0 %v2685
        %2739 = vmatpush.bf16.msra.mxu0 %v2684
        %2740 = vmatmul.bf16.gmra.mxu0 %v2592
        %v2741 = vpop.f32.mrf.mxu0
        %v2742 = vadd.f32 %v2590, %v2741
        %v2743 = vpop.f32.mrf.mxu0
        %v2744 = vadd.f32 %v2590, %v2743
        %2745 = vmatmul.bf16.gmra.mxu0 %v2595
        %v2746 = vpop.f32.mrf.mxu0
        %v2747 = vadd.f32 %v2590, %v2746
        %v2748 = vpop.f32.mrf.mxu0
        %v2749 = vadd.f32 %v2590, %v2748
        %2750 = vmatmul.bf16.gmra.mxu0 %v2598
        %v2751 = vpop.f32.mrf.mxu0
        %v2752 = vadd.f32 %v2590, %v2751
        %v2753 = vpop.f32.mrf.mxu0
        %v2754 = vadd.f32 %v2590, %v2753
        %2755 = vmatmul.bf16.gmra.mxu0 %v2601
        %v2756 = vpop.f32.mrf.mxu0
        %v2757 = vadd.f32 %v2590, %v2756
        %v2758 = vpop.f32.mrf.mxu0
        %v2759 = vadd.f32 %v2590, %v2758
        %2760 = vdwg.mxu0
        %2761 = vmatpush.bf16.msra.mxu0 %v2699
        %2762 = vmatpush.bf16.msra.mxu0 %v2698
        %2763 = vmatpush.bf16.msra.mxu0 %v2697
        %2764 = vmatpush.bf16.msra.mxu0 %v2696
        %2765 = vmatpush.bf16.msra.mxu0 %v2695
        %2766 = vmatpush.bf16.msra.mxu0 %v2694
        %2767 = vmatpush.bf16.msra.mxu0 %v2693
        %2768 = vmatpush.bf16.msra.mxu0 %v2692
        %2769 = vmatmul.bf16.gmra.mxu0 %v2593
        %v2770 = vpop.f32.mrf.mxu0
        %v2771 = vadd.f32 %v2742, %v2770
        %v2772 = vpop.f32.mrf.mxu0
        %v2773 = vadd.f32 %v2744, %v2772
        %2774 = vmatmul.bf16.gmra.mxu0 %v2596
        %v2775 = vpop.f32.mrf.mxu0
        %v2776 = vadd.f32 %v2747, %v2775
        %v2777 = vpop.f32.mrf.mxu0
        %v2778 = vadd.f32 %v2749, %v2777
        %2779 = vmatmul.bf16.gmra.mxu0 %v2599
        %v2780 = vpop.f32.mrf.mxu0
        %v2781 = vadd.f32 %v2752, %v2780
        %v2782 = vpop.f32.mrf.mxu0
        %v2783 = vadd.f32 %v2754, %v2782
        %2784 = vmatmul.bf16.gmra.mxu0 %v2602
        %v2785 = vpop.f32.mrf.mxu0
        %v2786 = vadd.f32 %v2757, %v2785
        %v2787 = vpop.f32.mrf.mxu0
        %v2788 = vadd.f32 %v2759, %v2787
        %2789 = vdwg.mxu0
        %2790 = vmatpush.bf16.msra.mxu0 0
        %2791 = vmatpush.bf16.msra.mxu0 0
        %2792 = vmatpush.bf16.msra.mxu0 0
        %2793 = vmatpush.bf16.msra.mxu0 0
        %2794 = vmatpush.bf16.msra.mxu0 0
        %2795 = vmatpush.bf16.msra.mxu0 0
        %2796 = vmatpush.bf16.msra.mxu0 %v2701
        %2797 = vmatpush.bf16.msra.mxu0 %v2700
        %2798 = vmatmul.bf16.gmra.mxu0 %v2721
        %v2799 = vpop.f32.mrf.mxu0
        %v2800 = vadd.f32 %v2771, %v2799
        %v2801 = vpop.f32.mrf.mxu0
        %v2802 = vadd.f32 %v2773, %v2801
        %2803 = vmatmul.bf16.gmra.mxu0 %v2724
        %v2804 = vpop.f32.mrf.mxu0
        %v2805 = vadd.f32 %v2776, %v2804
        %v2806 = vpop.f32.mrf.mxu0
        %v2807 = vadd.f32 %v2778, %v2806
        %2808 = vmatmul.bf16.gmra.mxu0 %v2727
        %v2809 = vpop.f32.mrf.mxu0
        %v2810 = vadd.f32 %v2781, %v2809
        %v2811 = vpop.f32.mrf.mxu0
        %v2812 = vadd.f32 %v2783, %v2811
        %2813 = vmatmul.bf16.gmra.mxu0 %v2730
        %v2814 = vpop.f32.mrf.mxu0
        %v2815 = vadd.f32 %v2786, %v2814
        %v2816 = vpop.f32.mrf.mxu0
        %v2817 = vadd.f32 %v2788, %v2816
        %2818 = vdwg.mxu0
        %v2819 = vadd.f32 %v1176, %v2800
        %v2820 = vadd.f32 %v1177, %v2802
        %v2821 = vadd.f32 %v1178, %v2805
        %v2822 = vadd.f32 %v1179, %v2807
        %v2823 = vadd.f32 %v1180, %v2810
        %v2824 = vadd.f32 %v1181, %v2812
        %v2825 = vadd.f32 %v1182, %v2815
        %v2826 = vadd.f32 %v1183, %v2817
        %2827 = vst.msk [vmem:[#allocation3] sm:$0xff] %vm744, %v2819
        %2828 = vst.msk [vmem:[#allocation3 + $0x8] sm:$0xff] %vm744, %v2820
        %2829 = vst.msk [vmem:[#allocation3 + $0x10] sm:$0xff] %vm744, %v2821
        %2830 = vst.msk [vmem:[#allocation3 + $0x18] sm:$0xff] %vm744, %v2822
        %2831 = vst.msk [vmem:[#allocation3 + $0x20] sm:$0xff] %vm744, %v2823
        %2832 = vst.msk [vmem:[#allocation3 + $0x28] sm:$0xff] %vm744, %v2824
        %2833 = vst.msk [vmem:[#allocation3 + $0x30] sm:$0xff] %vm744, %v2825
        %2834 = vst.msk [vmem:[#allocation3 + $0x38] sm:$0xff] %vm744, %v2826
      $region53: #{last_model_forward.6} parent=47 // loop_footer
        %s1175 = sadd.s32 1, %s1171
      $region54: #{last_model_forward.6} parent=47 // loop_footer_branch
        %1170 = sbr.rel target = $region50
      $region55: #{last_model_forward.6} parent=47 // loop_exit
        _
      %v2835 = vld [vmem:[#allocation3] sm:$0xff]
      %v2836 = vld [vmem:[#allocation3 + $0x8] sm:$0xff]
      %v2837 = vld [vmem:[#allocation3 + $0x10] sm:$0xff]
      %v2838 = vld [vmem:[#allocation3 + $0x18] sm:$0xff]
      %v2839 = vld [vmem:[#allocation3 + $0x20] sm:$0xff]
      %v2840 = vld [vmem:[#allocation3 + $0x28] sm:$0xff]
      %v2841 = vld [vmem:[#allocation3 + $0x30] sm:$0xff]
      %v2842 = vld [vmem:[#allocation3 + $0x38] sm:$0xff]
      %v2843 = vld [vmem:[#allocation4] sm:$0xff]
      %v2844 = vld [vmem:[#allocation4 + $0x8] sm:$0xff]
      %v2845 = vld [vmem:[#allocation4 + $0x10] sm:$0xff]
      %v2846 = vld [vmem:[#allocation4 + $0x18] sm:$0xff]
      %v2847 = vld [vmem:[#allocation4 + $0x20] sm:$0xff]
      %v2848 = vld [vmem:[#allocation4 + $0x28] sm:$0xff]
      %v2849 = vld [vmem:[#allocation4 + $0x30] sm:$0xff]
      %v2850 = vld [vmem:[#allocation4 + $0x38] sm:$0xff]
      %v2851 = vadd.f32 %v2835, %v2843
      %v2852 = vadd.f32 %v2836, %v2844
      %v2853 = vadd.f32 %v2837, %v2845
      %v2854 = vadd.f32 %v2838, %v2846
      %v2855 = vadd.f32 %v2839, %v2847
      %v2856 = vadd.f32 %v2840, %v2848
      %v2857 = vadd.f32 %v2841, %v2849
      %v2858 = vadd.f32 %v2842, %v2850
      %2859 = vst.msk [vmem:[%s278] sm:$0xff] %vm744, %v2851
      %2860 = vst.msk [vmem:[%s278 + $0x8] sm:$0xff] %vm744, %v2852
      %2861 = vst.msk [vmem:[%s278 + $0x10] sm:$0xff] %vm744, %v2853
      %2862 = vst.msk [vmem:[%s278 + $0x18] sm:$0xff] %vm744, %v2854
      %2863 = vst.msk [vmem:[%s278 + $0x20] sm:$0xff] %vm744, %v2855
      %2864 = vst.msk [vmem:[%s278 + $0x28] sm:$0xff] %vm744, %v2856
      %2865 = vst.msk [vmem:[%s278 + $0x30] sm:$0xff] %vm744, %v2857
      %2866 = vst.msk [vmem:[%s278 + $0x38] sm:$0xff] %vm744, %v2858
      %p2867 = scmp.lt.s32.totalorder %s18, 1
      %s2868 = scalar_select %p2867, %s18, 1
      %s2869 = smul.addr %s2868, 8
      %s2870 = smul.addr %s2869, 8
      %s2871 = scalar_lea.vmem %s7, %s2870
      // Predicated region
      $region56: #{last_model_forward.6} parent=47 // pred_check
        %p2872 = pneg %p188
      $region57: #{last_model_forward.6} parent=47 // pred_check_branch
        %2874 = sbr.rel (%p2872) target = $region59
      $region58: #{last_model_forward.6} parent=47 // pred_region
        _
      $region59: #{last_model_forward.6} parent=47 // pred_fallthru
        _
    $region48: #{last_model_forward.6} parent=5 // pred_fallthru
      _
    %p2875 = scmp.le.s32.totalorder 2, %s13
    // Predicated region
    $region60: #{last_model_forward.6} parent=5 // pred_check
      %p2876 = pneg %p2875
    $region61: #{last_model_forward.6} parent=5 // pred_check_branch
      %2878 = sbr.rel (%p2876) target = $region63
    $region62: #{last_model_forward.6} parent=5 // pred_region
      %s2879 = ssub.s32 %s13, 2
      // Predicated region
      $region64: #{last_model_forward.6} parent=62 // pred_check
        %p2880 = pneg %p194
      $region65: #{last_model_forward.6} parent=62 // pred_check_branch
        %2882 = sbr.rel (%p2880) target = $region67
      $region66: #{last_model_forward.6} parent=62 // pred_region
        %p2883 = scmp.lt.s32.totalorder %s19, 1
        %s2884 = scalar_select %p2883, %s19, 1
        %s2885 = smul.addr %s2884, 8
        %s2886 = smul.addr %s2885, 8
        %s2887 = scalar_lea.vmem %s7, %s2886
      $region67: #{last_model_forward.6} parent=62 // pred_fallthru
        _
    $region63: #{last_model_forward.6} parent=5 // pred_fallthru
      _
  $region6: #{last_model_forward.6} parent=0 // loop_footer
    %s17 = sadd.s32 1, %s13
  $region7: #{last_model_forward.6} parent=0 // loop_footer_branch
    %12 = sbr.rel target = $region3
  $region8: #{last_model_forward.6} parent=0 // loop_exit
    _

// kernel: last_model_forward.7
$region0: #{last_model_forward.7}
  #allocation0 [shape = 'u32[]', space=smem, size = 0x4, offset = 0x4, fixed_abs, tag = 'smem constant byte address 0x4 - core index']
  #allocation1 [shape = 'u32[72,128]{1,0:T(1,128)}', space=vmem, size = 0x9000, scoped, tag = 'internal scratch']
  #allocation2 [shape = 'bf16[10,10,32]{2,1,0:T(8,128)(2,1)}', space=vmem, size = 0xa000, scoped, tag = 'scratch operand']
  %s0 = inlined_call_operand.vmem [shape: f32[2,8,8,32], index: 0, kind: input, shape index: {}]
  %s1 = inlined_call_operand.vmem [shape: f32[2,8,8,32], index: 1, kind: input, shape index: {}]
  %s2 = inlined_call_operand.vmem [shape: bf16[288,32], index: 2, kind: input, shape index: {}]
  %s3 = inlined_call_operand.vmem [shape: bf16[288,32], index: 3, kind: input, shape index: {}]
  %s4 = inlined_call_operand.vmem [shape: f32[1,32], index: 4, kind: input, shape index: {}]
  %s5 = inlined_call_operand.vmem [shape: f32[1,32], index: 5, kind: input, shape index: {}]
  %s6 = inlined_call_operand.vmem [shape: f32[1,32], index: 6, kind: input, shape index: {}]
  %s7 = inlined_call_operand.vmem [shape: f32[2,8,8,32], index: 7, kind: output, shape index: {0}]
  %s8 = inlined_call_operand.vmem [shape: f32[2,64,32], index: 8, kind: output, shape index: {1}]
  %9 = xla_tuple %s7, %s8
  %s10 = sld [smem:[#allocation0]]
  $region69: #{last_model_forward.7} parent=0
    _
  %s12 = ssub.s32 1, %s10
  %s13 = scalar_select 0, %s12, %s10
  loop: start=0, step=1, limit=4
  $region2: #{last_model_forward.7} parent=0 // loop_pre_header
    _
  $region3: #{last_model_forward.7} parent=0 // loop_header
    %s15 = sphi 0, %s19
    %p16 = scmp.ge.s32.totalorder %s15, 4
    %s25 = sphi 0, %s27
    %s28 = sphi 0, %s25
    %s29 = sphi 0, %s28
    %s45 = sphi 0, %s29
    %s51 = sphi 0, %s53
    %s54 = sphi 0, %s51
    %s55 = sphi 0, %s54
    %s71 = sphi 0, %s55
    %s75 = sphi 0, %s75
    %s77 = sphi 0, %s75
    %s78 = sphi 0, %s77
    %s92 = sphi 0, %s78
    %s96 = sphi 0, %s96
    %s98 = sphi 0, %s96
    %s99 = sphi 0, %s98
    %s113 = sphi 0, %s99
    %s117 = sphi 0, %s117
    %s119 = sphi 0, %s117
    %s120 = sphi 0, %s119
    %s134 = sphi 0, %s120
    %s138 = sphi 0, %s138
    %s140 = sphi 0, %s138
    %s141 = sphi 0, %s140
    %s155 = sphi 0, %s141
    %s159 = sphi 0, %s159
    %s161 = sphi 0, %s159
    %s162 = sphi 0, %s161
    %s176 = sphi 0, %s162
    %s182 = sphi 0, %s184
    %s185 = sphi 0, %s182
    %s186 = sphi 0, %s185
    %s202 = sphi 0, %s186
    %s208 = sphi 0, %s210
    %s211 = sphi 0, %s208
    %s212 = sphi 0, %s211
    %s228 = sphi 0, %s212
  $region4: #{last_model_forward.7} parent=0 // loop_header_branch
    %18 = sbr.rel (%p16) target = $region8
  $region5: #{last_model_forward.7} parent=0 // loop_body
    %s20 = ssub.s32 %s15, 1
    %s21 = ssub.s32 %s15, 2
    %s22 = sadd.s32 %s15, 1
    %s23 = ssub.s32 %s15, %s22
    %p24 = scmp.eq.s32.totalorder %s23, 0
    %s26 = sadd.s32 %s25, 1
    %s27 = scalar_select %p24, %s25, %s26
    %p30 = pneg %p24
    %p31 = scmp.eq.s32.totalorder %s15, 1
    %p32 = por %p30, %p31
    %p33 = scmp.ne.s32.totalorder %s25, %s28
    %p34 = scmp.eq.s32.totalorder %s15, 0
    %p35 = por %p33, %p34
    %p36 = scmp.ne.s32.totalorder %s25, %s28
    %p37 = scmp.eq.s32.totalorder %s20, 1
    %p38 = por %p36, %p37
    %p39 = scmp.ne.s32.totalorder %s28, %s29
    %p40 = scmp.eq.s32.totalorder %s20, 0
    %p41 = por %p39, %p40
    %p42 = scmp.ne.s32.totalorder %s28, %s29
    %p43 = scmp.eq.s32.totalorder %s21, 1
    %p44 = por %p42, %p43
    %p46 = scmp.ne.s32.totalorder %s29, %s45
    %p47 = scmp.eq.s32.totalorder %s21, 0
    %p48 = por %p46, %p47
    %s49 = ssub.s32 %s15, %s22
    %p50 = scmp.eq.s32.totalorder %s49, 0
    %s52 = sadd.s32 %s51, 1
    %s53 = scalar_select %p50, %s51, %s52
    %p56 = pneg %p50
    %p57 = scmp.eq.s32.totalorder %s15, 1
    %p58 = por %p56, %p57
    %p59 = scmp.ne.s32.totalorder %s51, %s54
    %p60 = scmp.eq.s32.totalorder %s15, 0
    %p61 = por %p59, %p60
    %p62 = scmp.ne.s32.totalorder %s51, %s54
    %p63 = scmp.eq.s32.totalorder %s20, 1
    %p64 = por %p62, %p63
    %p65 = scmp.ne.s32.totalorder %s54, %s55
    %p66 = scmp.eq.s32.totalorder %s20, 0
    %p67 = por %p65, %p66
    %p68 = scmp.ne.s32.totalorder %s54, %s55
    %p69 = scmp.eq.s32.totalorder %s21, 1
    %p70 = por %p68, %p69
    %p72 = scmp.ne.s32.totalorder %s55, %s71
    %p73 = scmp.eq.s32.totalorder %s21, 0
    %p74 = por %p72, %p73
    %s76 = sadd.s32 %s75, 1
    %p79 = scmp.eq.s32.totalorder %s15, 1
    %p80 = scmp.ne.s32.totalorder %s75, %s77
    %p81 = scmp.eq.s32.totalorder %s15, 0
    %p82 = por %p80, %p81
    %p83 = scmp.ne.s32.totalorder %s75, %s77
    %p84 = scmp.eq.s32.totalorder %s20, 1
    %p85 = por %p83, %p84
    %p86 = scmp.ne.s32.totalorder %s77, %s78
    %p87 = scmp.eq.s32.totalorder %s20, 0
    %p88 = por %p86, %p87
    %p89 = scmp.ne.s32.totalorder %s77, %s78
    %p90 = scmp.eq.s32.totalorder %s21, 1
    %p91 = por %p89, %p90
    %p93 = scmp.ne.s32.totalorder %s78, %s92
    %p94 = scmp.eq.s32.totalorder %s21, 0
    %p95 = por %p93, %p94
    %s97 = sadd.s32 %s96, 1
    %p100 = scmp.eq.s32.totalorder %s15, 1
    %p101 = scmp.ne.s32.totalorder %s96, %s98
    %p102 = scmp.eq.s32.totalorder %s15, 0
    %p103 = por %p101, %p102
    %p104 = scmp.ne.s32.totalorder %s96, %s98
    %p105 = scmp.eq.s32.totalorder %s20, 1
    %p106 = por %p104, %p105
    %p107 = scmp.ne.s32.totalorder %s98, %s99
    %p108 = scmp.eq.s32.totalorder %s20, 0
    %p109 = por %p107, %p108
    %p110 = scmp.ne.s32.totalorder %s98, %s99
    %p111 = scmp.eq.s32.totalorder %s21, 1
    %p112 = por %p110, %p111
    %p114 = scmp.ne.s32.totalorder %s99, %s113
    %p115 = scmp.eq.s32.totalorder %s21, 0
    %p116 = por %p114, %p115
    %s118 = sadd.s32 %s117, 1
    %p121 = scmp.eq.s32.totalorder %s15, 1
    %p122 = scmp.ne.s32.totalorder %s117, %s119
    %p123 = scmp.eq.s32.totalorder %s15, 0
    %p124 = por %p122, %p123
    %p125 = scmp.ne.s32.totalorder %s117, %s119
    %p126 = scmp.eq.s32.totalorder %s20, 1
    %p127 = por %p125, %p126
    %p128 = scmp.ne.s32.totalorder %s119, %s120
    %p129 = scmp.eq.s32.totalorder %s20, 0
    %p130 = por %p128, %p129
    %p131 = scmp.ne.s32.totalorder %s119, %s120
    %p132 = scmp.eq.s32.totalorder %s21, 1
    %p133 = por %p131, %p132
    %p135 = scmp.ne.s32.totalorder %s120, %s134
    %p136 = scmp.eq.s32.totalorder %s21, 0
    %p137 = por %p135, %p136
    %s139 = sadd.s32 %s138, 1
    %p142 = scmp.eq.s32.totalorder %s15, 1
    %p143 = scmp.ne.s32.totalorder %s138, %s140
    %p144 = scmp.eq.s32.totalorder %s15, 0
    %p145 = por %p143, %p144
    %p146 = scmp.ne.s32.totalorder %s138, %s140
    %p147 = scmp.eq.s32.totalorder %s20, 1
    %p148 = por %p146, %p147
    %p149 = scmp.ne.s32.totalorder %s140, %s141
    %p150 = scmp.eq.s32.totalorder %s20, 0
    %p151 = por %p149, %p150
    %p152 = scmp.ne.s32.totalorder %s140, %s141
    %p153 = scmp.eq.s32.totalorder %s21, 1
    %p154 = por %p152, %p153
    %p156 = scmp.ne.s32.totalorder %s141, %s155
    %p157 = scmp.eq.s32.totalorder %s21, 0
    %p158 = por %p156, %p157
    %s160 = sadd.s32 %s159, 1
    %p163 = scmp.eq.s32.totalorder %s15, 1
    %p164 = scmp.ne.s32.totalorder %s159, %s161
    %p165 = scmp.eq.s32.totalorder %s15, 0
    %p166 = por %p164, %p165
    %p167 = scmp.ne.s32.totalorder %s159, %s161
    %p168 = scmp.eq.s32.totalorder %s20, 1
    %p169 = por %p167, %p168
    %p170 = scmp.ne.s32.totalorder %s161, %s162
    %p171 = scmp.eq.s32.totalorder %s20, 0
    %p172 = por %p170, %p171
    %p173 = scmp.ne.s32.totalorder %s161, %s162
    %p174 = scmp.eq.s32.totalorder %s21, 1
    %p175 = por %p173, %p174
    %p177 = scmp.ne.s32.totalorder %s162, %s176
    %p178 = scmp.eq.s32.totalorder %s21, 0
    %p179 = por %p177, %p178
    %s180 = ssub.s32 %s15, %s22
    %p181 = scmp.eq.s32.totalorder %s180, 0
    %s183 = sadd.s32 %s182, 1
    %s184 = scalar_select %p181, %s182, %s183
    %p187 = pneg %p181
    %p188 = scmp.eq.s32.totalorder %s15, 1
    %p189 = por %p187, %p188
    %p190 = scmp.ne.s32.totalorder %s182, %s185
    %p191 = scmp.eq.s32.totalorder %s15, 0
    %p192 = por %p190, %p191
    %p193 = scmp.ne.s32.totalorder %s182, %s185
    %p194 = scmp.eq.s32.totalorder %s20, 1
    %p195 = por %p193, %p194
    %p196 = scmp.ne.s32.totalorder %s185, %s186
    %p197 = scmp.eq.s32.totalorder %s20, 0
    %p198 = por %p196, %p197
    %p199 = scmp.ne.s32.totalorder %s185, %s186
    %p200 = scmp.eq.s32.totalorder %s21, 1
    %p201 = por %p199, %p200
    %p203 = scmp.ne.s32.totalorder %s186, %s202
    %p204 = scmp.eq.s32.totalorder %s21, 0
    %p205 = por %p203, %p204
    %s206 = ssub.s32 %s15, %s22
    %p207 = scmp.eq.s32.totalorder %s206, 0
    %s209 = sadd.s32 %s208, 1
    %s210 = scalar_select %p207, %s208, %s209
    %p213 = pneg %p207
    %p214 = scmp.eq.s32.totalorder %s15, 1
    %p215 = por %p213, %p214
    %p216 = scmp.ne.s32.totalorder %s208, %s211
    %p217 = scmp.eq.s32.totalorder %s15, 0
    %p218 = por %p216, %p217
    %p219 = scmp.ne.s32.totalorder %s208, %s211
    %p220 = scmp.eq.s32.totalorder %s20, 1
    %p221 = por %p219, %p220
    %p222 = scmp.ne.s32.totalorder %s211, %s212
    %p223 = scmp.eq.s32.totalorder %s20, 0
    %p224 = por %p222, %p223
    %p225 = scmp.ne.s32.totalorder %s211, %s212
    %p226 = scmp.eq.s32.totalorder %s21, 1
    %p227 = por %p225, %p226
    %p229 = scmp.ne.s32.totalorder %s212, %s228
    %p230 = scmp.eq.s32.totalorder %s21, 0
    %p231 = por %p229, %p230
    %p232 = scmp.le.s32.totalorder 1, %s15
    %p233 = scmp.lt.s32.totalorder %s15, 3
    %p234 = pnand %p232, %p233
    %p235 = pneg %p234
    // Predicated region
    $region9: #{last_model_forward.7} parent=5 // pred_check
      _
    $region10: #{last_model_forward.7} parent=5 // pred_check_branch
      %237 = sbr.rel (%p234) target = $region12
    $region11: #{last_model_forward.7} parent=5 // pred_region
      %s238 = ssub.s32 %s15, 1
      // Predicated region
      $region13: #{last_model_forward.7} parent=11 // pred_check
        %p239 = pneg %p88
      $region14: #{last_model_forward.7} parent=11 // pred_check_branch
        %241 = sbr.rel (%p239) target = $region16
      $region15: #{last_model_forward.7} parent=11 // pred_region
        _
      $region16: #{last_model_forward.7} parent=11 // pred_fallthru
        _
      // Predicated region
      $region17: #{last_model_forward.7} parent=11 // pred_check
        %p242 = pneg %p109
      $region18: #{last_model_forward.7} parent=11 // pred_check_branch
        %244 = sbr.rel (%p242) target = $region20
      $region19: #{last_model_forward.7} parent=11 // pred_region
        _
      $region20: #{last_model_forward.7} parent=11 // pred_fallthru
        _
      // Predicated region
      $region21: #{last_model_forward.7} parent=11 // pred_check
        %p245 = pneg %p130
      $region22: #{last_model_forward.7} parent=11 // pred_check_branch
        %247 = sbr.rel (%p245) target = $region24
      $region23: #{last_model_forward.7} parent=11 // pred_region
        _
      $region24: #{last_model_forward.7} parent=11 // pred_fallthru
        _
      // Predicated region
      $region25: #{last_model_forward.7} parent=11 // pred_check
        %p248 = pneg %p151
      $region26: #{last_model_forward.7} parent=11 // pred_check_branch
        %250 = sbr.rel (%p248) target = $region28
      $region27: #{last_model_forward.7} parent=11 // pred_region
        _
      $region28: #{last_model_forward.7} parent=11 // pred_fallthru
        _
      // Predicated region
      $region29: #{last_model_forward.7} parent=11 // pred_check
        %p251 = pneg %p172
      $region30: #{last_model_forward.7} parent=11 // pred_check_branch
        %253 = sbr.rel (%p251) target = $region32
      $region31: #{last_model_forward.7} parent=11 // pred_region
        _
      $region32: #{last_model_forward.7} parent=11 // pred_fallthru
        _
    $region12: #{last_model_forward.7} parent=5 // pred_fallthru
      _
    %p254 = scmp.lt.s32.totalorder %s15, 2
    // Predicated region
    $region33: #{last_model_forward.7} parent=5 // pred_check
      %p255 = pneg %p254
    $region34: #{last_model_forward.7} parent=5 // pred_check_branch
      %257 = sbr.rel (%p255) target = $region36
    $region35: #{last_model_forward.7} parent=5 // pred_region
      // Predicated region
      $region37: #{last_model_forward.7} parent=35 // pred_check
        %p258 = pneg %p35
      $region38: #{last_model_forward.7} parent=35 // pred_check_branch
        %260 = sbr.rel (%p258) target = $region40
      $region39: #{last_model_forward.7} parent=35 // pred_region
        %p261 = scmp.lt.s32.totalorder %s15, 1
        %s262 = scalar_select %p261, %s15, 1
        %s263 = smul.addr %s262, 8
        %s264 = smul.addr %s263, 8
        %s265 = scalar_lea.vmem %s0, %s264
      $region40: #{last_model_forward.7} parent=35 // pred_fallthru
        _
      // Predicated region
      $region41: #{last_model_forward.7} parent=35 // pred_check
        %p266 = pneg %p61
      $region42: #{last_model_forward.7} parent=35 // pred_check_branch
        %268 = sbr.rel (%p266) target = $region44
      $region43: #{last_model_forward.7} parent=35 // pred_region
        %p269 = scmp.lt.s32.totalorder %s15, 1
        %s270 = scalar_select %p269, %s15, 1
        %s271 = smul.addr %s270, 8
        %s272 = smul.addr %s271, 8
        %s273 = scalar_lea.vmem %s1, %s272
      $region44: #{last_model_forward.7} parent=35 // pred_fallthru
        _
    $region36: #{last_model_forward.7} parent=5 // pred_fallthru
      _
    %p274 = scmp.le.s32.totalorder 1, %s15
    %p275 = scmp.lt.s32.totalorder %s15, 3
    %p276 = pnand %p274, %p275
    %p277 = pneg %p276
    // Predicated region
    $region45: #{last_model_forward.7} parent=5 // pred_check
      _
    $region46: #{last_model_forward.7} parent=5 // pred_check_branch
      %279 = sbr.rel (%p276) target = $region48
    $region47: #{last_model_forward.7} parent=5 // pred_region
      %s280 = ssub.s32 %s15, 1
      %p281 = scmp.lt.s32.totalorder %s20, 1
      %s282 = scalar_select %p281, %s20, 1
      %s283 = smul.addr %s282, 8
      %s284 = smul.addr %s283, 8
      %s285 = scalar_lea.vmem %s0, %s284
      %p286 = pneg %p41
      %p287 = pneg %p38
      %p288 = scmp.lt.s32.totalorder %s20, 1
      %s289 = scalar_select %p288, %s20, 1
      %s290 = smul.addr %s289, 8
      %s291 = smul.addr %s290, 8
      %s292 = scalar_lea.vmem %s1, %s291
      %p293 = pneg %p67
      %p294 = pneg %p64
      %p295 = pneg %p88
      %p296 = pneg %p85
      %p297 = pneg %p109
      %p298 = pneg %p106
      %p299 = pneg %p130
      %p300 = pneg %p127
      %p301 = pneg %p151
      %p302 = pneg %p148
      %p303 = pneg %p172
      %p304 = pneg %p169
      %p305 = pneg %p198
      %p306 = pneg %p195
      %p307 = scmp.lt.s32.totalorder %s20, 1
      %s308 = scalar_select %p307, %s20, 1
      %s309 = smul.addr %s308, 8
      %s310 = smul.addr %s309, 8
      %s311 = scalar_lea.vmem %s7, %s310
      %p312 = pneg %p224
      %p313 = pneg %p221
      %p314 = scmp.lt.s32.totalorder %s20, 1
      %s315 = scalar_select %p314, %s20, 1
      %s316 = smul.addr %s315, 8
      %s317 = smul.addr %s316, 8
      %s318 = scalar_lea.vmem %s8, %s317
      %p319 = scmp.lt.s32.totalorder %s20, 1
      %s320 = scalar_select %p319, %s20, 1
      %s321 = smul.addr %s320, 8
      %s322 = smul.addr %s321, 8
      %s323 = scalar_lea.vmem %s0, %s322
      %p324 = scmp.lt.s32.totalorder %s20, 1
      %s325 = scalar_select %p324, %s20, 1
      %s326 = smul.addr %s325, 8
      %s327 = smul.addr %s326, 8
      %s328 = scalar_lea.vmem %s1, %s327
      %p329 = scmp.lt.s32.totalorder %s20, 1
      %s330 = scalar_select %p329, %s20, 1
      %s331 = smul.addr %s330, 8
      %s332 = smul.addr %s331, 8
      %s333 = scalar_lea.vmem %s7, %s332
      %p334 = scmp.lt.s32.totalorder %s20, 1
      %s335 = scalar_select %p334, %s20, 1
      %s336 = smul.addr %s335, 8
      %s337 = smul.addr %s336, 8
      %s338 = scalar_lea.vmem %s8, %s337
      %vm340 = vcmask 257024
      %341 = vst.msk [vmem:[#allocation2] sm:$0xf] %vm340, 0
      %vm342 = vcmask 253952
      %343 = vst.msk [vmem:[#allocation2 + $0x4] sm:$0x1] %vm342, 0
      %344 = vst.msk [vmem:[#allocation2 + $0x8] sm:$0xf] %vm340, 0
      %345 = vst.msk [vmem:[#allocation2 + $0xc] sm:$0x1] %vm342, 0
      %346 = vst.msk [vmem:[#allocation2 + $0x10] sm:$0xf] %vm340, 0
      %347 = vst.msk [vmem:[#allocation2 + $0x14] sm:$0x1] %vm342, 0
      %348 = vst.msk [vmem:[#allocation2 + $0x18] sm:$0xf] %vm340, 0
      %349 = vst.msk [vmem:[#allocation2 + $0x1c] sm:$0x1] %vm342, 0
      %350 = vst.msk [vmem:[#allocation2 + $0x20] sm:$0xf] %vm340, 0
      %351 = vst.msk [vmem:[#allocation2 + $0x24] sm:$0x1] %vm342, 0
      %352 = vst.msk [vmem:[#allocation2 + $0x28] sm:$0xf] %vm340, 0
      %353 = vst.msk [vmem:[#allocation2 + $0x2c] sm:$0x1] %vm342, 0
      %354 = vst.msk [vmem:[#allocation2 + $0x30] sm:$0xf] %vm340, 0
      %355 = vst.msk [vmem:[#allocation2 + $0x34] sm:$0x1] %vm342, 0
      %356 = vst.msk [vmem:[#allocation2 + $0x38] sm:$0xf] %vm340, 0
      %357 = vst.msk [vmem:[#allocation2 + $0x3c] sm:$0x1] %vm342, 0
      %358 = vst.msk [vmem:[#allocation2 + $0x40] sm:$0xf] %vm340, 0
      %359 = vst.msk [vmem:[#allocation2 + $0x44] sm:$0x1] %vm342, 0
      %360 = vst.msk [vmem:[#allocation2 + $0x48] sm:$0xf] %vm340, 0
      %361 = vst.msk [vmem:[#allocation2 + $0x4c] sm:$0x1] %vm342, 0
      %v362 = vld [vmem:[%s323] sm:$0xff]
      %v363 = vld [vmem:[%s323 + $0x8] sm:$0xff]
      %v364 = vld [vmem:[%s323 + $0x10] sm:$0xff]
      %v365 = vld [vmem:[%s323 + $0x18] sm:$0xff]
      %v366 = vld [vmem:[%s323 + $0x20] sm:$0xff]
      %v367 = vld [vmem:[%s323 + $0x28] sm:$0xff]
      %v368 = vld [vmem:[%s323 + $0x30] sm:$0xff]
      %v369 = vld [vmem:[%s323 + $0x38] sm:$0xff]
      %v370 = vpack.c.bf16 %v362, %v362
      %v371 = vpack.c.bf16 %v363, %v363
      %v372 = vpack.c.bf16 %v364, %v364
      %v373 = vpack.c.bf16 %v365, %v365
      %v374 = vpack.c.bf16 %v366, %v366
      %v375 = vpack.c.bf16 %v367, %v367
      %v376 = vpack.c.bf16 %v368, %v368
      %v377 = vpack.c.bf16 %v369, %v369
      %v379 = vshrl.u32 %v370, 16
      %v381 = vrot.slane %v379, 7
      %v382 = vshll.u32 %v370, 16
      %v384 = vor.u32 %v381, %v382
      %v385 = vrot.slane %v381, 4
      %v387 = vshrl.u32 %v371, 16
      %v389 = vrot.slane %v387, 7
      %v390 = vshll.u32 %v371, 16
      %v392 = vor.u32 %v389, %v390
      %v393 = vrot.slane %v389, 4
      %v395 = vshrl.u32 %v372, 16
      %v397 = vrot.slane %v395, 7
      %v398 = vshll.u32 %v372, 16
      %v400 = vor.u32 %v397, %v398
      %v401 = vrot.slane %v397, 4
      %v403 = vshrl.u32 %v373, 16
      %v405 = vrot.slane %v403, 7
      %v406 = vshll.u32 %v373, 16
      %v408 = vor.u32 %v405, %v406
      %v409 = vrot.slane %v405, 4
      %v411 = vshrl.u32 %v374, 16
      %v413 = vrot.slane %v411, 7
      %v414 = vshll.u32 %v374, 16
      %v416 = vor.u32 %v413, %v414
      %v417 = vrot.slane %v413, 4
      %v419 = vshrl.u32 %v375, 16
      %v421 = vrot.slane %v419, 7
      %v422 = vshll.u32 %v375, 16
      %v424 = vor.u32 %v421, %v422
      %v425 = vrot.slane %v421, 4
      %v427 = vshrl.u32 %v376, 16
      %v429 = vrot.slane %v427, 7
      %v430 = vshll.u32 %v376, 16
      %v432 = vor.u32 %v429, %v430
      %v433 = vrot.slane %v429, 4
      %v435 = vshrl.u32 %v377, 16
      %v437 = vrot.slane %v435, 7
      %v438 = vshll.u32 %v377, 16
      %v440 = vor.u32 %v437, %v438
      %v441 = vrot.slane %v437, 4
      %s458 = scalar_lea.vmem [#allocation2], 8
      %vm459 = vcmask 257024
      %vm460 = vsmask.f32 7938
      %vm461 = vmand %vm459, %vm460
      %v462 = vld [vmem:[%s458] sm:$0xf]
      %v463 = vsel %vm461, %v384, %v462
      %464 = vst [vmem:[%s458] sm:$0xf] %v463
      %vm465 = vcmask 253952
      %vm466 = vsmask.f32 256
      %vm467 = vmand %vm465, %vm466
      %v468 = vld [vmem:[%s458 + $0x4] sm:$0x1]
      %v469 = vsel %vm467, %v385, %v468
      %470 = vst [vmem:[%s458 + $0x4] sm:$0x1] %v469
      %v471 = vld [vmem:[%s458 + $0x8] sm:$0xf]
      %v472 = vsel %vm461, %v392, %v471
      %473 = vst [vmem:[%s458 + $0x8] sm:$0xf] %v472
      %v474 = vld [vmem:[%s458 + $0xc] sm:$0x1]
      %v475 = vsel %vm467, %v393, %v474
      %476 = vst [vmem:[%s458 + $0xc] sm:$0x1] %v475
      %v477 = vld [vmem:[%s458 + $0x10] sm:$0xf]
      %v478 = vsel %vm461, %v400, %v477
      %479 = vst [vmem:[%s458 + $0x10] sm:$0xf] %v478
      %v480 = vld [vmem:[%s458 + $0x14] sm:$0x1]
      %v481 = vsel %vm467, %v401, %v480
      %482 = vst [vmem:[%s458 + $0x14] sm:$0x1] %v481
      %v483 = vld [vmem:[%s458 + $0x18] sm:$0xf]
      %v484 = vsel %vm461, %v408, %v483
      %485 = vst [vmem:[%s458 + $0x18] sm:$0xf] %v484
      %v486 = vld [vmem:[%s458 + $0x1c] sm:$0x1]
      %v487 = vsel %vm467, %v409, %v486
      %488 = vst [vmem:[%s458 + $0x1c] sm:$0x1] %v487
      %v489 = vld [vmem:[%s458 + $0x20] sm:$0xf]
      %v490 = vsel %vm461, %v416, %v489
      %491 = vst [vmem:[%s458 + $0x20] sm:$0xf] %v490
      %v492 = vld [vmem:[%s458 + $0x24] sm:$0x1]
      %v493 = vsel %vm467, %v417, %v492
      %494 = vst [vmem:[%s458 + $0x24] sm:$0x1] %v493
      %v495 = vld [vmem:[%s458 + $0x28] sm:$0xf]
      %v496 = vsel %vm461, %v424, %v495
      %497 = vst [vmem:[%s458 + $0x28] sm:$0xf] %v496
      %v498 = vld [vmem:[%s458 + $0x2c] sm:$0x1]
      %v499 = vsel %vm467, %v425, %v498
      %500 = vst [vmem:[%s458 + $0x2c] sm:$0x1] %v499
      %v501 = vld [vmem:[%s458 + $0x30] sm:$0xf]
      %v502 = vsel %vm461, %v432, %v501
      %503 = vst [vmem:[%s458 + $0x30] sm:$0xf] %v502
      %v504 = vld [vmem:[%s458 + $0x34] sm:$0x1]
      %v505 = vsel %vm467, %v433, %v504
      %506 = vst [vmem:[%s458 + $0x34] sm:$0x1] %v505
      %v507 = vld [vmem:[%s458 + $0x38] sm:$0xf]
      %v508 = vsel %vm461, %v440, %v507
      %509 = vst [vmem:[%s458 + $0x38] sm:$0xf] %v508
      %v510 = vld [vmem:[%s458 + $0x3c] sm:$0x1]
      %v511 = vsel %vm467, %v441, %v510
      %512 = vst [vmem:[%s458 + $0x3c] sm:$0x1] %v511
      %v513 = vld [vmem:[%s2] sm:$0xf]
      %v514 = vld [vmem:[%s2 + $0x4] sm:$0xf]
      %v515 = vld [vmem:[%s2 + $0x8] sm:$0xf]
      %v516 = vld [vmem:[%s2 + $0xc] sm:$0xf]
      %v517 = vld [vmem:[%s2 + $0x10] sm:$0xf]
      %v518 = vld [vmem:[%s2 + $0x14] sm:$0xf]
      %v519 = vld [vmem:[%s2 + $0x18] sm:$0xf]
      %v520 = vld [vmem:[%s2 + $0x1c] sm:$0xf]
      %v521 = vld [vmem:[%s2 + $0x20] sm:$0xf]
      %v522 = vld [vmem:[%s2 + $0x24] sm:$0xf]
      %v523 = vld [vmem:[%s2 + $0x28] sm:$0xf]
      %v524 = vld [vmem:[%s2 + $0x2c] sm:$0xf]
      %v525 = vld [vmem:[%s2 + $0x30] sm:$0xf]
      %v526 = vld [vmem:[%s2 + $0x34] sm:$0xf]
      %v527 = vld [vmem:[%s2 + $0x38] sm:$0xf]
      %v528 = vld [vmem:[%s2 + $0x3c] sm:$0xf]
      %v529 = vld [vmem:[%s2 + $0x40] sm:$0xf]
      %v530 = vld [vmem:[%s2 + $0x44] sm:$0xf]
      %v531 = vld [vmem:[%s2 + $0x48] sm:$0xf]
      %v532 = vld [vmem:[%s2 + $0x4c] sm:$0xf]
      %v533 = vld [vmem:[%s2 + $0x50] sm:$0xf]
      %v534 = vld [vmem:[%s2 + $0x54] sm:$0xf]
      %v535 = vld [vmem:[%s2 + $0x58] sm:$0xf]
      %v536 = vld [vmem:[%s2 + $0x5c] sm:$0xf]
      %v537 = vld [vmem:[%s2 + $0x60] sm:$0xf]
      %v538 = vld [vmem:[%s2 + $0x64] sm:$0xf]
      %v539 = vld [vmem:[%s2 + $0x68] sm:$0xf]
      %v540 = vld [vmem:[%s2 + $0x6c] sm:$0xf]
      %v541 = vld [vmem:[%s2 + $0x70] sm:$0xf]
      %v542 = vld [vmem:[%s2 + $0x74] sm:$0xf]
      %v543 = vld [vmem:[%s2 + $0x78] sm:$0xf]
      %v544 = vld [vmem:[%s2 + $0x7c] sm:$0xf]
      %v545 = vld [vmem:[%s2 + $0x80] sm:$0xf]
      %v546 = vld [vmem:[%s2 + $0x84] sm:$0xf]
      %v547 = vld [vmem:[%s2 + $0x88] sm:$0xf]
      %v548 = vld [vmem:[%s2 + $0x8c] sm:$0xf]
      %v549 = vld [vmem:[#allocation2] sm:$0xf]
      %v550 = vld [vmem:[#allocation2 + $0x4] sm:$0x1]
      %v551 = vld [vmem:[#allocation2 + $0x8] sm:$0xf]
      %v552 = vld [vmem:[#allocation2 + $0xc] sm:$0x1]
      %v553 = vld [vmem:[#allocation2 + $0x10] sm:$0xf]
      %v554 = vld [vmem:[#allocation2 + $0x14] sm:$0x1]
      %v555 = vld [vmem:[#allocation2 + $0x18] sm:$0xf]
      %v556 = vld [vmem:[#allocation2 + $0x1c] sm:$0x1]
      %v557 = vld [vmem:[#allocation2 + $0x20] sm:$0xf]
      %v558 = vld [vmem:[#allocation2 + $0x24] sm:$0x1]
      %v559 = vld [vmem:[#allocation2 + $0x28] sm:$0xf]
      %v560 = vld [vmem:[#allocation2 + $0x2c] sm:$0x1]
      %v561 = vld [vmem:[#allocation2 + $0x30] sm:$0xf]
      %v562 = vld [vmem:[#allocation2 + $0x34] sm:$0x1]
      %v563 = vld [vmem:[#allocation2 + $0x38] sm:$0xf]
      %v564 = vld [vmem:[#allocation2 + $0x3c] sm:$0x1]
      %v565 = vld [vmem:[#allocation2 + $0x40] sm:$0xf]
      %v566 = vld [vmem:[#allocation2 + $0x44] sm:$0x1]
      %v567 = vld [vmem:[#allocation2 + $0x48] sm:$0xf]
      %v568 = vld [vmem:[#allocation2 + $0x4c] sm:$0x1]
      %v585 = vunpack.c.l.b16 %v549
      %v586 = vunpack.c.l.b16 %v550
      %v587 = vunpack.c.l.b16 %v551
      %v588 = vunpack.c.l.b16 %v552
      %v589 = vunpack.c.l.b16 %v553
      %v590 = vunpack.c.l.b16 %v554
      %v591 = vunpack.c.l.b16 %v555
      %v592 = vunpack.c.l.b16 %v556
      %v593 = vunpack.c.l.b16 %v557
      %v594 = vunpack.c.l.b16 %v558
      %v595 = vunpack.c.l.b16 %v559
      %v596 = vunpack.c.l.b16 %v560
      %v597 = vunpack.c.l.b16 %v561
      %v598 = vunpack.c.l.b16 %v562
      %v599 = vunpack.c.l.b16 %v563
      %v600 = vunpack.c.l.b16 %v564
      %v601 = vpack.c.b16 %v586, %v585
      %v602 = vpack.c.b16 %v588, %v587
      %v603 = vpack.c.b16 %v590, %v589
      %v604 = vpack.c.b16 %v592, %v591
      %v605 = vpack.c.b16 %v594, %v593
      %v606 = vpack.c.b16 %v596, %v595
      %v607 = vpack.c.b16 %v598, %v597
      %v608 = vpack.c.b16 %v600, %v599
      %v610 = vshrl.u32 %v601, 16
      %v612 = vshll.u32 %v601, 16
      %v614 = vrot.slane %v612, 1
      %v615 = vor.u32 %v610, %v614
      %v617 = vshrl.u32 %v602, 16
      %v619 = vshll.u32 %v602, 16
      %v621 = vrot.slane %v619, 1
      %v622 = vor.u32 %v617, %v621
      %v624 = vshrl.u32 %v603, 16
      %v626 = vshll.u32 %v603, 16
      %v628 = vrot.slane %v626, 1
      %v629 = vor.u32 %v624, %v628
      %v631 = vshrl.u32 %v604, 16
      %v633 = vshll.u32 %v604, 16
      %v635 = vrot.slane %v633, 1
      %v636 = vor.u32 %v631, %v635
      %v638 = vshrl.u32 %v605, 16
      %v640 = vshll.u32 %v605, 16
      %v642 = vrot.slane %v640, 1
      %v643 = vor.u32 %v638, %v642
      %v645 = vshrl.u32 %v606, 16
      %v647 = vshll.u32 %v606, 16
      %v649 = vrot.slane %v647, 1
      %v650 = vor.u32 %v645, %v649
      %v652 = vshrl.u32 %v607, 16
      %v654 = vshll.u32 %v607, 16
      %v656 = vrot.slane %v654, 1
      %v657 = vor.u32 %v652, %v656
      %v659 = vshrl.u32 %v608, 16
      %v661 = vshll.u32 %v608, 16
      %v663 = vrot.slane %v661, 1
      %v664 = vor.u32 %v659, %v663
      %665 = vrot.lane.b32.xlu0 %v615, 32
      %v666 = vpop.permute.xlu0 %665
      %667 = vrot.lane.b32.xlu0 %v622, 32
      %v668 = vpop.permute.xlu0 %667
      %669 = vrot.lane.b32.xlu0 %v629, 32
      %v670 = vpop.permute.xlu0 %669
      %671 = vrot.lane.b32.xlu0 %v636, 32
      %v672 = vpop.permute.xlu0 %671
      %673 = vrot.lane.b32.xlu0 %v643, 32
      %v674 = vpop.permute.xlu0 %673
      %675 = vrot.lane.b32.xlu0 %v650, 32
      %v676 = vpop.permute.xlu0 %675
      %677 = vrot.lane.b32.xlu0 %v657, 32
      %v678 = vpop.permute.xlu0 %677
      %679 = vrot.lane.b32.xlu0 %v664, 32
      %v680 = vpop.permute.xlu0 %679
      %v681 = vrot.slane %v601, 1
      %v682 = vrot.slane %v602, 1
      %v683 = vrot.slane %v603, 1
      %v684 = vrot.slane %v604, 1
      %v685 = vrot.slane %v605, 1
      %v686 = vrot.slane %v606, 1
      %v687 = vrot.slane %v607, 1
      %v688 = vrot.slane %v608, 1
      %689 = vrot.lane.b32.xlu0 %v681, 64
      %v690 = vpop.permute.xlu0 %689
      %691 = vrot.lane.b32.xlu0 %v682, 64
      %v692 = vpop.permute.xlu0 %691
      %693 = vrot.lane.b32.xlu0 %v683, 64
      %v694 = vpop.permute.xlu0 %693
      %695 = vrot.lane.b32.xlu0 %v684, 64
      %v696 = vpop.permute.xlu0 %695
      %697 = vrot.lane.b32.xlu0 %v685, 64
      %v698 = vpop.permute.xlu0 %697
      %699 = vrot.lane.b32.xlu0 %v686, 64
      %v700 = vpop.permute.xlu0 %699
      %701 = vrot.lane.b32.xlu0 %v687, 64
      %v702 = vpop.permute.xlu0 %701
      %703 = vrot.lane.b32.xlu0 %v688, 64
      %v704 = vpop.permute.xlu0 %703
      %v706 = vunpack.c.l.b16 %v565
      %v707 = vpack.c.b16 %v587, %v587
      %v708 = vpack.c.b16 %v589, %v589
      %v709 = vpack.c.b16 %v591, %v591
      %v710 = vpack.c.b16 %v593, %v593
      %v711 = vpack.c.b16 %v595, %v595
      %v712 = vpack.c.b16 %v597, %v597
      %v713 = vpack.c.b16 %v599, %v599
      %v714 = vpack.c.b16 %v706, %v706
      %715 = vrot.lane.b32.xlu0 %v707, 96
      %v716 = vpop.permute.xlu0 %715
      %717 = vrot.lane.b32.xlu0 %v708, 96
      %v718 = vpop.permute.xlu0 %717
      %719 = vrot.lane.b32.xlu0 %v709, 96
      %v720 = vpop.permute.xlu0 %719
      %721 = vrot.lane.b32.xlu0 %v710, 96
      %v722 = vpop.permute.xlu0 %721
      %723 = vrot.lane.b32.xlu0 %v711, 96
      %v724 = vpop.permute.xlu0 %723
      %725 = vrot.lane.b32.xlu0 %v712, 96
      %v726 = vpop.permute.xlu0 %725
      %727 = vrot.lane.b32.xlu0 %v713, 96
      %v728 = vpop.permute.xlu0 %727
      %729 = vrot.lane.b32.xlu0 %v714, 96
      %v730 = vpop.permute.xlu0 %729
      %v732 = vunpack.c.l.b16 %v566
      %v733 = vpack.c.b16 %v732, %v706
      %v735 = vshrl.u32 %v733, 16
      %v737 = vshll.u32 %v733, 16
      %v739 = vrot.slane %v737, 1
      %v740 = vor.u32 %v735, %v739
      %v741 = vrot.slane %v733, 1
      %742 = vrot.lane.b32.xlu0 %v682, 32
      %v743 = vpop.permute.xlu0 %742
      %744 = vrot.lane.b32.xlu0 %v683, 32
      %v745 = vpop.permute.xlu0 %744
      %746 = vrot.lane.b32.xlu0 %v684, 32
      %v747 = vpop.permute.xlu0 %746
      %748 = vrot.lane.b32.xlu0 %v685, 32
      %v749 = vpop.permute.xlu0 %748
      %750 = vrot.lane.b32.xlu0 %v686, 32
      %v751 = vpop.permute.xlu0 %750
      %752 = vrot.lane.b32.xlu0 %v687, 32
      %v753 = vpop.permute.xlu0 %752
      %754 = vrot.lane.b32.xlu0 %v688, 32
      %v755 = vpop.permute.xlu0 %754
      %756 = vrot.lane.b32.xlu0 %v741, 32
      %v757 = vpop.permute.xlu0 %756
      %v759 = vunpack.c.l.b16 %v567
      %v760 = vpack.c.b16 %v759, %v759
      %761 = vrot.lane.b32.xlu0 %v708, 64
      %v762 = vpop.permute.xlu0 %761
      %763 = vrot.lane.b32.xlu0 %v709, 64
      %v764 = vpop.permute.xlu0 %763
      %765 = vrot.lane.b32.xlu0 %v710, 64
      %v766 = vpop.permute.xlu0 %765
      %767 = vrot.lane.b32.xlu0 %v711, 64
      %v768 = vpop.permute.xlu0 %767
      %769 = vrot.lane.b32.xlu0 %v712, 64
      %v770 = vpop.permute.xlu0 %769
      %771 = vrot.lane.b32.xlu0 %v713, 64
      %v772 = vpop.permute.xlu0 %771
      %773 = vrot.lane.b32.xlu0 %v714, 64
      %v774 = vpop.permute.xlu0 %773
      %775 = vrot.lane.b32.xlu0 %v760, 64
      %v776 = vpop.permute.xlu0 %775
      %v778 = vunpack.c.l.b16 %v568
      %v779 = vpack.c.b16 %v778, %v759
      %v781 = vshrl.u32 %v779, 16
      %v783 = vshll.u32 %v779, 16
      %v785 = vrot.slane %v783, 1
      %v786 = vor.u32 %v781, %v785
      %787 = vrot.lane.b32.xlu0 %v629, 96
      %v788 = vpop.permute.xlu0 %787
      %789 = vrot.lane.b32.xlu0 %v636, 96
      %v790 = vpop.permute.xlu0 %789
      %791 = vrot.lane.b32.xlu0 %v643, 96
      %v792 = vpop.permute.xlu0 %791
      %793 = vrot.lane.b32.xlu0 %v650, 96
      %v794 = vpop.permute.xlu0 %793
      %795 = vrot.lane.b32.xlu0 %v657, 96
      %v796 = vpop.permute.xlu0 %795
      %797 = vrot.lane.b32.xlu0 %v664, 96
      %v798 = vpop.permute.xlu0 %797
      %799 = vrot.lane.b32.xlu0 %v740, 96
      %v800 = vpop.permute.xlu0 %799
      %801 = vrot.lane.b32.xlu0 %v786, 96
      %v802 = vpop.permute.xlu0 %801
      %v803 = vrot.slane %v779, 1
      %vm804 = vcmask 261120
      %v807 = vsel %vm804, %v549, %v666
      %v810 = vsel %vm804, %v551, %v668
      %v813 = vsel %vm804, %v553, %v670
      %v816 = vsel %vm804, %v555, %v672
      %v819 = vsel %vm804, %v557, %v674
      %v822 = vsel %vm804, %v559, %v676
      %v825 = vsel %vm804, %v561, %v678
      %v828 = vsel %vm804, %v563, %v680
      %vm829 = vcmask 523264
      %v831 = vsel %vm829, %v807, %v690
      %v833 = vsel %vm829, %v810, %v692
      %v835 = vsel %vm829, %v813, %v694
      %v837 = vsel %vm829, %v816, %v696
      %v839 = vsel %vm829, %v819, %v698
      %v841 = vsel %vm829, %v822, %v700
      %v843 = vsel %vm829, %v825, %v702
      %v845 = vsel %vm829, %v828, %v704
      %vm846 = vcmask 785408
      %v848 = vsel %vm846, %v831, %v716
      %v850 = vsel %vm846, %v833, %v718
      %v852 = vsel %vm846, %v835, %v720
      %v854 = vsel %vm846, %v837, %v722
      %v856 = vsel %vm846, %v839, %v724
      %v858 = vsel %vm846, %v841, %v726
      %v860 = vsel %vm846, %v843, %v728
      %v862 = vsel %vm846, %v845, %v730
      %v865 = vsel %vm804, %v622, %v743
      %v868 = vsel %vm804, %v629, %v745
      %v871 = vsel %vm804, %v636, %v747
      %v874 = vsel %vm804, %v643, %v749
      %v877 = vsel %vm804, %v650, %v751
      %v880 = vsel %vm804, %v657, %v753
      %v883 = vsel %vm804, %v664, %v755
      %v886 = vsel %vm804, %v740, %v757
      %v888 = vsel %vm829, %v865, %v762
      %v890 = vsel %vm829, %v868, %v764
      %v892 = vsel %vm829, %v871, %v766
      %v894 = vsel %vm829, %v874, %v768
      %v896 = vsel %vm829, %v877, %v770
      %v898 = vsel %vm829, %v880, %v772
      %v900 = vsel %vm829, %v883, %v774
      %v902 = vsel %vm829, %v886, %v776
      %v904 = vsel %vm846, %v888, %v788
      %v906 = vsel %vm846, %v890, %v790
      %v908 = vsel %vm846, %v892, %v792
      %v910 = vsel %vm846, %v894, %v794
      %v912 = vsel %vm846, %v896, %v796
      %v914 = vsel %vm846, %v898, %v798
      %v916 = vsel %vm846, %v900, %v800
      %v918 = vsel %vm846, %v902, %v802
      %v935 = vunpack.c.l.b16 %v848
      %v936 = vunpack.c.l.b16 %v904
      %v937 = vunpack.c.l.b16 %v683
      %v938 = vunpack.c.l.b16 %v850
      %v939 = vunpack.c.l.b16 %v906
      %v940 = vunpack.c.l.b16 %v684
      %v941 = vunpack.c.l.b16 %v852
      %v942 = vunpack.c.l.b16 %v908
      %v943 = vunpack.c.l.b16 %v685
      %v944 = vunpack.c.l.b16 %v854
      %v945 = vunpack.c.l.b16 %v910
      %v946 = vunpack.c.l.b16 %v686
      %v947 = vunpack.c.l.b16 %v856
      %v948 = vunpack.c.l.b16 %v912
      %v949 = vunpack.c.l.b16 %v687
      %v950 = vunpack.c.l.b16 %v858
      %v951 = vunpack.c.l.b16 %v914
      %v952 = vunpack.c.l.b16 %v688
      %v953 = vunpack.c.l.b16 %v860
      %v954 = vunpack.c.l.b16 %v916
      %v955 = vunpack.c.l.b16 %v741
      %v956 = vunpack.c.l.b16 %v862
      %v957 = vunpack.c.l.b16 %v918
      %v958 = vunpack.c.l.b16 %v803
      %v959 = vld [vmem:[%s328] sm:$0xff]
      %v960 = vld [vmem:[%s328 + $0x8] sm:$0xff]
      %v961 = vld [vmem:[%s328 + $0x10] sm:$0xff]
      %v962 = vld [vmem:[%s328 + $0x18] sm:$0xff]
      %v963 = vld [vmem:[%s328 + $0x20] sm:$0xff]
      %v964 = vld [vmem:[%s328 + $0x28] sm:$0xff]
      %v965 = vld [vmem:[%s328 + $0x30] sm:$0xff]
      %v966 = vld [vmem:[%s328 + $0x38] sm:$0xff]
      %v967 = vpack.c.bf16 %v959, %v959
      %v968 = vpack.c.bf16 %v960, %v960
      %v969 = vpack.c.bf16 %v961, %v961
      %v970 = vpack.c.bf16 %v962, %v962
      %v971 = vpack.c.bf16 %v963, %v963
      %v972 = vpack.c.bf16 %v964, %v964
      %v973 = vpack.c.bf16 %v965, %v965
      %v974 = vpack.c.bf16 %v966, %v966
      %v976 = vshrl.u32 %v967, 16
      %v978 = vrot.slane %v976, 7
      %v979 = vshll.u32 %v967, 16
      %v981 = vor.u32 %v978, %v979
      %v982 = vrot.slane %v978, 4
      %v984 = vshrl.u32 %v968, 16
      %v986 = vrot.slane %v984, 7
      %v987 = vshll.u32 %v968, 16
      %v989 = vor.u32 %v986, %v987
      %v990 = vrot.slane %v986, 4
      %v992 = vshrl.u32 %v969, 16
      %v994 = vrot.slane %v992, 7
      %v995 = vshll.u32 %v969, 16
      %v997 = vor.u32 %v994, %v995
      %v998 = vrot.slane %v994, 4
      %v1000 = vshrl.u32 %v970, 16
      %v1002 = vrot.slane %v1000, 7
      %v1003 = vshll.u32 %v970, 16
      %v1005 = vor.u32 %v1002, %v1003
      %v1006 = vrot.slane %v1002, 4
      %v1008 = vshrl.u32 %v971, 16
      %v1010 = vrot.slane %v1008, 7
      %v1011 = vshll.u32 %v971, 16
      %v1013 = vor.u32 %v1010, %v1011
      %v1014 = vrot.slane %v1010, 4
      %v1016 = vshrl.u32 %v972, 16
      %v1018 = vrot.slane %v1016, 7
      %v1019 = vshll.u32 %v972, 16
      %v1021 = vor.u32 %v1018, %v1019
      %v1022 = vrot.slane %v1018, 4
      %v1024 = vshrl.u32 %v973, 16
      %v1026 = vrot.slane %v1024, 7
      %v1027 = vshll.u32 %v973, 16
      %v1029 = vor.u32 %v1026, %v1027
      %v1030 = vrot.slane %v1026, 4
      %v1032 = vshrl.u32 %v974, 16
      %v1034 = vrot.slane %v1032, 7
      %v1035 = vshll.u32 %v974, 16
      %v1037 = vor.u32 %v1034, %v1035
      %v1038 = vrot.slane %v1034, 4
      %v1055 = vld [vmem:[%s458] sm:$0xf]
      %v1056 = vsel %vm461, %v981, %v1055
      %1057 = vst [vmem:[%s458] sm:$0xf] %v1056
      %v1058 = vld [vmem:[%s458 + $0x4] sm:$0x1]
      %v1059 = vsel %vm467, %v982, %v1058
      %1060 = vst [vmem:[%s458 + $0x4] sm:$0x1] %v1059
      %v1061 = vld [vmem:[%s458 + $0x8] sm:$0xf]
      %v1062 = vsel %vm461, %v989, %v1061
      %1063 = vst [vmem:[%s458 + $0x8] sm:$0xf] %v1062
      %v1064 = vld [vmem:[%s458 + $0xc] sm:$0x1]
      %v1065 = vsel %vm467, %v990, %v1064
      %1066 = vst [vmem:[%s458 + $0xc] sm:$0x1] %v1065
      %v1067 = vld [vmem:[%s458 + $0x10] sm:$0xf]
      %v1068 = vsel %vm461, %v997, %v1067
      %1069 = vst [vmem:[%s458 + $0x10] sm:$0xf] %v1068
      %v1070 = vld [vmem:[%s458 + $0x14] sm:$0x1]
      %v1071 = vsel %vm467, %v998, %v1070
      %1072 = vst [vmem:[%s458 + $0x14] sm:$0x1] %v1071
      %v1073 = vld [vmem:[%s458 + $0x18] sm:$0xf]
      %v1074 = vsel %vm461, %v1005, %v1073
      %1075 = vst [vmem:[%s458 + $0x18] sm:$0xf] %v1074
      %v1076 = vld [vmem:[%s458 + $0x1c] sm:$0x1]
      %v1077 = vsel %vm467, %v1006, %v1076
      %1078 = vst [vmem:[%s458 + $0x1c] sm:$0x1] %v1077
      %v1079 = vld [vmem:[%s458 + $0x20] sm:$0xf]
      %v1080 = vsel %vm461, %v1013, %v1079
      %1081 = vst [vmem:[%s458 + $0x20] sm:$0xf] %v1080
      %v1082 = vld [vmem:[%s458 + $0x24] sm:$0x1]
      %v1083 = vsel %vm467, %v1014, %v1082
      %1084 = vst [vmem:[%s458 + $0x24] sm:$0x1] %v1083
      %v1085 = vld [vmem:[%s458 + $0x28] sm:$0xf]
      %v1086 = vsel %vm461, %v1021, %v1085
      %1087 = vst [vmem:[%s458 + $0x28] sm:$0xf] %v1086
      %v1088 = vld [vmem:[%s458 + $0x2c] sm:$0x1]
      %v1089 = vsel %vm467, %v1022, %v1088
      %1090 = vst [vmem:[%s458 + $0x2c] sm:$0x1] %v1089
      %v1091 = vld [vmem:[%s458 + $0x30] sm:$0xf]
      %v1092 = vsel %vm461, %v1029, %v1091
      %1093 = vst [vmem:[%s458 + $0x30] sm:$0xf] %v1092
      %v1094 = vld [vmem:[%s458 + $0x34] sm:$0x1]
      %v1095 = vsel %vm467, %v1030, %v1094
      %1096 = vst [vmem:[%s458 + $0x34] sm:$0x1] %v1095
      %v1097 = vld [vmem:[%s458 + $0x38] sm:$0xf]
      %v1098 = vsel %vm461, %v1037, %v1097
      %1099 = vst [vmem:[%s458 + $0x38] sm:$0xf] %v1098
      %v1100 = vld [vmem:[%s458 + $0x3c] sm:$0x1]
      %v1101 = vsel %vm467, %v1038, %v1100
      %1102 = vst [vmem:[%s458 + $0x3c] sm:$0x1] %v1101
      %v1103 = vld [vmem:[%s3] sm:$0xf]
      %v1104 = vld [vmem:[%s3 + $0x4] sm:$0xf]
      %v1105 = vld [vmem:[%s3 + $0x8] sm:$0xf]
      %v1106 = vld [vmem:[%s3 + $0xc] sm:$0xf]
      %v1107 = vld [vmem:[%s3 + $0x10] sm:$0xf]
      %v1108 = vld [vmem:[%s3 + $0x14] sm:$0xf]
      %v1109 = vld [vmem:[%s3 + $0x18] sm:$0xf]
      %v1110 = vld [vmem:[%s3 + $0x1c] sm:$0xf]
      %v1111 = vld [vmem:[%s3 + $0x20] sm:$0xf]
      %v1112 = vld [vmem:[%s3 + $0x24] sm:$0xf]
      %v1113 = vld [vmem:[%s3 + $0x28] sm:$0xf]
      %v1114 = vld [vmem:[%s3 + $0x2c] sm:$0xf]
      %v1115 = vld [vmem:[%s3 + $0x30] sm:$0xf]
      %v1116 = vld [vmem:[%s3 + $0x34] sm:$0xf]
      %v1117 = vld [vmem:[%s3 + $0x38] sm:$0xf]
      %v1118 = vld [vmem:[%s3 + $0x3c] sm:$0xf]
      %v1119 = vld [vmem:[%s3 + $0x40] sm:$0xf]
      %v1120 = vld [vmem:[%s3 + $0x44] sm:$0xf]
      %v1121 = vld [vmem:[%s3 + $0x48] sm:$0xf]
      %v1122 = vld [vmem:[%s3 + $0x4c] sm:$0xf]
      %v1123 = vld [vmem:[%s3 + $0x50] sm:$0xf]
      %v1124 = vld [vmem:[%s3 + $0x54] sm:$0xf]
      %v1125 = vld [vmem:[%s3 + $0x58] sm:$0xf]
      %v1126 = vld [vmem:[%s3 + $0x5c] sm:$0xf]
      %v1127 = vld [vmem:[%s3 + $0x60] sm:$0xf]
      %v1128 = vld [vmem:[%s3 + $0x64] sm:$0xf]
      %v1129 = vld [vmem:[%s3 + $0x68] sm:$0xf]
      %v1130 = vld [vmem:[%s3 + $0x6c] sm:$0xf]
      %v1131 = vld [vmem:[%s3 + $0x70] sm:$0xf]
      %v1132 = vld [vmem:[%s3 + $0x74] sm:$0xf]
      %v1133 = vld [vmem:[%s3 + $0x78] sm:$0xf]
      %v1134 = vld [vmem:[%s3 + $0x7c] sm:$0xf]
      %v1135 = vld [vmem:[%s3 + $0x80] sm:$0xf]
      %v1136 = vld [vmem:[%s3 + $0x84] sm:$0xf]
      %v1137 = vld [vmem:[%s3 + $0x88] sm:$0xf]
      %v1138 = vld [vmem:[%s3 + $0x8c] sm:$0xf]
      %v1139 = vld [vmem:[#allocation2] sm:$0xf]
      %v1140 = vld [vmem:[#allocation2 + $0x4] sm:$0x1]
      %v1141 = vld [vmem:[#allocation2 + $0x8] sm:$0xf]
      %v1142 = vld [vmem:[#allocation2 + $0xc] sm:$0x1]
      %v1143 = vld [vmem:[#allocation2 + $0x10] sm:$0xf]
      %v1144 = vld [vmem:[#allocation2 + $0x14] sm:$0x1]
      %v1145 = vld [vmem:[#allocation2 + $0x18] sm:$0xf]
      %v1146 = vld [vmem:[#allocation2 + $0x1c] sm:$0x1]
      %v1147 = vld [vmem:[#allocation2 + $0x20] sm:$0xf]
      %v1148 = vld [vmem:[#allocation2 + $0x24] sm:$0x1]
      %v1149 = vld [vmem:[#allocation2 + $0x28] sm:$0xf]
      %v1150 = vld [vmem:[#allocation2 + $0x2c] sm:$0x1]
      %v1151 = vld [vmem:[#allocation2 + $0x30] sm:$0xf]
      %v1152 = vld [vmem:[#allocation2 + $0x34] sm:$0x1]
      %v1153 = vld [vmem:[#allocation2 + $0x38] sm:$0xf]
      %v1154 = vld [vmem:[#allocation2 + $0x3c] sm:$0x1]
      %v1155 = vld [vmem:[#allocation2 + $0x40] sm:$0xf]
      %v1156 = vld [vmem:[#allocation2 + $0x44] sm:$0x1]
      %v1157 = vld [vmem:[#allocation2 + $0x48] sm:$0xf]
      %v1158 = vld [vmem:[#allocation2 + $0x4c] sm:$0x1]
      %v1175 = vunpack.c.l.b16 %v1139
      %v1176 = vunpack.c.l.b16 %v1140
      %v1177 = vunpack.c.l.b16 %v1141
      %v1178 = vunpack.c.l.b16 %v1142
      %v1179 = vunpack.c.l.b16 %v1143
      %v1180 = vunpack.c.l.b16 %v1144
      %v1181 = vunpack.c.l.b16 %v1145
      %v1182 = vunpack.c.l.b16 %v1146
      %v1183 = vunpack.c.l.b16 %v1147
      %v1184 = vunpack.c.l.b16 %v1148
      %v1185 = vunpack.c.l.b16 %v1149
      %v1186 = vunpack.c.l.b16 %v1150
      %v1187 = vunpack.c.l.b16 %v1151
      %v1188 = vunpack.c.l.b16 %v1152
      %v1189 = vunpack.c.l.b16 %v1153
      %v1190 = vunpack.c.l.b16 %v1154
      %v1191 = vpack.c.b16 %v1176, %v1175
      %v1192 = vpack.c.b16 %v1178, %v1177
      %v1193 = vpack.c.b16 %v1180, %v1179
      %v1194 = vpack.c.b16 %v1182, %v1181
      %v1195 = vpack.c.b16 %v1184, %v1183
      %v1196 = vpack.c.b16 %v1186, %v1185
      %v1197 = vpack.c.b16 %v1188, %v1187
      %v1198 = vpack.c.b16 %v1190, %v1189
      %v1200 = vshrl.u32 %v1191, 16
      %v1202 = vshll.u32 %v1191, 16
      %v1204 = vrot.slane %v1202, 1
      %v1205 = vor.u32 %v1200, %v1204
      %v1207 = vshrl.u32 %v1192, 16
      %v1209 = vshll.u32 %v1192, 16
      %v1211 = vrot.slane %v1209, 1
      %v1212 = vor.u32 %v1207, %v1211
      %v1214 = vshrl.u32 %v1193, 16
      %v1216 = vshll.u32 %v1193, 16
      %v1218 = vrot.slane %v1216, 1
      %v1219 = vor.u32 %v1214, %v1218
      %v1221 = vshrl.u32 %v1194, 16
      %v1223 = vshll.u32 %v1194, 16
      %v1225 = vrot.slane %v1223, 1
      %v1226 = vor.u32 %v1221, %v1225
      %v1228 = vshrl.u32 %v1195, 16
      %v1230 = vshll.u32 %v1195, 16
      %v1232 = vrot.slane %v1230, 1
      %v1233 = vor.u32 %v1228, %v1232
      %v1235 = vshrl.u32 %v1196, 16
      %v1237 = vshll.u32 %v1196, 16
      %v1239 = vrot.slane %v1237, 1
      %v1240 = vor.u32 %v1235, %v1239
      %v1242 = vshrl.u32 %v1197, 16
      %v1244 = vshll.u32 %v1197, 16
      %v1246 = vrot.slane %v1244, 1
      %v1247 = vor.u32 %v1242, %v1246
      %v1249 = vshrl.u32 %v1198, 16
      %v1251 = vshll.u32 %v1198, 16
      %v1253 = vrot.slane %v1251, 1
      %v1254 = vor.u32 %v1249, %v1253
      %1255 = vrot.lane.b32.xlu0 %v1205, 32
      %v1256 = vpop.permute.xlu0 %1255
      %1257 = vrot.lane.b32.xlu0 %v1212, 32
      %v1258 = vpop.permute.xlu0 %1257
      %1259 = vrot.lane.b32.xlu0 %v1219, 32
      %v1260 = vpop.permute.xlu0 %1259
      %1261 = vrot.lane.b32.xlu0 %v1226, 32
      %v1262 = vpop.permute.xlu0 %1261
      %1263 = vrot.lane.b32.xlu0 %v1233, 32
      %v1264 = vpop.permute.xlu0 %1263
      %1265 = vrot.lane.b32.xlu0 %v1240, 32
      %v1266 = vpop.permute.xlu0 %1265
      %1267 = vrot.lane.b32.xlu0 %v1247, 32
      %v1268 = vpop.permute.xlu0 %1267
      %1269 = vrot.lane.b32.xlu0 %v1254, 32
      %v1270 = vpop.permute.xlu0 %1269
      %v1271 = vrot.slane %v1191, 1
      %v1272 = vrot.slane %v1192, 1
      %v1273 = vrot.slane %v1193, 1
      %v1274 = vrot.slane %v1194, 1
      %v1275 = vrot.slane %v1195, 1
      %v1276 = vrot.slane %v1196, 1
      %v1277 = vrot.slane %v1197, 1
      %v1278 = vrot.slane %v1198, 1
      %1279 = vrot.lane.b32.xlu0 %v1271, 64
      %v1280 = vpop.permute.xlu0 %1279
      %1281 = vrot.lane.b32.xlu0 %v1272, 64
      %v1282 = vpop.permute.xlu0 %1281
      %1283 = vrot.lane.b32.xlu0 %v1273, 64
      %v1284 = vpop.permute.xlu0 %1283
      %1285 = vrot.lane.b32.xlu0 %v1274, 64
      %v1286 = vpop.permute.xlu0 %1285
      %1287 = vrot.lane.b32.xlu0 %v1275, 64
      %v1288 = vpop.permute.xlu0 %1287
      %1289 = vrot.lane.b32.xlu0 %v1276, 64
      %v1290 = vpop.permute.xlu0 %1289
      %1291 = vrot.lane.b32.xlu0 %v1277, 64
      %v1292 = vpop.permute.xlu0 %1291
      %1293 = vrot.lane.b32.xlu0 %v1278, 64
      %v1294 = vpop.permute.xlu0 %1293
      %v1296 = vunpack.c.l.b16 %v1155
      %v1297 = vpack.c.b16 %v1177, %v1177
      %v1298 = vpack.c.b16 %v1179, %v1179
      %v1299 = vpack.c.b16 %v1181, %v1181
      %v1300 = vpack.c.b16 %v1183, %v1183
      %v1301 = vpack.c.b16 %v1185, %v1185
      %v1302 = vpack.c.b16 %v1187, %v1187
      %v1303 = vpack.c.b16 %v1189, %v1189
      %v1304 = vpack.c.b16 %v1296, %v1296
      %1305 = vrot.lane.b32.xlu0 %v1297, 96
      %v1306 = vpop.permute.xlu0 %1305
      %1307 = vrot.lane.b32.xlu0 %v1298, 96
      %v1308 = vpop.permute.xlu0 %1307
      %1309 = vrot.lane.b32.xlu0 %v1299, 96
      %v1310 = vpop.permute.xlu0 %1309
      %1311 = vrot.lane.b32.xlu0 %v1300, 96
      %v1312 = vpop.permute.xlu0 %1311
      %1313 = vrot.lane.b32.xlu0 %v1301, 96
      %v1314 = vpop.permute.xlu0 %1313
      %1315 = vrot.lane.b32.xlu0 %v1302, 96
      %v1316 = vpop.permute.xlu0 %1315
      %1317 = vrot.lane.b32.xlu0 %v1303, 96
      %v1318 = vpop.permute.xlu0 %1317
      %1319 = vrot.lane.b32.xlu0 %v1304, 96
      %v1320 = vpop.permute.xlu0 %1319
      %v1322 = vunpack.c.l.b16 %v1156
      %v1323 = vpack.c.b16 %v1322, %v1296
      %v1325 = vshrl.u32 %v1323, 16
      %v1327 = vshll.u32 %v1323, 16
      %v1329 = vrot.slane %v1327, 1
      %v1330 = vor.u32 %v1325, %v1329
      %v1331 = vrot.slane %v1323, 1
      %1332 = vrot.lane.b32.xlu0 %v1272, 32
      %v1333 = vpop.permute.xlu0 %1332
      %1334 = vrot.lane.b32.xlu0 %v1273, 32
      %v1335 = vpop.permute.xlu0 %1334
      %1336 = vrot.lane.b32.xlu0 %v1274, 32
      %v1337 = vpop.permute.xlu0 %1336
      %1338 = vrot.lane.b32.xlu0 %v1275, 32
      %v1339 = vpop.permute.xlu0 %1338
      %1340 = vrot.lane.b32.xlu0 %v1276, 32
      %v1341 = vpop.permute.xlu0 %1340
      %1342 = vrot.lane.b32.xlu0 %v1277, 32
      %v1343 = vpop.permute.xlu0 %1342
      %1344 = vrot.lane.b32.xlu0 %v1278, 32
      %v1345 = vpop.permute.xlu0 %1344
      %1346 = vrot.lane.b32.xlu0 %v1331, 32
      %v1347 = vpop.permute.xlu0 %1346
      %v1349 = vunpack.c.l.b16 %v1157
      %v1350 = vpack.c.b16 %v1349, %v1349
      %1351 = vrot.lane.b32.xlu0 %v1298, 64
      %v1352 = vpop.permute.xlu0 %1351
      %1353 = vrot.lane.b32.xlu0 %v1299, 64
      %v1354 = vpop.permute.xlu0 %1353
      %1355 = vrot.lane.b32.xlu0 %v1300, 64
      %v1356 = vpop.permute.xlu0 %1355
      %1357 = vrot.lane.b32.xlu0 %v1301, 64
      %v1358 = vpop.permute.xlu0 %1357
      %1359 = vrot.lane.b32.xlu0 %v1302, 64
      %v1360 = vpop.permute.xlu0 %1359
      %1361 = vrot.lane.b32.xlu0 %v1303, 64
      %v1362 = vpop.permute.xlu0 %1361
      %1363 = vrot.lane.b32.xlu0 %v1304, 64
      %v1364 = vpop.permute.xlu0 %1363
      %1365 = vrot.lane.b32.xlu0 %v1350, 64
      %v1366 = vpop.permute.xlu0 %1365
      %v1368 = vunpack.c.l.b16 %v1158
      %v1369 = vpack.c.b16 %v1368, %v1349
      %v1371 = vshrl.u32 %v1369, 16
      %v1373 = vshll.u32 %v1369, 16
      %v1375 = vrot.slane %v1373, 1
      %v1376 = vor.u32 %v1371, %v1375
      %1377 = vrot.lane.b32.xlu0 %v1219, 96
      %v1378 = vpop.permute.xlu0 %1377
      %1379 = vrot.lane.b32.xlu0 %v1226, 96
      %v1380 = vpop.permute.xlu0 %1379
      %1381 = vrot.lane.b32.xlu0 %v1233, 96
      %v1382 = vpop.permute.xlu0 %1381
      %1383 = vrot.lane.b32.xlu0 %v1240, 96
      %v1384 = vpop.permute.xlu0 %1383
      %1385 = vrot.lane.b32.xlu0 %v1247, 96
      %v1386 = vpop.permute.xlu0 %1385
      %1387 = vrot.lane.b32.xlu0 %v1254, 96
      %v1388 = vpop.permute.xlu0 %1387
      %1389 = vrot.lane.b32.xlu0 %v1330, 96
      %v1390 = vpop.permute.xlu0 %1389
      %1391 = vrot.lane.b32.xlu0 %v1376, 96
      %v1392 = vpop.permute.xlu0 %1391
      %v1393 = vrot.slane %v1369, 1
      %v1396 = vsel %vm804, %v1139, %v1256
      %v1399 = vsel %vm804, %v1141, %v1258
      %v1402 = vsel %vm804, %v1143, %v1260
      %v1405 = vsel %vm804, %v1145, %v1262
      %v1408 = vsel %vm804, %v1147, %v1264
      %v1411 = vsel %vm804, %v1149, %v1266
      %v1414 = vsel %vm804, %v1151, %v1268
      %v1417 = vsel %vm804, %v1153, %v1270
      %v1419 = vsel %vm829, %v1396, %v1280
      %v1421 = vsel %vm829, %v1399, %v1282
      %v1423 = vsel %vm829, %v1402, %v1284
      %v1425 = vsel %vm829, %v1405, %v1286
      %v1427 = vsel %vm829, %v1408, %v1288
      %v1429 = vsel %vm829, %v1411, %v1290
      %v1431 = vsel %vm829, %v1414, %v1292
      %v1433 = vsel %vm829, %v1417, %v1294
      %v1435 = vsel %vm846, %v1419, %v1306
      %v1437 = vsel %vm846, %v1421, %v1308
      %v1439 = vsel %vm846, %v1423, %v1310
      %v1441 = vsel %vm846, %v1425, %v1312
      %v1443 = vsel %vm846, %v1427, %v1314
      %v1445 = vsel %vm846, %v1429, %v1316
      %v1447 = vsel %vm846, %v1431, %v1318
      %v1449 = vsel %vm846, %v1433, %v1320
      %v1452 = vsel %vm804, %v1212, %v1333
      %v1455 = vsel %vm804, %v1219, %v1335
      %v1458 = vsel %vm804, %v1226, %v1337
      %v1461 = vsel %vm804, %v1233, %v1339
      %v1464 = vsel %vm804, %v1240, %v1341
      %v1467 = vsel %vm804, %v1247, %v1343
      %v1470 = vsel %vm804, %v1254, %v1345
      %v1473 = vsel %vm804, %v1330, %v1347
      %v1475 = vsel %vm829, %v1452, %v1352
      %v1477 = vsel %vm829, %v1455, %v1354
      %v1479 = vsel %vm829, %v1458, %v1356
      %v1481 = vsel %vm829, %v1461, %v1358
      %v1483 = vsel %vm829, %v1464, %v1360
      %v1485 = vsel %vm829, %v1467, %v1362
      %v1487 = vsel %vm829, %v1470, %v1364
      %v1489 = vsel %vm829, %v1473, %v1366
      %v1491 = vsel %vm846, %v1475, %v1378
      %v1493 = vsel %vm846, %v1477, %v1380
      %v1495 = vsel %vm846, %v1479, %v1382
      %v1497 = vsel %vm846, %v1481, %v1384
      %v1499 = vsel %vm846, %v1483, %v1386
      %v1501 = vsel %vm846, %v1485, %v1388
      %v1503 = vsel %vm846, %v1487, %v1390
      %v1505 = vsel %vm846, %v1489, %v1392
      %v1522 = vunpack.c.l.b16 %v1435
      %v1523 = vunpack.c.l.b16 %v1491
      %v1524 = vunpack.c.l.b16 %v1273
      %v1525 = vunpack.c.l.b16 %v1437
      %v1526 = vunpack.c.l.b16 %v1493
      %v1527 = vunpack.c.l.b16 %v1274
      %v1528 = vunpack.c.l.b16 %v1439
      %v1529 = vunpack.c.l.b16 %v1495
      %v1530 = vunpack.c.l.b16 %v1275
      %v1531 = vunpack.c.l.b16 %v1441
      %v1532 = vunpack.c.l.b16 %v1497
      %v1533 = vunpack.c.l.b16 %v1276
      %v1534 = vunpack.c.l.b16 %v1443
      %v1535 = vunpack.c.l.b16 %v1499
      %v1536 = vunpack.c.l.b16 %v1277
      %v1537 = vunpack.c.l.b16 %v1445
      %v1538 = vunpack.c.l.b16 %v1501
      %v1539 = vunpack.c.l.b16 %v1278
      %v1540 = vunpack.c.l.b16 %v1447
      %v1541 = vunpack.c.l.b16 %v1503
      %v1542 = vunpack.c.l.b16 %v1331
      %v1543 = vunpack.c.l.b16 %v1449
      %v1544 = vunpack.c.l.b16 %v1505
      %v1545 = vunpack.c.l.b16 %v1393
      %v1546 = vpack.c.b16 %v1525, %v1522
      %v1547 = vpack.c.b16 %v1526, %v1523
      %v1548 = vpack.c.b16 %v1527, %v1524
      %v1549 = vpack.c.b16 %v1531, %v1528
      %v1550 = vpack.c.b16 %v1532, %v1529
      %v1551 = vpack.c.b16 %v1533, %v1530
      %v1552 = vpack.c.b16 %v1537, %v1534
      %v1553 = vpack.c.b16 %v1538, %v1535
      %v1554 = vpack.c.b16 %v1539, %v1536
      %v1555 = vpack.c.b16 %v1543, %v1540
      %v1556 = vpack.c.b16 %v1544, %v1541
      %v1557 = vpack.c.b16 %v1545, %v1542
      %v1602 = vunpack.c.l.b16 %v1103
      %v1603 = vunpack.c.l.b16 %v1104
      %v1604 = vunpack.c.l.b16 %v1105
      %v1605 = vunpack.c.l.b16 %v1106
      %v1606 = vunpack.c.l.b16 %v1107
      %v1607 = vunpack.c.l.b16 %v1108
      %v1608 = vunpack.c.l.b16 %v1109
      %v1609 = vunpack.c.l.b16 %v1110
      %v1610 = vunpack.c.l.b16 %v1111
      %v1611 = vunpack.c.l.b16 %v1112
      %v1612 = vunpack.c.l.b16 %v1113
      %v1613 = vunpack.c.l.b16 %v1114
      %v1614 = vunpack.c.l.b16 %v1115
      %v1615 = vunpack.c.l.b16 %v1116
      %v1616 = vunpack.c.l.b16 %v1117
      %v1617 = vunpack.c.l.b16 %v1118
      %v1618 = vunpack.c.l.b16 %v1119
      %v1619 = vunpack.c.l.b16 %v1120
      %v1620 = vunpack.c.l.b16 %v1121
      %v1621 = vunpack.c.l.b16 %v1122
      %v1622 = vunpack.c.l.b16 %v1123
      %v1623 = vunpack.c.l.b16 %v1124
      %v1624 = vunpack.c.l.b16 %v1125
      %v1625 = vunpack.c.l.b16 %v1126
      %v1626 = vunpack.c.l.b16 %v1127
      %v1627 = vunpack.c.l.b16 %v1128
      %v1628 = vunpack.c.l.b16 %v1129
      %v1629 = vunpack.c.l.b16 %v1130
      %v1630 = vunpack.c.l.b16 %v1131
      %v1631 = vunpack.c.l.b16 %v1132
      %v1632 = vunpack.c.l.b16 %v1133
      %v1633 = vunpack.c.l.b16 %v1134
      %v1634 = vunpack.c.l.b16 %v1135
      %v1635 = vunpack.c.l.b16 %v1136
      %v1636 = vunpack.c.l.b16 %v1137
      %v1637 = vunpack.c.l.b16 %v1138
      %v1638 = vpack.c.b16 %v1603, %v1602
      %v1639 = vpack.c.b16 %v1605, %v1604
      %v1640 = vpack.c.b16 %v1607, %v1606
      %v1641 = vpack.c.b16 %v1609, %v1608
      %v1642 = vpack.c.b16 %v1611, %v1610
      %v1643 = vpack.c.b16 %v1613, %v1612
      %v1644 = vpack.c.b16 %v1615, %v1614
      %v1645 = vpack.c.b16 %v1617, %v1616
      %v1646 = vpack.c.b16 %v1619, %v1618
      %v1647 = vpack.c.b16 %v1621, %v1620
      %v1648 = vpack.c.b16 %v1623, %v1622
      %v1649 = vpack.c.b16 %v1625, %v1624
      %v1650 = vpack.c.b16 %v1627, %v1626
      %v1651 = vpack.c.b16 %v1629, %v1628
      %v1652 = vpack.c.b16 %v1631, %v1630
      %v1653 = vpack.c.b16 %v1633, %v1632
      %v1654 = vpack.c.b16 %v1635, %v1634
      %v1655 = vpack.c.b16 %v1637, %v1636
      %v1675 = vsel %vm804, %v1548, 0
      %v1678 = vsel %vm804, %v1551, 0
      %v1681 = vsel %vm804, %v1554, 0
      %v1684 = vsel %vm804, %v1557, 0
      %1686 = vmatpush.bf16.msra.mxu0 %v1645
      %1687 = vmatpush.bf16.msra.mxu0 %v1644
      %1688 = vmatpush.bf16.msra.mxu0 %v1643
      %1689 = vmatpush.bf16.msra.mxu0 %v1642
      %1690 = vmatpush.bf16.msra.mxu0 %v1641
      %1691 = vmatpush.bf16.msra.mxu0 %v1640
      %1692 = vmatpush.bf16.msra.mxu0 %v1639
      %1693 = vmatpush.bf16.msra.mxu0 %v1638
      %1694 = vmatmul.bf16.gmra.mxu0 %v1546
      %v1695 = vpop.f32.mrf.mxu0
      %v1696 = vadd.f32 0.0, %v1695
      %v1697 = vpop.f32.mrf.mxu0
      %v1698 = vadd.f32 0.0, %v1697
      %1699 = vmatmul.bf16.gmra.mxu0 %v1549
      %v1700 = vpop.f32.mrf.mxu0
      %v1701 = vadd.f32 0.0, %v1700
      %v1702 = vpop.f32.mrf.mxu0
      %v1703 = vadd.f32 0.0, %v1702
      %1704 = vmatmul.bf16.gmra.mxu0 %v1552
      %v1705 = vpop.f32.mrf.mxu0
      %v1706 = vadd.f32 0.0, %v1705
      %v1707 = vpop.f32.mrf.mxu0
      %v1708 = vadd.f32 0.0, %v1707
      %1709 = vmatmul.bf16.gmra.mxu0 %v1555
      %v1710 = vpop.f32.mrf.mxu0
      %v1711 = vadd.f32 0.0, %v1710
      %v1712 = vpop.f32.mrf.mxu0
      %v1713 = vadd.f32 0.0, %v1712
      %1714 = vdwg.mxu0
      %1715 = vmatpush.bf16.msra.mxu0 %v1653
      %1716 = vmatpush.bf16.msra.mxu0 %v1652
      %1717 = vmatpush.bf16.msra.mxu0 %v1651
      %1718 = vmatpush.bf16.msra.mxu0 %v1650
      %1719 = vmatpush.bf16.msra.mxu0 %v1649
      %1720 = vmatpush.bf16.msra.mxu0 %v1648
      %1721 = vmatpush.bf16.msra.mxu0 %v1647
      %1722 = vmatpush.bf16.msra.mxu0 %v1646
      %1723 = vmatmul.bf16.gmra.mxu0 %v1547
      %v1724 = vpop.f32.mrf.mxu0
      %v1725 = vadd.f32 %v1696, %v1724
      %v1726 = vpop.f32.mrf.mxu0
      %v1727 = vadd.f32 %v1698, %v1726
      %1728 = vmatmul.bf16.gmra.mxu0 %v1550
      %v1729 = vpop.f32.mrf.mxu0
      %v1730 = vadd.f32 %v1701, %v1729
      %v1731 = vpop.f32.mrf.mxu0
      %v1732 = vadd.f32 %v1703, %v1731
      %1733 = vmatmul.bf16.gmra.mxu0 %v1553
      %v1734 = vpop.f32.mrf.mxu0
      %v1735 = vadd.f32 %v1706, %v1734
      %v1736 = vpop.f32.mrf.mxu0
      %v1737 = vadd.f32 %v1708, %v1736
      %1738 = vmatmul.bf16.gmra.mxu0 %v1556
      %v1739 = vpop.f32.mrf.mxu0
      %v1740 = vadd.f32 %v1711, %v1739
      %v1741 = vpop.f32.mrf.mxu0
      %v1742 = vadd.f32 %v1713, %v1741
      %1743 = vdwg.mxu0
      %1744 = vmatpush.bf16.msra.mxu0 0
      %1745 = vmatpush.bf16.msra.mxu0 0
      %1746 = vmatpush.bf16.msra.mxu0 0
      %1747 = vmatpush.bf16.msra.mxu0 0
      %1748 = vmatpush.bf16.msra.mxu0 0
      %1749 = vmatpush.bf16.msra.mxu0 0
      %1750 = vmatpush.bf16.msra.mxu0 %v1655
      %1751 = vmatpush.bf16.msra.mxu0 %v1654
      %1752 = vmatmul.bf16.gmra.mxu0 %v1675
      %v1753 = vpop.f32.mrf.mxu0
      %v1754 = vadd.f32 %v1725, %v1753
      %v1755 = vpop.f32.mrf.mxu0
      %v1756 = vadd.f32 %v1727, %v1755
      %1757 = vmatmul.bf16.gmra.mxu0 %v1678
      %v1758 = vpop.f32.mrf.mxu0
      %v1759 = vadd.f32 %v1730, %v1758
      %v1760 = vpop.f32.mrf.mxu0
      %v1761 = vadd.f32 %v1732, %v1760
      %1762 = vmatmul.bf16.gmra.mxu0 %v1681
      %v1763 = vpop.f32.mrf.mxu0
      %v1764 = vadd.f32 %v1735, %v1763
      %v1765 = vpop.f32.mrf.mxu0
      %v1766 = vadd.f32 %v1737, %v1765
      %1767 = vmatmul.bf16.gmra.mxu0 %v1684
      %v1768 = vpop.f32.mrf.mxu0
      %v1769 = vadd.f32 %v1740, %v1768
      %v1770 = vpop.f32.mrf.mxu0
      %v1771 = vadd.f32 %v1742, %v1770
      %1772 = vdwg.mxu0
      %v1773 = vpack.c.b16 %v938, %v935
      %v1774 = vpack.c.b16 %v939, %v936
      %v1775 = vpack.c.b16 %v940, %v937
      %v1776 = vpack.c.b16 %v944, %v941
      %v1777 = vpack.c.b16 %v945, %v942
      %v1778 = vpack.c.b16 %v946, %v943
      %v1779 = vpack.c.b16 %v950, %v947
      %v1780 = vpack.c.b16 %v951, %v948
      %v1781 = vpack.c.b16 %v952, %v949
      %v1782 = vpack.c.b16 %v956, %v953
      %v1783 = vpack.c.b16 %v957, %v954
      %v1784 = vpack.c.b16 %v958, %v955
      %v1829 = vunpack.c.l.b16 %v513
      %v1830 = vunpack.c.l.b16 %v514
      %v1831 = vunpack.c.l.b16 %v515
      %v1832 = vunpack.c.l.b16 %v516
      %v1833 = vunpack.c.l.b16 %v517
      %v1834 = vunpack.c.l.b16 %v518
      %v1835 = vunpack.c.l.b16 %v519
      %v1836 = vunpack.c.l.b16 %v520
      %v1837 = vunpack.c.l.b16 %v521
      %v1838 = vunpack.c.l.b16 %v522
      %v1839 = vunpack.c.l.b16 %v523
      %v1840 = vunpack.c.l.b16 %v524
      %v1841 = vunpack.c.l.b16 %v525
      %v1842 = vunpack.c.l.b16 %v526
      %v1843 = vunpack.c.l.b16 %v527
      %v1844 = vunpack.c.l.b16 %v528
      %v1845 = vunpack.c.l.b16 %v529
      %v1846 = vunpack.c.l.b16 %v530
      %v1847 = vunpack.c.l.b16 %v531
      %v1848 = vunpack.c.l.b16 %v532
      %v1849 = vunpack.c.l.b16 %v533
      %v1850 = vunpack.c.l.b16 %v534
      %v1851 = vunpack.c.l.b16 %v535
      %v1852 = vunpack.c.l.b16 %v536
      %v1853 = vunpack.c.l.b16 %v537
      %v1854 = vunpack.c.l.b16 %v538
      %v1855 = vunpack.c.l.b16 %v539
      %v1856 = vunpack.c.l.b16 %v540
      %v1857 = vunpack.c.l.b16 %v541
      %v1858 = vunpack.c.l.b16 %v542
      %v1859 = vunpack.c.l.b16 %v543
      %v1860 = vunpack.c.l.b16 %v544
      %v1861 = vunpack.c.l.b16 %v545
      %v1862 = vunpack.c.l.b16 %v546
      %v1863 = vunpack.c.l.b16 %v547
      %v1864 = vunpack.c.l.b16 %v548
      %v1865 = vpack.c.b16 %v1830, %v1829
      %v1866 = vpack.c.b16 %v1832, %v1831
      %v1867 = vpack.c.b16 %v1834, %v1833
      %v1868 = vpack.c.b16 %v1836, %v1835
      %v1869 = vpack.c.b16 %v1838, %v1837
      %v1870 = vpack.c.b16 %v1840, %v1839
      %v1871 = vpack.c.b16 %v1842, %v1841
      %v1872 = vpack.c.b16 %v1844, %v1843
      %v1873 = vpack.c.b16 %v1846, %v1845
      %v1874 = vpack.c.b16 %v1848, %v1847
      %v1875 = vpack.c.b16 %v1850, %v1849
      %v1876 = vpack.c.b16 %v1852, %v1851
      %v1877 = vpack.c.b16 %v1854, %v1853
      %v1878 = vpack.c.b16 %v1856, %v1855
      %v1879 = vpack.c.b16 %v1858, %v1857
      %v1880 = vpack.c.b16 %v1860, %v1859
      %v1881 = vpack.c.b16 %v1862, %v1861
      %v1882 = vpack.c.b16 %v1864, %v1863
      %v1902 = vsel %vm804, %v1775, 0
      %v1905 = vsel %vm804, %v1778, 0
      %v1908 = vsel %vm804, %v1781, 0
      %v1911 = vsel %vm804, %v1784, 0
      %1913 = vmatpush.bf16.msra.mxu0 %v1872
      %1914 = vmatpush.bf16.msra.mxu0 %v1871
      %1915 = vmatpush.bf16.msra.mxu0 %v1870
      %1916 = vmatpush.bf16.msra.mxu0 %v1869
      %1917 = vmatpush.bf16.msra.mxu0 %v1868
      %1918 = vmatpush.bf16.msra.mxu0 %v1867
      %1919 = vmatpush.bf16.msra.mxu0 %v1866
      %1920 = vmatpush.bf16.msra.mxu0 %v1865
      %1921 = vmatmul.bf16.gmra.mxu0 %v1773
      %v1922 = vpop.f32.mrf.mxu0
      %v1923 = vadd.f32 %v1754, %v1922
      %v1924 = vpop.f32.mrf.mxu0
      %v1925 = vadd.f32 %v1756, %v1924
      %1926 = vmatmul.bf16.gmra.mxu0 %v1776
      %v1927 = vpop.f32.mrf.mxu0
      %v1928 = vadd.f32 %v1759, %v1927
      %v1929 = vpop.f32.mrf.mxu0
      %v1930 = vadd.f32 %v1761, %v1929
      %1931 = vmatmul.bf16.gmra.mxu0 %v1779
      %v1932 = vpop.f32.mrf.mxu0
      %v1933 = vadd.f32 %v1764, %v1932
      %v1934 = vpop.f32.mrf.mxu0
      %v1935 = vadd.f32 %v1766, %v1934
      %1936 = vmatmul.bf16.gmra.mxu0 %v1782
      %v1937 = vpop.f32.mrf.mxu0
      %v1938 = vadd.f32 %v1769, %v1937
      %v1939 = vpop.f32.mrf.mxu0
      %v1940 = vadd.f32 %v1771, %v1939
      %1941 = vdwg.mxu0
      %1942 = vmatpush.bf16.msra.mxu0 %v1880
      %1943 = vmatpush.bf16.msra.mxu0 %v1879
      %1944 = vmatpush.bf16.msra.mxu0 %v1878
      %1945 = vmatpush.bf16.msra.mxu0 %v1877
      %1946 = vmatpush.bf16.msra.mxu0 %v1876
      %1947 = vmatpush.bf16.msra.mxu0 %v1875
      %1948 = vmatpush.bf16.msra.mxu0 %v1874
      %1949 = vmatpush.bf16.msra.mxu0 %v1873
      %1950 = vmatmul.bf16.gmra.mxu0 %v1774
      %v1951 = vpop.f32.mrf.mxu0
      %v1952 = vadd.f32 %v1923, %v1951
      %v1953 = vpop.f32.mrf.mxu0
      %v1954 = vadd.f32 %v1925, %v1953
      %1955 = vmatmul.bf16.gmra.mxu0 %v1777
      %v1956 = vpop.f32.mrf.mxu0
      %v1957 = vadd.f32 %v1928, %v1956
      %v1958 = vpop.f32.mrf.mxu0
      %v1959 = vadd.f32 %v1930, %v1958
      %1960 = vmatmul.bf16.gmra.mxu0 %v1780
      %v1961 = vpop.f32.mrf.mxu0
      %v1962 = vadd.f32 %v1933, %v1961
      %v1963 = vpop.f32.mrf.mxu0
      %v1964 = vadd.f32 %v1935, %v1963
      %1965 = vmatmul.bf16.gmra.mxu0 %v1783
      %v1966 = vpop.f32.mrf.mxu0
      %v1967 = vadd.f32 %v1938, %v1966
      %v1968 = vpop.f32.mrf.mxu0
      %v1969 = vadd.f32 %v1940, %v1968
      %1970 = vdwg.mxu0
      %1971 = vmatpush.bf16.msra.mxu0 0
      %1972 = vmatpush.bf16.msra.mxu0 0
      %1973 = vmatpush.bf16.msra.mxu0 0
      %1974 = vmatpush.bf16.msra.mxu0 0
      %1975 = vmatpush.bf16.msra.mxu0 0
      %1976 = vmatpush.bf16.msra.mxu0 0
      %1977 = vmatpush.bf16.msra.mxu0 %v1882
      %1978 = vmatpush.bf16.msra.mxu0 %v1881
      %1979 = vmatmul.bf16.gmra.mxu0 %v1902
      %v1980 = vpop.f32.mrf.mxu0
      %v1981 = vadd.f32 %v1952, %v1980
      %v1982 = vpop.f32.mrf.mxu0
      %v1983 = vadd.f32 %v1954, %v1982
      %1984 = vmatmul.bf16.gmra.mxu0 %v1905
      %v1985 = vpop.f32.mrf.mxu0
      %v1986 = vadd.f32 %v1957, %v1985
      %v1987 = vpop.f32.mrf.mxu0
      %v1988 = vadd.f32 %v1959, %v1987
      %1989 = vmatmul.bf16.gmra.mxu0 %v1908
      %v1990 = vpop.f32.mrf.mxu0
      %v1991 = vadd.f32 %v1962, %v1990
      %v1992 = vpop.f32.mrf.mxu0
      %v1993 = vadd.f32 %v1964, %v1992
      %1994 = vmatmul.bf16.gmra.mxu0 %v1911
      %v1995 = vpop.f32.mrf.mxu0
      %v1996 = vadd.f32 %v1967, %v1995
      %v1997 = vpop.f32.mrf.mxu0
      %v1998 = vadd.f32 %v1969, %v1997
      %1999 = vdwg.mxu0
      %v2000 = vld [vmem:[%s4] sm:$0x1]
      %v2002 = vperm.slane %v2000, 0
      %v2004 = vadd.f32 %v1981, %v2002
      %v2005 = vadd.f32 %v1983, %v2002
      %v2006 = vadd.f32 %v1986, %v2002
      %v2007 = vadd.f32 %v1988, %v2002
      %v2008 = vadd.f32 %v1991, %v2002
      %v2009 = vadd.f32 %v1993, %v2002
      %v2010 = vadd.f32 %v1996, %v2002
      %v2011 = vadd.f32 %v1998, %v2002
      %2012 = vst.msk [vmem:[%s333] sm:$0xff] %vm804, %v2004
      %2013 = vst.msk [vmem:[%s333 + $0x8] sm:$0xff] %vm804, %v2005
      %2014 = vst.msk [vmem:[%s333 + $0x10] sm:$0xff] %vm804, %v2006
      %2015 = vst.msk [vmem:[%s333 + $0x18] sm:$0xff] %vm804, %v2007
      %2016 = vst.msk [vmem:[%s333 + $0x20] sm:$0xff] %vm804, %v2008
      %2017 = vst.msk [vmem:[%s333 + $0x28] sm:$0xff] %vm804, %v2009
      %2018 = vst.msk [vmem:[%s333 + $0x30] sm:$0xff] %vm804, %v2010
      %2019 = vst.msk [vmem:[%s333 + $0x38] sm:$0xff] %vm804, %v2011
      %v2020 = vld [vmem:[%s5] sm:$0x1]
      %v2021 = vld [vmem:[%s6] sm:$0x1]
      %v2022 = vsel %vm804, %v2004, 0.0
      %2023 = vadd.xlane.f32.xlu0 %v2022
      %v2024 = vpop.xlane.xlu0 %2023
      %v2025 = vsel %vm804, %v2005, 0.0
      %2026 = vadd.xlane.f32.xlu0 %v2025
      %v2027 = vpop.xlane.xlu0 %2026
      %v2028 = vsel %vm804, %v2006, 0.0
      %2029 = vadd.xlane.f32.xlu0 %v2028
      %v2030 = vpop.xlane.xlu0 %2029
      %v2031 = vsel %vm804, %v2007, 0.0
      %2032 = vadd.xlane.f32.xlu0 %v2031
      %v2033 = vpop.xlane.xlu0 %2032
      %v2034 = vsel %vm804, %v2008, 0.0
      %2035 = vadd.xlane.f32.xlu0 %v2034
      %v2036 = vpop.xlane.xlu0 %2035
      %v2037 = vsel %vm804, %v2009, 0.0
      %2038 = vadd.xlane.f32.xlu0 %v2037
      %v2039 = vpop.xlane.xlu0 %2038
      %v2040 = vsel %vm804, %v2010, 0.0
      %2041 = vadd.xlane.f32.xlu0 %v2040
      %v2042 = vpop.xlane.xlu0 %2041
      %v2043 = vsel %vm804, %v2011, 0.0
      %2044 = vadd.xlane.f32.xlu0 %v2043
      %v2045 = vpop.xlane.xlu0 %2044
      %v2046 = vrcp.pop 32.0
      %v2047 = vmul.f32 32.0, %v2046
      %v2048 = vsub.f32 1.0, %v2047
      %v2049 = vmul.f32 %v2046, %v2048
      %v2050 = vadd.f32 %v2046, %v2049
      %vm2051 = vweird.f32 %v2046
      %v2052 = vsel %vm2051, %v2046, %v2050
      %v2053 = vmul.f32 %v2024, %v2052
      %v2054 = vmul.f32 %v2027, %v2052
      %v2055 = vmul.f32 %v2030, %v2052
      %v2056 = vmul.f32 %v2033, %v2052
      %v2057 = vmul.f32 %v2036, %v2052
      %v2058 = vmul.f32 %v2039, %v2052
      %v2059 = vmul.f32 %v2042, %v2052
      %v2060 = vmul.f32 %v2045, %v2052
      %v2061 = vsub.f32 %v2004, %v2053
      %v2062 = vsub.f32 %v2005, %v2054
      %v2063 = vsub.f32 %v2006, %v2055
      %v2064 = vsub.f32 %v2007, %v2056
      %v2065 = vsub.f32 %v2008, %v2057
      %v2066 = vsub.f32 %v2009, %v2058
      %v2067 = vsub.f32 %v2010, %v2059
      %v2068 = vsub.f32 %v2011, %v2060
      %v2069 = vmul.f32 %v2061, %v2061
      %v2070 = vmul.f32 %v2062, %v2062
      %v2071 = vmul.f32 %v2063, %v2063
      %v2072 = vmul.f32 %v2064, %v2064
      %v2073 = vmul.f32 %v2065, %v2065
      %v2074 = vmul.f32 %v2066, %v2066
      %v2075 = vmul.f32 %v2067, %v2067
      %v2076 = vmul.f32 %v2068, %v2068
      %v2077 = vsel %vm804, %v2069, 0.0
      %2078 = vadd.xlane.f32.xlu0 %v2077
      %v2079 = vpop.xlane.xlu0 %2078
      %v2080 = vsel %vm804, %v2070, 0.0
      %2081 = vadd.xlane.f32.xlu0 %v2080
      %v2082 = vpop.xlane.xlu0 %2081
      %v2083 = vsel %vm804, %v2071, 0.0
      %2084 = vadd.xlane.f32.xlu0 %v2083
      %v2085 = vpop.xlane.xlu0 %2084
      %v2086 = vsel %vm804, %v2072, 0.0
      %2087 = vadd.xlane.f32.xlu0 %v2086
      %v2088 = vpop.xlane.xlu0 %2087
      %v2089 = vsel %vm804, %v2073, 0.0
      %2090 = vadd.xlane.f32.xlu0 %v2089
      %v2091 = vpop.xlane.xlu0 %2090
      %v2092 = vsel %vm804, %v2074, 0.0
      %2093 = vadd.xlane.f32.xlu0 %v2092
      %v2094 = vpop.xlane.xlu0 %2093
      %v2095 = vsel %vm804, %v2075, 0.0
      %2096 = vadd.xlane.f32.xlu0 %v2095
      %v2097 = vpop.xlane.xlu0 %2096
      %v2098 = vsel %vm804, %v2076, 0.0
      %2099 = vadd.xlane.f32.xlu0 %v2098
      %v2100 = vpop.xlane.xlu0 %2099
      %v2101 = vmul.f32 %v2079, %v2052
      %v2102 = vmul.f32 %v2082, %v2052
      %v2103 = vmul.f32 %v2085, %v2052
      %v2104 = vmul.f32 %v2088, %v2052
      %v2105 = vmul.f32 %v2091, %v2052
      %v2106 = vmul.f32 %v2094, %v2052
      %v2107 = vmul.f32 %v2097, %v2052
      %v2108 = vmul.f32 %v2100, %v2052
      %v2109 = vadd.f32 %v2101, 1e-05
      %v2110 = vadd.f32 %v2102, 1e-05
      %v2111 = vadd.f32 %v2103, 1e-05
      %v2112 = vadd.f32 %v2104, 1e-05
      %v2113 = vadd.f32 %v2105, 1e-05
      %v2114 = vadd.f32 %v2106, 1e-05
      %v2115 = vadd.f32 %v2107, 1e-05
      %v2116 = vadd.f32 %v2108, 1e-05
      %v2117 = vrsqrt.pop %v2109
      %v2118 = vmul.f32 %v2117, %v2109
      %v2119 = vmul.f32 %v2118, %v2117
      %v2120 = vmul.f32 0.5, %v2119
      %v2121 = vsub.f32 1.5, %v2120
      %v2122 = vmul.f32 %v2117, %v2121
      %vm2123 = vweird.f32 %v2109
      %vm2124 = vweird.f32 %v2117
      %vm2125 = vmor %vm2123, %vm2124
      %v2126 = vsel %vm2125, %v2117, %v2122
      %v2127 = vrsqrt.pop %v2110
      %v2128 = vmul.f32 %v2127, %v2110
      %v2129 = vmul.f32 %v2128, %v2127
      %v2130 = vmul.f32 0.5, %v2129
      %v2131 = vsub.f32 1.5, %v2130
      %v2132 = vmul.f32 %v2127, %v2131
      %vm2133 = vweird.f32 %v2110
      %vm2134 = vweird.f32 %v2127
      %vm2135 = vmor %vm2133, %vm2134
      %v2136 = vsel %vm2135, %v2127, %v2132
      %v2137 = vrsqrt.pop %v2111
      %v2138 = vmul.f32 %v2137, %v2111
      %v2139 = vmul.f32 %v2138, %v2137
      %v2140 = vmul.f32 0.5, %v2139
      %v2141 = vsub.f32 1.5, %v2140
      %v2142 = vmul.f32 %v2137, %v2141
      %vm2143 = vweird.f32 %v2111
      %vm2144 = vweird.f32 %v2137
      %vm2145 = vmor %vm2143, %vm2144
      %v2146 = vsel %vm2145, %v2137, %v2142
      %v2147 = vrsqrt.pop %v2112
      %v2148 = vmul.f32 %v2147, %v2112
      %v2149 = vmul.f32 %v2148, %v2147
      %v2150 = vmul.f32 0.5, %v2149
      %v2151 = vsub.f32 1.5, %v2150
      %v2152 = vmul.f32 %v2147, %v2151
      %vm2153 = vweird.f32 %v2112
      %vm2154 = vweird.f32 %v2147
      %vm2155 = vmor %vm2153, %vm2154
      %v2156 = vsel %vm2155, %v2147, %v2152
      %v2157 = vrsqrt.pop %v2113
      %v2158 = vmul.f32 %v2157, %v2113
      %v2159 = vmul.f32 %v2158, %v2157
      %v2160 = vmul.f32 0.5, %v2159
      %v2161 = vsub.f32 1.5, %v2160
      %v2162 = vmul.f32 %v2157, %v2161
      %vm2163 = vweird.f32 %v2113
      %vm2164 = vweird.f32 %v2157
      %vm2165 = vmor %vm2163, %vm2164
      %v2166 = vsel %vm2165, %v2157, %v2162
      %v2167 = vrsqrt.pop %v2114
      %v2168 = vmul.f32 %v2167, %v2114
      %v2169 = vmul.f32 %v2168, %v2167
      %v2170 = vmul.f32 0.5, %v2169
      %v2171 = vsub.f32 1.5, %v2170
      %v2172 = vmul.f32 %v2167, %v2171
      %vm2173 = vweird.f32 %v2114
      %vm2174 = vweird.f32 %v2167
      %vm2175 = vmor %vm2173, %vm2174
      %v2176 = vsel %vm2175, %v2167, %v2172
      %v2177 = vrsqrt.pop %v2115
      %v2178 = vmul.f32 %v2177, %v2115
      %v2179 = vmul.f32 %v2178, %v2177
      %v2180 = vmul.f32 0.5, %v2179
      %v2181 = vsub.f32 1.5, %v2180
      %v2182 = vmul.f32 %v2177, %v2181
      %vm2183 = vweird.f32 %v2115
      %vm2184 = vweird.f32 %v2177
      %vm2185 = vmor %vm2183, %vm2184
      %v2186 = vsel %vm2185, %v2177, %v2182
      %v2187 = vrsqrt.pop %v2116
      %v2188 = vmul.f32 %v2187, %v2116
      %v2189 = vmul.f32 %v2188, %v2187
      %v2190 = vmul.f32 0.5, %v2189
      %v2191 = vsub.f32 1.5, %v2190
      %v2192 = vmul.f32 %v2187, %v2191
      %vm2193 = vweird.f32 %v2116
      %vm2194 = vweird.f32 %v2187
      %vm2195 = vmor %vm2193, %vm2194
      %v2196 = vsel %vm2195, %v2187, %v2192
      %v2197 = vmul.f32 %v2061, %v2126
      %v2198 = vmul.f32 %v2062, %v2136
      %v2199 = vmul.f32 %v2063, %v2146
      %v2200 = vmul.f32 %v2064, %v2156
      %v2201 = vmul.f32 %v2065, %v2166
      %v2202 = vmul.f32 %v2066, %v2176
      %v2203 = vmul.f32 %v2067, %v2186
      %v2204 = vmul.f32 %v2068, %v2196
      %v2206 = vperm.slane %v2020, 0
      %v2208 = vmul.f32 %v2197, %v2206
      %v2209 = vmul.f32 %v2198, %v2206
      %v2210 = vmul.f32 %v2199, %v2206
      %v2211 = vmul.f32 %v2200, %v2206
      %v2212 = vmul.f32 %v2201, %v2206
      %v2213 = vmul.f32 %v2202, %v2206
      %v2214 = vmul.f32 %v2203, %v2206
      %v2215 = vmul.f32 %v2204, %v2206
      %v2217 = vperm.slane %v2021, 0
      %v2219 = vadd.f32 %v2208, %v2217
      %v2220 = vadd.f32 %v2209, %v2217
      %v2221 = vadd.f32 %v2210, %v2217
      %v2222 = vadd.f32 %v2211, %v2217
      %v2223 = vadd.f32 %v2212, %v2217
      %v2224 = vadd.f32 %v2213, %v2217
      %v2225 = vadd.f32 %v2214, %v2217
      %v2226 = vadd.f32 %v2215, %v2217
      %2227 = vst.msk [vmem:[%s338] sm:$0xff] %vm804, %v2219
      %2228 = vst.msk [vmem:[%s338 + $0x8] sm:$0xff] %vm804, %v2220
      %2229 = vst.msk [vmem:[%s338 + $0x10] sm:$0xff] %vm804, %v2221
      %2230 = vst.msk [vmem:[%s338 + $0x18] sm:$0xff] %vm804, %v2222
      %2231 = vst.msk [vmem:[%s338 + $0x20] sm:$0xff] %vm804, %v2223
      %2232 = vst.msk [vmem:[%s338 + $0x28] sm:$0xff] %vm804, %v2224
      %2233 = vst.msk [vmem:[%s338 + $0x30] sm:$0xff] %vm804, %v2225
      %2234 = vst.msk [vmem:[%s338 + $0x38] sm:$0xff] %vm804, %v2226
      %p2235 = scmp.lt.s32.totalorder %s20, 1
      %s2236 = scalar_select %p2235, %s20, 1
      %s2237 = smul.addr %s2236, 8
      %s2238 = smul.addr %s2237, 8
      %s2239 = scalar_lea.vmem %s7, %s2238
      %p2240 = scmp.lt.s32.totalorder %s20, 1
      %s2241 = scalar_select %p2240, %s20, 1
      %s2242 = smul.addr %s2241, 8
      %s2243 = smul.addr %s2242, 8
      %s2244 = scalar_lea.vmem %s8, %s2243
      // Predicated region
      $region49: #{last_model_forward.7} parent=47 // pred_check
        %p2245 = pneg %p195
      $region50: #{last_model_forward.7} parent=47 // pred_check_branch
        %2247 = sbr.rel (%p2245) target = $region52
      $region51: #{last_model_forward.7} parent=47 // pred_region
        _
      $region52: #{last_model_forward.7} parent=47 // pred_fallthru
        _
      // Predicated region
      $region53: #{last_model_forward.7} parent=47 // pred_check
        %p2248 = pneg %p221
      $region54: #{last_model_forward.7} parent=47 // pred_check_branch
        %2250 = sbr.rel (%p2248) target = $region56
      $region55: #{last_model_forward.7} parent=47 // pred_region
        _
      $region56: #{last_model_forward.7} parent=47 // pred_fallthru
        _
    $region48: #{last_model_forward.7} parent=5 // pred_fallthru
      _
    %p2251 = scmp.le.s32.totalorder 2, %s15
    // Predicated region
    $region57: #{last_model_forward.7} parent=5 // pred_check
      %p2252 = pneg %p2251
    $region58: #{last_model_forward.7} parent=5 // pred_check_branch
      %2254 = sbr.rel (%p2252) target = $region60
    $region59: #{last_model_forward.7} parent=5 // pred_region
      %s2255 = ssub.s32 %s15, 2
      // Predicated region
      $region61: #{last_model_forward.7} parent=59 // pred_check
        %p2256 = pneg %p201
      $region62: #{last_model_forward.7} parent=59 // pred_check_branch
        %2258 = sbr.rel (%p2256) target = $region64
      $region63: #{last_model_forward.7} parent=59 // pred_region
        %p2259 = scmp.lt.s32.totalorder %s21, 1
        %s2260 = scalar_select %p2259, %s21, 1
        %s2261 = smul.addr %s2260, 8
        %s2262 = smul.addr %s2261, 8
        %s2263 = scalar_lea.vmem %s7, %s2262
      $region64: #{last_model_forward.7} parent=59 // pred_fallthru
        _
      // Predicated region
      $region65: #{last_model_forward.7} parent=59 // pred_check
        %p2264 = pneg %p227
      $region66: #{last_model_forward.7} parent=59 // pred_check_branch
        %2266 = sbr.rel (%p2264) target = $region68
      $region67: #{last_model_forward.7} parent=59 // pred_region
        %p2267 = scmp.lt.s32.totalorder %s21, 1
        %s2268 = scalar_select %p2267, %s21, 1
        %s2269 = smul.addr %s2268, 8
        %s2270 = smul.addr %s2269, 8
        %s2271 = scalar_lea.vmem %s8, %s2270
      $region68: #{last_model_forward.7} parent=59 // pred_fallthru
        _
    $region60: #{last_model_forward.7} parent=5 // pred_fallthru
      _
  $region6: #{last_model_forward.7} parent=0 // loop_footer
    %s19 = sadd.s32 1, %s15
  $region7: #{last_model_forward.7} parent=0 // loop_footer_branch
    %14 = sbr.rel target = $region3
  $region8: #{last_model_forward.7} parent=0 // loop_exit
    _

// kernel: last_model_forward.9
$region0: #{last_model_forward.9}
  #allocation0 [shape = 'u32[]', space=smem, size = 0x4, offset = 0x4, fixed_abs, tag = 'smem constant byte address 0x4 - core index']
  #allocation1 [shape = 'u32[72,128]{1,0:T(1,128)}', space=vmem, size = 0x9000, scoped, tag = 'internal scratch']
  #allocation2 [shape = 'bf16[10,10,32]{2,1,0:T(8,128)(2,1)}', space=vmem, size = 0xa000, scoped, tag = 'scratch operand']
  %s0 = inlined_call_operand.vmem [shape: f32[2,8,8,32], index: 0, kind: input, shape index: {}]
  %s1 = inlined_call_operand.vmem [shape: f32[2,8,8,32], index: 1, kind: input, shape index: {}]
  %s2 = inlined_call_operand.vmem [shape: bf16[288,32], index: 2, kind: input, shape index: {}]
  %s3 = inlined_call_operand.vmem [shape: bf16[288,32], index: 3, kind: input, shape index: {}]
  %s4 = inlined_call_operand.vmem [shape: f32[1,32], index: 4, kind: input, shape index: {}]
  %s5 = inlined_call_operand.hbm [shape: f32[2,8,8,32], index: 5, kind: output, shape index: {}]
  %s6 = sld [smem:[#allocation0]]
  $region53: #{last_model_forward.9} parent=0
    _
  %s8 = ssub.s32 1, %s6
  %s9 = scalar_select 0, %s8, %s6
  $region1: #{last_model_forward.9} parent=0
    #allocation3 [shape = 'u8[65536]{0}', space=vmem, size = 0x10000, scoped, tag = 'output window, operand 0']
    #allocation4 [shape = 's32[2]{0}', space=sflag, size = 0x8, scoped, tag = 'scoped memory for last_model_forward.9']
    %10 = vsyncpa [#allocation4], 0
    %s11 = scalar_lea.sflag [#allocation4], 1
    %12 = vsyncpa %s11, 0
    loop: start=0, step=1, limit=4
    $region2: #{last_model_forward.9} parent=1 // loop_pre_header
      _
    $region3: #{last_model_forward.9} parent=1 // loop_header
      %s14 = sphi 0, %s18
      %p15 = scmp.ge.s32.totalorder %s14, 4
      %s24 = sphi 0, %s26
      %s27 = sphi 0, %s24
      %s28 = sphi 0, %s27
      %s44 = sphi 0, %s28
      %s50 = sphi 0, %s52
      %s53 = sphi 0, %s50
      %s54 = sphi 0, %s53
      %s70 = sphi 0, %s54
      %s74 = sphi 0, %s74
      %s76 = sphi 0, %s74
      %s77 = sphi 0, %s76
      %s91 = sphi 0, %s77
      %s95 = sphi 0, %s95
      %s97 = sphi 0, %s95
      %s98 = sphi 0, %s97
      %s112 = sphi 0, %s98
      %s116 = sphi 0, %s116
      %s118 = sphi 0, %s116
      %s119 = sphi 0, %s118
      %s133 = sphi 0, %s119
      %s139 = sphi 0, %s141
      %s142 = sphi 0, %s139
      %s143 = sphi 0, %s142
      %s159 = sphi 0, %s143
    $region4: #{last_model_forward.9} parent=1 // loop_header_branch
      %17 = sbr.rel (%p15) target = $region8
    $region5: #{last_model_forward.9} parent=1 // loop_body
      %s19 = ssub.s32 %s14, 1
      %s20 = ssub.s32 %s14, 2
      %s21 = sadd.s32 %s14, 1
      %s22 = ssub.s32 %s14, %s21
      %p23 = scmp.eq.s32.totalorder %s22, 0
      %s25 = sadd.s32 %s24, 1
      %s26 = scalar_select %p23, %s24, %s25
      %p29 = pneg %p23
      %p30 = scmp.eq.s32.totalorder %s14, 1
      %p31 = por %p29, %p30
      %p32 = scmp.ne.s32.totalorder %s24, %s27
      %p33 = scmp.eq.s32.totalorder %s14, 0
      %p34 = por %p32, %p33
      %p35 = scmp.ne.s32.totalorder %s24, %s27
      %p36 = scmp.eq.s32.totalorder %s19, 1
      %p37 = por %p35, %p36
      %p38 = scmp.ne.s32.totalorder %s27, %s28
      %p39 = scmp.eq.s32.totalorder %s19, 0
      %p40 = por %p38, %p39
      %p41 = scmp.ne.s32.totalorder %s27, %s28
      %p42 = scmp.eq.s32.totalorder %s20, 1
      %p43 = por %p41, %p42
      %p45 = scmp.ne.s32.totalorder %s28, %s44
      %p46 = scmp.eq.s32.totalorder %s20, 0
      %p47 = por %p45, %p46
      %s48 = ssub.s32 %s14, %s21
      %p49 = scmp.eq.s32.totalorder %s48, 0
      %s51 = sadd.s32 %s50, 1
      %s52 = scalar_select %p49, %s50, %s51
      %p55 = pneg %p49
      %p56 = scmp.eq.s32.totalorder %s14, 1
      %p57 = por %p55, %p56
      %p58 = scmp.ne.s32.totalorder %s50, %s53
      %p59 = scmp.eq.s32.totalorder %s14, 0
      %p60 = por %p58, %p59
      %p61 = scmp.ne.s32.totalorder %s50, %s53
      %p62 = scmp.eq.s32.totalorder %s19, 1
      %p63 = por %p61, %p62
      %p64 = scmp.ne.s32.totalorder %s53, %s54
      %p65 = scmp.eq.s32.totalorder %s19, 0
      %p66 = por %p64, %p65
      %p67 = scmp.ne.s32.totalorder %s53, %s54
      %p68 = scmp.eq.s32.totalorder %s20, 1
      %p69 = por %p67, %p68
      %p71 = scmp.ne.s32.totalorder %s54, %s70
      %p72 = scmp.eq.s32.totalorder %s20, 0
      %p73 = por %p71, %p72
      %s75 = sadd.s32 %s74, 1
      %p78 = scmp.eq.s32.totalorder %s14, 1
      %p79 = scmp.ne.s32.totalorder %s74, %s76
      %p80 = scmp.eq.s32.totalorder %s14, 0
      %p81 = por %p79, %p80
      %p82 = scmp.ne.s32.totalorder %s74, %s76
      %p83 = scmp.eq.s32.totalorder %s19, 1
      %p84 = por %p82, %p83
      %p85 = scmp.ne.s32.totalorder %s76, %s77
      %p86 = scmp.eq.s32.totalorder %s19, 0
      %p87 = por %p85, %p86
      %p88 = scmp.ne.s32.totalorder %s76, %s77
      %p89 = scmp.eq.s32.totalorder %s20, 1
      %p90 = por %p88, %p89
      %p92 = scmp.ne.s32.totalorder %s77, %s91
      %p93 = scmp.eq.s32.totalorder %s20, 0
      %p94 = por %p92, %p93
      %s96 = sadd.s32 %s95, 1
      %p99 = scmp.eq.s32.totalorder %s14, 1
      %p100 = scmp.ne.s32.totalorder %s95, %s97
      %p101 = scmp.eq.s32.totalorder %s14, 0
      %p102 = por %p100, %p101
      %p103 = scmp.ne.s32.totalorder %s95, %s97
      %p104 = scmp.eq.s32.totalorder %s19, 1
      %p105 = por %p103, %p104
      %p106 = scmp.ne.s32.totalorder %s97, %s98
      %p107 = scmp.eq.s32.totalorder %s19, 0
      %p108 = por %p106, %p107
      %p109 = scmp.ne.s32.totalorder %s97, %s98
      %p110 = scmp.eq.s32.totalorder %s20, 1
      %p111 = por %p109, %p110
      %p113 = scmp.ne.s32.totalorder %s98, %s112
      %p114 = scmp.eq.s32.totalorder %s20, 0
      %p115 = por %p113, %p114
      %s117 = sadd.s32 %s116, 1
      %p120 = scmp.eq.s32.totalorder %s14, 1
      %p121 = scmp.ne.s32.totalorder %s116, %s118
      %p122 = scmp.eq.s32.totalorder %s14, 0
      %p123 = por %p121, %p122
      %p124 = scmp.ne.s32.totalorder %s116, %s118
      %p125 = scmp.eq.s32.totalorder %s19, 1
      %p126 = por %p124, %p125
      %p127 = scmp.ne.s32.totalorder %s118, %s119
      %p128 = scmp.eq.s32.totalorder %s19, 0
      %p129 = por %p127, %p128
      %p130 = scmp.ne.s32.totalorder %s118, %s119
      %p131 = scmp.eq.s32.totalorder %s20, 1
      %p132 = por %p130, %p131
      %p134 = scmp.ne.s32.totalorder %s119, %s133
      %p135 = scmp.eq.s32.totalorder %s20, 0
      %p136 = por %p134, %p135
      %s137 = ssub.s32 %s14, %s21
      %p138 = scmp.eq.s32.totalorder %s137, 0
      %s140 = sadd.s32 %s139, 1
      %s141 = scalar_select %p138, %s139, %s140
      %p144 = pneg %p138
      %p145 = scmp.eq.s32.totalorder %s14, 1
      %p146 = por %p144, %p145
      %p147 = scmp.ne.s32.totalorder %s139, %s142
      %p148 = scmp.eq.s32.totalorder %s14, 0
      %p149 = por %p147, %p148
      %p150 = scmp.ne.s32.totalorder %s139, %s142
      %p151 = scmp.eq.s32.totalorder %s19, 1
      %p152 = por %p150, %p151
      %p153 = scmp.ne.s32.totalorder %s142, %s143
      %p154 = scmp.eq.s32.totalorder %s19, 0
      %p155 = por %p153, %p154
      %p156 = scmp.ne.s32.totalorder %s142, %s143
      %p157 = scmp.eq.s32.totalorder %s20, 1
      %p158 = por %p156, %p157
      %p160 = scmp.ne.s32.totalorder %s143, %s159
      %p161 = scmp.eq.s32.totalorder %s20, 0
      %p162 = por %p160, %p161
      %p163 = scmp.le.s32.totalorder 1, %s14
      %p164 = scmp.lt.s32.totalorder %s14, 3
      %p165 = pnand %p163, %p164
      %p166 = pneg %p165
      // Predicated region
      $region9: #{last_model_forward.9} parent=5 // pred_check
        _
      $region10: #{last_model_forward.9} parent=5 // pred_check_branch
        %168 = sbr.rel (%p165) target = $region12
      $region11: #{last_model_forward.9} parent=5 // pred_region
        %s169 = ssub.s32 %s14, 1
        // Predicated region
        $region13: #{last_model_forward.9} parent=11 // pred_check
          %p170 = pneg %p87
        $region14: #{last_model_forward.9} parent=11 // pred_check_branch
          %172 = sbr.rel (%p170) target = $region16
        $region15: #{last_model_forward.9} parent=11 // pred_region
          _
        $region16: #{last_model_forward.9} parent=11 // pred_fallthru
          _
        // Predicated region
        $region17: #{last_model_forward.9} parent=11 // pred_check
          %p173 = pneg %p108
        $region18: #{last_model_forward.9} parent=11 // pred_check_branch
          %175 = sbr.rel (%p173) target = $region20
        $region19: #{last_model_forward.9} parent=11 // pred_region
          _
        $region20: #{last_model_forward.9} parent=11 // pred_fallthru
          _
        // Predicated region
        $region21: #{last_model_forward.9} parent=11 // pred_check
          %p176 = pneg %p129
        $region22: #{last_model_forward.9} parent=11 // pred_check_branch
          %178 = sbr.rel (%p176) target = $region24
        $region23: #{last_model_forward.9} parent=11 // pred_region
          _
        $region24: #{last_model_forward.9} parent=11 // pred_fallthru
          _
      $region12: #{last_model_forward.9} parent=5 // pred_fallthru
        _
      %p179 = scmp.lt.s32.totalorder %s14, 2
      // Predicated region
      $region25: #{last_model_forward.9} parent=5 // pred_check
        %p180 = pneg %p179
      $region26: #{last_model_forward.9} parent=5 // pred_check_branch
        %182 = sbr.rel (%p180) target = $region28
      $region27: #{last_model_forward.9} parent=5 // pred_region
        // Predicated region
        $region29: #{last_model_forward.9} parent=27 // pred_check
          %p183 = pneg %p34
        $region30: #{last_model_forward.9} parent=27 // pred_check_branch
          %185 = sbr.rel (%p183) target = $region32
        $region31: #{last_model_forward.9} parent=27 // pred_region
          %p186 = scmp.lt.s32.totalorder %s14, 1
          %s187 = scalar_select %p186, %s14, 1
          %s188 = smul.addr %s187, 8
          %s189 = smul.addr %s188, 8
          %s190 = scalar_lea.vmem %s0, %s189
        $region32: #{last_model_forward.9} parent=27 // pred_fallthru
          _
        // Predicated region
        $region33: #{last_model_forward.9} parent=27 // pred_check
          %p191 = pneg %p60
        $region34: #{last_model_forward.9} parent=27 // pred_check_branch
          %193 = sbr.rel (%p191) target = $region36
        $region35: #{last_model_forward.9} parent=27 // pred_region
          %p194 = scmp.lt.s32.totalorder %s14, 1
          %s195 = scalar_select %p194, %s14, 1
          %s196 = smul.addr %s195, 8
          %s197 = smul.addr %s196, 8
          %s198 = scalar_lea.vmem %s1, %s197
        $region36: #{last_model_forward.9} parent=27 // pred_fallthru
          _
      $region28: #{last_model_forward.9} parent=5 // pred_fallthru
        _
      %p199 = scmp.le.s32.totalorder 1, %s14
      %p200 = scmp.lt.s32.totalorder %s14, 3
      %p201 = pnand %p199, %p200
      %p202 = pneg %p201
      // Predicated region
      $region37: #{last_model_forward.9} parent=5 // pred_check
        _
      $region38: #{last_model_forward.9} parent=5 // pred_check_branch
        %204 = sbr.rel (%p201) target = $region40
      $region39: #{last_model_forward.9} parent=5 // pred_region
        %s205 = ssub.s32 %s14, 1
        %p206 = scmp.lt.s32.totalorder %s19, 1
        %s207 = scalar_select %p206, %s19, 1
        %s208 = smul.addr %s207, 8
        %s209 = smul.addr %s208, 8
        %s210 = scalar_lea.vmem %s0, %s209
        %p211 = pneg %p40
        %p212 = pneg %p37
        %p213 = scmp.lt.s32.totalorder %s19, 1
        %s214 = scalar_select %p213, %s19, 1
        %s215 = smul.addr %s214, 8
        %s216 = smul.addr %s215, 8
        %s217 = scalar_lea.vmem %s1, %s216
        %p218 = pneg %p66
        %p219 = pneg %p63
        %p220 = pneg %p87
        %p221 = pneg %p84
        %p222 = pneg %p108
        %p223 = pneg %p105
        %p224 = pneg %p129
        %p225 = pneg %p126
        %p226 = pneg %p155
        %p227 = pneg %p152
        %s228 = sand.u32 %s142, 1
        %s229 = scalar_lea.sflag [#allocation4], %s228
        %s230 = sand.u32 %s142, 1
        %s231 = smul.addr %s230, 64
        %s232 = scalar_lea.vmem [#allocation3], %s231
        %p233 = scmp.lt.s32.totalorder %s19, 1
        %s234 = scalar_select %p233, %s19, 1
        %s235 = smul.addr %s234, 8
        %s236 = smul.addr %s235, 8
        %s237 = scalar_lea.vmem %s0, %s236
        %p238 = scmp.lt.s32.totalorder %s19, 1
        %s239 = scalar_select %p238, %s19, 1
        %s240 = smul.addr %s239, 8
        %s241 = smul.addr %s240, 8
        %s242 = scalar_lea.vmem %s1, %s241
        %vm244 = vcmask 257024
        %245 = vst.msk [vmem:[#allocation2] sm:$0xf] %vm244, 0
        %vm246 = vcmask 253952
        %247 = vst.msk [vmem:[#allocation2 + $0x4] sm:$0x1] %vm246, 0
        %248 = vst.msk [vmem:[#allocation2 + $0x8] sm:$0xf] %vm244, 0
        %249 = vst.msk [vmem:[#allocation2 + $0xc] sm:$0x1] %vm246, 0
        %250 = vst.msk [vmem:[#allocation2 + $0x10] sm:$0xf] %vm244, 0
        %251 = vst.msk [vmem:[#allocation2 + $0x14] sm:$0x1] %vm246, 0
        %252 = vst.msk [vmem:[#allocation2 + $0x18] sm:$0xf] %vm244, 0
        %253 = vst.msk [vmem:[#allocation2 + $0x1c] sm:$0x1] %vm246, 0
        %254 = vst.msk [vmem:[#allocation2 + $0x20] sm:$0xf] %vm244, 0
        %255 = vst.msk [vmem:[#allocation2 + $0x24] sm:$0x1] %vm246, 0
        %256 = vst.msk [vmem:[#allocation2 + $0x28] sm:$0xf] %vm244, 0
        %257 = vst.msk [vmem:[#allocation2 + $0x2c] sm:$0x1] %vm246, 0
        %258 = vst.msk [vmem:[#allocation2 + $0x30] sm:$0xf] %vm244, 0
        %259 = vst.msk [vmem:[#allocation2 + $0x34] sm:$0x1] %vm246, 0
        %260 = vst.msk [vmem:[#allocation2 + $0x38] sm:$0xf] %vm244, 0
        %261 = vst.msk [vmem:[#allocation2 + $0x3c] sm:$0x1] %vm246, 0
        %262 = vst.msk [vmem:[#allocation2 + $0x40] sm:$0xf] %vm244, 0
        %263 = vst.msk [vmem:[#allocation2 + $0x44] sm:$0x1] %vm246, 0
        %264 = vst.msk [vmem:[#allocation2 + $0x48] sm:$0xf] %vm244, 0
        %265 = vst.msk [vmem:[#allocation2 + $0x4c] sm:$0x1] %vm246, 0
        %v266 = vld [vmem:[%s237] sm:$0xff]
        %v267 = vld [vmem:[%s237 + $0x8] sm:$0xff]
        %v268 = vld [vmem:[%s237 + $0x10] sm:$0xff]
        %v269 = vld [vmem:[%s237 + $0x18] sm:$0xff]
        %v270 = vld [vmem:[%s237 + $0x20] sm:$0xff]
        %v271 = vld [vmem:[%s237 + $0x28] sm:$0xff]
        %v272 = vld [vmem:[%s237 + $0x30] sm:$0xff]
        %v273 = vld [vmem:[%s237 + $0x38] sm:$0xff]
        %v274 = vpack.c.bf16 %v266, %v266
        %v275 = vpack.c.bf16 %v267, %v267
        %v276 = vpack.c.bf16 %v268, %v268
        %v277 = vpack.c.bf16 %v269, %v269
        %v278 = vpack.c.bf16 %v270, %v270
        %v279 = vpack.c.bf16 %v271, %v271
        %v280 = vpack.c.bf16 %v272, %v272
        %v281 = vpack.c.bf16 %v273, %v273
        %v283 = vshrl.u32 %v274, 16
        %v285 = vrot.slane %v283, 7
        %v286 = vshll.u32 %v274, 16
        %v288 = vor.u32 %v285, %v286
        %v289 = vrot.slane %v285, 4
        %v291 = vshrl.u32 %v275, 16
        %v293 = vrot.slane %v291, 7
        %v294 = vshll.u32 %v275, 16
        %v296 = vor.u32 %v293, %v294
        %v297 = vrot.slane %v293, 4
        %v299 = vshrl.u32 %v276, 16
        %v301 = vrot.slane %v299, 7
        %v302 = vshll.u32 %v276, 16
        %v304 = vor.u32 %v301, %v302
        %v305 = vrot.slane %v301, 4
        %v307 = vshrl.u32 %v277, 16
        %v309 = vrot.slane %v307, 7
        %v310 = vshll.u32 %v277, 16
        %v312 = vor.u32 %v309, %v310
        %v313 = vrot.slane %v309, 4
        %v315 = vshrl.u32 %v278, 16
        %v317 = vrot.slane %v315, 7
        %v318 = vshll.u32 %v278, 16
        %v320 = vor.u32 %v317, %v318
        %v321 = vrot.slane %v317, 4
        %v323 = vshrl.u32 %v279, 16
        %v325 = vrot.slane %v323, 7
        %v326 = vshll.u32 %v279, 16
        %v328 = vor.u32 %v325, %v326
        %v329 = vrot.slane %v325, 4
        %v331 = vshrl.u32 %v280, 16
        %v333 = vrot.slane %v331, 7
        %v334 = vshll.u32 %v280, 16
        %v336 = vor.u32 %v333, %v334
        %v337 = vrot.slane %v333, 4
        %v339 = vshrl.u32 %v281, 16
        %v341 = vrot.slane %v339, 7
        %v342 = vshll.u32 %v281, 16
        %v344 = vor.u32 %v341, %v342
        %v345 = vrot.slane %v341, 4
        %s362 = scalar_lea.vmem [#allocation2], 8
        %vm363 = vcmask 257024
        %vm364 = vsmask.f32 7938
        %vm365 = vmand %vm363, %vm364
        %v366 = vld [vmem:[%s362] sm:$0xf]
        %v367 = vsel %vm365, %v288, %v366
        %368 = vst [vmem:[%s362] sm:$0xf] %v367
        %vm369 = vcmask 253952
        %vm370 = vsmask.f32 256
        %vm371 = vmand %vm369, %vm370
        %v372 = vld [vmem:[%s362 + $0x4] sm:$0x1]
        %v373 = vsel %vm371, %v289, %v372
        %374 = vst [vmem:[%s362 + $0x4] sm:$0x1] %v373
        %v375 = vld [vmem:[%s362 + $0x8] sm:$0xf]
        %v376 = vsel %vm365, %v296, %v375
        %377 = vst [vmem:[%s362 + $0x8] sm:$0xf] %v376
        %v378 = vld [vmem:[%s362 + $0xc] sm:$0x1]
        %v379 = vsel %vm371, %v297, %v378
        %380 = vst [vmem:[%s362 + $0xc] sm:$0x1] %v379
        %v381 = vld [vmem:[%s362 + $0x10] sm:$0xf]
        %v382 = vsel %vm365, %v304, %v381
        %383 = vst [vmem:[%s362 + $0x10] sm:$0xf] %v382
        %v384 = vld [vmem:[%s362 + $0x14] sm:$0x1]
        %v385 = vsel %vm371, %v305, %v384
        %386 = vst [vmem:[%s362 + $0x14] sm:$0x1] %v385
        %v387 = vld [vmem:[%s362 + $0x18] sm:$0xf]
        %v388 = vsel %vm365, %v312, %v387
        %389 = vst [vmem:[%s362 + $0x18] sm:$0xf] %v388
        %v390 = vld [vmem:[%s362 + $0x1c] sm:$0x1]
        %v391 = vsel %vm371, %v313, %v390
        %392 = vst [vmem:[%s362 + $0x1c] sm:$0x1] %v391
        %v393 = vld [vmem:[%s362 + $0x20] sm:$0xf]
        %v394 = vsel %vm365, %v320, %v393
        %395 = vst [vmem:[%s362 + $0x20] sm:$0xf] %v394
        %v396 = vld [vmem:[%s362 + $0x24] sm:$0x1]
        %v397 = vsel %vm371, %v321, %v396
        %398 = vst [vmem:[%s362 + $0x24] sm:$0x1] %v397
        %v399 = vld [vmem:[%s362 + $0x28] sm:$0xf]
        %v400 = vsel %vm365, %v328, %v399
        %401 = vst [vmem:[%s362 + $0x28] sm:$0xf] %v400
        %v402 = vld [vmem:[%s362 + $0x2c] sm:$0x1]
        %v403 = vsel %vm371, %v329, %v402
        %404 = vst [vmem:[%s362 + $0x2c] sm:$0x1] %v403
        %v405 = vld [vmem:[%s362 + $0x30] sm:$0xf]
        %v406 = vsel %vm365, %v336, %v405
        %407 = vst [vmem:[%s362 + $0x30] sm:$0xf] %v406
        %v408 = vld [vmem:[%s362 + $0x34] sm:$0x1]
        %v409 = vsel %vm371, %v337, %v408
        %410 = vst [vmem:[%s362 + $0x34] sm:$0x1] %v409
        %v411 = vld [vmem:[%s362 + $0x38] sm:$0xf]
        %v412 = vsel %vm365, %v344, %v411
        %413 = vst [vmem:[%s362 + $0x38] sm:$0xf] %v412
        %v414 = vld [vmem:[%s362 + $0x3c] sm:$0x1]
        %v415 = vsel %vm371, %v345, %v414
        %416 = vst [vmem:[%s362 + $0x3c] sm:$0x1] %v415
        %v417 = vld [vmem:[%s2] sm:$0xf]
        %v418 = vld [vmem:[%s2 + $0x4] sm:$0xf]
        %v419 = vld [vmem:[%s2 + $0x8] sm:$0xf]
        %v420 = vld [vmem:[%s2 + $0xc] sm:$0xf]
        %v421 = vld [vmem:[%s2 + $0x10] sm:$0xf]
        %v422 = vld [vmem:[%s2 + $0x14] sm:$0xf]
        %v423 = vld [vmem:[%s2 + $0x18] sm:$0xf]
        %v424 = vld [vmem:[%s2 + $0x1c] sm:$0xf]
        %v425 = vld [vmem:[%s2 + $0x20] sm:$0xf]
        %v426 = vld [vmem:[%s2 + $0x24] sm:$0xf]
        %v427 = vld [vmem:[%s2 + $0x28] sm:$0xf]
        %v428 = vld [vmem:[%s2 + $0x2c] sm:$0xf]
        %v429 = vld [vmem:[%s2 + $0x30] sm:$0xf]
        %v430 = vld [vmem:[%s2 + $0x34] sm:$0xf]
        %v431 = vld [vmem:[%s2 + $0x38] sm:$0xf]
        %v432 = vld [vmem:[%s2 + $0x3c] sm:$0xf]
        %v433 = vld [vmem:[%s2 + $0x40] sm:$0xf]
        %v434 = vld [vmem:[%s2 + $0x44] sm:$0xf]
        %v435 = vld [vmem:[%s2 + $0x48] sm:$0xf]
        %v436 = vld [vmem:[%s2 + $0x4c] sm:$0xf]
        %v437 = vld [vmem:[%s2 + $0x50] sm:$0xf]
        %v438 = vld [vmem:[%s2 + $0x54] sm:$0xf]
        %v439 = vld [vmem:[%s2 + $0x58] sm:$0xf]
        %v440 = vld [vmem:[%s2 + $0x5c] sm:$0xf]
        %v441 = vld [vmem:[%s2 + $0x60] sm:$0xf]
        %v442 = vld [vmem:[%s2 + $0x64] sm:$0xf]
        %v443 = vld [vmem:[%s2 + $0x68] sm:$0xf]
        %v444 = vld [vmem:[%s2 + $0x6c] sm:$0xf]
        %v445 = vld [vmem:[%s2 + $0x70] sm:$0xf]
        %v446 = vld [vmem:[%s2 + $0x74] sm:$0xf]
        %v447 = vld [vmem:[%s2 + $0x78] sm:$0xf]
        %v448 = vld [vmem:[%s2 + $0x7c] sm:$0xf]
        %v449 = vld [vmem:[%s2 + $0x80] sm:$0xf]
        %v450 = vld [vmem:[%s2 + $0x84] sm:$0xf]
        %v451 = vld [vmem:[%s2 + $0x88] sm:$0xf]
        %v452 = vld [vmem:[%s2 + $0x8c] sm:$0xf]
        %v453 = vld [vmem:[#allocation2] sm:$0xf]
        %v454 = vld [vmem:[#allocation2 + $0x4] sm:$0x1]
        %v455 = vld [vmem:[#allocation2 + $0x8] sm:$0xf]
        %v456 = vld [vmem:[#allocation2 + $0xc] sm:$0x1]
        %v457 = vld [vmem:[#allocation2 + $0x10] sm:$0xf]
        %v458 = vld [vmem:[#allocation2 + $0x14] sm:$0x1]
        %v459 = vld [vmem:[#allocation2 + $0x18] sm:$0xf]
        %v460 = vld [vmem:[#allocation2 + $0x1c] sm:$0x1]
        %v461 = vld [vmem:[#allocation2 + $0x20] sm:$0xf]
        %v462 = vld [vmem:[#allocation2 + $0x24] sm:$0x1]
        %v463 = vld [vmem:[#allocation2 + $0x28] sm:$0xf]
        %v464 = vld [vmem:[#allocation2 + $0x2c] sm:$0x1]
        %v465 = vld [vmem:[#allocation2 + $0x30] sm:$0xf]
        %v466 = vld [vmem:[#allocation2 + $0x34] sm:$0x1]
        %v467 = vld [vmem:[#allocation2 + $0x38] sm:$0xf]
        %v468 = vld [vmem:[#allocation2 + $0x3c] sm:$0x1]
        %v469 = vld [vmem:[#allocation2 + $0x40] sm:$0xf]
        %v470 = vld [vmem:[#allocation2 + $0x44] sm:$0x1]
        %v471 = vld [vmem:[#allocation2 + $0x48] sm:$0xf]
        %v472 = vld [vmem:[#allocation2 + $0x4c] sm:$0x1]
        %v489 = vunpack.c.l.b16 %v453
        %v490 = vunpack.c.l.b16 %v454
        %v491 = vunpack.c.l.b16 %v455
        %v492 = vunpack.c.l.b16 %v456
        %v493 = vunpack.c.l.b16 %v457
        %v494 = vunpack.c.l.b16 %v458
        %v495 = vunpack.c.l.b16 %v459
        %v496 = vunpack.c.l.b16 %v460
        %v497 = vunpack.c.l.b16 %v461
        %v498 = vunpack.c.l.b16 %v462
        %v499 = vunpack.c.l.b16 %v463
        %v500 = vunpack.c.l.b16 %v464
        %v501 = vunpack.c.l.b16 %v465
        %v502 = vunpack.c.l.b16 %v466
        %v503 = vunpack.c.l.b16 %v467
        %v504 = vunpack.c.l.b16 %v468
        %v505 = vpack.c.b16 %v490, %v489
        %v506 = vpack.c.b16 %v492, %v491
        %v507 = vpack.c.b16 %v494, %v493
        %v508 = vpack.c.b16 %v496, %v495
        %v509 = vpack.c.b16 %v498, %v497
        %v510 = vpack.c.b16 %v500, %v499
        %v511 = vpack.c.b16 %v502, %v501
        %v512 = vpack.c.b16 %v504, %v503
        %v514 = vshrl.u32 %v505, 16
        %v516 = vshll.u32 %v505, 16
        %v518 = vrot.slane %v516, 1
        %v519 = vor.u32 %v514, %v518
        %v521 = vshrl.u32 %v506, 16
        %v523 = vshll.u32 %v506, 16
        %v525 = vrot.slane %v523, 1
        %v526 = vor.u32 %v521, %v525
        %v528 = vshrl.u32 %v507, 16
        %v530 = vshll.u32 %v507, 16
        %v532 = vrot.slane %v530, 1
        %v533 = vor.u32 %v528, %v532
        %v535 = vshrl.u32 %v508, 16
        %v537 = vshll.u32 %v508, 16
        %v539 = vrot.slane %v537, 1
        %v540 = vor.u32 %v535, %v539
        %v542 = vshrl.u32 %v509, 16
        %v544 = vshll.u32 %v509, 16
        %v546 = vrot.slane %v544, 1
        %v547 = vor.u32 %v542, %v546
        %v549 = vshrl.u32 %v510, 16
        %v551 = vshll.u32 %v510, 16
        %v553 = vrot.slane %v551, 1
        %v554 = vor.u32 %v549, %v553
        %v556 = vshrl.u32 %v511, 16
        %v558 = vshll.u32 %v511, 16
        %v560 = vrot.slane %v558, 1
        %v561 = vor.u32 %v556, %v560
        %v563 = vshrl.u32 %v512, 16
        %v565 = vshll.u32 %v512, 16
        %v567 = vrot.slane %v565, 1
        %v568 = vor.u32 %v563, %v567
        %569 = vrot.lane.b32.xlu0 %v519, 32
        %v570 = vpop.permute.xlu0 %569
        %571 = vrot.lane.b32.xlu0 %v526, 32
        %v572 = vpop.permute.xlu0 %571
        %573 = vrot.lane.b32.xlu0 %v533, 32
        %v574 = vpop.permute.xlu0 %573
        %575 = vrot.lane.b32.xlu0 %v540, 32
        %v576 = vpop.permute.xlu0 %575
        %577 = vrot.lane.b32.xlu0 %v547, 32
        %v578 = vpop.permute.xlu0 %577
        %579 = vrot.lane.b32.xlu0 %v554, 32
        %v580 = vpop.permute.xlu0 %579
        %581 = vrot.lane.b32.xlu0 %v561, 32
        %v582 = vpop.permute.xlu0 %581
        %583 = vrot.lane.b32.xlu0 %v568, 32
        %v584 = vpop.permute.xlu0 %583
        %v585 = vrot.slane %v505, 1
        %v586 = vrot.slane %v506, 1
        %v587 = vrot.slane %v507, 1
        %v588 = vrot.slane %v508, 1
        %v589 = vrot.slane %v509, 1
        %v590 = vrot.slane %v510, 1
        %v591 = vrot.slane %v511, 1
        %v592 = vrot.slane %v512, 1
        %593 = vrot.lane.b32.xlu0 %v585, 64
        %v594 = vpop.permute.xlu0 %593
        %595 = vrot.lane.b32.xlu0 %v586, 64
        %v596 = vpop.permute.xlu0 %595
        %597 = vrot.lane.b32.xlu0 %v587, 64
        %v598 = vpop.permute.xlu0 %597
        %599 = vrot.lane.b32.xlu0 %v588, 64
        %v600 = vpop.permute.xlu0 %599
        %601 = vrot.lane.b32.xlu0 %v589, 64
        %v602 = vpop.permute.xlu0 %601
        %603 = vrot.lane.b32.xlu0 %v590, 64
        %v604 = vpop.permute.xlu0 %603
        %605 = vrot.lane.b32.xlu0 %v591, 64
        %v606 = vpop.permute.xlu0 %605
        %607 = vrot.lane.b32.xlu0 %v592, 64
        %v608 = vpop.permute.xlu0 %607
        %v610 = vunpack.c.l.b16 %v469
        %v611 = vpack.c.b16 %v491, %v491
        %v612 = vpack.c.b16 %v493, %v493
        %v613 = vpack.c.b16 %v495, %v495
        %v614 = vpack.c.b16 %v497, %v497
        %v615 = vpack.c.b16 %v499, %v499
        %v616 = vpack.c.b16 %v501, %v501
        %v617 = vpack.c.b16 %v503, %v503
        %v618 = vpack.c.b16 %v610, %v610
        %619 = vrot.lane.b32.xlu0 %v611, 96
        %v620 = vpop.permute.xlu0 %619
        %621 = vrot.lane.b32.xlu0 %v612, 96
        %v622 = vpop.permute.xlu0 %621
        %623 = vrot.lane.b32.xlu0 %v613, 96
        %v624 = vpop.permute.xlu0 %623
        %625 = vrot.lane.b32.xlu0 %v614, 96
        %v626 = vpop.permute.xlu0 %625
        %627 = vrot.lane.b32.xlu0 %v615, 96
        %v628 = vpop.permute.xlu0 %627
        %629 = vrot.lane.b32.xlu0 %v616, 96
        %v630 = vpop.permute.xlu0 %629
        %631 = vrot.lane.b32.xlu0 %v617, 96
        %v632 = vpop.permute.xlu0 %631
        %633 = vrot.lane.b32.xlu0 %v618, 96
        %v634 = vpop.permute.xlu0 %633
        %v636 = vunpack.c.l.b16 %v470
        %v637 = vpack.c.b16 %v636, %v610
        %v639 = vshrl.u32 %v637, 16
        %v641 = vshll.u32 %v637, 16
        %v643 = vrot.slane %v641, 1
        %v644 = vor.u32 %v639, %v643
        %v645 = vrot.slane %v637, 1
        %646 = vrot.lane.b32.xlu0 %v586, 32
        %v647 = vpop.permute.xlu0 %646
        %648 = vrot.lane.b32.xlu0 %v587, 32
        %v649 = vpop.permute.xlu0 %648
        %650 = vrot.lane.b32.xlu0 %v588, 32
        %v651 = vpop.permute.xlu0 %650
        %652 = vrot.lane.b32.xlu0 %v589, 32
        %v653 = vpop.permute.xlu0 %652
        %654 = vrot.lane.b32.xlu0 %v590, 32
        %v655 = vpop.permute.xlu0 %654
        %656 = vrot.lane.b32.xlu0 %v591, 32
        %v657 = vpop.permute.xlu0 %656
        %658 = vrot.lane.b32.xlu0 %v592, 32
        %v659 = vpop.permute.xlu0 %658
        %660 = vrot.lane.b32.xlu0 %v645, 32
        %v661 = vpop.permute.xlu0 %660
        %v663 = vunpack.c.l.b16 %v471
        %v664 = vpack.c.b16 %v663, %v663
        %665 = vrot.lane.b32.xlu0 %v612, 64
        %v666 = vpop.permute.xlu0 %665
        %667 = vrot.lane.b32.xlu0 %v613, 64
        %v668 = vpop.permute.xlu0 %667
        %669 = vrot.lane.b32.xlu0 %v614, 64
        %v670 = vpop.permute.xlu0 %669
        %671 = vrot.lane.b32.xlu0 %v615, 64
        %v672 = vpop.permute.xlu0 %671
        %673 = vrot.lane.b32.xlu0 %v616, 64
        %v674 = vpop.permute.xlu0 %673
        %675 = vrot.lane.b32.xlu0 %v617, 64
        %v676 = vpop.permute.xlu0 %675
        %677 = vrot.lane.b32.xlu0 %v618, 64
        %v678 = vpop.permute.xlu0 %677
        %679 = vrot.lane.b32.xlu0 %v664, 64
        %v680 = vpop.permute.xlu0 %679
        %v682 = vunpack.c.l.b16 %v472
        %v683 = vpack.c.b16 %v682, %v663
        %v685 = vshrl.u32 %v683, 16
        %v687 = vshll.u32 %v683, 16
        %v689 = vrot.slane %v687, 1
        %v690 = vor.u32 %v685, %v689
        %691 = vrot.lane.b32.xlu0 %v533, 96
        %v692 = vpop.permute.xlu0 %691
        %693 = vrot.lane.b32.xlu0 %v540, 96
        %v694 = vpop.permute.xlu0 %693
        %695 = vrot.lane.b32.xlu0 %v547, 96
        %v696 = vpop.permute.xlu0 %695
        %697 = vrot.lane.b32.xlu0 %v554, 96
        %v698 = vpop.permute.xlu0 %697
        %699 = vrot.lane.b32.xlu0 %v561, 96
        %v700 = vpop.permute.xlu0 %699
        %701 = vrot.lane.b32.xlu0 %v568, 96
        %v702 = vpop.permute.xlu0 %701
        %703 = vrot.lane.b32.xlu0 %v644, 96
        %v704 = vpop.permute.xlu0 %703
        %705 = vrot.lane.b32.xlu0 %v690, 96
        %v706 = vpop.permute.xlu0 %705
        %v707 = vrot.slane %v683, 1
        %vm708 = vcmask 261120
        %v711 = vsel %vm708, %v453, %v570
        %v714 = vsel %vm708, %v455, %v572
        %v717 = vsel %vm708, %v457, %v574
        %v720 = vsel %vm708, %v459, %v576
        %v723 = vsel %vm708, %v461, %v578
        %v726 = vsel %vm708, %v463, %v580
        %v729 = vsel %vm708, %v465, %v582
        %v732 = vsel %vm708, %v467, %v584
        %vm733 = vcmask 523264
        %v735 = vsel %vm733, %v711, %v594
        %v737 = vsel %vm733, %v714, %v596
        %v739 = vsel %vm733, %v717, %v598
        %v741 = vsel %vm733, %v720, %v600
        %v743 = vsel %vm733, %v723, %v602
        %v745 = vsel %vm733, %v726, %v604
        %v747 = vsel %vm733, %v729, %v606
        %v749 = vsel %vm733, %v732, %v608
        %vm750 = vcmask 785408
        %v752 = vsel %vm750, %v735, %v620
        %v754 = vsel %vm750, %v737, %v622
        %v756 = vsel %vm750, %v739, %v624
        %v758 = vsel %vm750, %v741, %v626
        %v760 = vsel %vm750, %v743, %v628
        %v762 = vsel %vm750, %v745, %v630
        %v764 = vsel %vm750, %v747, %v632
        %v766 = vsel %vm750, %v749, %v634
        %v769 = vsel %vm708, %v526, %v647
        %v772 = vsel %vm708, %v533, %v649
        %v775 = vsel %vm708, %v540, %v651
        %v778 = vsel %vm708, %v547, %v653
        %v781 = vsel %vm708, %v554, %v655
        %v784 = vsel %vm708, %v561, %v657
        %v787 = vsel %vm708, %v568, %v659
        %v790 = vsel %vm708, %v644, %v661
        %v792 = vsel %vm733, %v769, %v666
        %v794 = vsel %vm733, %v772, %v668
        %v796 = vsel %vm733, %v775, %v670
        %v798 = vsel %vm733, %v778, %v672
        %v800 = vsel %vm733, %v781, %v674
        %v802 = vsel %vm733, %v784, %v676
        %v804 = vsel %vm733, %v787, %v678
        %v806 = vsel %vm733, %v790, %v680
        %v808 = vsel %vm750, %v792, %v692
        %v810 = vsel %vm750, %v794, %v694
        %v812 = vsel %vm750, %v796, %v696
        %v814 = vsel %vm750, %v798, %v698
        %v816 = vsel %vm750, %v800, %v700
        %v818 = vsel %vm750, %v802, %v702
        %v820 = vsel %vm750, %v804, %v704
        %v822 = vsel %vm750, %v806, %v706
        %v839 = vunpack.c.l.b16 %v752
        %v840 = vunpack.c.l.b16 %v808
        %v841 = vunpack.c.l.b16 %v587
        %v842 = vunpack.c.l.b16 %v754
        %v843 = vunpack.c.l.b16 %v810
        %v844 = vunpack.c.l.b16 %v588
        %v845 = vunpack.c.l.b16 %v756
        %v846 = vunpack.c.l.b16 %v812
        %v847 = vunpack.c.l.b16 %v589
        %v848 = vunpack.c.l.b16 %v758
        %v849 = vunpack.c.l.b16 %v814
        %v850 = vunpack.c.l.b16 %v590
        %v851 = vunpack.c.l.b16 %v760
        %v852 = vunpack.c.l.b16 %v816
        %v853 = vunpack.c.l.b16 %v591
        %v854 = vunpack.c.l.b16 %v762
        %v855 = vunpack.c.l.b16 %v818
        %v856 = vunpack.c.l.b16 %v592
        %v857 = vunpack.c.l.b16 %v764
        %v858 = vunpack.c.l.b16 %v820
        %v859 = vunpack.c.l.b16 %v645
        %v860 = vunpack.c.l.b16 %v766
        %v861 = vunpack.c.l.b16 %v822
        %v862 = vunpack.c.l.b16 %v707
        %v863 = vld [vmem:[%s242] sm:$0xff]
        %v864 = vld [vmem:[%s242 + $0x8] sm:$0xff]
        %v865 = vld [vmem:[%s242 + $0x10] sm:$0xff]
        %v866 = vld [vmem:[%s242 + $0x18] sm:$0xff]
        %v867 = vld [vmem:[%s242 + $0x20] sm:$0xff]
        %v868 = vld [vmem:[%s242 + $0x28] sm:$0xff]
        %v869 = vld [vmem:[%s242 + $0x30] sm:$0xff]
        %v870 = vld [vmem:[%s242 + $0x38] sm:$0xff]
        %v871 = vpack.c.bf16 %v863, %v863
        %v872 = vpack.c.bf16 %v864, %v864
        %v873 = vpack.c.bf16 %v865, %v865
        %v874 = vpack.c.bf16 %v866, %v866
        %v875 = vpack.c.bf16 %v867, %v867
        %v876 = vpack.c.bf16 %v868, %v868
        %v877 = vpack.c.bf16 %v869, %v869
        %v878 = vpack.c.bf16 %v870, %v870
        %v880 = vshrl.u32 %v871, 16
        %v882 = vrot.slane %v880, 7
        %v883 = vshll.u32 %v871, 16
        %v885 = vor.u32 %v882, %v883
        %v886 = vrot.slane %v882, 4
        %v888 = vshrl.u32 %v872, 16
        %v890 = vrot.slane %v888, 7
        %v891 = vshll.u32 %v872, 16
        %v893 = vor.u32 %v890, %v891
        %v894 = vrot.slane %v890, 4
        %v896 = vshrl.u32 %v873, 16
        %v898 = vrot.slane %v896, 7
        %v899 = vshll.u32 %v873, 16
        %v901 = vor.u32 %v898, %v899
        %v902 = vrot.slane %v898, 4
        %v904 = vshrl.u32 %v874, 16
        %v906 = vrot.slane %v904, 7
        %v907 = vshll.u32 %v874, 16
        %v909 = vor.u32 %v906, %v907
        %v910 = vrot.slane %v906, 4
        %v912 = vshrl.u32 %v875, 16
        %v914 = vrot.slane %v912, 7
        %v915 = vshll.u32 %v875, 16
        %v917 = vor.u32 %v914, %v915
        %v918 = vrot.slane %v914, 4
        %v920 = vshrl.u32 %v876, 16
        %v922 = vrot.slane %v920, 7
        %v923 = vshll.u32 %v876, 16
        %v925 = vor.u32 %v922, %v923
        %v926 = vrot.slane %v922, 4
        %v928 = vshrl.u32 %v877, 16
        %v930 = vrot.slane %v928, 7
        %v931 = vshll.u32 %v877, 16
        %v933 = vor.u32 %v930, %v931
        %v934 = vrot.slane %v930, 4
        %v936 = vshrl.u32 %v878, 16
        %v938 = vrot.slane %v936, 7
        %v939 = vshll.u32 %v878, 16
        %v941 = vor.u32 %v938, %v939
        %v942 = vrot.slane %v938, 4
        %v959 = vld [vmem:[%s362] sm:$0xf]
        %v960 = vsel %vm365, %v885, %v959
        %961 = vst [vmem:[%s362] sm:$0xf] %v960
        %v962 = vld [vmem:[%s362 + $0x4] sm:$0x1]
        %v963 = vsel %vm371, %v886, %v962
        %964 = vst [vmem:[%s362 + $0x4] sm:$0x1] %v963
        %v965 = vld [vmem:[%s362 + $0x8] sm:$0xf]
        %v966 = vsel %vm365, %v893, %v965
        %967 = vst [vmem:[%s362 + $0x8] sm:$0xf] %v966
        %v968 = vld [vmem:[%s362 + $0xc] sm:$0x1]
        %v969 = vsel %vm371, %v894, %v968
        %970 = vst [vmem:[%s362 + $0xc] sm:$0x1] %v969
        %v971 = vld [vmem:[%s362 + $0x10] sm:$0xf]
        %v972 = vsel %vm365, %v901, %v971
        %973 = vst [vmem:[%s362 + $0x10] sm:$0xf] %v972
        %v974 = vld [vmem:[%s362 + $0x14] sm:$0x1]
        %v975 = vsel %vm371, %v902, %v974
        %976 = vst [vmem:[%s362 + $0x14] sm:$0x1] %v975
        %v977 = vld [vmem:[%s362 + $0x18] sm:$0xf]
        %v978 = vsel %vm365, %v909, %v977
        %979 = vst [vmem:[%s362 + $0x18] sm:$0xf] %v978
        %v980 = vld [vmem:[%s362 + $0x1c] sm:$0x1]
        %v981 = vsel %vm371, %v910, %v980
        %982 = vst [vmem:[%s362 + $0x1c] sm:$0x1] %v981
        %v983 = vld [vmem:[%s362 + $0x20] sm:$0xf]
        %v984 = vsel %vm365, %v917, %v983
        %985 = vst [vmem:[%s362 + $0x20] sm:$0xf] %v984
        %v986 = vld [vmem:[%s362 + $0x24] sm:$0x1]
        %v987 = vsel %vm371, %v918, %v986
        %988 = vst [vmem:[%s362 + $0x24] sm:$0x1] %v987
        %v989 = vld [vmem:[%s362 + $0x28] sm:$0xf]
        %v990 = vsel %vm365, %v925, %v989
        %991 = vst [vmem:[%s362 + $0x28] sm:$0xf] %v990
        %v992 = vld [vmem:[%s362 + $0x2c] sm:$0x1]
        %v993 = vsel %vm371, %v926, %v992
        %994 = vst [vmem:[%s362 + $0x2c] sm:$0x1] %v993
        %v995 = vld [vmem:[%s362 + $0x30] sm:$0xf]
        %v996 = vsel %vm365, %v933, %v995
        %997 = vst [vmem:[%s362 + $0x30] sm:$0xf] %v996
        %v998 = vld [vmem:[%s362 + $0x34] sm:$0x1]
        %v999 = vsel %vm371, %v934, %v998
        %1000 = vst [vmem:[%s362 + $0x34] sm:$0x1] %v999
        %v1001 = vld [vmem:[%s362 + $0x38] sm:$0xf]
        %v1002 = vsel %vm365, %v941, %v1001
        %1003 = vst [vmem:[%s362 + $0x38] sm:$0xf] %v1002
        %v1004 = vld [vmem:[%s362 + $0x3c] sm:$0x1]
        %v1005 = vsel %vm371, %v942, %v1004
        %1006 = vst [vmem:[%s362 + $0x3c] sm:$0x1] %v1005
        %v1007 = vld [vmem:[%s3] sm:$0xf]
        %v1008 = vld [vmem:[%s3 + $0x4] sm:$0xf]
        %v1009 = vld [vmem:[%s3 + $0x8] sm:$0xf]
        %v1010 = vld [vmem:[%s3 + $0xc] sm:$0xf]
        %v1011 = vld [vmem:[%s3 + $0x10] sm:$0xf]
        %v1012 = vld [vmem:[%s3 + $0x14] sm:$0xf]
        %v1013 = vld [vmem:[%s3 + $0x18] sm:$0xf]
        %v1014 = vld [vmem:[%s3 + $0x1c] sm:$0xf]
        %v1015 = vld [vmem:[%s3 + $0x20] sm:$0xf]
        %v1016 = vld [vmem:[%s3 + $0x24] sm:$0xf]
        %v1017 = vld [vmem:[%s3 + $0x28] sm:$0xf]
        %v1018 = vld [vmem:[%s3 + $0x2c] sm:$0xf]
        %v1019 = vld [vmem:[%s3 + $0x30] sm:$0xf]
        %v1020 = vld [vmem:[%s3 + $0x34] sm:$0xf]
        %v1021 = vld [vmem:[%s3 + $0x38] sm:$0xf]
        %v1022 = vld [vmem:[%s3 + $0x3c] sm:$0xf]
        %v1023 = vld [vmem:[%s3 + $0x40] sm:$0xf]
        %v1024 = vld [vmem:[%s3 + $0x44] sm:$0xf]
        %v1025 = vld [vmem:[%s3 + $0x48] sm:$0xf]
        %v1026 = vld [vmem:[%s3 + $0x4c] sm:$0xf]
        %v1027 = vld [vmem:[%s3 + $0x50] sm:$0xf]
        %v1028 = vld [vmem:[%s3 + $0x54] sm:$0xf]
        %v1029 = vld [vmem:[%s3 + $0x58] sm:$0xf]
        %v1030 = vld [vmem:[%s3 + $0x5c] sm:$0xf]
        %v1031 = vld [vmem:[%s3 + $0x60] sm:$0xf]
        %v1032 = vld [vmem:[%s3 + $0x64] sm:$0xf]
        %v1033 = vld [vmem:[%s3 + $0x68] sm:$0xf]
        %v1034 = vld [vmem:[%s3 + $0x6c] sm:$0xf]
        %v1035 = vld [vmem:[%s3 + $0x70] sm:$0xf]
        %v1036 = vld [vmem:[%s3 + $0x74] sm:$0xf]
        %v1037 = vld [vmem:[%s3 + $0x78] sm:$0xf]
        %v1038 = vld [vmem:[%s3 + $0x7c] sm:$0xf]
        %v1039 = vld [vmem:[%s3 + $0x80] sm:$0xf]
        %v1040 = vld [vmem:[%s3 + $0x84] sm:$0xf]
        %v1041 = vld [vmem:[%s3 + $0x88] sm:$0xf]
        %v1042 = vld [vmem:[%s3 + $0x8c] sm:$0xf]
        %v1043 = vld [vmem:[#allocation2] sm:$0xf]
        %v1044 = vld [vmem:[#allocation2 + $0x4] sm:$0x1]
        %v1045 = vld [vmem:[#allocation2 + $0x8] sm:$0xf]
        %v1046 = vld [vmem:[#allocation2 + $0xc] sm:$0x1]
        %v1047 = vld [vmem:[#allocation2 + $0x10] sm:$0xf]
        %v1048 = vld [vmem:[#allocation2 + $0x14] sm:$0x1]
        %v1049 = vld [vmem:[#allocation2 + $0x18] sm:$0xf]
        %v1050 = vld [vmem:[#allocation2 + $0x1c] sm:$0x1]
        %v1051 = vld [vmem:[#allocation2 + $0x20] sm:$0xf]
        %v1052 = vld [vmem:[#allocation2 + $0x24] sm:$0x1]
        %v1053 = vld [vmem:[#allocation2 + $0x28] sm:$0xf]
        %v1054 = vld [vmem:[#allocation2 + $0x2c] sm:$0x1]
        %v1055 = vld [vmem:[#allocation2 + $0x30] sm:$0xf]
        %v1056 = vld [vmem:[#allocation2 + $0x34] sm:$0x1]
        %v1057 = vld [vmem:[#allocation2 + $0x38] sm:$0xf]
        %v1058 = vld [vmem:[#allocation2 + $0x3c] sm:$0x1]
        %v1059 = vld [vmem:[#allocation2 + $0x40] sm:$0xf]
        %v1060 = vld [vmem:[#allocation2 + $0x44] sm:$0x1]
        %v1061 = vld [vmem:[#allocation2 + $0x48] sm:$0xf]
        %v1062 = vld [vmem:[#allocation2 + $0x4c] sm:$0x1]
        %v1079 = vunpack.c.l.b16 %v1043
        %v1080 = vunpack.c.l.b16 %v1044
        %v1081 = vunpack.c.l.b16 %v1045
        %v1082 = vunpack.c.l.b16 %v1046
        %v1083 = vunpack.c.l.b16 %v1047
        %v1084 = vunpack.c.l.b16 %v1048
        %v1085 = vunpack.c.l.b16 %v1049
        %v1086 = vunpack.c.l.b16 %v1050
        %v1087 = vunpack.c.l.b16 %v1051
        %v1088 = vunpack.c.l.b16 %v1052
        %v1089 = vunpack.c.l.b16 %v1053
        %v1090 = vunpack.c.l.b16 %v1054
        %v1091 = vunpack.c.l.b16 %v1055
        %v1092 = vunpack.c.l.b16 %v1056
        %v1093 = vunpack.c.l.b16 %v1057
        %v1094 = vunpack.c.l.b16 %v1058
        %v1095 = vpack.c.b16 %v1080, %v1079
        %v1096 = vpack.c.b16 %v1082, %v1081
        %v1097 = vpack.c.b16 %v1084, %v1083
        %v1098 = vpack.c.b16 %v1086, %v1085
        %v1099 = vpack.c.b16 %v1088, %v1087
        %v1100 = vpack.c.b16 %v1090, %v1089
        %v1101 = vpack.c.b16 %v1092, %v1091
        %v1102 = vpack.c.b16 %v1094, %v1093
        %v1104 = vshrl.u32 %v1095, 16
        %v1106 = vshll.u32 %v1095, 16
        %v1108 = vrot.slane %v1106, 1
        %v1109 = vor.u32 %v1104, %v1108
        %v1111 = vshrl.u32 %v1096, 16
        %v1113 = vshll.u32 %v1096, 16
        %v1115 = vrot.slane %v1113, 1
        %v1116 = vor.u32 %v1111, %v1115
        %v1118 = vshrl.u32 %v1097, 16
        %v1120 = vshll.u32 %v1097, 16
        %v1122 = vrot.slane %v1120, 1
        %v1123 = vor.u32 %v1118, %v1122
        %v1125 = vshrl.u32 %v1098, 16
        %v1127 = vshll.u32 %v1098, 16
        %v1129 = vrot.slane %v1127, 1
        %v1130 = vor.u32 %v1125, %v1129
        %v1132 = vshrl.u32 %v1099, 16
        %v1134 = vshll.u32 %v1099, 16
        %v1136 = vrot.slane %v1134, 1
        %v1137 = vor.u32 %v1132, %v1136
        %v1139 = vshrl.u32 %v1100, 16
        %v1141 = vshll.u32 %v1100, 16
        %v1143 = vrot.slane %v1141, 1
        %v1144 = vor.u32 %v1139, %v1143
        %v1146 = vshrl.u32 %v1101, 16
        %v1148 = vshll.u32 %v1101, 16
        %v1150 = vrot.slane %v1148, 1
        %v1151 = vor.u32 %v1146, %v1150
        %v1153 = vshrl.u32 %v1102, 16
        %v1155 = vshll.u32 %v1102, 16
        %v1157 = vrot.slane %v1155, 1
        %v1158 = vor.u32 %v1153, %v1157
        %1159 = vrot.lane.b32.xlu0 %v1109, 32
        %v1160 = vpop.permute.xlu0 %1159
        %1161 = vrot.lane.b32.xlu0 %v1116, 32
        %v1162 = vpop.permute.xlu0 %1161
        %1163 = vrot.lane.b32.xlu0 %v1123, 32
        %v1164 = vpop.permute.xlu0 %1163
        %1165 = vrot.lane.b32.xlu0 %v1130, 32
        %v1166 = vpop.permute.xlu0 %1165
        %1167 = vrot.lane.b32.xlu0 %v1137, 32
        %v1168 = vpop.permute.xlu0 %1167
        %1169 = vrot.lane.b32.xlu0 %v1144, 32
        %v1170 = vpop.permute.xlu0 %1169
        %1171 = vrot.lane.b32.xlu0 %v1151, 32
        %v1172 = vpop.permute.xlu0 %1171
        %1173 = vrot.lane.b32.xlu0 %v1158, 32
        %v1174 = vpop.permute.xlu0 %1173
        %v1175 = vrot.slane %v1095, 1
        %v1176 = vrot.slane %v1096, 1
        %v1177 = vrot.slane %v1097, 1
        %v1178 = vrot.slane %v1098, 1
        %v1179 = vrot.slane %v1099, 1
        %v1180 = vrot.slane %v1100, 1
        %v1181 = vrot.slane %v1101, 1
        %v1182 = vrot.slane %v1102, 1
        %1183 = vrot.lane.b32.xlu0 %v1175, 64
        %v1184 = vpop.permute.xlu0 %1183
        %1185 = vrot.lane.b32.xlu0 %v1176, 64
        %v1186 = vpop.permute.xlu0 %1185
        %1187 = vrot.lane.b32.xlu0 %v1177, 64
        %v1188 = vpop.permute.xlu0 %1187
        %1189 = vrot.lane.b32.xlu0 %v1178, 64
        %v1190 = vpop.permute.xlu0 %1189
        %1191 = vrot.lane.b32.xlu0 %v1179, 64
        %v1192 = vpop.permute.xlu0 %1191
        %1193 = vrot.lane.b32.xlu0 %v1180, 64
        %v1194 = vpop.permute.xlu0 %1193
        %1195 = vrot.lane.b32.xlu0 %v1181, 64
        %v1196 = vpop.permute.xlu0 %1195
        %1197 = vrot.lane.b32.xlu0 %v1182, 64
        %v1198 = vpop.permute.xlu0 %1197
        %v1200 = vunpack.c.l.b16 %v1059
        %v1201 = vpack.c.b16 %v1081, %v1081
        %v1202 = vpack.c.b16 %v1083, %v1083
        %v1203 = vpack.c.b16 %v1085, %v1085
        %v1204 = vpack.c.b16 %v1087, %v1087
        %v1205 = vpack.c.b16 %v1089, %v1089
        %v1206 = vpack.c.b16 %v1091, %v1091
        %v1207 = vpack.c.b16 %v1093, %v1093
        %v1208 = vpack.c.b16 %v1200, %v1200
        %1209 = vrot.lane.b32.xlu0 %v1201, 96
        %v1210 = vpop.permute.xlu0 %1209
        %1211 = vrot.lane.b32.xlu0 %v1202, 96
        %v1212 = vpop.permute.xlu0 %1211
        %1213 = vrot.lane.b32.xlu0 %v1203, 96
        %v1214 = vpop.permute.xlu0 %1213
        %1215 = vrot.lane.b32.xlu0 %v1204, 96
        %v1216 = vpop.permute.xlu0 %1215
        %1217 = vrot.lane.b32.xlu0 %v1205, 96
        %v1218 = vpop.permute.xlu0 %1217
        %1219 = vrot.lane.b32.xlu0 %v1206, 96
        %v1220 = vpop.permute.xlu0 %1219
        %1221 = vrot.lane.b32.xlu0 %v1207, 96
        %v1222 = vpop.permute.xlu0 %1221
        %1223 = vrot.lane.b32.xlu0 %v1208, 96
        %v1224 = vpop.permute.xlu0 %1223
        %v1226 = vunpack.c.l.b16 %v1060
        %v1227 = vpack.c.b16 %v1226, %v1200
        %v1229 = vshrl.u32 %v1227, 16
        %v1231 = vshll.u32 %v1227, 16
        %v1233 = vrot.slane %v1231, 1
        %v1234 = vor.u32 %v1229, %v1233
        %v1235 = vrot.slane %v1227, 1
        %1236 = vrot.lane.b32.xlu0 %v1176, 32
        %v1237 = vpop.permute.xlu0 %1236
        %1238 = vrot.lane.b32.xlu0 %v1177, 32
        %v1239 = vpop.permute.xlu0 %1238
        %1240 = vrot.lane.b32.xlu0 %v1178, 32
        %v1241 = vpop.permute.xlu0 %1240
        %1242 = vrot.lane.b32.xlu0 %v1179, 32
        %v1243 = vpop.permute.xlu0 %1242
        %1244 = vrot.lane.b32.xlu0 %v1180, 32
        %v1245 = vpop.permute.xlu0 %1244
        %1246 = vrot.lane.b32.xlu0 %v1181, 32
        %v1247 = vpop.permute.xlu0 %1246
        %1248 = vrot.lane.b32.xlu0 %v1182, 32
        %v1249 = vpop.permute.xlu0 %1248
        %1250 = vrot.lane.b32.xlu0 %v1235, 32
        %v1251 = vpop.permute.xlu0 %1250
        %v1253 = vunpack.c.l.b16 %v1061
        %v1254 = vpack.c.b16 %v1253, %v1253
        %1255 = vrot.lane.b32.xlu0 %v1202, 64
        %v1256 = vpop.permute.xlu0 %1255
        %1257 = vrot.lane.b32.xlu0 %v1203, 64
        %v1258 = vpop.permute.xlu0 %1257
        %1259 = vrot.lane.b32.xlu0 %v1204, 64
        %v1260 = vpop.permute.xlu0 %1259
        %1261 = vrot.lane.b32.xlu0 %v1205, 64
        %v1262 = vpop.permute.xlu0 %1261
        %1263 = vrot.lane.b32.xlu0 %v1206, 64
        %v1264 = vpop.permute.xlu0 %1263
        %1265 = vrot.lane.b32.xlu0 %v1207, 64
        %v1266 = vpop.permute.xlu0 %1265
        %1267 = vrot.lane.b32.xlu0 %v1208, 64
        %v1268 = vpop.permute.xlu0 %1267
        %1269 = vrot.lane.b32.xlu0 %v1254, 64
        %v1270 = vpop.permute.xlu0 %1269
        %v1272 = vunpack.c.l.b16 %v1062
        %v1273 = vpack.c.b16 %v1272, %v1253
        %v1275 = vshrl.u32 %v1273, 16
        %v1277 = vshll.u32 %v1273, 16
        %v1279 = vrot.slane %v1277, 1
        %v1280 = vor.u32 %v1275, %v1279
        %1281 = vrot.lane.b32.xlu0 %v1123, 96
        %v1282 = vpop.permute.xlu0 %1281
        %1283 = vrot.lane.b32.xlu0 %v1130, 96
        %v1284 = vpop.permute.xlu0 %1283
        %1285 = vrot.lane.b32.xlu0 %v1137, 96
        %v1286 = vpop.permute.xlu0 %1285
        %1287 = vrot.lane.b32.xlu0 %v1144, 96
        %v1288 = vpop.permute.xlu0 %1287
        %1289 = vrot.lane.b32.xlu0 %v1151, 96
        %v1290 = vpop.permute.xlu0 %1289
        %1291 = vrot.lane.b32.xlu0 %v1158, 96
        %v1292 = vpop.permute.xlu0 %1291
        %1293 = vrot.lane.b32.xlu0 %v1234, 96
        %v1294 = vpop.permute.xlu0 %1293
        %1295 = vrot.lane.b32.xlu0 %v1280, 96
        %v1296 = vpop.permute.xlu0 %1295
        %v1297 = vrot.slane %v1273, 1
        %v1300 = vsel %vm708, %v1043, %v1160
        %v1303 = vsel %vm708, %v1045, %v1162
        %v1306 = vsel %vm708, %v1047, %v1164
        %v1309 = vsel %vm708, %v1049, %v1166
        %v1312 = vsel %vm708, %v1051, %v1168
        %v1315 = vsel %vm708, %v1053, %v1170
        %v1318 = vsel %vm708, %v1055, %v1172
        %v1321 = vsel %vm708, %v1057, %v1174
        %v1323 = vsel %vm733, %v1300, %v1184
        %v1325 = vsel %vm733, %v1303, %v1186
        %v1327 = vsel %vm733, %v1306, %v1188
        %v1329 = vsel %vm733, %v1309, %v1190
        %v1331 = vsel %vm733, %v1312, %v1192
        %v1333 = vsel %vm733, %v1315, %v1194
        %v1335 = vsel %vm733, %v1318, %v1196
        %v1337 = vsel %vm733, %v1321, %v1198
        %v1339 = vsel %vm750, %v1323, %v1210
        %v1341 = vsel %vm750, %v1325, %v1212
        %v1343 = vsel %vm750, %v1327, %v1214
        %v1345 = vsel %vm750, %v1329, %v1216
        %v1347 = vsel %vm750, %v1331, %v1218
        %v1349 = vsel %vm750, %v1333, %v1220
        %v1351 = vsel %vm750, %v1335, %v1222
        %v1353 = vsel %vm750, %v1337, %v1224
        %v1356 = vsel %vm708, %v1116, %v1237
        %v1359 = vsel %vm708, %v1123, %v1239
        %v1362 = vsel %vm708, %v1130, %v1241
        %v1365 = vsel %vm708, %v1137, %v1243
        %v1368 = vsel %vm708, %v1144, %v1245
        %v1371 = vsel %vm708, %v1151, %v1247
        %v1374 = vsel %vm708, %v1158, %v1249
        %v1377 = vsel %vm708, %v1234, %v1251
        %v1379 = vsel %vm733, %v1356, %v1256
        %v1381 = vsel %vm733, %v1359, %v1258
        %v1383 = vsel %vm733, %v1362, %v1260
        %v1385 = vsel %vm733, %v1365, %v1262
        %v1387 = vsel %vm733, %v1368, %v1264
        %v1389 = vsel %vm733, %v1371, %v1266
        %v1391 = vsel %vm733, %v1374, %v1268
        %v1393 = vsel %vm733, %v1377, %v1270
        %v1395 = vsel %vm750, %v1379, %v1282
        %v1397 = vsel %vm750, %v1381, %v1284
        %v1399 = vsel %vm750, %v1383, %v1286
        %v1401 = vsel %vm750, %v1385, %v1288
        %v1403 = vsel %vm750, %v1387, %v1290
        %v1405 = vsel %vm750, %v1389, %v1292
        %v1407 = vsel %vm750, %v1391, %v1294
        %v1409 = vsel %vm750, %v1393, %v1296
        %v1426 = vunpack.c.l.b16 %v1339
        %v1427 = vunpack.c.l.b16 %v1395
        %v1428 = vunpack.c.l.b16 %v1177
        %v1429 = vunpack.c.l.b16 %v1341
        %v1430 = vunpack.c.l.b16 %v1397
        %v1431 = vunpack.c.l.b16 %v1178
        %v1432 = vunpack.c.l.b16 %v1343
        %v1433 = vunpack.c.l.b16 %v1399
        %v1434 = vunpack.c.l.b16 %v1179
        %v1435 = vunpack.c.l.b16 %v1345
        %v1436 = vunpack.c.l.b16 %v1401
        %v1437 = vunpack.c.l.b16 %v1180
        %v1438 = vunpack.c.l.b16 %v1347
        %v1439 = vunpack.c.l.b16 %v1403
        %v1440 = vunpack.c.l.b16 %v1181
        %v1441 = vunpack.c.l.b16 %v1349
        %v1442 = vunpack.c.l.b16 %v1405
        %v1443 = vunpack.c.l.b16 %v1182
        %v1444 = vunpack.c.l.b16 %v1351
        %v1445 = vunpack.c.l.b16 %v1407
        %v1446 = vunpack.c.l.b16 %v1235
        %v1447 = vunpack.c.l.b16 %v1353
        %v1448 = vunpack.c.l.b16 %v1409
        %v1449 = vunpack.c.l.b16 %v1297
        %v1450 = vpack.c.b16 %v1429, %v1426
        %v1451 = vpack.c.b16 %v1430, %v1427
        %v1452 = vpack.c.b16 %v1431, %v1428
        %v1453 = vpack.c.b16 %v1435, %v1432
        %v1454 = vpack.c.b16 %v1436, %v1433
        %v1455 = vpack.c.b16 %v1437, %v1434
        %v1456 = vpack.c.b16 %v1441, %v1438
        %v1457 = vpack.c.b16 %v1442, %v1439
        %v1458 = vpack.c.b16 %v1443, %v1440
        %v1459 = vpack.c.b16 %v1447, %v1444
        %v1460 = vpack.c.b16 %v1448, %v1445
        %v1461 = vpack.c.b16 %v1449, %v1446
        %v1506 = vunpack.c.l.b16 %v1007
        %v1507 = vunpack.c.l.b16 %v1008
        %v1508 = vunpack.c.l.b16 %v1009
        %v1509 = vunpack.c.l.b16 %v1010
        %v1510 = vunpack.c.l.b16 %v1011
        %v1511 = vunpack.c.l.b16 %v1012
        %v1512 = vunpack.c.l.b16 %v1013
        %v1513 = vunpack.c.l.b16 %v1014
        %v1514 = vunpack.c.l.b16 %v1015
        %v1515 = vunpack.c.l.b16 %v1016
        %v1516 = vunpack.c.l.b16 %v1017
        %v1517 = vunpack.c.l.b16 %v1018
        %v1518 = vunpack.c.l.b16 %v1019
        %v1519 = vunpack.c.l.b16 %v1020
        %v1520 = vunpack.c.l.b16 %v1021
        %v1521 = vunpack.c.l.b16 %v1022
        %v1522 = vunpack.c.l.b16 %v1023
        %v1523 = vunpack.c.l.b16 %v1024
        %v1524 = vunpack.c.l.b16 %v1025
        %v1525 = vunpack.c.l.b16 %v1026
        %v1526 = vunpack.c.l.b16 %v1027
        %v1527 = vunpack.c.l.b16 %v1028
        %v1528 = vunpack.c.l.b16 %v1029
        %v1529 = vunpack.c.l.b16 %v1030
        %v1530 = vunpack.c.l.b16 %v1031
        %v1531 = vunpack.c.l.b16 %v1032
        %v1532 = vunpack.c.l.b16 %v1033
        %v1533 = vunpack.c.l.b16 %v1034
        %v1534 = vunpack.c.l.b16 %v1035
        %v1535 = vunpack.c.l.b16 %v1036
        %v1536 = vunpack.c.l.b16 %v1037
        %v1537 = vunpack.c.l.b16 %v1038
        %v1538 = vunpack.c.l.b16 %v1039
        %v1539 = vunpack.c.l.b16 %v1040
        %v1540 = vunpack.c.l.b16 %v1041
        %v1541 = vunpack.c.l.b16 %v1042
        %v1542 = vpack.c.b16 %v1507, %v1506
        %v1543 = vpack.c.b16 %v1509, %v1508
        %v1544 = vpack.c.b16 %v1511, %v1510
        %v1545 = vpack.c.b16 %v1513, %v1512
        %v1546 = vpack.c.b16 %v1515, %v1514
        %v1547 = vpack.c.b16 %v1517, %v1516
        %v1548 = vpack.c.b16 %v1519, %v1518
        %v1549 = vpack.c.b16 %v1521, %v1520
        %v1550 = vpack.c.b16 %v1523, %v1522
        %v1551 = vpack.c.b16 %v1525, %v1524
        %v1552 = vpack.c.b16 %v1527, %v1526
        %v1553 = vpack.c.b16 %v1529, %v1528
        %v1554 = vpack.c.b16 %v1531, %v1530
        %v1555 = vpack.c.b16 %v1533, %v1532
        %v1556 = vpack.c.b16 %v1535, %v1534
        %v1557 = vpack.c.b16 %v1537, %v1536
        %v1558 = vpack.c.b16 %v1539, %v1538
        %v1559 = vpack.c.b16 %v1541, %v1540
        %v1579 = vsel %vm708, %v1452, 0
        %v1582 = vsel %vm708, %v1455, 0
        %v1585 = vsel %vm708, %v1458, 0
        %v1588 = vsel %vm708, %v1461, 0
        %1590 = vmatpush.bf16.msra.mxu0 %v1549
        %1591 = vmatpush.bf16.msra.mxu0 %v1548
        %1592 = vmatpush.bf16.msra.mxu0 %v1547
        %1593 = vmatpush.bf16.msra.mxu0 %v1546
        %1594 = vmatpush.bf16.msra.mxu0 %v1545
        %1595 = vmatpush.bf16.msra.mxu0 %v1544
        %1596 = vmatpush.bf16.msra.mxu0 %v1543
        %1597 = vmatpush.bf16.msra.mxu0 %v1542
        %1598 = vmatmul.bf16.gmra.mxu0 %v1450
        %v1599 = vpop.f32.mrf.mxu0
        %v1600 = vadd.f32 0.0, %v1599
        %v1601 = vpop.f32.mrf.mxu0
        %v1602 = vadd.f32 0.0, %v1601
        %1603 = vmatmul.bf16.gmra.mxu0 %v1453
        %v1604 = vpop.f32.mrf.mxu0
        %v1605 = vadd.f32 0.0, %v1604
        %v1606 = vpop.f32.mrf.mxu0
        %v1607 = vadd.f32 0.0, %v1606
        %1608 = vmatmul.bf16.gmra.mxu0 %v1456
        %v1609 = vpop.f32.mrf.mxu0
        %v1610 = vadd.f32 0.0, %v1609
        %v1611 = vpop.f32.mrf.mxu0
        %v1612 = vadd.f32 0.0, %v1611
        %1613 = vmatmul.bf16.gmra.mxu0 %v1459
        %v1614 = vpop.f32.mrf.mxu0
        %v1615 = vadd.f32 0.0, %v1614
        %v1616 = vpop.f32.mrf.mxu0
        %v1617 = vadd.f32 0.0, %v1616
        %1618 = vdwg.mxu0
        %1619 = vmatpush.bf16.msra.mxu0 %v1557
        %1620 = vmatpush.bf16.msra.mxu0 %v1556
        %1621 = vmatpush.bf16.msra.mxu0 %v1555
        %1622 = vmatpush.bf16.msra.mxu0 %v1554
        %1623 = vmatpush.bf16.msra.mxu0 %v1553
        %1624 = vmatpush.bf16.msra.mxu0 %v1552
        %1625 = vmatpush.bf16.msra.mxu0 %v1551
        %1626 = vmatpush.bf16.msra.mxu0 %v1550
        %1627 = vmatmul.bf16.gmra.mxu0 %v1451
        %v1628 = vpop.f32.mrf.mxu0
        %v1629 = vadd.f32 %v1600, %v1628
        %v1630 = vpop.f32.mrf.mxu0
        %v1631 = vadd.f32 %v1602, %v1630
        %1632 = vmatmul.bf16.gmra.mxu0 %v1454
        %v1633 = vpop.f32.mrf.mxu0
        %v1634 = vadd.f32 %v1605, %v1633
        %v1635 = vpop.f32.mrf.mxu0
        %v1636 = vadd.f32 %v1607, %v1635
        %1637 = vmatmul.bf16.gmra.mxu0 %v1457
        %v1638 = vpop.f32.mrf.mxu0
        %v1639 = vadd.f32 %v1610, %v1638
        %v1640 = vpop.f32.mrf.mxu0
        %v1641 = vadd.f32 %v1612, %v1640
        %1642 = vmatmul.bf16.gmra.mxu0 %v1460
        %v1643 = vpop.f32.mrf.mxu0
        %v1644 = vadd.f32 %v1615, %v1643
        %v1645 = vpop.f32.mrf.mxu0
        %v1646 = vadd.f32 %v1617, %v1645
        %1647 = vdwg.mxu0
        %1648 = vmatpush.bf16.msra.mxu0 0
        %1649 = vmatpush.bf16.msra.mxu0 0
        %1650 = vmatpush.bf16.msra.mxu0 0
        %1651 = vmatpush.bf16.msra.mxu0 0
        %1652 = vmatpush.bf16.msra.mxu0 0
        %1653 = vmatpush.bf16.msra.mxu0 0
        %1654 = vmatpush.bf16.msra.mxu0 %v1559
        %1655 = vmatpush.bf16.msra.mxu0 %v1558
        %1656 = vmatmul.bf16.gmra.mxu0 %v1579
        %v1657 = vpop.f32.mrf.mxu0
        %v1658 = vadd.f32 %v1629, %v1657
        %v1659 = vpop.f32.mrf.mxu0
        %v1660 = vadd.f32 %v1631, %v1659
        %1661 = vmatmul.bf16.gmra.mxu0 %v1582
        %v1662 = vpop.f32.mrf.mxu0
        %v1663 = vadd.f32 %v1634, %v1662
        %v1664 = vpop.f32.mrf.mxu0
        %v1665 = vadd.f32 %v1636, %v1664
        %1666 = vmatmul.bf16.gmra.mxu0 %v1585
        %v1667 = vpop.f32.mrf.mxu0
        %v1668 = vadd.f32 %v1639, %v1667
        %v1669 = vpop.f32.mrf.mxu0
        %v1670 = vadd.f32 %v1641, %v1669
        %1671 = vmatmul.bf16.gmra.mxu0 %v1588
        %v1672 = vpop.f32.mrf.mxu0
        %v1673 = vadd.f32 %v1644, %v1672
        %v1674 = vpop.f32.mrf.mxu0
        %v1675 = vadd.f32 %v1646, %v1674
        %1676 = vdwg.mxu0
        %v1677 = vpack.c.b16 %v842, %v839
        %v1678 = vpack.c.b16 %v843, %v840
        %v1679 = vpack.c.b16 %v844, %v841
        %v1680 = vpack.c.b16 %v848, %v845
        %v1681 = vpack.c.b16 %v849, %v846
        %v1682 = vpack.c.b16 %v850, %v847
        %v1683 = vpack.c.b16 %v854, %v851
        %v1684 = vpack.c.b16 %v855, %v852
        %v1685 = vpack.c.b16 %v856, %v853
        %v1686 = vpack.c.b16 %v860, %v857
        %v1687 = vpack.c.b16 %v861, %v858
        %v1688 = vpack.c.b16 %v862, %v859
        %v1733 = vunpack.c.l.b16 %v417
        %v1734 = vunpack.c.l.b16 %v418
        %v1735 = vunpack.c.l.b16 %v419
        %v1736 = vunpack.c.l.b16 %v420
        %v1737 = vunpack.c.l.b16 %v421
        %v1738 = vunpack.c.l.b16 %v422
        %v1739 = vunpack.c.l.b16 %v423
        %v1740 = vunpack.c.l.b16 %v424
        %v1741 = vunpack.c.l.b16 %v425
        %v1742 = vunpack.c.l.b16 %v426
        %v1743 = vunpack.c.l.b16 %v427
        %v1744 = vunpack.c.l.b16 %v428
        %v1745 = vunpack.c.l.b16 %v429
        %v1746 = vunpack.c.l.b16 %v430
        %v1747 = vunpack.c.l.b16 %v431
        %v1748 = vunpack.c.l.b16 %v432
        %v1749 = vunpack.c.l.b16 %v433
        %v1750 = vunpack.c.l.b16 %v434
        %v1751 = vunpack.c.l.b16 %v435
        %v1752 = vunpack.c.l.b16 %v436
        %v1753 = vunpack.c.l.b16 %v437
        %v1754 = vunpack.c.l.b16 %v438
        %v1755 = vunpack.c.l.b16 %v439
        %v1756 = vunpack.c.l.b16 %v440
        %v1757 = vunpack.c.l.b16 %v441
        %v1758 = vunpack.c.l.b16 %v442
        %v1759 = vunpack.c.l.b16 %v443
        %v1760 = vunpack.c.l.b16 %v444
        %v1761 = vunpack.c.l.b16 %v445
        %v1762 = vunpack.c.l.b16 %v446
        %v1763 = vunpack.c.l.b16 %v447
        %v1764 = vunpack.c.l.b16 %v448
        %v1765 = vunpack.c.l.b16 %v449
        %v1766 = vunpack.c.l.b16 %v450
        %v1767 = vunpack.c.l.b16 %v451
        %v1768 = vunpack.c.l.b16 %v452
        %v1769 = vpack.c.b16 %v1734, %v1733
        %v1770 = vpack.c.b16 %v1736, %v1735
        %v1771 = vpack.c.b16 %v1738, %v1737
        %v1772 = vpack.c.b16 %v1740, %v1739
        %v1773 = vpack.c.b16 %v1742, %v1741
        %v1774 = vpack.c.b16 %v1744, %v1743
        %v1775 = vpack.c.b16 %v1746, %v1745
        %v1776 = vpack.c.b16 %v1748, %v1747
        %v1777 = vpack.c.b16 %v1750, %v1749
        %v1778 = vpack.c.b16 %v1752, %v1751
        %v1779 = vpack.c.b16 %v1754, %v1753
        %v1780 = vpack.c.b16 %v1756, %v1755
        %v1781 = vpack.c.b16 %v1758, %v1757
        %v1782 = vpack.c.b16 %v1760, %v1759
        %v1783 = vpack.c.b16 %v1762, %v1761
        %v1784 = vpack.c.b16 %v1764, %v1763
        %v1785 = vpack.c.b16 %v1766, %v1765
        %v1786 = vpack.c.b16 %v1768, %v1767
        %v1806 = vsel %vm708, %v1679, 0
        %v1809 = vsel %vm708, %v1682, 0
        %v1812 = vsel %vm708, %v1685, 0
        %v1815 = vsel %vm708, %v1688, 0
        %1817 = vmatpush.bf16.msra.mxu0 %v1776
        %1818 = vmatpush.bf16.msra.mxu0 %v1775
        %1819 = vmatpush.bf16.msra.mxu0 %v1774
        %1820 = vmatpush.bf16.msra.mxu0 %v1773
        %1821 = vmatpush.bf16.msra.mxu0 %v1772
        %1822 = vmatpush.bf16.msra.mxu0 %v1771
        %1823 = vmatpush.bf16.msra.mxu0 %v1770
        %1824 = vmatpush.bf16.msra.mxu0 %v1769
        %1825 = vmatmul.bf16.gmra.mxu0 %v1677
        %v1826 = vpop.f32.mrf.mxu0
        %v1827 = vadd.f32 %v1658, %v1826
        %v1828 = vpop.f32.mrf.mxu0
        %v1829 = vadd.f32 %v1660, %v1828
        %1830 = vmatmul.bf16.gmra.mxu0 %v1680
        %v1831 = vpop.f32.mrf.mxu0
        %v1832 = vadd.f32 %v1663, %v1831
        %v1833 = vpop.f32.mrf.mxu0
        %v1834 = vadd.f32 %v1665, %v1833
        %1835 = vmatmul.bf16.gmra.mxu0 %v1683
        %v1836 = vpop.f32.mrf.mxu0
        %v1837 = vadd.f32 %v1668, %v1836
        %v1838 = vpop.f32.mrf.mxu0
        %v1839 = vadd.f32 %v1670, %v1838
        %1840 = vmatmul.bf16.gmra.mxu0 %v1686
        %v1841 = vpop.f32.mrf.mxu0
        %v1842 = vadd.f32 %v1673, %v1841
        %v1843 = vpop.f32.mrf.mxu0
        %v1844 = vadd.f32 %v1675, %v1843
        %1845 = vdwg.mxu0
        %1846 = vmatpush.bf16.msra.mxu0 %v1784
        %1847 = vmatpush.bf16.msra.mxu0 %v1783
        %1848 = vmatpush.bf16.msra.mxu0 %v1782
        %1849 = vmatpush.bf16.msra.mxu0 %v1781
        %1850 = vmatpush.bf16.msra.mxu0 %v1780
        %1851 = vmatpush.bf16.msra.mxu0 %v1779
        %1852 = vmatpush.bf16.msra.mxu0 %v1778
        %1853 = vmatpush.bf16.msra.mxu0 %v1777
        %1854 = vmatmul.bf16.gmra.mxu0 %v1678
        %v1855 = vpop.f32.mrf.mxu0
        %v1856 = vadd.f32 %v1827, %v1855
        %v1857 = vpop.f32.mrf.mxu0
        %v1858 = vadd.f32 %v1829, %v1857
        %1859 = vmatmul.bf16.gmra.mxu0 %v1681
        %v1860 = vpop.f32.mrf.mxu0
        %v1861 = vadd.f32 %v1832, %v1860
        %v1862 = vpop.f32.mrf.mxu0
        %v1863 = vadd.f32 %v1834, %v1862
        %1864 = vmatmul.bf16.gmra.mxu0 %v1684
        %v1865 = vpop.f32.mrf.mxu0
        %v1866 = vadd.f32 %v1837, %v1865
        %v1867 = vpop.f32.mrf.mxu0
        %v1868 = vadd.f32 %v1839, %v1867
        %1869 = vmatmul.bf16.gmra.mxu0 %v1687
        %v1870 = vpop.f32.mrf.mxu0
        %v1871 = vadd.f32 %v1842, %v1870
        %v1872 = vpop.f32.mrf.mxu0
        %v1873 = vadd.f32 %v1844, %v1872
        %1874 = vdwg.mxu0
        %1875 = vmatpush.bf16.msra.mxu0 0
        %1876 = vmatpush.bf16.msra.mxu0 0
        %1877 = vmatpush.bf16.msra.mxu0 0
        %1878 = vmatpush.bf16.msra.mxu0 0
        %1879 = vmatpush.bf16.msra.mxu0 0
        %1880 = vmatpush.bf16.msra.mxu0 0
        %1881 = vmatpush.bf16.msra.mxu0 %v1786
        %1882 = vmatpush.bf16.msra.mxu0 %v1785
        %1883 = vmatmul.bf16.gmra.mxu0 %v1806
        %v1884 = vpop.f32.mrf.mxu0
        %v1885 = vadd.f32 %v1856, %v1884
        %v1886 = vpop.f32.mrf.mxu0
        %v1887 = vadd.f32 %v1858, %v1886
        %1888 = vmatmul.bf16.gmra.mxu0 %v1809
        %v1889 = vpop.f32.mrf.mxu0
        %v1890 = vadd.f32 %v1861, %v1889
        %v1891 = vpop.f32.mrf.mxu0
        %v1892 = vadd.f32 %v1863, %v1891
        %1893 = vmatmul.bf16.gmra.mxu0 %v1812
        %v1894 = vpop.f32.mrf.mxu0
        %v1895 = vadd.f32 %v1866, %v1894
        %v1896 = vpop.f32.mrf.mxu0
        %v1897 = vadd.f32 %v1868, %v1896
        %1898 = vmatmul.bf16.gmra.mxu0 %v1815
        %v1899 = vpop.f32.mrf.mxu0
        %v1900 = vadd.f32 %v1871, %v1899
        %v1901 = vpop.f32.mrf.mxu0
        %v1902 = vadd.f32 %v1873, %v1901
        %1903 = vdwg.mxu0
        %v1904 = vld [vmem:[%s4] sm:$0x1]
        %v1906 = vperm.slane %v1904, 0
        %v1908 = vadd.f32 %v1885, %v1906
        %v1909 = vadd.f32 %v1887, %v1906
        %v1910 = vadd.f32 %v1890, %v1906
        %v1911 = vadd.f32 %v1892, %v1906
        %v1912 = vadd.f32 %v1895, %v1906
        %v1913 = vadd.f32 %v1897, %v1906
        %v1914 = vadd.f32 %v1900, %v1906
        %v1915 = vadd.f32 %v1902, %v1906
        %1916 = vst.msk [vmem:[%s232] sm:$0xff] %vm708, %v1908
        %1917 = vst.msk [vmem:[%s232 + $0x8] sm:$0xff] %vm708, %v1909
        %1918 = vst.msk [vmem:[%s232 + $0x10] sm:$0xff] %vm708, %v1910
        %1919 = vst.msk [vmem:[%s232 + $0x18] sm:$0xff] %vm708, %v1911
        %1920 = vst.msk [vmem:[%s232 + $0x20] sm:$0xff] %vm708, %v1912
        %1921 = vst.msk [vmem:[%s232 + $0x28] sm:$0xff] %vm708, %v1913
        %1922 = vst.msk [vmem:[%s232 + $0x30] sm:$0xff] %vm708, %v1914
        %1923 = vst.msk [vmem:[%s232 + $0x38] sm:$0xff] %vm708, %v1915
        %s1924 = sand.u32 %s142, 1
        %s1925 = scalar_lea.sflag [#allocation4], %s1924
        %s1926 = sand.u32 %s142, 1
        %s1927 = smul.addr %s1926, 64
        %s1928 = scalar_lea.vmem [#allocation3], %s1927
        // Predicated region
        $region41: #{last_model_forward.9} parent=39 // pred_check
          %p1929 = pneg %p152
        $region42: #{last_model_forward.9} parent=39 // pred_check_branch
          %1931 = sbr.rel (%p1929) target = $region44
        $region43: #{last_model_forward.9} parent=39 // pred_region
          %1933 = vsyncadd %s1925, 0
          %s1934 = smul.addr %s19, 8
          %s1935 = smul.addr %s1934, 8
          %s1936 = scalar_lea.hbm %s5, %s1935
          %s1937 = sshll.u32 %s1928, 4
          %s1938 = int_to_ptr.vmem [resolvable:$true] %s1937
          %s1939 = sshll.u32 %s1936, 4
          %s1940 = int_to_ptr.hbm [resolvable:$true] %s1939
          %1945 = dma.vmem_to_hbm [thread:$0]  %s1938, 1024, %s1940, %s1925, 128, 128, 8
        $region44: #{last_model_forward.9} parent=39 // pred_fallthru
          _
      $region40: #{last_model_forward.9} parent=5 // pred_fallthru
        _
      %p1946 = scmp.le.s32.totalorder 2, %s14
      // Predicated region
      $region45: #{last_model_forward.9} parent=5 // pred_check
        %p1947 = pneg %p1946
      $region46: #{last_model_forward.9} parent=5 // pred_check_branch
        %1949 = sbr.rel (%p1947) target = $region48
      $region47: #{last_model_forward.9} parent=5 // pred_region
        %s1950 = ssub.s32 %s14, 2
        // Predicated region
        $region49: #{last_model_forward.9} parent=47 // pred_check
          %p1951 = pneg %p158
        $region50: #{last_model_forward.9} parent=47 // pred_check_branch
          %1953 = sbr.rel (%p1951) target = $region52
        $region51: #{last_model_forward.9} parent=47 // pred_region
          %s1954 = sand.u32 %s143, 1
          %s1955 = scalar_lea.sflag [#allocation4], %s1954
          %s1956 = sand.u32 %s143, 1
          %s1957 = smul.addr %s1956, 64
          %s1958 = scalar_lea.vmem [#allocation3], %s1957
          %1960 = dma.done %s1955, 1024
        $region52: #{last_model_forward.9} parent=47 // pred_fallthru
          _
      $region48: #{last_model_forward.9} parent=5 // pred_fallthru
        _
    $region6: #{last_model_forward.9} parent=1 // loop_footer
      %s18 = sadd.s32 1, %s14
    $region7: #{last_model_forward.9} parent=1 // loop_footer_branch
      %13 = sbr.rel target = $region3
    $region8: #{last_model_forward.9} parent=1 // loop_exit
      _
    %1961 = vsyncpa [#allocation4], 1
    %s1962 = scalar_lea.sflag [#allocation4], 1
    %1963 = vsyncpa %s1962, 1

</llo_original>
